<compile_context>
chip_gen: v6e
topology: v6e:2x2x1
jax: 0.10.0
libtpu: 0.0.40
codegen_flags: <defaults>
</compile_context>

<pallas_src>
import functools

import jax
import jax.numpy as jnp
from jax.experimental import pallas as pl
from jax.experimental.pallas import tpu as pltpu

NEG_INF = -1e9
_PROJ_ROW_BUDGET = 1024   # max rows of the hoisted projection materialized in f32


def _round_up(x, m):
    return (x + m - 1) // m * m


def bilstm_maxpool_kernel(emb_ref, len_ref, wih_ref, whh_f_ref, whh_b_ref, b_ref,
                          out_ref, pre_f_ref, pre_b_ref, *, proj_chunk):
    """Fused BiLSTM + length-masked max pooling for one batch tile.

    emb_ref : (T, Bt, E)   bf16  time-major word embeddings (batch tile)
    len_ref : (Bt, 1)      i32   valid lengths
    wih_ref : (E, 8H)      bf16  [W_ih_fwd | W_ih_bwd]      (gate order i,f,g,o)
    whh_*   : (H, 4H)      bf16  recurrent weights per direction
    b_ref   : (1, 8H)      f32   [b_fwd | b_bwd]  (b_ih + b_hh)
    out_ref : (Bt, 2H)     f32   [max_t h_fwd | max_t h_bwd]
    pre_*   : (T, Bt, 4H)  bf16  VMEM scratch holding hoisted input projections
    """
    T, Bt, E = emb_ref.shape
    H = whh_f_ref.shape[0]
    G = 4 * H

    lengths = len_ref[...]                                    # (Bt, 1) i32

    # ---- hoisted, fused input projection (off the serial path) -------------
    # One MXU weight-stream over x with the fused (E, 8H) weight; processed in
    # time chunks so the f32 matmul intermediate stays bounded; stored bf16.
    wih = wih_ref[...]                                        # (E, 8H) bf16
    for t0 in range(0, T, proj_chunk):
        tc = min(proj_chunk, T - t0)
        x = emb_ref[pl.ds(t0, tc)].reshape(tc * Bt, E)        # bf16, tile-aligned
        pre = jnp.dot(x, wih, preferred_element_type=jnp.float32).astype(jnp.bfloat16)
        pre_f_ref[pl.ds(t0, tc)] = pre[:, :G].reshape(tc, Bt, G)
        pre_b_ref[pl.ds(t0, tc)] = pre[:, G:].reshape(tc, Bt, G)

    # Recurrent weights / biases loaded & hoisted once.
    whh_f = whh_f_ref[...]
    whh_b = whh_b_ref[...]
    b_f = b_ref[:, :G]                                        # (1, 4H) f32
    b_b = b_ref[:, G:]

    def lstm_cell(pre, bias, h, c, whh):
        # h@W_hh in bf16 operands / f32 accumulate; all elementwise math in f32.
        g = pre.astype(jnp.float32) + bias + jnp.dot(
            h.astype(jnp.bfloat16), whh, preferred_element_type=jnp.float32)
        i = jax.nn.sigmoid(g[:, 0:H])
        f = jax.nn.sigmoid(g[:, H:2 * H])
        gg = jnp.tanh(g[:, 2 * H:3 * H])
        o = jax.nn.sigmoid(g[:, 3 * H:4 * H])
        c_new = f * c + i * gg
        h_new = o * jnp.tanh(c_new)
        return h_new, c_new

    zeros = jnp.zeros((Bt, H), jnp.float32)
    neg = jnp.full((Bt, H), NEG_INF, jnp.float32)

    # ---- fused fwd/bwd recurrence: one loop, two independent chains (ILP) ----
    def step(t, carry):
        hf, cf, mf, hb, cb, mb = carry
        tb = T - 1 - t

        pre_f = pre_f_ref[t]                                  # (Bt, 4H) bf16
        pre_b = pre_b_ref[tb]

        valid_f = t < lengths                                 # (Bt, 1) bool
        valid_b = tb < lengths

        hf_n, cf_n = lstm_cell(pre_f, b_f, hf, cf, whh_f)
        hb_n, cb_n = lstm_cell(pre_b, b_b, hb, cb, whh_b)

        # packed-sequence semantics: state frozen past the sentence length
        hf = jnp.where(valid_f, hf_n, hf)
        cf = jnp.where(valid_f, cf_n, cf)
        mf = jnp.where(valid_f, jnp.maximum(mf, hf_n), mf)

        hb = jnp.where(valid_b, hb_n, hb)
        cb = jnp.where(valid_b, cb_n, cb)
        mb = jnp.where(valid_b, jnp.maximum(mb, hb_n), mb)
        return hf, cf, mf, hb, cb, mb

    carry0 = (zeros, zeros, neg, zeros, zeros, neg)
    # Unroll only when the loop is short AND the carries are small; at large Bt the
    # step is MXU-throughput-bound and unrolling just multiplies live vregs.
    unroll = True if (T <= 16 and Bt <= 64) else 1
    _, _, mf, _, _, mb = jax.lax.fori_loop(0, T, step, carry0, unroll=unroll)

    pooled = jnp.concatenate([mf, mb], axis=-1)               # (Bt, 2H), lane-dense
    out_ref[...] = jnp.where(lengths > 0, pooled, 0.0)        # padded / empty rows -> 0


def _physical_vmem_bytes():
    try:
        return int(pltpu.get_tpu_info().vmem_capacity_bytes)
    except Exception:
        return 64 << 20   # conservative fallback (v7x physical VMEM)


def _vmem_limit_bytes(T, Tc, Bt, E, H, single_buffer_weights):
    bf16, f32 = 2, 4
    G = 4 * H
    wbuf = 1 if single_buffer_weights else 2
    emb_tile = 2 * T * Bt * E * bf16                  # double-buffered emb tile
    weights = wbuf * (E * 2 * G + 2 * H * G) * bf16   # fused W_ih + both W_hh
    biases = wbuf * 2 * G * f32
    out_tile = 2 * Bt * 2 * H * f32
    pregate = 2 * T * Bt * G * bf16                   # bf16 pre-gate scratch (both dirs)
    proj_tmp = Tc * Bt * 2 * G * f32                  # f32 intermediate of one proj chunk
    lens = 2 * Bt * 4
    need = int(1.3 * (emb_tile + weights + biases + out_tile + pregate + proj_tmp + lens))
    need += 4 << 20
    cap = max(_physical_vmem_bytes() - (8 << 20), 32 << 20)   # generation-aware ceiling
    return min(max(need, 32 << 20), cap)


def infersent_encode(token_ids, lengths, params, *, batch_tile=None):
    """Embedding gather (glue) + Pallas fused BiLSTM-maxpool kernel."""
    table = params["embedding"]                               # (V, E) bf16
    emb = jnp.transpose(table[token_ids], (1, 0, 2)).astype(jnp.bfloat16)   # (T, B, E)
    T, B, E = emb.shape
    H = params["whh_f"].shape[0]
    G = 4 * H

    # Batch tile: multiple of 16 (bf16 sublane packing); grows with the batch up to
    # 256 so the recurrent matmul streams many rows through the MXU. On v7x, pick
    # batches large enough that Bp/Bt >= 2 so both TensorCores get a tile.
    if batch_tile is None:
        batch_tile = min(256, _round_up(B, 16))
    Bt = max(16, _round_up(batch_tile, 16))
    Bp = _round_up(B, Bt)
    nb = Bp // Bt

    if Bp != B:
        emb = jnp.pad(emb, ((0, 0), (0, Bp - B), (0, 0)))
        lengths = jnp.pad(lengths, (0, Bp - B))
    len_b1 = lengths.astype(jnp.int32).reshape(Bp, 1)

    # Fuse the per-direction input weights / biases (one weight stream in-kernel).
    wih = jnp.concatenate([params["wih_f"], params["wih_b"]], axis=1)   # (E, 8H) bf16
    b = jnp.concatenate([params["b_f"], params["b_b"]], axis=1)         # (1, 8H) f32

    proj_chunk = max(1, min(T, _PROJ_ROW_BUDGET // Bt))
    kernel = functools.partial(bilstm_maxpool_kernel, proj_chunk=proj_chunk)

    def run(single_buffer_weights):
        # Constant-index weights: single-buffer them to halve resident weight VMEM.
        wmode = (dict(pipeline_mode=pl.Buffered(1))
                 if single_buffer_weights else {})
        grid_spec = pltpu.PrefetchScalarGridSpec(
            num_scalar_prefetch=0,
            grid=(nb,),
            in_specs=[
                pl.BlockSpec((T, Bt, E), lambda i: (0, i, 0)),   # emb: batch-tiled
                pl.BlockSpec((Bt, 1), lambda i: (i, 0)),         # lengths
                pl.BlockSpec((E, 2 * G), lambda i: (0, 0), **wmode),   # fused W_ih
                pl.BlockSpec((H, G), lambda i: (0, 0), **wmode),       # W_hh fwd
                pl.BlockSpec((H, G), lambda i: (0, 0), **wmode),       # W_hh bwd
                pl.BlockSpec((1, 2 * G), lambda i: (0, 0), **wmode),   # fused bias
            ],
            out_specs=pl.BlockSpec((Bt, 2 * H), lambda i: (i, 0)),
            scratch_shapes=[pltpu.VMEM((T, Bt, G), jnp.bfloat16),
                            pltpu.VMEM((T, Bt, G), jnp.bfloat16)],
        )
        out = pl.pallas_call(
            kernel,
            out_shape=jax.ShapeDtypeStruct((Bp, 2 * H), jnp.float32),
            grid_spec=grid_spec,
            compiler_params=pltpu.CompilerParams(
                dimension_semantics=("parallel",),   # independent batch tiles
                vmem_limit_bytes=_vmem_limit_bytes(T, proj_chunk, Bt, E, H,
                                                   single_buffer_weights)),
        )(emb, len_b1, wih, params["whh_f"], params["whh_b"], b)
        return jax.block_until_ready(out)

    try:
        out = run(True)       # preferred: single-buffered resident weights
    except Exception:
        out = run(False)      # fallback: default double buffering
    return out[:B]


def make_params(key, vocab_size, emb_dim, hidden):
    """Deterministic synthetic parameters (same shapes as InferSent's nn.LSTM)."""
    ks = jax.random.split(key, 9)
    s = 0.1

    def rnd(k, shape):
        return jax.random.normal(k, shape, jnp.float32) * s

    # PyTorch stores (4H, in); we keep the transposed layout (in, 4H), gate order i,f,g,o.
    # Matmul operands stored in bf16; biases (added in f32) stay f32.
    return {
        "embedding": rnd(ks[0], (vocab_size, emb_dim)).astype(jnp.bfloat16),
        "wih_f": rnd(ks[1], (emb_dim, 4 * hidden)).astype(jnp.bfloat16),
        "whh_f": rnd(ks[2], (hidden, 4 * hidden)).astype(jnp.bfloat16),
        "b_f":   rnd(ks[3], (1, 4 * hidden)) + rnd(ks[4], (1, 4 * hidden)),  # b_ih + b_hh
        "wih_b": rnd(ks[5], (emb_dim, 4 * hidden)).astype(jnp.bfloat16),
        "whh_b": rnd(ks[6], (hidden, 4 * hidden)).astype(jnp.bfloat16),
        "b_b":   rnd(ks[7], (1, 4 * hidden)) + rnd(ks[8], (1, 4 * hidden)),
    }


def reference_encode(token_ids, lengths, params):
    """Pure-JAX reference of the same math (bf16 matmul operands / bf16 pre-gate
    scratch / f32 gate math), kept in sync with the kernel's numerics."""
    emb = jnp.transpose(params["embedding"][token_ids], (1, 0, 2)).astype(jnp.bfloat16)
    T, B, E = emb.shape
    H = params["whh_f"].shape[0]
    len_b1 = lengths.astype(jnp.int32).reshape(B, 1)

    def run(d):
        wih = params["wih_" + d]; whh = params["whh_" + d]; b = params["b_" + d]
        pre = jnp.dot(emb.reshape(T * B, E), wih, preferred_element_type=jnp.float32)
        pre = pre.astype(jnp.bfloat16).reshape(T, B, 4 * H)   # matches bf16 scratch
        h = jnp.zeros((B, H), jnp.float32)
        c = jnp.zeros((B, H), jnp.float32)
        m = jnp.full((B, H), NEG_INF, jnp.float32)
        ts = range(T) if d == "f" else range(T - 1, -1, -1)
        for t in ts:
            g = pre[t].astype(jnp.float32) + b + jnp.dot(
                h.astype(jnp.bfloat16), whh, preferred_element_type=jnp.float32)
            i = jax.nn.sigmoid(g[:, :H]); f = jax.nn.sigmoid(g[:, H:2 * H])
            gg = jnp.tanh(g[:, 2 * H:3 * H]); o = jax.nn.sigmoid(g[:, 3 * H:4 * H])
            c_new = f * c + i * gg
            h_new = o * jnp.tanh(c_new)
            valid = t < len_b1
            h = jnp.where(valid, h_new, h)
            c = jnp.where(valid, c_new, c)
            m = jnp.where(valid, jnp.maximum(m, h_new), m)
        return m

    out = jnp.concatenate([run("f"), run("b")], axis=-1)
    return jnp.where(len_b1 > 0, out, 0.0)


if __name__ == "__main__":
    # Small, lane-aligned shapes: batch=2, seq=8, word_emb_dim=128, enc_lstm_dim=128, vocab=50
    B, T, E, H, V = 2, 8, 128, 128, 50
    key = jax.random.PRNGKey(0)
    k_tok, k_par = jax.random.split(key)

    token_ids = jax.random.randint(k_tok, (B, T), 0, V, dtype=jnp.int32)
    lengths = jnp.array([T, 5], dtype=jnp.int32)        # second sentence is padded
    params = make_params(k_par, V, E, H)

    out = jax.block_until_ready(infersent_encode(token_ids, lengths, params))
    ref = reference_encode(token_ids, lengths, params)

    assert out.shape == (B, 2 * H)
    assert jnp.allclose(out, ref, rtol=5e-3, atol=5e-3), "mismatch vs pure-JAX reference"

    print("KERNEL_OK")
</pallas_src>

<mosaic_0001>
module attributes {stable_mosaic.version = 11 : i64} {
  func.func @bilstm_maxpool_kernel(%arg0: i32, %arg1: memref<8x16x128xbf16, #tpu.memory_space<vmem>>, %arg2: memref<16x1xi32, #tpu.memory_space<vmem>>, %arg3: memref<128x1024xbf16, #tpu.memory_space<vmem>>, %arg4: memref<128x512xbf16, #tpu.memory_space<vmem>>, %arg5: memref<128x512xbf16, #tpu.memory_space<vmem>>, %arg6: memref<1x1024xf32, #tpu.memory_space<vmem>>, %arg7: memref<16x256xf32, #tpu.memory_space<vmem>>, %arg8: memref<8x16x512xbf16, #tpu.memory_space<vmem>>, %arg9: memref<8x16x512xbf16, #tpu.memory_space<vmem>>) attributes {dimension_semantics = [#tpu.dimension_semantics<parallel>], iteration_bounds = array<i64: 1>, scalar_prefetch = 0 : i64, scratch_operands = 2 : i64, tpu.core_type = #tpu.core_type<tc>, window_params = [{transform_indices = @transform_0, window_bounds = array<i64: 8, 16, 128>}, {transform_indices = @transform_1, window_bounds = array<i64: 16, 1>}, {pipeline_mode = #tpu.pipeline_mode<synchronous>, transform_indices = @transform_2, window_bounds = array<i64: 128, 1024>}, {pipeline_mode = #tpu.pipeline_mode<synchronous>, transform_indices = @transform_3, window_bounds = array<i64: 128, 512>}, {pipeline_mode = #tpu.pipeline_mode<synchronous>, transform_indices = @transform_4, window_bounds = array<i64: 128, 512>}, {pipeline_mode = #tpu.pipeline_mode<synchronous>, transform_indices = @transform_5, window_bounds = array<i64: 1, 1024>}, {transform_indices = @transform_6, window_bounds = array<i64: 16, 256>}]} {
    %c0 = arith.constant 0 : index
    %c0_0 = arith.constant 0 : index
    %0 = vector.load %arg2[%c0, %c0_0] : memref<16x1xi32, #tpu.memory_space<vmem>>, vector<16x1xi32>
    %c0_1 = arith.constant 0 : index
    %c0_2 = arith.constant 0 : index
    %1 = vector.load %arg3[%c0_1, %c0_2] : memref<128x1024xbf16, #tpu.memory_space<vmem>>, vector<128x1024xbf16>
    %c0_3 = arith.constant 0 : index
    %c0_4 = arith.constant 0 : index
    %c0_5 = arith.constant 0 : index
    %2 = vector.load %arg1[%c0_3, %c0_4, %c0_5] : memref<8x16x128xbf16, #tpu.memory_space<vmem>>, vector<8x16x128xbf16>
    %3 = vector.shape_cast %2 : vector<8x16x128xbf16> to vector<128x128xbf16>
    %cst = arith.constant dense<0.000000e+00> : vector<128x1024xf32>
    %4 = tpu.matmul %3, %1, %cst {dimension_numbers = #tpu.dot_dimension_numbers<[1], [0], [0], [1], [0, 0, 1, 1], [], []>} : vector<128x128xbf16>, vector<128x1024xbf16>, vector<128x1024xf32> -> vector<128x1024xf32>
    %5 = arith.truncf %4 : vector<128x1024xf32> to vector<128x1024xbf16>
    %6 = vector.extract_strided_slice %5 {offsets = [0, 0], sizes = [128, 512], strides = [1, 1]} : vector<128x1024xbf16> to vector<128x512xbf16>
    %7 = vector.shape_cast %6 : vector<128x512xbf16> to vector<8x16x512xbf16>
    %c0_6 = arith.constant 0 : index
    %c0_7 = arith.constant 0 : index
    %c0_8 = arith.constant 0 : index
    %8 = vector.load %arg8[%c0_6, %c0_7, %c0_8] : memref<8x16x512xbf16, #tpu.memory_space<vmem>>, vector<8x16x512xbf16>
    tpu.vector_store %arg8[%c0_6, %c0_7, %c0_8], %7 {strides = array<i32>} : memref<8x16x512xbf16, #tpu.memory_space<vmem>>, vector<8x16x512xbf16>,
    %9 = vector.extract_strided_slice %5 {offsets = [0, 512], sizes = [128, 512], strides = [1, 1]} : vector<128x1024xbf16> to vector<128x512xbf16>
    %10 = vector.shape_cast %9 : vector<128x512xbf16> to vector<8x16x512xbf16>
    %c0_9 = arith.constant 0 : index
    %c0_10 = arith.constant 0 : index
    %c0_11 = arith.constant 0 : index
    %11 = vector.load %arg9[%c0_9, %c0_10, %c0_11] : memref<8x16x512xbf16, #tpu.memory_space<vmem>>, vector<8x16x512xbf16>
    tpu.vector_store %arg9[%c0_9, %c0_10, %c0_11], %10 {strides = array<i32>} : memref<8x16x512xbf16, #tpu.memory_space<vmem>>, vector<8x16x512xbf16>,
    %c0_12 = arith.constant 0 : index
    %c0_13 = arith.constant 0 : index
    %12 = vector.load %arg4[%c0_12, %c0_13] : memref<128x512xbf16, #tpu.memory_space<vmem>>, vector<128x512xbf16>
    %c0_14 = arith.constant 0 : index
    %c0_15 = arith.constant 0 : index
    %13 = vector.load %arg5[%c0_14, %c0_15] : memref<128x512xbf16, #tpu.memory_space<vmem>>, vector<128x512xbf16>
    %c0_16 = arith.constant 0 : index
    %c0_17 = arith.constant 0 : index
    %14 = vector.load %arg6[%c0_16, %c0_17] : memref<1x1024xf32, #tpu.memory_space<vmem>>, vector<1x512xf32>
    %c0_18 = arith.constant 0 : index
    %c512 = arith.constant 512 : index
    %15 = vector.load %arg6[%c0_18, %c512] : memref<1x1024xf32, #tpu.memory_space<vmem>>, vector<1x512xf32>
    %cst_19 = arith.constant 0.000000e+00 : f32
    %16 = vector.broadcast %cst_19 : f32 to vector<16x128xf32>
    %cst_20 = arith.constant -1.000000e+09 : f32
    %17 = vector.broadcast %cst_20 : f32 to vector<16x128xf32>
    %c0_i32 = arith.constant 0 : i32
    %c7_i32 = arith.constant 7 : i32
    %18 = arith.subi %c7_i32, %c0_i32 : i32
    %19 = arith.index_cast %c0_i32 : i32 to index
    %c0_21 = arith.constant 0 : index
    %c0_22 = arith.constant 0 : index
    %20 = vector.load %arg8[%19, %c0_21, %c0_22] : memref<8x16x512xbf16, #tpu.memory_space<vmem>>, vector<1x16x512xbf16>
    %21 = vector.shape_cast %20 : vector<1x16x512xbf16> to vector<16x512xbf16>
    %22 = arith.index_cast %18 : i32 to index
    %c0_23 = arith.constant 0 : index
    %c0_24 = arith.constant 0 : index
    %23 = vector.load %arg9[%22, %c0_23, %c0_24] : memref<8x16x512xbf16, #tpu.memory_space<vmem>>, vector<1x16x512xbf16>
    %24 = vector.shape_cast %23 : vector<1x16x512xbf16> to vector<16x512xbf16>
    %25 = vector.broadcast %c0_i32 : i32 to vector<16x1xi32>
    %26 = arith.cmpi slt, %25, %0 : vector<16x1xi32>
    %27 = vector.broadcast %18 : i32 to vector<16x1xi32>
    %28 = arith.cmpi slt, %27, %0 : vector<16x1xi32>
    %29 = arith.extf %21 : vector<16x512xbf16> to vector<16x512xf32>
    %30 = vector.broadcast %14 : vector<1x512xf32> to vector<16x512xf32>
    %31 = arith.addf %29, %30 : vector<16x512xf32>
    %32 = arith.truncf %16 : vector<16x128xf32> to vector<16x128xbf16>
    %cst_25 = arith.constant dense<0.000000e+00> : vector<16x512xf32>
    %33 = tpu.matmul %32, %12, %cst_25 {dimension_numbers = #tpu.dot_dimension_numbers<[1], [0], [0], [1], [0, 0, 1, 1], [], []>} : vector<16x128xbf16>, vector<128x512xbf16>, vector<16x512xf32> -> vector<16x512xf32>
    %34 = arith.addf %31, %33 : vector<16x512xf32>
    %35 = vector.extract_strided_slice %34 {offsets = [0, 0], sizes = [16, 128], strides = [1, 1]} : vector<16x512xf32> to vector<16x128xf32>
    %36 = arith.negf %35 : vector<16x128xf32>
    %37 = math.exp %36 : vector<16x128xf32>
    %cst_26 = arith.constant 1.000000e+00 : f32
    %38 = vector.broadcast %cst_26 : f32 to vector<16x128xf32>
    %39 = arith.addf %38, %37 : vector<16x128xf32>
    %40 = arith.divf %38, %39 : vector<16x128xf32>
    %41 = vector.extract_strided_slice %34 {offsets = [0, 128], sizes = [16, 128], strides = [1, 1]} : vector<16x512xf32> to vector<16x128xf32>
    %42 = arith.negf %41 : vector<16x128xf32>
    %43 = math.exp %42 : vector<16x128xf32>
    %cst_27 = arith.constant 1.000000e+00 : f32
    %44 = vector.broadcast %cst_27 : f32 to vector<16x128xf32>
    %45 = arith.addf %44, %43 : vector<16x128xf32>
    %46 = arith.divf %44, %45 : vector<16x128xf32>
    %47 = vector.extract_strided_slice %34 {offsets = [0, 256], sizes = [16, 128], strides = [1, 1]} : vector<16x512xf32> to vector<16x128xf32>
    %48 = math.tanh %47 : vector<16x128xf32>
    %49 = vector.extract_strided_slice %34 {offsets = [0, 384], sizes = [16, 128], strides = [1, 1]} : vector<16x512xf32> to vector<16x128xf32>
    %50 = arith.negf %49 : vector<16x128xf32>
    %51 = math.exp %50 : vector<16x128xf32>
    %cst_28 = arith.constant 1.000000e+00 : f32
    %52 = vector.broadcast %cst_28 : f32 to vector<16x128xf32>
    %53 = arith.addf %52, %51 : vector<16x128xf32>
    %54 = arith.divf %52, %53 : vector<16x128xf32>
    %55 = arith.mulf %46, %16 : vector<16x128xf32>
    %56 = arith.mulf %40, %48 : vector<16x128xf32>
    %57 = arith.addf %55, %56 : vector<16x128xf32>
    %58 = math.tanh %57 : vector<16x128xf32>
    %59 = arith.mulf %54, %58 : vector<16x128xf32>
    %60 = arith.extf %24 : vector<16x512xbf16> to vector<16x512xf32>
    %61 = vector.broadcast %15 : vector<1x512xf32> to vector<16x512xf32>
    %62 = arith.addf %60, %61 : vector<16x512xf32>
    %63 = arith.truncf %16 : vector<16x128xf32> to vector<16x128xbf16>
    %cst_29 = arith.constant dense<0.000000e+00> : vector<16x512xf32>
    %64 = tpu.matmul %63, %13, %cst_29 {dimension_numbers = #tpu.dot_dimension_numbers<[1], [0], [0], [1], [0, 0, 1, 1], [], []>} : vector<16x128xbf16>, vector<128x512xbf16>, vector<16x512xf32> -> vector<16x512xf32>
    %65 = arith.addf %62, %64 : vector<16x512xf32>
    %66 = vector.extract_strided_slice %65 {offsets = [0, 0], sizes = [16, 128], strides = [1, 1]} : vector<16x512xf32> to vector<16x128xf32>
    %67 = arith.negf %66 : vector<16x128xf32>
    %68 = math.exp %67 : vector<16x128xf32>
    %cst_30 = arith.constant 1.000000e+00 : f32
    %69 = vector.broadcast %cst_30 : f32 to vector<16x128xf32>
    %70 = arith.addf %69, %68 : vector<16x128xf32>
    %71 = arith.divf %69, %70 : vector<16x128xf32>
    %72 = vector.extract_strided_slice %65 {offsets = [0, 128], sizes = [16, 128], strides = [1, 1]} : vector<16x512xf32> to vector<16x128xf32>
    %73 = arith.negf %72 : vector<16x128xf32>
    %74 = math.exp %73 : vector<16x128xf32>
    %cst_31 = arith.constant 1.000000e+00 : f32
    %75 = vector.broadcast %cst_31 : f32 to vector<16x128xf32>
    %76 = arith.addf %75, %74 : vector<16x128xf32>
    %77 = arith.divf %75, %76 : vector<16x128xf32>
    %78 = vector.extract_strided_slice %65 {offsets = [0, 256], sizes = [16, 128], strides = [1, 1]} : vector<16x512xf32> to vector<16x128xf32>
    %79 = math.tanh %78 : vector<16x128xf32>
    %80 = vector.extract_strided_slice %65 {offsets = [0, 384], sizes = [16, 128], strides = [1, 1]} : vector<16x512xf32> to vector<16x128xf32>
    %81 = arith.negf %80 : vector<16x128xf32>
    %82 = math.exp %81 : vector<16x128xf32>
    %cst_32 = arith.constant 1.000000e+00 : f32
    %83 = vector.broadcast %cst_32 : f32 to vector<16x128xf32>
    %84 = arith.addf %83, %82 : vector<16x128xf32>
    %85 = arith.divf %83, %84 : vector<16x128xf32>
    %86 = arith.mulf %77, %16 : vector<16x128xf32>
    %87 = arith.mulf %71, %79 : vector<16x128xf32>
    %88 = arith.addf %86, %87 : vector<16x128xf32>
    %89 = math.tanh %88 : vector<16x128xf32>
    %90 = arith.mulf %85, %89 : vector<16x128xf32>
    %91 = vector.shape_cast %26 : vector<16x1xi1> to vector<16x1xi1>
    %92 = vector.broadcast %91 : vector<16x1xi1> to vector<16x128xi1>
    %93 = arith.select %92, %59, %16 : vector<16x128xi1>, vector<16x128xf32>
    %94 = vector.shape_cast %26 : vector<16x1xi1> to vector<16x1xi1>
    %95 = vector.broadcast %94 : vector<16x1xi1> to vector<16x128xi1>
    %96 = arith.select %95, %57, %16 : vector<16x128xi1>, vector<16x128xf32>
    %97 = arith.maximumf %17, %59 : vector<16x128xf32>
    %98 = vector.shape_cast %26 : vector<16x1xi1> to vector<16x1xi1>
    %99 = vector.broadcast %98 : vector<16x1xi1> to vector<16x128xi1>
    %100 = arith.select %99, %97, %17 : vector<16x128xi1>, vector<16x128xf32>
    %101 = vector.shape_cast %28 : vector<16x1xi1> to vector<16x1xi1>
    %102 = vector.broadcast %101 : vector<16x1xi1> to vector<16x128xi1>
    %103 = arith.select %102, %90, %16 : vector<16x128xi1>, vector<16x128xf32>
    %104 = vector.shape_cast %28 : vector<16x1xi1> to vector<16x1xi1>
    %105 = vector.broadcast %104 : vector<16x1xi1> to vector<16x128xi1>
    %106 = arith.select %105, %88, %16 : vector<16x128xi1>, vector<16x128xf32>
    %107 = arith.maximumf %17, %90 : vector<16x128xf32>
    %108 = vector.shape_cast %28 : vector<16x1xi1> to vector<16x1xi1>
    %109 = vector.broadcast %108 : vector<16x1xi1> to vector<16x128xi1>
    %110 = arith.select %109, %107, %17 : vector<16x128xi1>, vector<16x128xf32>
    %c1_i32 = arith.constant 1 : i32
    %c7_i32_33 = arith.constant 7 : i32
    %111 = arith.subi %c7_i32_33, %c1_i32 : i32
    %112 = arith.index_cast %c1_i32 : i32 to index
    %c0_34 = arith.constant 0 : index
    %c0_35 = arith.constant 0 : index
    %113 = vector.load %arg8[%112, %c0_34, %c0_35] : memref<8x16x512xbf16, #tpu.memory_space<vmem>>, vector<1x16x512xbf16>
    %114 = vector.shape_cast %113 : vector<1x16x512xbf16> to vector<16x512xbf16>
    %115 = arith.index_cast %111 : i32 to index
    %c0_36 = arith.constant 0 : index
    %c0_37 = arith.constant 0 : index
    %116 = vector.load %arg9[%115, %c0_36, %c0_37] : memref<8x16x512xbf16, #tpu.memory_space<vmem>>, vector<1x16x512xbf16>
    %117 = vector.shape_cast %116 : vector<1x16x512xbf16> to vector<16x512xbf16>
    %118 = vector.broadcast %c1_i32 : i32 to vector<16x1xi32>
    %119 = arith.cmpi slt, %118, %0 : vector<16x1xi32>
    %120 = vector.broadcast %111 : i32 to vector<16x1xi32>
    %121 = arith.cmpi slt, %120, %0 : vector<16x1xi32>
    %122 = arith.extf %114 : vector<16x512xbf16> to vector<16x512xf32>
    %123 = vector.broadcast %14 : vector<1x512xf32> to vector<16x512xf32>
    %124 = arith.addf %122, %123 : vector<16x512xf32>
    %125 = arith.truncf %93 : vector<16x128xf32> to vector<16x128xbf16>
    %cst_38 = arith.constant dense<0.000000e+00> : vector<16x512xf32>
    %126 = tpu.matmul %125, %12, %cst_38 {dimension_numbers = #tpu.dot_dimension_numbers<[1], [0], [0], [1], [0, 0, 1, 1], [], []>} : vector<16x128xbf16>, vector<128x512xbf16>, vector<16x512xf32> -> vector<16x512xf32>
    %127 = arith.addf %124, %126 : vector<16x512xf32>
    %128 = vector.extract_strided_slice %127 {offsets = [0, 0], sizes = [16, 128], strides = [1, 1]} : vector<16x512xf32> to vector<16x128xf32>
    %129 = arith.negf %128 : vector<16x128xf32>
    %130 = math.exp %129 : vector<16x128xf32>
    %cst_39 = arith.constant 1.000000e+00 : f32
    %131 = vector.broadcast %cst_39 : f32 to vector<16x128xf32>
    %132 = arith.addf %131, %130 : vector<16x128xf32>
    %133 = arith.divf %131, %132 : vector<16x128xf32>
    %134 = vector.extract_strided_slice %127 {offsets = [0, 128], sizes = [16, 128], strides = [1, 1]} : vector<16x512xf32> to vector<16x128xf32>
    %135 = arith.negf %134 : vector<16x128xf32>
    %136 = math.exp %135 : vector<16x128xf32>
    %cst_40 = arith.constant 1.000000e+00 : f32
    %137 = vector.broadcast %cst_40 : f32 to vector<16x128xf32>
    %138 = arith.addf %137, %136 : vector<16x128xf32>
    %139 = arith.divf %137, %138 : vector<16x128xf32>
    %140 = vector.extract_strided_slice %127 {offsets = [0, 256], sizes = [16, 128], strides = [1, 1]} : vector<16x512xf32> to vector<16x128xf32>
    %141 = math.tanh %140 : vector<16x128xf32>
    %142 = vector.extract_strided_slice %127 {offsets = [0, 384], sizes = [16, 128], strides = [1, 1]} : vector<16x512xf32> to vector<16x128xf32>
    %143 = arith.negf %142 : vector<16x128xf32>
    %144 = math.exp %143 : vector<16x128xf32>
    %cst_41 = arith.constant 1.000000e+00 : f32
    %145 = vector.broadcast %cst_41 : f32 to vector<16x128xf32>
    %146 = arith.addf %145, %144 : vector<16x128xf32>
    %147 = arith.divf %145, %146 : vector<16x128xf32>
    %148 = arith.mulf %139, %96 : vector<16x128xf32>
    %149 = arith.mulf %133, %141 : vector<16x128xf32>
    %150 = arith.addf %148, %149 : vector<16x128xf32>
    %151 = math.tanh %150 : vector<16x128xf32>
    %152 = arith.mulf %147, %151 : vector<16x128xf32>
    %153 = arith.extf %117 : vector<16x512xbf16> to vector<16x512xf32>
    %154 = vector.broadcast %15 : vector<1x512xf32> to vector<16x512xf32>
    %155 = arith.addf %153, %154 : vector<16x512xf32>
    %156 = arith.truncf %103 : vector<16x128xf32> to vector<16x128xbf16>
    %cst_42 = arith.constant dense<0.000000e+00> : vector<16x512xf32>
    %157 = tpu.matmul %156, %13, %cst_42 {dimension_numbers = #tpu.dot_dimension_numbers<[1], [0], [0], [1], [0, 0, 1, 1], [], []>} : vector<16x128xbf16>, vector<128x512xbf16>, vector<16x512xf32> -> vector<16x512xf32>
    %158 = arith.addf %155, %157 : vector<16x512xf32>
    %159 = vector.extract_strided_slice %158 {offsets = [0, 0], sizes = [16, 128], strides = [1, 1]} : vector<16x512xf32> to vector<16x128xf32>
    %160 = arith.negf %159 : vector<16x128xf32>
    %161 = math.exp %160 : vector<16x128xf32>
    %cst_43 = arith.constant 1.000000e+00 : f32
    %162 = vector.broadcast %cst_43 : f32 to vector<16x128xf32>
    %163 = arith.addf %162, %161 : vector<16x128xf32>
    %164 = arith.divf %162, %163 : vector<16x128xf32>
    %165 = vector.extract_strided_slice %158 {offsets = [0, 128], sizes = [16, 128], strides = [1, 1]} : vector<16x512xf32> to vector<16x128xf32>
    %166 = arith.negf %165 : vector<16x128xf32>
    %167 = math.exp %166 : vector<16x128xf32>
    %cst_44 = arith.constant 1.000000e+00 : f32
    %168 = vector.broadcast %cst_44 : f32 to vector<16x128xf32>
    %169 = arith.addf %168, %167 : vector<16x128xf32>
    %170 = arith.divf %168, %169 : vector<16x128xf32>
    %171 = vector.extract_strided_slice %158 {offsets = [0, 256], sizes = [16, 128], strides = [1, 1]} : vector<16x512xf32> to vector<16x128xf32>
    %172 = math.tanh %171 : vector<16x128xf32>
    %173 = vector.extract_strided_slice %158 {offsets = [0, 384], sizes = [16, 128], strides = [1, 1]} : vector<16x512xf32> to vector<16x128xf32>
    %174 = arith.negf %173 : vector<16x128xf32>
    %175 = math.exp %174 : vector<16x128xf32>
    %cst_45 = arith.constant 1.000000e+00 : f32
    %176 = vector.broadcast %cst_45 : f32 to vector<16x128xf32>
    %177 = arith.addf %176, %175 : vector<16x128xf32>
    %178 = arith.divf %176, %177 : vector<16x128xf32>
    %179 = arith.mulf %170, %106 : vector<16x128xf32>
    %180 = arith.mulf %164, %172 : vector<16x128xf32>
    %181 = arith.addf %179, %180 : vector<16x128xf32>
    %182 = math.tanh %181 : vector<16x128xf32>
    %183 = arith.mulf %178, %182 : vector<16x128xf32>
    %184 = vector.shape_cast %119 : vector<16x1xi1> to vector<16x1xi1>
    %185 = vector.broadcast %184 : vector<16x1xi1> to vector<16x128xi1>
    %186 = arith.select %185, %152, %93 : vector<16x128xi1>, vector<16x128xf32>
    %187 = vector.shape_cast %119 : vector<16x1xi1> to vector<16x1xi1>
    %188 = vector.broadcast %187 : vector<16x1xi1> to vector<16x128xi1>
    %189 = arith.select %188, %150, %96 : vector<16x128xi1>, vector<16x128xf32>
    %190 = arith.maximumf %100, %152 : vector<16x128xf32>
    %191 = vector.shape_cast %119 : vector<16x1xi1> to vector<16x1xi1>
    %192 = vector.broadcast %191 : vector<16x1xi1> to vector<16x128xi1>
    %193 = arith.select %192, %190, %100 : vector<16x128xi1>, vector<16x128xf32>
    %194 = vector.shape_cast %121 : vector<16x1xi1> to vector<16x1xi1>
    %195 = vector.broadcast %194 : vector<16x1xi1> to vector<16x128xi1>
    %196 = arith.select %195, %183, %103 : vector<16x128xi1>, vector<16x128xf32>
    %197 = vector.shape_cast %121 : vector<16x1xi1> to vector<16x1xi1>
    %198 = vector.broadcast %197 : vector<16x1xi1> to vector<16x128xi1>
    %199 = arith.select %198, %181, %106 : vector<16x128xi1>, vector<16x128xf32>
    %200 = arith.maximumf %110, %183 : vector<16x128xf32>
    %201 = vector.shape_cast %121 : vector<16x1xi1> to vector<16x1xi1>
    %202 = vector.broadcast %201 : vector<16x1xi1> to vector<16x128xi1>
    %203 = arith.select %202, %200, %110 : vector<16x128xi1>, vector<16x128xf32>
    %c2_i32 = arith.constant 2 : i32
    %c7_i32_46 = arith.constant 7 : i32
    %204 = arith.subi %c7_i32_46, %c2_i32 : i32
    %205 = arith.index_cast %c2_i32 : i32 to index
    %c0_47 = arith.constant 0 : index
    %c0_48 = arith.constant 0 : index
    %206 = vector.load %arg8[%205, %c0_47, %c0_48] : memref<8x16x512xbf16, #tpu.memory_space<vmem>>, vector<1x16x512xbf16>
    %207 = vector.shape_cast %206 : vector<1x16x512xbf16> to vector<16x512xbf16>
    %208 = arith.index_cast %204 : i32 to index
    %c0_49 = arith.constant 0 : index
    %c0_50 = arith.constant 0 : index
    %209 = vector.load %arg9[%208, %c0_49, %c0_50] : memref<8x16x512xbf16, #tpu.memory_space<vmem>>, vector<1x16x512xbf16>
    %210 = vector.shape_cast %209 : vector<1x16x512xbf16> to vector<16x512xbf16>
    %211 = vector.broadcast %c2_i32 : i32 to vector<16x1xi32>
    %212 = arith.cmpi slt, %211, %0 : vector<16x1xi32>
    %213 = vector.broadcast %204 : i32 to vector<16x1xi32>
    %214 = arith.cmpi slt, %213, %0 : vector<16x1xi32>
    %215 = arith.extf %207 : vector<16x512xbf16> to vector<16x512xf32>
    %216 = vector.broadcast %14 : vector<1x512xf32> to vector<16x512xf32>
    %217 = arith.addf %215, %216 : vector<16x512xf32>
    %218 = arith.truncf %186 : vector<16x128xf32> to vector<16x128xbf16>
    %cst_51 = arith.constant dense<0.000000e+00> : vector<16x512xf32>
    %219 = tpu.matmul %218, %12, %cst_51 {dimension_numbers = #tpu.dot_dimension_numbers<[1], [0], [0], [1], [0, 0, 1, 1], [], []>} : vector<16x128xbf16>, vector<128x512xbf16>, vector<16x512xf32> -> vector<16x512xf32>
    %220 = arith.addf %217, %219 : vector<16x512xf32>
    %221 = vector.extract_strided_slice %220 {offsets = [0, 0], sizes = [16, 128], strides = [1, 1]} : vector<16x512xf32> to vector<16x128xf32>
    %222 = arith.negf %221 : vector<16x128xf32>
    %223 = math.exp %222 : vector<16x128xf32>
    %cst_52 = arith.constant 1.000000e+00 : f32
    %224 = vector.broadcast %cst_52 : f32 to vector<16x128xf32>
    %225 = arith.addf %224, %223 : vector<16x128xf32>
    %226 = arith.divf %224, %225 : vector<16x128xf32>
    %227 = vector.extract_strided_slice %220 {offsets = [0, 128], sizes = [16, 128], strides = [1, 1]} : vector<16x512xf32> to vector<16x128xf32>
    %228 = arith.negf %227 : vector<16x128xf32>
    %229 = math.exp %228 : vector<16x128xf32>
    %cst_53 = arith.constant 1.000000e+00 : f32
    %230 = vector.broadcast %cst_53 : f32 to vector<16x128xf32>
    %231 = arith.addf %230, %229 : vector<16x128xf32>
    %232 = arith.divf %230, %231 : vector<16x128xf32>
    %233 = vector.extract_strided_slice %220 {offsets = [0, 256], sizes = [16, 128], strides = [1, 1]} : vector<16x512xf32> to vector<16x128xf32>
    %234 = math.tanh %233 : vector<16x128xf32>
    %235 = vector.extract_strided_slice %220 {offsets = [0, 384], sizes = [16, 128], strides = [1, 1]} : vector<16x512xf32> to vector<16x128xf32>
    %236 = arith.negf %235 : vector<16x128xf32>
    %237 = math.exp %236 : vector<16x128xf32>
    %cst_54 = arith.constant 1.000000e+00 : f32
    %238 = vector.broadcast %cst_54 : f32 to vector<16x128xf32>
    %239 = arith.addf %238, %237 : vector<16x128xf32>
    %240 = arith.divf %238, %239 : vector<16x128xf32>
    %241 = arith.mulf %232, %189 : vector<16x128xf32>
    %242 = arith.mulf %226, %234 : vector<16x128xf32>
    %243 = arith.addf %241, %242 : vector<16x128xf32>
    %244 = math.tanh %243 : vector<16x128xf32>
    %245 = arith.mulf %240, %244 : vector<16x128xf32>
    %246 = arith.extf %210 : vector<16x512xbf16> to vector<16x512xf32>
    %247 = vector.broadcast %15 : vector<1x512xf32> to vector<16x512xf32>
    %248 = arith.addf %246, %247 : vector<16x512xf32>
    %249 = arith.truncf %196 : vector<16x128xf32> to vector<16x128xbf16>
    %cst_55 = arith.constant dense<0.000000e+00> : vector<16x512xf32>
    %250 = tpu.matmul %249, %13, %cst_55 {dimension_numbers = #tpu.dot_dimension_numbers<[1], [0], [0], [1], [0, 0, 1, 1], [], []>} : vector<16x128xbf16>, vector<128x512xbf16>, vector<16x512xf32> -> vector<16x512xf32>
    %251 = arith.addf %248, %250 : vector<16x512xf32>
    %252 = vector.extract_strided_slice %251 {offsets = [0, 0], sizes = [16, 128], strides = [1, 1]} : vector<16x512xf32> to vector<16x128xf32>
    %253 = arith.negf %252 : vector<16x128xf32>
    %254 = math.exp %253 : vector<16x128xf32>
    %cst_56 = arith.constant 1.000000e+00 : f32
    %255 = vector.broadcast %cst_56 : f32 to vector<16x128xf32>
    %256 = arith.addf %255, %254 : vector<16x128xf32>
    %257 = arith.divf %255, %256 : vector<16x128xf32>
    %258 = vector.extract_strided_slice %251 {offsets = [0, 128], sizes = [16, 128], strides = [1, 1]} : vector<16x512xf32> to vector<16x128xf32>
    %259 = arith.negf %258 : vector<16x128xf32>
    %260 = math.exp %259 : vector<16x128xf32>
    %cst_57 = arith.constant 1.000000e+00 : f32
    %261 = vector.broadcast %cst_57 : f32 to vector<16x128xf32>
    %262 = arith.addf %261, %260 : vector<16x128xf32>
    %263 = arith.divf %261, %262 : vector<16x128xf32>
    %264 = vector.extract_strided_slice %251 {offsets = [0, 256], sizes = [16, 128], strides = [1, 1]} : vector<16x512xf32> to vector<16x128xf32>
    %265 = math.tanh %264 : vector<16x128xf32>
    %266 = vector.extract_strided_slice %251 {offsets = [0, 384], sizes = [16, 128], strides = [1, 1]} : vector<16x512xf32> to vector<16x128xf32>
    %267 = arith.negf %266 : vector<16x128xf32>
    %268 = math.exp %267 : vector<16x128xf32>
    %cst_58 = arith.constant 1.000000e+00 : f32
    %269 = vector.broadcast %cst_58 : f32 to vector<16x128xf32>
    %270 = arith.addf %269, %268 : vector<16x128xf32>
    %271 = arith.divf %269, %270 : vector<16x128xf32>
    %272 = arith.mulf %263, %199 : vector<16x128xf32>
    %273 = arith.mulf %257, %265 : vector<16x128xf32>
    %274 = arith.addf %272, %273 : vector<16x128xf32>
    %275 = math.tanh %274 : vector<16x128xf32>
    %276 = arith.mulf %271, %275 : vector<16x128xf32>
    %277 = vector.shape_cast %212 : vector<16x1xi1> to vector<16x1xi1>
    %278 = vector.broadcast %277 : vector<16x1xi1> to vector<16x128xi1>
    %279 = arith.select %278, %245, %186 : vector<16x128xi1>, vector<16x128xf32>
    %280 = vector.shape_cast %212 : vector<16x1xi1> to vector<16x1xi1>
    %281 = vector.broadcast %280 : vector<16x1xi1> to vector<16x128xi1>
    %282 = arith.select %281, %243, %189 : vector<16x128xi1>, vector<16x128xf32>
    %283 = arith.maximumf %193, %245 : vector<16x128xf32>
    %284 = vector.shape_cast %212 : vector<16x1xi1> to vector<16x1xi1>
    %285 = vector.broadcast %284 : vector<16x1xi1> to vector<16x128xi1>
    %286 = arith.select %285, %283, %193 : vector<16x128xi1>, vector<16x128xf32>
    %287 = vector.shape_cast %214 : vector<16x1xi1> to vector<16x1xi1>
    %288 = vector.broadcast %287 : vector<16x1xi1> to vector<16x128xi1>
    %289 = arith.select %288, %276, %196 : vector<16x128xi1>, vector<16x128xf32>
    %290 = vector.shape_cast %214 : vector<16x1xi1> to vector<16x1xi1>
    %291 = vector.broadcast %290 : vector<16x1xi1> to vector<16x128xi1>
    %292 = arith.select %291, %274, %199 : vector<16x128xi1>, vector<16x128xf32>
    %293 = arith.maximumf %203, %276 : vector<16x128xf32>
    %294 = vector.shape_cast %214 : vector<16x1xi1> to vector<16x1xi1>
    %295 = vector.broadcast %294 : vector<16x1xi1> to vector<16x128xi1>
    %296 = arith.select %295, %293, %203 : vector<16x128xi1>, vector<16x128xf32>
    %c3_i32 = arith.constant 3 : i32
    %c7_i32_59 = arith.constant 7 : i32
    %297 = arith.subi %c7_i32_59, %c3_i32 : i32
    %298 = arith.index_cast %c3_i32 : i32 to index
    %c0_60 = arith.constant 0 : index
    %c0_61 = arith.constant 0 : index
    %299 = vector.load %arg8[%298, %c0_60, %c0_61] : memref<8x16x512xbf16, #tpu.memory_space<vmem>>, vector<1x16x512xbf16>
    %300 = vector.shape_cast %299 : vector<1x16x512xbf16> to vector<16x512xbf16>
    %301 = arith.index_cast %297 : i32 to index
    %c0_62 = arith.constant 0 : index
    %c0_63 = arith.constant 0 : index
    %302 = vector.load %arg9[%301, %c0_62, %c0_63] : memref<8x16x512xbf16, #tpu.memory_space<vmem>>, vector<1x16x512xbf16>
    %303 = vector.shape_cast %302 : vector<1x16x512xbf16> to vector<16x512xbf16>
    %304 = vector.broadcast %c3_i32 : i32 to vector<16x1xi32>
    %305 = arith.cmpi slt, %304, %0 : vector<16x1xi32>
    %306 = vector.broadcast %297 : i32 to vector<16x1xi32>
    %307 = arith.cmpi slt, %306, %0 : vector<16x1xi32>
    %308 = arith.extf %300 : vector<16x512xbf16> to vector<16x512xf32>
    %309 = vector.broadcast %14 : vector<1x512xf32> to vector<16x512xf32>
    %310 = arith.addf %308, %309 : vector<16x512xf32>
    %311 = arith.truncf %279 : vector<16x128xf32> to vector<16x128xbf16>
    %cst_64 = arith.constant dense<0.000000e+00> : vector<16x512xf32>
    %312 = tpu.matmul %311, %12, %cst_64 {dimension_numbers = #tpu.dot_dimension_numbers<[1], [0], [0], [1], [0, 0, 1, 1], [], []>} : vector<16x128xbf16>, vector<128x512xbf16>, vector<16x512xf32> -> vector<16x512xf32>
    %313 = arith.addf %310, %312 : vector<16x512xf32>
    %314 = vector.extract_strided_slice %313 {offsets = [0, 0], sizes = [16, 128], strides = [1, 1]} : vector<16x512xf32> to vector<16x128xf32>
    %315 = arith.negf %314 : vector<16x128xf32>
    %316 = math.exp %315 : vector<16x128xf32>
    %cst_65 = arith.constant 1.000000e+00 : f32
    %317 = vector.broadcast %cst_65 : f32 to vector<16x128xf32>
    %318 = arith.addf %317, %316 : vector<16x128xf32>
    %319 = arith.divf %317, %318 : vector<16x128xf32>
    %320 = vector.extract_strided_slice %313 {offsets = [0, 128], sizes = [16, 128], strides = [1, 1]} : vector<16x512xf32> to vector<16x128xf32>
    %321 = arith.negf %320 : vector<16x128xf32>
    %322 = math.exp %321 : vector<16x128xf32>
    %cst_66 = arith.constant 1.000000e+00 : f32
    %323 = vector.broadcast %cst_66 : f32 to vector<16x128xf32>
    %324 = arith.addf %323, %322 : vector<16x128xf32>
    %325 = arith.divf %323, %324 : vector<16x128xf32>
    %326 = vector.extract_strided_slice %313 {offsets = [0, 256], sizes = [16, 128], strides = [1, 1]} : vector<16x512xf32> to vector<16x128xf32>
    %327 = math.tanh %326 : vector<16x128xf32>
    %328 = vector.extract_strided_slice %313 {offsets = [0, 384], sizes = [16, 128], strides = [1, 1]} : vector<16x512xf32> to vector<16x128xf32>
    %329 = arith.negf %328 : vector<16x128xf32>
    %330 = math.exp %329 : vector<16x128xf32>
    %cst_67 = arith.constant 1.000000e+00 : f32
    %331 = vector.broadcast %cst_67 : f32 to vector<16x128xf32>
    %332 = arith.addf %331, %330 : vector<16x128xf32>
    %333 = arith.divf %331, %332 : vector<16x128xf32>
    %334 = arith.mulf %325, %282 : vector<16x128xf32>
    %335 = arith.mulf %319, %327 : vector<16x128xf32>
    %336 = arith.addf %334, %335 : vector<16x128xf32>
    %337 = math.tanh %336 : vector<16x128xf32>
    %338 = arith.mulf %333, %337 : vector<16x128xf32>
    %339 = arith.extf %303 : vector<16x512xbf16> to vector<16x512xf32>
    %340 = vector.broadcast %15 : vector<1x512xf32> to vector<16x512xf32>
    %341 = arith.addf %339, %340 : vector<16x512xf32>
    %342 = arith.truncf %289 : vector<16x128xf32> to vector<16x128xbf16>
    %cst_68 = arith.constant dense<0.000000e+00> : vector<16x512xf32>
    %343 = tpu.matmul %342, %13, %cst_68 {dimension_numbers = #tpu.dot_dimension_numbers<[1], [0], [0], [1], [0, 0, 1, 1], [], []>} : vector<16x128xbf16>, vector<128x512xbf16>, vector<16x512xf32> -> vector<16x512xf32>
    %344 = arith.addf %341, %343 : vector<16x512xf32>
    %345 = vector.extract_strided_slice %344 {offsets = [0, 0], sizes = [16, 128], strides = [1, 1]} : vector<16x512xf32> to vector<16x128xf32>
    %346 = arith.negf %345 : vector<16x128xf32>
    %347 = math.exp %346 : vector<16x128xf32>
    %cst_69 = arith.constant 1.000000e+00 : f32
    %348 = vector.broadcast %cst_69 : f32 to vector<16x128xf32>
    %349 = arith.addf %348, %347 : vector<16x128xf32>
    %350 = arith.divf %348, %349 : vector<16x128xf32>
    %351 = vector.extract_strided_slice %344 {offsets = [0, 128], sizes = [16, 128], strides = [1, 1]} : vector<16x512xf32> to vector<16x128xf32>
    %352 = arith.negf %351 : vector<16x128xf32>
    %353 = math.exp %352 : vector<16x128xf32>
    %cst_70 = arith.constant 1.000000e+00 : f32
    %354 = vector.broadcast %cst_70 : f32 to vector<16x128xf32>
    %355 = arith.addf %354, %353 : vector<16x128xf32>
    %356 = arith.divf %354, %355 : vector<16x128xf32>
    %357 = vector.extract_strided_slice %344 {offsets = [0, 256], sizes = [16, 128], strides = [1, 1]} : vector<16x512xf32> to vector<16x128xf32>
    %358 = math.tanh %357 : vector<16x128xf32>
    %359 = vector.extract_strided_slice %344 {offsets = [0, 384], sizes = [16, 128], strides = [1, 1]} : vector<16x512xf32> to vector<16x128xf32>
    %360 = arith.negf %359 : vector<16x128xf32>
    %361 = math.exp %360 : vector<16x128xf32>
    %cst_71 = arith.constant 1.000000e+00 : f32
    %362 = vector.broadcast %cst_71 : f32 to vector<16x128xf32>
    %363 = arith.addf %362, %361 : vector<16x128xf32>
    %364 = arith.divf %362, %363 : vector<16x128xf32>
    %365 = arith.mulf %356, %292 : vector<16x128xf32>
    %366 = arith.mulf %350, %358 : vector<16x128xf32>
    %367 = arith.addf %365, %366 : vector<16x128xf32>
    %368 = math.tanh %367 : vector<16x128xf32>
    %369 = arith.mulf %364, %368 : vector<16x128xf32>
    %370 = vector.shape_cast %305 : vector<16x1xi1> to vector<16x1xi1>
    %371 = vector.broadcast %370 : vector<16x1xi1> to vector<16x128xi1>
    %372 = arith.select %371, %338, %279 : vector<16x128xi1>, vector<16x128xf32>
    %373 = vector.shape_cast %305 : vector<16x1xi1> to vector<16x1xi1>
    %374 = vector.broadcast %373 : vector<16x1xi1> to vector<16x128xi1>
    %375 = arith.select %374, %336, %282 : vector<16x128xi1>, vector<16x128xf32>
    %376 = arith.maximumf %286, %338 : vector<16x128xf32>
    %377 = vector.shape_cast %305 : vector<16x1xi1> to vector<16x1xi1>
    %378 = vector.broadcast %377 : vector<16x1xi1> to vector<16x128xi1>
    %379 = arith.select %378, %376, %286 : vector<16x128xi1>, vector<16x128xf32>
    %380 = vector.shape_cast %307 : vector<16x1xi1> to vector<16x1xi1>
    %381 = vector.broadcast %380 : vector<16x1xi1> to vector<16x128xi1>
    %382 = arith.select %381, %369, %289 : vector<16x128xi1>, vector<16x128xf32>
    %383 = vector.shape_cast %307 : vector<16x1xi1> to vector<16x1xi1>
    %384 = vector.broadcast %383 : vector<16x1xi1> to vector<16x128xi1>
    %385 = arith.select %384, %367, %292 : vector<16x128xi1>, vector<16x128xf32>
    %386 = arith.maximumf %296, %369 : vector<16x128xf32>
    %387 = vector.shape_cast %307 : vector<16x1xi1> to vector<16x1xi1>
    %388 = vector.broadcast %387 : vector<16x1xi1> to vector<16x128xi1>
    %389 = arith.select %388, %386, %296 : vector<16x128xi1>, vector<16x128xf32>
    %c4_i32 = arith.constant 4 : i32
    %c7_i32_72 = arith.constant 7 : i32
    %390 = arith.subi %c7_i32_72, %c4_i32 : i32
    %391 = arith.index_cast %c4_i32 : i32 to index
    %c0_73 = arith.constant 0 : index
    %c0_74 = arith.constant 0 : index
    %392 = vector.load %arg8[%391, %c0_73, %c0_74] : memref<8x16x512xbf16, #tpu.memory_space<vmem>>, vector<1x16x512xbf16>
    %393 = vector.shape_cast %392 : vector<1x16x512xbf16> to vector<16x512xbf16>
    %394 = arith.index_cast %390 : i32 to index
    %c0_75 = arith.constant 0 : index
    %c0_76 = arith.constant 0 : index
    %395 = vector.load %arg9[%394, %c0_75, %c0_76] : memref<8x16x512xbf16, #tpu.memory_space<vmem>>, vector<1x16x512xbf16>
    %396 = vector.shape_cast %395 : vector<1x16x512xbf16> to vector<16x512xbf16>
    %397 = vector.broadcast %c4_i32 : i32 to vector<16x1xi32>
    %398 = arith.cmpi slt, %397, %0 : vector<16x1xi32>
    %399 = vector.broadcast %390 : i32 to vector<16x1xi32>
    %400 = arith.cmpi slt, %399, %0 : vector<16x1xi32>
    %401 = arith.extf %393 : vector<16x512xbf16> to vector<16x512xf32>
    %402 = vector.broadcast %14 : vector<1x512xf32> to vector<16x512xf32>
    %403 = arith.addf %401, %402 : vector<16x512xf32>
    %404 = arith.truncf %372 : vector<16x128xf32> to vector<16x128xbf16>
    %cst_77 = arith.constant dense<0.000000e+00> : vector<16x512xf32>
    %405 = tpu.matmul %404, %12, %cst_77 {dimension_numbers = #tpu.dot_dimension_numbers<[1], [0], [0], [1], [0, 0, 1, 1], [], []>} : vector<16x128xbf16>, vector<128x512xbf16>, vector<16x512xf32> -> vector<16x512xf32>
    %406 = arith.addf %403, %405 : vector<16x512xf32>
    %407 = vector.extract_strided_slice %406 {offsets = [0, 0], sizes = [16, 128], strides = [1, 1]} : vector<16x512xf32> to vector<16x128xf32>
    %408 = arith.negf %407 : vector<16x128xf32>
    %409 = math.exp %408 : vector<16x128xf32>
    %cst_78 = arith.constant 1.000000e+00 : f32
    %410 = vector.broadcast %cst_78 : f32 to vector<16x128xf32>
    %411 = arith.addf %410, %409 : vector<16x128xf32>
    %412 = arith.divf %410, %411 : vector<16x128xf32>
    %413 = vector.extract_strided_slice %406 {offsets = [0, 128], sizes = [16, 128], strides = [1, 1]} : vector<16x512xf32> to vector<16x128xf32>
    %414 = arith.negf %413 : vector<16x128xf32>
    %415 = math.exp %414 : vector<16x128xf32>
    %cst_79 = arith.constant 1.000000e+00 : f32
    %416 = vector.broadcast %cst_79 : f32 to vector<16x128xf32>
    %417 = arith.addf %416, %415 : vector<16x128xf32>
    %418 = arith.divf %416, %417 : vector<16x128xf32>
    %419 = vector.extract_strided_slice %406 {offsets = [0, 256], sizes = [16, 128], strides = [1, 1]} : vector<16x512xf32> to vector<16x128xf32>
    %420 = math.tanh %419 : vector<16x128xf32>
    %421 = vector.extract_strided_slice %406 {offsets = [0, 384], sizes = [16, 128], strides = [1, 1]} : vector<16x512xf32> to vector<16x128xf32>
    %422 = arith.negf %421 : vector<16x128xf32>
    %423 = math.exp %422 : vector<16x128xf32>
    %cst_80 = arith.constant 1.000000e+00 : f32
    %424 = vector.broadcast %cst_80 : f32 to vector<16x128xf32>
    %425 = arith.addf %424, %423 : vector<16x128xf32>
    %426 = arith.divf %424, %425 : vector<16x128xf32>
    %427 = arith.mulf %418, %375 : vector<16x128xf32>
    %428 = arith.mulf %412, %420 : vector<16x128xf32>
    %429 = arith.addf %427, %428 : vector<16x128xf32>
    %430 = math.tanh %429 : vector<16x128xf32>
    %431 = arith.mulf %426, %430 : vector<16x128xf32>
    %432 = arith.extf %396 : vector<16x512xbf16> to vector<16x512xf32>
    %433 = vector.broadcast %15 : vector<1x512xf32> to vector<16x512xf32>
    %434 = arith.addf %432, %433 : vector<16x512xf32>
    %435 = arith.truncf %382 : vector<16x128xf32> to vector<16x128xbf16>
    %cst_81 = arith.constant dense<0.000000e+00> : vector<16x512xf32>
    %436 = tpu.matmul %435, %13, %cst_81 {dimension_numbers = #tpu.dot_dimension_numbers<[1], [0], [0], [1], [0, 0, 1, 1], [], []>} : vector<16x128xbf16>, vector<128x512xbf16>, vector<16x512xf32> -> vector<16x512xf32>
    %437 = arith.addf %434, %436 : vector<16x512xf32>
    %438 = vector.extract_strided_slice %437 {offsets = [0, 0], sizes = [16, 128], strides = [1, 1]} : vector<16x512xf32> to vector<16x128xf32>
    %439 = arith.negf %438 : vector<16x128xf32>
    %440 = math.exp %439 : vector<16x128xf32>
    %cst_82 = arith.constant 1.000000e+00 : f32
    %441 = vector.broadcast %cst_82 : f32 to vector<16x128xf32>
    %442 = arith.addf %441, %440 : vector<16x128xf32>
    %443 = arith.divf %441, %442 : vector<16x128xf32>
    %444 = vector.extract_strided_slice %437 {offsets = [0, 128], sizes = [16, 128], strides = [1, 1]} : vector<16x512xf32> to vector<16x128xf32>
    %445 = arith.negf %444 : vector<16x128xf32>
    %446 = math.exp %445 : vector<16x128xf32>
    %cst_83 = arith.constant 1.000000e+00 : f32
    %447 = vector.broadcast %cst_83 : f32 to vector<16x128xf32>
    %448 = arith.addf %447, %446 : vector<16x128xf32>
    %449 = arith.divf %447, %448 : vector<16x128xf32>
    %450 = vector.extract_strided_slice %437 {offsets = [0, 256], sizes = [16, 128], strides = [1, 1]} : vector<16x512xf32> to vector<16x128xf32>
    %451 = math.tanh %450 : vector<16x128xf32>
    %452 = vector.extract_strided_slice %437 {offsets = [0, 384], sizes = [16, 128], strides = [1, 1]} : vector<16x512xf32> to vector<16x128xf32>
    %453 = arith.negf %452 : vector<16x128xf32>
    %454 = math.exp %453 : vector<16x128xf32>
    %cst_84 = arith.constant 1.000000e+00 : f32
    %455 = vector.broadcast %cst_84 : f32 to vector<16x128xf32>
    %456 = arith.addf %455, %454 : vector<16x128xf32>
    %457 = arith.divf %455, %456 : vector<16x128xf32>
    %458 = arith.mulf %449, %385 : vector<16x128xf32>
    %459 = arith.mulf %443, %451 : vector<16x128xf32>
    %460 = arith.addf %458, %459 : vector<16x128xf32>
    %461 = math.tanh %460 : vector<16x128xf32>
    %462 = arith.mulf %457, %461 : vector<16x128xf32>
    %463 = vector.shape_cast %398 : vector<16x1xi1> to vector<16x1xi1>
    %464 = vector.broadcast %463 : vector<16x1xi1> to vector<16x128xi1>
    %465 = arith.select %464, %431, %372 : vector<16x128xi1>, vector<16x128xf32>
    %466 = vector.shape_cast %398 : vector<16x1xi1> to vector<16x1xi1>
    %467 = vector.broadcast %466 : vector<16x1xi1> to vector<16x128xi1>
    %468 = arith.select %467, %429, %375 : vector<16x128xi1>, vector<16x128xf32>
    %469 = arith.maximumf %379, %431 : vector<16x128xf32>
    %470 = vector.shape_cast %398 : vector<16x1xi1> to vector<16x1xi1>
    %471 = vector.broadcast %470 : vector<16x1xi1> to vector<16x128xi1>
    %472 = arith.select %471, %469, %379 : vector<16x128xi1>, vector<16x128xf32>
    %473 = vector.shape_cast %400 : vector<16x1xi1> to vector<16x1xi1>
    %474 = vector.broadcast %473 : vector<16x1xi1> to vector<16x128xi1>
    %475 = arith.select %474, %462, %382 : vector<16x128xi1>, vector<16x128xf32>
    %476 = vector.shape_cast %400 : vector<16x1xi1> to vector<16x1xi1>
    %477 = vector.broadcast %476 : vector<16x1xi1> to vector<16x128xi1>
    %478 = arith.select %477, %460, %385 : vector<16x128xi1>, vector<16x128xf32>
    %479 = arith.maximumf %389, %462 : vector<16x128xf32>
    %480 = vector.shape_cast %400 : vector<16x1xi1> to vector<16x1xi1>
    %481 = vector.broadcast %480 : vector<16x1xi1> to vector<16x128xi1>
    %482 = arith.select %481, %479, %389 : vector<16x128xi1>, vector<16x128xf32>
    %c5_i32 = arith.constant 5 : i32
    %c7_i32_85 = arith.constant 7 : i32
    %483 = arith.subi %c7_i32_85, %c5_i32 : i32
    %484 = arith.index_cast %c5_i32 : i32 to index
    %c0_86 = arith.constant 0 : index
    %c0_87 = arith.constant 0 : index
    %485 = vector.load %arg8[%484, %c0_86, %c0_87] : memref<8x16x512xbf16, #tpu.memory_space<vmem>>, vector<1x16x512xbf16>
    %486 = vector.shape_cast %485 : vector<1x16x512xbf16> to vector<16x512xbf16>
    %487 = arith.index_cast %483 : i32 to index
    %c0_88 = arith.constant 0 : index
    %c0_89 = arith.constant 0 : index
    %488 = vector.load %arg9[%487, %c0_88, %c0_89] : memref<8x16x512xbf16, #tpu.memory_space<vmem>>, vector<1x16x512xbf16>
    %489 = vector.shape_cast %488 : vector<1x16x512xbf16> to vector<16x512xbf16>
    %490 = vector.broadcast %c5_i32 : i32 to vector<16x1xi32>
    %491 = arith.cmpi slt, %490, %0 : vector<16x1xi32>
    %492 = vector.broadcast %483 : i32 to vector<16x1xi32>
    %493 = arith.cmpi slt, %492, %0 : vector<16x1xi32>
    %494 = arith.extf %486 : vector<16x512xbf16> to vector<16x512xf32>
    %495 = vector.broadcast %14 : vector<1x512xf32> to vector<16x512xf32>
    %496 = arith.addf %494, %495 : vector<16x512xf32>
    %497 = arith.truncf %465 : vector<16x128xf32> to vector<16x128xbf16>
    %cst_90 = arith.constant dense<0.000000e+00> : vector<16x512xf32>
    %498 = tpu.matmul %497, %12, %cst_90 {dimension_numbers = #tpu.dot_dimension_numbers<[1], [0], [0], [1], [0, 0, 1, 1], [], []>} : vector<16x128xbf16>, vector<128x512xbf16>, vector<16x512xf32> -> vector<16x512xf32>
    %499 = arith.addf %496, %498 : vector<16x512xf32>
    %500 = vector.extract_strided_slice %499 {offsets = [0, 0], sizes = [16, 128], strides = [1, 1]} : vector<16x512xf32> to vector<16x128xf32>
    %501 = arith.negf %500 : vector<16x128xf32>
    %502 = math.exp %501 : vector<16x128xf32>
    %cst_91 = arith.constant 1.000000e+00 : f32
    %503 = vector.broadcast %cst_91 : f32 to vector<16x128xf32>
    %504 = arith.addf %503, %502 : vector<16x128xf32>
    %505 = arith.divf %503, %504 : vector<16x128xf32>
    %506 = vector.extract_strided_slice %499 {offsets = [0, 128], sizes = [16, 128], strides = [1, 1]} : vector<16x512xf32> to vector<16x128xf32>
    %507 = arith.negf %506 : vector<16x128xf32>
    %508 = math.exp %507 : vector<16x128xf32>
    %cst_92 = arith.constant 1.000000e+00 : f32
    %509 = vector.broadcast %cst_92 : f32 to vector<16x128xf32>
    %510 = arith.addf %509, %508 : vector<16x128xf32>
    %511 = arith.divf %509, %510 : vector<16x128xf32>
    %512 = vector.extract_strided_slice %499 {offsets = [0, 256], sizes = [16, 128], strides = [1, 1]} : vector<16x512xf32> to vector<16x128xf32>
    %513 = math.tanh %512 : vector<16x128xf32>
    %514 = vector.extract_strided_slice %499 {offsets = [0, 384], sizes = [16, 128], strides = [1, 1]} : vector<16x512xf32> to vector<16x128xf32>
    %515 = arith.negf %514 : vector<16x128xf32>
    %516 = math.exp %515 : vector<16x128xf32>
    %cst_93 = arith.constant 1.000000e+00 : f32
    %517 = vector.broadcast %cst_93 : f32 to vector<16x128xf32>
    %518 = arith.addf %517, %516 : vector<16x128xf32>
    %519 = arith.divf %517, %518 : vector<16x128xf32>
    %520 = arith.mulf %511, %468 : vector<16x128xf32>
    %521 = arith.mulf %505, %513 : vector<16x128xf32>
    %522 = arith.addf %520, %521 : vector<16x128xf32>
    %523 = math.tanh %522 : vector<16x128xf32>
    %524 = arith.mulf %519, %523 : vector<16x128xf32>
    %525 = arith.extf %489 : vector<16x512xbf16> to vector<16x512xf32>
    %526 = vector.broadcast %15 : vector<1x512xf32> to vector<16x512xf32>
    %527 = arith.addf %525, %526 : vector<16x512xf32>
    %528 = arith.truncf %475 : vector<16x128xf32> to vector<16x128xbf16>
    %cst_94 = arith.constant dense<0.000000e+00> : vector<16x512xf32>
    %529 = tpu.matmul %528, %13, %cst_94 {dimension_numbers = #tpu.dot_dimension_numbers<[1], [0], [0], [1], [0, 0, 1, 1], [], []>} : vector<16x128xbf16>, vector<128x512xbf16>, vector<16x512xf32> -> vector<16x512xf32>
    %530 = arith.addf %527, %529 : vector<16x512xf32>
    %531 = vector.extract_strided_slice %530 {offsets = [0, 0], sizes = [16, 128], strides = [1, 1]} : vector<16x512xf32> to vector<16x128xf32>
    %532 = arith.negf %531 : vector<16x128xf32>
    %533 = math.exp %532 : vector<16x128xf32>
    %cst_95 = arith.constant 1.000000e+00 : f32
    %534 = vector.broadcast %cst_95 : f32 to vector<16x128xf32>
    %535 = arith.addf %534, %533 : vector<16x128xf32>
    %536 = arith.divf %534, %535 : vector<16x128xf32>
    %537 = vector.extract_strided_slice %530 {offsets = [0, 128], sizes = [16, 128], strides = [1, 1]} : vector<16x512xf32> to vector<16x128xf32>
    %538 = arith.negf %537 : vector<16x128xf32>
    %539 = math.exp %538 : vector<16x128xf32>
    %cst_96 = arith.constant 1.000000e+00 : f32
    %540 = vector.broadcast %cst_96 : f32 to vector<16x128xf32>
    %541 = arith.addf %540, %539 : vector<16x128xf32>
    %542 = arith.divf %540, %541 : vector<16x128xf32>
    %543 = vector.extract_strided_slice %530 {offsets = [0, 256], sizes = [16, 128], strides = [1, 1]} : vector<16x512xf32> to vector<16x128xf32>
    %544 = math.tanh %543 : vector<16x128xf32>
    %545 = vector.extract_strided_slice %530 {offsets = [0, 384], sizes = [16, 128], strides = [1, 1]} : vector<16x512xf32> to vector<16x128xf32>
    %546 = arith.negf %545 : vector<16x128xf32>
    %547 = math.exp %546 : vector<16x128xf32>
    %cst_97 = arith.constant 1.000000e+00 : f32
    %548 = vector.broadcast %cst_97 : f32 to vector<16x128xf32>
    %549 = arith.addf %548, %547 : vector<16x128xf32>
    %550 = arith.divf %548, %549 : vector<16x128xf32>
    %551 = arith.mulf %542, %478 : vector<16x128xf32>
    %552 = arith.mulf %536, %544 : vector<16x128xf32>
    %553 = arith.addf %551, %552 : vector<16x128xf32>
    %554 = math.tanh %553 : vector<16x128xf32>
    %555 = arith.mulf %550, %554 : vector<16x128xf32>
    %556 = vector.shape_cast %491 : vector<16x1xi1> to vector<16x1xi1>
    %557 = vector.broadcast %556 : vector<16x1xi1> to vector<16x128xi1>
    %558 = arith.select %557, %524, %465 : vector<16x128xi1>, vector<16x128xf32>
    %559 = vector.shape_cast %491 : vector<16x1xi1> to vector<16x1xi1>
    %560 = vector.broadcast %559 : vector<16x1xi1> to vector<16x128xi1>
    %561 = arith.select %560, %522, %468 : vector<16x128xi1>, vector<16x128xf32>
    %562 = arith.maximumf %472, %524 : vector<16x128xf32>
    %563 = vector.shape_cast %491 : vector<16x1xi1> to vector<16x1xi1>
    %564 = vector.broadcast %563 : vector<16x1xi1> to vector<16x128xi1>
    %565 = arith.select %564, %562, %472 : vector<16x128xi1>, vector<16x128xf32>
    %566 = vector.shape_cast %493 : vector<16x1xi1> to vector<16x1xi1>
    %567 = vector.broadcast %566 : vector<16x1xi1> to vector<16x128xi1>
    %568 = arith.select %567, %555, %475 : vector<16x128xi1>, vector<16x128xf32>
    %569 = vector.shape_cast %493 : vector<16x1xi1> to vector<16x1xi1>
    %570 = vector.broadcast %569 : vector<16x1xi1> to vector<16x128xi1>
    %571 = arith.select %570, %553, %478 : vector<16x128xi1>, vector<16x128xf32>
    %572 = arith.maximumf %482, %555 : vector<16x128xf32>
    %573 = vector.shape_cast %493 : vector<16x1xi1> to vector<16x1xi1>
    %574 = vector.broadcast %573 : vector<16x1xi1> to vector<16x128xi1>
    %575 = arith.select %574, %572, %482 : vector<16x128xi1>, vector<16x128xf32>
    %c6_i32 = arith.constant 6 : i32
    %c7_i32_98 = arith.constant 7 : i32
    %576 = arith.subi %c7_i32_98, %c6_i32 : i32
    %577 = arith.index_cast %c6_i32 : i32 to index
    %c0_99 = arith.constant 0 : index
    %c0_100 = arith.constant 0 : index
    %578 = vector.load %arg8[%577, %c0_99, %c0_100] : memref<8x16x512xbf16, #tpu.memory_space<vmem>>, vector<1x16x512xbf16>
    %579 = vector.shape_cast %578 : vector<1x16x512xbf16> to vector<16x512xbf16>
    %580 = arith.index_cast %576 : i32 to index
    %c0_101 = arith.constant 0 : index
    %c0_102 = arith.constant 0 : index
    %581 = vector.load %arg9[%580, %c0_101, %c0_102] : memref<8x16x512xbf16, #tpu.memory_space<vmem>>, vector<1x16x512xbf16>
    %582 = vector.shape_cast %581 : vector<1x16x512xbf16> to vector<16x512xbf16>
    %583 = vector.broadcast %c6_i32 : i32 to vector<16x1xi32>
    %584 = arith.cmpi slt, %583, %0 : vector<16x1xi32>
    %585 = vector.broadcast %576 : i32 to vector<16x1xi32>
    %586 = arith.cmpi slt, %585, %0 : vector<16x1xi32>
    %587 = arith.extf %579 : vector<16x512xbf16> to vector<16x512xf32>
    %588 = vector.broadcast %14 : vector<1x512xf32> to vector<16x512xf32>
    %589 = arith.addf %587, %588 : vector<16x512xf32>
    %590 = arith.truncf %558 : vector<16x128xf32> to vector<16x128xbf16>
    %cst_103 = arith.constant dense<0.000000e+00> : vector<16x512xf32>
    %591 = tpu.matmul %590, %12, %cst_103 {dimension_numbers = #tpu.dot_dimension_numbers<[1], [0], [0], [1], [0, 0, 1, 1], [], []>} : vector<16x128xbf16>, vector<128x512xbf16>, vector<16x512xf32> -> vector<16x512xf32>
    %592 = arith.addf %589, %591 : vector<16x512xf32>
    %593 = vector.extract_strided_slice %592 {offsets = [0, 0], sizes = [16, 128], strides = [1, 1]} : vector<16x512xf32> to vector<16x128xf32>
    %594 = arith.negf %593 : vector<16x128xf32>
    %595 = math.exp %594 : vector<16x128xf32>
    %cst_104 = arith.constant 1.000000e+00 : f32
    %596 = vector.broadcast %cst_104 : f32 to vector<16x128xf32>
    %597 = arith.addf %596, %595 : vector<16x128xf32>
    %598 = arith.divf %596, %597 : vector<16x128xf32>
    %599 = vector.extract_strided_slice %592 {offsets = [0, 128], sizes = [16, 128], strides = [1, 1]} : vector<16x512xf32> to vector<16x128xf32>
    %600 = arith.negf %599 : vector<16x128xf32>
    %601 = math.exp %600 : vector<16x128xf32>
    %cst_105 = arith.constant 1.000000e+00 : f32
    %602 = vector.broadcast %cst_105 : f32 to vector<16x128xf32>
    %603 = arith.addf %602, %601 : vector<16x128xf32>
    %604 = arith.divf %602, %603 : vector<16x128xf32>
    %605 = vector.extract_strided_slice %592 {offsets = [0, 256], sizes = [16, 128], strides = [1, 1]} : vector<16x512xf32> to vector<16x128xf32>
    %606 = math.tanh %605 : vector<16x128xf32>
    %607 = vector.extract_strided_slice %592 {offsets = [0, 384], sizes = [16, 128], strides = [1, 1]} : vector<16x512xf32> to vector<16x128xf32>
    %608 = arith.negf %607 : vector<16x128xf32>
    %609 = math.exp %608 : vector<16x128xf32>
    %cst_106 = arith.constant 1.000000e+00 : f32
    %610 = vector.broadcast %cst_106 : f32 to vector<16x128xf32>
    %611 = arith.addf %610, %609 : vector<16x128xf32>
    %612 = arith.divf %610, %611 : vector<16x128xf32>
    %613 = arith.mulf %604, %561 : vector<16x128xf32>
    %614 = arith.mulf %598, %606 : vector<16x128xf32>
    %615 = arith.addf %613, %614 : vector<16x128xf32>
    %616 = math.tanh %615 : vector<16x128xf32>
    %617 = arith.mulf %612, %616 : vector<16x128xf32>
    %618 = arith.extf %582 : vector<16x512xbf16> to vector<16x512xf32>
    %619 = vector.broadcast %15 : vector<1x512xf32> to vector<16x512xf32>
    %620 = arith.addf %618, %619 : vector<16x512xf32>
    %621 = arith.truncf %568 : vector<16x128xf32> to vector<16x128xbf16>
    %cst_107 = arith.constant dense<0.000000e+00> : vector<16x512xf32>
    %622 = tpu.matmul %621, %13, %cst_107 {dimension_numbers = #tpu.dot_dimension_numbers<[1], [0], [0], [1], [0, 0, 1, 1], [], []>} : vector<16x128xbf16>, vector<128x512xbf16>, vector<16x512xf32> -> vector<16x512xf32>
    %623 = arith.addf %620, %622 : vector<16x512xf32>
    %624 = vector.extract_strided_slice %623 {offsets = [0, 0], sizes = [16, 128], strides = [1, 1]} : vector<16x512xf32> to vector<16x128xf32>
    %625 = arith.negf %624 : vector<16x128xf32>
    %626 = math.exp %625 : vector<16x128xf32>
    %cst_108 = arith.constant 1.000000e+00 : f32
    %627 = vector.broadcast %cst_108 : f32 to vector<16x128xf32>
    %628 = arith.addf %627, %626 : vector<16x128xf32>
    %629 = arith.divf %627, %628 : vector<16x128xf32>
    %630 = vector.extract_strided_slice %623 {offsets = [0, 128], sizes = [16, 128], strides = [1, 1]} : vector<16x512xf32> to vector<16x128xf32>
    %631 = arith.negf %630 : vector<16x128xf32>
    %632 = math.exp %631 : vector<16x128xf32>
    %cst_109 = arith.constant 1.000000e+00 : f32
    %633 = vector.broadcast %cst_109 : f32 to vector<16x128xf32>
    %634 = arith.addf %633, %632 : vector<16x128xf32>
    %635 = arith.divf %633, %634 : vector<16x128xf32>
    %636 = vector.extract_strided_slice %623 {offsets = [0, 256], sizes = [16, 128], strides = [1, 1]} : vector<16x512xf32> to vector<16x128xf32>
    %637 = math.tanh %636 : vector<16x128xf32>
    %638 = vector.extract_strided_slice %623 {offsets = [0, 384], sizes = [16, 128], strides = [1, 1]} : vector<16x512xf32> to vector<16x128xf32>
    %639 = arith.negf %638 : vector<16x128xf32>
    %640 = math.exp %639 : vector<16x128xf32>
    %cst_110 = arith.constant 1.000000e+00 : f32
    %641 = vector.broadcast %cst_110 : f32 to vector<16x128xf32>
    %642 = arith.addf %641, %640 : vector<16x128xf32>
    %643 = arith.divf %641, %642 : vector<16x128xf32>
    %644 = arith.mulf %635, %571 : vector<16x128xf32>
    %645 = arith.mulf %629, %637 : vector<16x128xf32>
    %646 = arith.addf %644, %645 : vector<16x128xf32>
    %647 = math.tanh %646 : vector<16x128xf32>
    %648 = arith.mulf %643, %647 : vector<16x128xf32>
    %649 = vector.shape_cast %584 : vector<16x1xi1> to vector<16x1xi1>
    %650 = vector.broadcast %649 : vector<16x1xi1> to vector<16x128xi1>
    %651 = arith.select %650, %617, %558 : vector<16x128xi1>, vector<16x128xf32>
    %652 = vector.shape_cast %584 : vector<16x1xi1> to vector<16x1xi1>
    %653 = vector.broadcast %652 : vector<16x1xi1> to vector<16x128xi1>
    %654 = arith.select %653, %615, %561 : vector<16x128xi1>, vector<16x128xf32>
    %655 = arith.maximumf %565, %617 : vector<16x128xf32>
    %656 = vector.shape_cast %584 : vector<16x1xi1> to vector<16x1xi1>
    %657 = vector.broadcast %656 : vector<16x1xi1> to vector<16x128xi1>
    %658 = arith.select %657, %655, %565 : vector<16x128xi1>, vector<16x128xf32>
    %659 = vector.shape_cast %586 : vector<16x1xi1> to vector<16x1xi1>
    %660 = vector.broadcast %659 : vector<16x1xi1> to vector<16x128xi1>
    %661 = arith.select %660, %648, %568 : vector<16x128xi1>, vector<16x128xf32>
    %662 = vector.shape_cast %586 : vector<16x1xi1> to vector<16x1xi1>
    %663 = vector.broadcast %662 : vector<16x1xi1> to vector<16x128xi1>
    %664 = arith.select %663, %646, %571 : vector<16x128xi1>, vector<16x128xf32>
    %665 = arith.maximumf %575, %648 : vector<16x128xf32>
    %666 = vector.shape_cast %586 : vector<16x1xi1> to vector<16x1xi1>
    %667 = vector.broadcast %666 : vector<16x1xi1> to vector<16x128xi1>
    %668 = arith.select %667, %665, %575 : vector<16x128xi1>, vector<16x128xf32>
    %c7_i32_111 = arith.constant 7 : i32
    %c7_i32_112 = arith.constant 7 : i32
    %669 = arith.subi %c7_i32_112, %c7_i32_111 : i32
    %670 = arith.index_cast %c7_i32_111 : i32 to index
    %c0_113 = arith.constant 0 : index
    %c0_114 = arith.constant 0 : index
    %671 = vector.load %arg8[%670, %c0_113, %c0_114] : memref<8x16x512xbf16, #tpu.memory_space<vmem>>, vector<1x16x512xbf16>
    %672 = vector.shape_cast %671 : vector<1x16x512xbf16> to vector<16x512xbf16>
    %673 = arith.index_cast %669 : i32 to index
    %c0_115 = arith.constant 0 : index
    %c0_116 = arith.constant 0 : index
    %674 = vector.load %arg9[%673, %c0_115, %c0_116] : memref<8x16x512xbf16, #tpu.memory_space<vmem>>, vector<1x16x512xbf16>
    %675 = vector.shape_cast %674 : vector<1x16x512xbf16> to vector<16x512xbf16>
    %676 = vector.broadcast %c7_i32_111 : i32 to vector<16x1xi32>
    %677 = arith.cmpi slt, %676, %0 : vector<16x1xi32>
    %678 = vector.broadcast %669 : i32 to vector<16x1xi32>
    %679 = arith.cmpi slt, %678, %0 : vector<16x1xi32>
    %680 = arith.extf %672 : vector<16x512xbf16> to vector<16x512xf32>
    %681 = vector.broadcast %14 : vector<1x512xf32> to vector<16x512xf32>
    %682 = arith.addf %680, %681 : vector<16x512xf32>
    %683 = arith.truncf %651 : vector<16x128xf32> to vector<16x128xbf16>
    %cst_117 = arith.constant dense<0.000000e+00> : vector<16x512xf32>
    %684 = tpu.matmul %683, %12, %cst_117 {dimension_numbers = #tpu.dot_dimension_numbers<[1], [0], [0], [1], [0, 0, 1, 1], [], []>} : vector<16x128xbf16>, vector<128x512xbf16>, vector<16x512xf32> -> vector<16x512xf32>
    %685 = arith.addf %682, %684 : vector<16x512xf32>
    %686 = vector.extract_strided_slice %685 {offsets = [0, 0], sizes = [16, 128], strides = [1, 1]} : vector<16x512xf32> to vector<16x128xf32>
    %687 = arith.negf %686 : vector<16x128xf32>
    %688 = math.exp %687 : vector<16x128xf32>
    %cst_118 = arith.constant 1.000000e+00 : f32
    %689 = vector.broadcast %cst_118 : f32 to vector<16x128xf32>
    %690 = arith.addf %689, %688 : vector<16x128xf32>
    %691 = arith.divf %689, %690 : vector<16x128xf32>
    %692 = vector.extract_strided_slice %685 {offsets = [0, 128], sizes = [16, 128], strides = [1, 1]} : vector<16x512xf32> to vector<16x128xf32>
    %693 = arith.negf %692 : vector<16x128xf32>
    %694 = math.exp %693 : vector<16x128xf32>
    %cst_119 = arith.constant 1.000000e+00 : f32
    %695 = vector.broadcast %cst_119 : f32 to vector<16x128xf32>
    %696 = arith.addf %695, %694 : vector<16x128xf32>
    %697 = arith.divf %695, %696 : vector<16x128xf32>
    %698 = vector.extract_strided_slice %685 {offsets = [0, 256], sizes = [16, 128], strides = [1, 1]} : vector<16x512xf32> to vector<16x128xf32>
    %699 = math.tanh %698 : vector<16x128xf32>
    %700 = vector.extract_strided_slice %685 {offsets = [0, 384], sizes = [16, 128], strides = [1, 1]} : vector<16x512xf32> to vector<16x128xf32>
    %701 = arith.negf %700 : vector<16x128xf32>
    %702 = math.exp %701 : vector<16x128xf32>
    %cst_120 = arith.constant 1.000000e+00 : f32
    %703 = vector.broadcast %cst_120 : f32 to vector<16x128xf32>
    %704 = arith.addf %703, %702 : vector<16x128xf32>
    %705 = arith.divf %703, %704 : vector<16x128xf32>
    %706 = arith.mulf %697, %654 : vector<16x128xf32>
    %707 = arith.mulf %691, %699 : vector<16x128xf32>
    %708 = arith.addf %706, %707 : vector<16x128xf32>
    %709 = math.tanh %708 : vector<16x128xf32>
    %710 = arith.mulf %705, %709 : vector<16x128xf32>
    %711 = arith.extf %675 : vector<16x512xbf16> to vector<16x512xf32>
    %712 = vector.broadcast %15 : vector<1x512xf32> to vector<16x512xf32>
    %713 = arith.addf %711, %712 : vector<16x512xf32>
    %714 = arith.truncf %661 : vector<16x128xf32> to vector<16x128xbf16>
    %cst_121 = arith.constant dense<0.000000e+00> : vector<16x512xf32>
    %715 = tpu.matmul %714, %13, %cst_121 {dimension_numbers = #tpu.dot_dimension_numbers<[1], [0], [0], [1], [0, 0, 1, 1], [], []>} : vector<16x128xbf16>, vector<128x512xbf16>, vector<16x512xf32> -> vector<16x512xf32>
    %716 = arith.addf %713, %715 : vector<16x512xf32>
    %717 = vector.extract_strided_slice %716 {offsets = [0, 0], sizes = [16, 128], strides = [1, 1]} : vector<16x512xf32> to vector<16x128xf32>
    %718 = arith.negf %717 : vector<16x128xf32>
    %719 = math.exp %718 : vector<16x128xf32>
    %cst_122 = arith.constant 1.000000e+00 : f32
    %720 = vector.broadcast %cst_122 : f32 to vector<16x128xf32>
    %721 = arith.addf %720, %719 : vector<16x128xf32>
    %722 = arith.divf %720, %721 : vector<16x128xf32>
    %723 = vector.extract_strided_slice %716 {offsets = [0, 128], sizes = [16, 128], strides = [1, 1]} : vector<16x512xf32> to vector<16x128xf32>
    %724 = arith.negf %723 : vector<16x128xf32>
    %725 = math.exp %724 : vector<16x128xf32>
    %cst_123 = arith.constant 1.000000e+00 : f32
    %726 = vector.broadcast %cst_123 : f32 to vector<16x128xf32>
    %727 = arith.addf %726, %725 : vector<16x128xf32>
    %728 = arith.divf %726, %727 : vector<16x128xf32>
    %729 = vector.extract_strided_slice %716 {offsets = [0, 256], sizes = [16, 128], strides = [1, 1]} : vector<16x512xf32> to vector<16x128xf32>
    %730 = math.tanh %729 : vector<16x128xf32>
    %731 = vector.extract_strided_slice %716 {offsets = [0, 384], sizes = [16, 128], strides = [1, 1]} : vector<16x512xf32> to vector<16x128xf32>
    %732 = arith.negf %731 : vector<16x128xf32>
    %733 = math.exp %732 : vector<16x128xf32>
    %cst_124 = arith.constant 1.000000e+00 : f32
    %734 = vector.broadcast %cst_124 : f32 to vector<16x128xf32>
    %735 = arith.addf %734, %733 : vector<16x128xf32>
    %736 = arith.divf %734, %735 : vector<16x128xf32>
    %737 = arith.mulf %728, %664 : vector<16x128xf32>
    %738 = arith.mulf %722, %730 : vector<16x128xf32>
    %739 = arith.addf %737, %738 : vector<16x128xf32>
    %740 = math.tanh %739 : vector<16x128xf32>
    %741 = arith.mulf %736, %740 : vector<16x128xf32>
    %742 = vector.shape_cast %677 : vector<16x1xi1> to vector<16x1xi1>
    %743 = vector.broadcast %742 : vector<16x1xi1> to vector<16x128xi1>
    %744 = arith.select %743, %710, %651 : vector<16x128xi1>, vector<16x128xf32>
    %745 = vector.shape_cast %677 : vector<16x1xi1> to vector<16x1xi1>
    %746 = vector.broadcast %745 : vector<16x1xi1> to vector<16x128xi1>
    %747 = arith.select %746, %708, %654 : vector<16x128xi1>, vector<16x128xf32>
    %748 = arith.maximumf %658, %710 : vector<16x128xf32>
    %749 = vector.shape_cast %677 : vector<16x1xi1> to vector<16x1xi1>
    %750 = vector.broadcast %749 : vector<16x1xi1> to vector<16x128xi1>
    %751 = arith.select %750, %748, %658 : vector<16x128xi1>, vector<16x128xf32>
    %752 = vector.shape_cast %679 : vector<16x1xi1> to vector<16x1xi1>
    %753 = vector.broadcast %752 : vector<16x1xi1> to vector<16x128xi1>
    %754 = arith.select %753, %741, %661 : vector<16x128xi1>, vector<16x128xf32>
    %755 = vector.shape_cast %679 : vector<16x1xi1> to vector<16x1xi1>
    %756 = vector.broadcast %755 : vector<16x1xi1> to vector<16x128xi1>
    %757 = arith.select %756, %739, %664 : vector<16x128xi1>, vector<16x128xf32>
    %758 = arith.maximumf %668, %741 : vector<16x128xf32>
    %759 = vector.shape_cast %679 : vector<16x1xi1> to vector<16x1xi1>
    %760 = vector.broadcast %759 : vector<16x1xi1> to vector<16x128xi1>
    %761 = arith.select %760, %758, %668 : vector<16x128xi1>, vector<16x128xf32>
    %c8_i32 = arith.constant 8 : i32
    %762 = tpu.concatenate %751, %761 in 1 : vector<16x128xf32>, vector<16x128xf32> -> vector<16x256xf32>
    %c0_i32_125 = arith.constant 0 : i32
    %763 = vector.broadcast %c0_i32_125 : i32 to vector<16x1xi32>
    %764 = arith.cmpi sgt, %0, %763 : vector<16x1xi32>
    %cst_126 = arith.constant 0.000000e+00 : f32
    %765 = vector.shape_cast %764 : vector<16x1xi1> to vector<16x1xi1>
    %766 = vector.broadcast %765 : vector<16x1xi1> to vector<16x256xi1>
    %767 = vector.broadcast %cst_126 : f32 to vector<16x256xf32>
    %768 = arith.select %766, %762, %767 : vector<16x256xi1>, vector<16x256xf32>
    %c0_127 = arith.constant 0 : index
    %c0_128 = arith.constant 0 : index
    %769 = vector.load %arg7[%c0_127, %c0_128] : memref<16x256xf32, #tpu.memory_space<vmem>>, vector<16x256xf32>
    tpu.vector_store %arg7[%c0_127, %c0_128], %768 {strides = array<i32>} : memref<16x256xf32, #tpu.memory_space<vmem>>, vector<16x256xf32>,
    return
  }
  func.func @transform_0(%arg0: i32) -> (i32, i32, i32) {
    %c0_i32 = arith.constant 0 : i32
    %c0_i32_0 = arith.constant 0 : i32
    %c0_i32_1 = arith.constant 0 : i32
    return %c0_i32, %arg0, %c0_i32_0 : i32, i32, i32
  }
  func.func @transform_1(%arg0: i32) -> (i32, i32) {
    %c0_i32 = arith.constant 0 : i32
    %c0_i32_0 = arith.constant 0 : i32
    return %arg0, %c0_i32 : i32, i32
  }
  func.func @transform_2(%arg0: i32) -> (i32, i32) {
    %c0_i32 = arith.constant 0 : i32
    %c0_i32_0 = arith.constant 0 : i32
    %c0_i32_1 = arith.constant 0 : i32
    return %c0_i32, %c0_i32_0 : i32, i32
  }
  func.func @transform_3(%arg0: i32) -> (i32, i32) {
    %c0_i32 = arith.constant 0 : i32
    %c0_i32_0 = arith.constant 0 : i32
    %c0_i32_1 = arith.constant 0 : i32
    return %c0_i32, %c0_i32_0 : i32, i32
  }
  func.func @transform_4(%arg0: i32) -> (i32, i32) {
    %c0_i32 = arith.constant 0 : i32
    %c0_i32_0 = arith.constant 0 : i32
    %c0_i32_1 = arith.constant 0 : i32
    return %c0_i32, %c0_i32_0 : i32, i32
  }
  func.func @transform_5(%arg0: i32) -> (i32, i32) {
    %c0_i32 = arith.constant 0 : i32
    %c0_i32_0 = arith.constant 0 : i32
    %c0_i32_1 = arith.constant 0 : i32
    return %c0_i32, %c0_i32_0 : i32, i32
  }
  func.func @transform_6(%arg0: i32) -> (i32, i32) {
    %c0_i32 = arith.constant 0 : i32
    %c0_i32_0 = arith.constant 0 : i32
    return %arg0, %c0_i32 : i32, i32
  }
}

module attributes {stable_mosaic.version = 11 : i64} {
  func.func @bilstm_maxpool_kernel(%arg0: i32, %arg1: memref<8x16x128xbf16, #tpu.memory_space<vmem>>, %arg2: memref<16x1xi32, #tpu.memory_space<vmem>>, %arg3: memref<128x1024xbf16, #tpu.memory_space<vmem>>, %arg4: memref<128x512xbf16, #tpu.memory_space<vmem>>, %arg5: memref<128x512xbf16, #tpu.memory_space<vmem>>, %arg6: memref<1x1024xf32, #tpu.memory_space<vmem>>, %arg7: memref<16x256xf32, #tpu.memory_space<vmem>>, %arg8: memref<8x16x512xbf16, #tpu.memory_space<vmem>>, %arg9: memref<8x16x512xbf16, #tpu.memory_space<vmem>>) attributes {dimension_semantics = [#tpu.dimension_semantics<parallel>], iteration_bounds = array<i64: 1>, scalar_prefetch = 0 : i64, scratch_operands = 2 : i64, tpu.core_type = #tpu.core_type<tc>, window_params = [{transform_indices = @transform_0, window_bounds = array<i64: 8, 16, 128>}, {transform_indices = @transform_1, window_bounds = array<i64: 16, 1>}, {pipeline_mode = #tpu.pipeline_mode<synchronous>, transform_indices = @transform_2, window_bounds = array<i64: 128, 1024>}, {pipeline_mode = #tpu.pipeline_mode<synchronous>, transform_indices = @transform_3, window_bounds = array<i64: 128, 512>}, {pipeline_mode = #tpu.pipeline_mode<synchronous>, transform_indices = @transform_4, window_bounds = array<i64: 128, 512>}, {pipeline_mode = #tpu.pipeline_mode<synchronous>, transform_indices = @transform_5, window_bounds = array<i64: 1, 1024>}, {transform_indices = @transform_6, window_bounds = array<i64: 16, 256>}]} {
    %c0 = arith.constant 0 : index
    %c0_0 = arith.constant 0 : index
    %0 = vector.load %arg2[%c0, %c0_0] : memref<16x1xi32, #tpu.memory_space<vmem>>, vector<16x1xi32>
    %c0_1 = arith.constant 0 : index
    %c0_2 = arith.constant 0 : index
    %1 = vector.load %arg3[%c0_1, %c0_2] : memref<128x1024xbf16, #tpu.memory_space<vmem>>, vector<128x1024xbf16>
    %c0_3 = arith.constant 0 : index
    %c0_4 = arith.constant 0 : index
    %c0_5 = arith.constant 0 : index
    %2 = vector.load %arg1[%c0_3, %c0_4, %c0_5] : memref<8x16x128xbf16, #tpu.memory_space<vmem>>, vector<8x16x128xbf16>
    %3 = vector.shape_cast %2 : vector<8x16x128xbf16> to vector<128x128xbf16>
    %cst = arith.constant dense<0.000000e+00> : vector<128x1024xf32>
    %4 = tpu.matmul %3, %1, %cst {dimension_numbers = #tpu.dot_dimension_numbers<[1], [0], [0], [1], [0, 0, 1, 1], [], []>} : vector<128x128xbf16>, vector<128x1024xbf16>, vector<128x1024xf32> -> vector<128x1024xf32>
    %5 = arith.truncf %4 : vector<128x1024xf32> to vector<128x1024xbf16>
    %6 = vector.extract_strided_slice %5 {offsets = [0, 0], sizes = [128, 512], strides = [1, 1]} : vector<128x1024xbf16> to vector<128x512xbf16>
    %7 = vector.shape_cast %6 : vector<128x512xbf16> to vector<8x16x512xbf16>
    %c0_6 = arith.constant 0 : index
    %c0_7 = arith.constant 0 : index
    %c0_8 = arith.constant 0 : index
    %8 = vector.load %arg8[%c0_6, %c0_7, %c0_8] : memref<8x16x512xbf16, #tpu.memory_space<vmem>>, vector<8x16x512xbf16>
    tpu.vector_store %arg8[%c0_6, %c0_7, %c0_8], %7 {strides = array<i32>} : memref<8x16x512xbf16, #tpu.memory_space<vmem>>, vector<8x16x512xbf16>,
    %9 = vector.extract_strided_slice %5 {offsets = [0, 512], sizes = [128, 512], strides = [1, 1]} : vector<128x1024xbf16> to vector<128x512xbf16>
    %10 = vector.shape_cast %9 : vector<128x512xbf16> to vector<8x16x512xbf16>
    %c0_9 = arith.constant 0 : index
    %c0_10 = arith.constant 0 : index
    %c0_11 = arith.constant 0 : index
    %11 = vector.load %arg9[%c0_9, %c0_10, %c0_11] : memref<8x16x512xbf16, #tpu.memory_space<vmem>>, vector<8x16x512xbf16>
    tpu.vector_store %arg9[%c0_9, %c0_10, %c0_11], %10 {strides = array<i32>} : memref<8x16x512xbf16, #tpu.memory_space<vmem>>, vector<8x16x512xbf16>,
    %c0_12 = arith.constant 0 : index
    %c0_13 = arith.constant 0 : index
    %12 = vector.load %arg4[%c0_12, %c0_13] : memref<128x512xbf16, #tpu.memory_space<vmem>>, vector<128x512xbf16>
    %c0_14 = arith.constant 0 : index
    %c0_15 = arith.constant 0 : index
    %13 = vector.load %arg5[%c0_14, %c0_15] : memref<128x512xbf16, #tpu.memory_space<vmem>>, vector<128x512xbf16>
    %c0_16 = arith.constant 0 : index
    %c0_17 = arith.constant 0 : index
    %14 = vector.load %arg6[%c0_16, %c0_17] : memref<1x1024xf32, #tpu.memory_space<vmem>>, vector<1x512xf32>
    %c0_18 = arith.constant 0 : index
    %c512 = arith.constant 512 : index
    %15 = vector.load %arg6[%c0_18, %c512] : memref<1x1024xf32, #tpu.memory_space<vmem>>, vector<1x512xf32>
    %cst_19 = arith.constant 0.000000e+00 : f32
    %16 = vector.broadcast %cst_19 : f32 to vector<16x128xf32>
    %cst_20 = arith.constant -1.000000e+09 : f32
    %17 = vector.broadcast %cst_20 : f32 to vector<16x128xf32>
    %c0_i32 = arith.constant 0 : i32
    %c7_i32 = arith.constant 7 : i32
    %18 = arith.subi %c7_i32, %c0_i32 : i32
    %19 = arith.index_cast %c0_i32 : i32 to index
    %c0_21 = arith.constant 0 : index
    %c0_22 = arith.constant 0 : index
    %20 = vector.load %arg8[%19, %c0_21, %c0_22] : memref<8x16x512xbf16, #tpu.memory_space<vmem>>, vector<1x16x512xbf16>
    %21 = vector.shape_cast %20 : vector<1x16x512xbf16> to vector<16x512xbf16>
    %22 = arith.index_cast %18 : i32 to index
    %c0_23 = arith.constant 0 : index
    %c0_24 = arith.constant 0 : index
    %23 = vector.load %arg9[%22, %c0_23, %c0_24] : memref<8x16x512xbf16, #tpu.memory_space<vmem>>, vector<1x16x512xbf16>
    %24 = vector.shape_cast %23 : vector<1x16x512xbf16> to vector<16x512xbf16>
    %25 = vector.broadcast %c0_i32 : i32 to vector<16x1xi32>
    %26 = arith.cmpi slt, %25, %0 : vector<16x1xi32>
    %27 = vector.broadcast %18 : i32 to vector<16x1xi32>
    %28 = arith.cmpi slt, %27, %0 : vector<16x1xi32>
    %29 = arith.extf %21 : vector<16x512xbf16> to vector<16x512xf32>
    %30 = vector.broadcast %14 : vector<1x512xf32> to vector<16x512xf32>
    %31 = arith.addf %29, %30 : vector<16x512xf32>
    %32 = arith.truncf %16 : vector<16x128xf32> to vector<16x128xbf16>
    %cst_25 = arith.constant dense<0.000000e+00> : vector<16x512xf32>
    %33 = tpu.matmul %32, %12, %cst_25 {dimension_numbers = #tpu.dot_dimension_numbers<[1], [0], [0], [1], [0, 0, 1, 1], [], []>} : vector<16x128xbf16>, vector<128x512xbf16>, vector<16x512xf32> -> vector<16x512xf32>
    %34 = arith.addf %31, %33 : vector<16x512xf32>
    %35 = vector.extract_strided_slice %34 {offsets = [0, 0], sizes = [16, 128], strides = [1, 1]} : vector<16x512xf32> to vector<16x128xf32>
    %36 = arith.negf %35 : vector<16x128xf32>
    %37 = math.exp %36 : vector<16x128xf32>
    %cst_26 = arith.constant 1.000000e+00 : f32
    %38 = vector.broadcast %cst_26 : f32 to vector<16x128xf32>
    %39 = arith.addf %38, %37 : vector<16x128xf32>
    %40 = arith.divf %38, %39 : vector<16x128xf32>
    %41 = vector.extract_strided_slice %34 {offsets = [0, 128], sizes = [16, 128], strides = [1, 1]} : vector<16x512xf32> to vector<16x128xf32>
    %42 = arith.negf %41 : vector<16x128xf32>
    %43 = math.exp %42 : vector<16x128xf32>
    %cst_27 = arith.constant 1.000000e+00 : f32
    %44 = vector.broadcast %cst_27 : f32 to vector<16x128xf32>
    %45 = arith.addf %44, %43 : vector<16x128xf32>
    %46 = arith.divf %44, %45 : vector<16x128xf32>
    %47 = vector.extract_strided_slice %34 {offsets = [0, 256], sizes = [16, 128], strides = [1, 1]} : vector<16x512xf32> to vector<16x128xf32>
    %48 = math.tanh %47 : vector<16x128xf32>
    %49 = vector.extract_strided_slice %34 {offsets = [0, 384], sizes = [16, 128], strides = [1, 1]} : vector<16x512xf32> to vector<16x128xf32>
    %50 = arith.negf %49 : vector<16x128xf32>
    %51 = math.exp %50 : vector<16x128xf32>
    %cst_28 = arith.constant 1.000000e+00 : f32
    %52 = vector.broadcast %cst_28 : f32 to vector<16x128xf32>
    %53 = arith.addf %52, %51 : vector<16x128xf32>
    %54 = arith.divf %52, %53 : vector<16x128xf32>
    %55 = arith.mulf %46, %16 : vector<16x128xf32>
    %56 = arith.mulf %40, %48 : vector<16x128xf32>
    %57 = arith.addf %55, %56 : vector<16x128xf32>
    %58 = math.tanh %57 : vector<16x128xf32>
    %59 = arith.mulf %54, %58 : vector<16x128xf32>
    %60 = arith.extf %24 : vector<16x512xbf16> to vector<16x512xf32>
    %61 = vector.broadcast %15 : vector<1x512xf32> to vector<16x512xf32>
    %62 = arith.addf %60, %61 : vector<16x512xf32>
    %63 = arith.truncf %16 : vector<16x128xf32> to vector<16x128xbf16>
    %cst_29 = arith.constant dense<0.000000e+00> : vector<16x512xf32>
    %64 = tpu.matmul %63, %13, %cst_29 {dimension_numbers = #tpu.dot_dimension_numbers<[1], [0], [0], [1], [0, 0, 1, 1], [], []>} : vector<16x128xbf16>, vector<128x512xbf16>, vector<16x512xf32> -> vector<16x512xf32>
    %65 = arith.addf %62, %64 : vector<16x512xf32>
    %66 = vector.extract_strided_slice %65 {offsets = [0, 0], sizes = [16, 128], strides = [1, 1]} : vector<16x512xf32> to vector<16x128xf32>
    %67 = arith.negf %66 : vector<16x128xf32>
    %68 = math.exp %67 : vector<16x128xf32>
    %cst_30 = arith.constant 1.000000e+00 : f32
    %69 = vector.broadcast %cst_30 : f32 to vector<16x128xf32>
    %70 = arith.addf %69, %68 : vector<16x128xf32>
    %71 = arith.divf %69, %70 : vector<16x128xf32>
    %72 = vector.extract_strided_slice %65 {offsets = [0, 128], sizes = [16, 128], strides = [1, 1]} : vector<16x512xf32> to vector<16x128xf32>
    %73 = arith.negf %72 : vector<16x128xf32>
    %74 = math.exp %73 : vector<16x128xf32>
    %cst_31 = arith.constant 1.000000e+00 : f32
    %75 = vector.broadcast %cst_31 : f32 to vector<16x128xf32>
    %76 = arith.addf %75, %74 : vector<16x128xf32>
    %77 = arith.divf %75, %76 : vector<16x128xf32>
    %78 = vector.extract_strided_slice %65 {offsets = [0, 256], sizes = [16, 128], strides = [1, 1]} : vector<16x512xf32> to vector<16x128xf32>
    %79 = math.tanh %78 : vector<16x128xf32>
    %80 = vector.extract_strided_slice %65 {offsets = [0, 384], sizes = [16, 128], strides = [1, 1]} : vector<16x512xf32> to vector<16x128xf32>
    %81 = arith.negf %80 : vector<16x128xf32>
    %82 = math.exp %81 : vector<16x128xf32>
    %cst_32 = arith.constant 1.000000e+00 : f32
    %83 = vector.broadcast %cst_32 : f32 to vector<16x128xf32>
    %84 = arith.addf %83, %82 : vector<16x128xf32>
    %85 = arith.divf %83, %84 : vector<16x128xf32>
    %86 = arith.mulf %77, %16 : vector<16x128xf32>
    %87 = arith.mulf %71, %79 : vector<16x128xf32>
    %88 = arith.addf %86, %87 : vector<16x128xf32>
    %89 = math.tanh %88 : vector<16x128xf32>
    %90 = arith.mulf %85, %89 : vector<16x128xf32>
    %91 = vector.shape_cast %26 : vector<16x1xi1> to vector<16x1xi1>
    %92 = vector.broadcast %91 : vector<16x1xi1> to vector<16x128xi1>
    %93 = arith.select %92, %59, %16 : vector<16x128xi1>, vector<16x128xf32>
    %94 = vector.shape_cast %26 : vector<16x1xi1> to vector<16x1xi1>
    %95 = vector.broadcast %94 : vector<16x1xi1> to vector<16x128xi1>
    %96 = arith.select %95, %57, %16 : vector<16x128xi1>, vector<16x128xf32>
    %97 = arith.maximumf %17, %59 : vector<16x128xf32>
    %98 = vector.shape_cast %26 : vector<16x1xi1> to vector<16x1xi1>
    %99 = vector.broadcast %98 : vector<16x1xi1> to vector<16x128xi1>
    %100 = arith.select %99, %97, %17 : vector<16x128xi1>, vector<16x128xf32>
    %101 = vector.shape_cast %28 : vector<16x1xi1> to vector<16x1xi1>
    %102 = vector.broadcast %101 : vector<16x1xi1> to vector<16x128xi1>
    %103 = arith.select %102, %90, %16 : vector<16x128xi1>, vector<16x128xf32>
    %104 = vector.shape_cast %28 : vector<16x1xi1> to vector<16x1xi1>
    %105 = vector.broadcast %104 : vector<16x1xi1> to vector<16x128xi1>
    %106 = arith.select %105, %88, %16 : vector<16x128xi1>, vector<16x128xf32>
    %107 = arith.maximumf %17, %90 : vector<16x128xf32>
    %108 = vector.shape_cast %28 : vector<16x1xi1> to vector<16x1xi1>
    %109 = vector.broadcast %108 : vector<16x1xi1> to vector<16x128xi1>
    %110 = arith.select %109, %107, %17 : vector<16x128xi1>, vector<16x128xf32>
    %c1_i32 = arith.constant 1 : i32
    %c7_i32_33 = arith.constant 7 : i32
    %111 = arith.subi %c7_i32_33, %c1_i32 : i32
    %112 = arith.index_cast %c1_i32 : i32 to index
    %c0_34 = arith.constant 0 : index
    %c0_35 = arith.constant 0 : index
    %113 = vector.load %arg8[%112, %c0_34, %c0_35] : memref<8x16x512xbf16, #tpu.memory_space<vmem>>, vector<1x16x512xbf16>
    %114 = vector.shape_cast %113 : vector<1x16x512xbf16> to vector<16x512xbf16>
    %115 = arith.index_cast %111 : i32 to index
    %c0_36 = arith.constant 0 : index
    %c0_37 = arith.constant 0 : index
    %116 = vector.load %arg9[%115, %c0_36, %c0_37] : memref<8x16x512xbf16, #tpu.memory_space<vmem>>, vector<1x16x512xbf16>
    %117 = vector.shape_cast %116 : vector<1x16x512xbf16> to vector<16x512xbf16>
    %118 = vector.broadcast %c1_i32 : i32 to vector<16x1xi32>
    %119 = arith.cmpi slt, %118, %0 : vector<16x1xi32>
    %120 = vector.broadcast %111 : i32 to vector<16x1xi32>
    %121 = arith.cmpi slt, %120, %0 : vector<16x1xi32>
    %122 = arith.extf %114 : vector<16x512xbf16> to vector<16x512xf32>
    %123 = vector.broadcast %14 : vector<1x512xf32> to vector<16x512xf32>
    %124 = arith.addf %122, %123 : vector<16x512xf32>
    %125 = arith.truncf %93 : vector<16x128xf32> to vector<16x128xbf16>
    %cst_38 = arith.constant dense<0.000000e+00> : vector<16x512xf32>
    %126 = tpu.matmul %125, %12, %cst_38 {dimension_numbers = #tpu.dot_dimension_numbers<[1], [0], [0], [1], [0, 0, 1, 1], [], []>} : vector<16x128xbf16>, vector<128x512xbf16>, vector<16x512xf32> -> vector<16x512xf32>
    %127 = arith.addf %124, %126 : vector<16x512xf32>
    %128 = vector.extract_strided_slice %127 {offsets = [0, 0], sizes = [16, 128], strides = [1, 1]} : vector<16x512xf32> to vector<16x128xf32>
    %129 = arith.negf %128 : vector<16x128xf32>
    %130 = math.exp %129 : vector<16x128xf32>
    %cst_39 = arith.constant 1.000000e+00 : f32
    %131 = vector.broadcast %cst_39 : f32 to vector<16x128xf32>
    %132 = arith.addf %131, %130 : vector<16x128xf32>
    %133 = arith.divf %131, %132 : vector<16x128xf32>
    %134 = vector.extract_strided_slice %127 {offsets = [0, 128], sizes = [16, 128], strides = [1, 1]} : vector<16x512xf32> to vector<16x128xf32>
    %135 = arith.negf %134 : vector<16x128xf32>
    %136 = math.exp %135 : vector<16x128xf32>
    %cst_40 = arith.constant 1.000000e+00 : f32
    %137 = vector.broadcast %cst_40 : f32 to vector<16x128xf32>
    %138 = arith.addf %137, %136 : vector<16x128xf32>
    %139 = arith.divf %137, %138 : vector<16x128xf32>
    %140 = vector.extract_strided_slice %127 {offsets = [0, 256], sizes = [16, 128], strides = [1, 1]} : vector<16x512xf32> to vector<16x128xf32>
    %141 = math.tanh %140 : vector<16x128xf32>
    %142 = vector.extract_strided_slice %127 {offsets = [0, 384], sizes = [16, 128], strides = [1, 1]} : vector<16x512xf32> to vector<16x128xf32>
    %143 = arith.negf %142 : vector<16x128xf32>
    %144 = math.exp %143 : vector<16x128xf32>
    %cst_41 = arith.constant 1.000000e+00 : f32
    %145 = vector.broadcast %cst_41 : f32 to vector<16x128xf32>
    %146 = arith.addf %145, %144 : vector<16x128xf32>
    %147 = arith.divf %145, %146 : vector<16x128xf32>
    %148 = arith.mulf %139, %96 : vector<16x128xf32>
    %149 = arith.mulf %133, %141 : vector<16x128xf32>
    %150 = arith.addf %148, %149 : vector<16x128xf32>
    %151 = math.tanh %150 : vector<16x128xf32>
    %152 = arith.mulf %147, %151 : vector<16x128xf32>
    %153 = arith.extf %117 : vector<16x512xbf16> to vector<16x512xf32>
    %154 = vector.broadcast %15 : vector<1x512xf32> to vector<16x512xf32>
    %155 = arith.addf %153, %154 : vector<16x512xf32>
    %156 = arith.truncf %103 : vector<16x128xf32> to vector<16x128xbf16>
    %cst_42 = arith.constant dense<0.000000e+00> : vector<16x512xf32>
    %157 = tpu.matmul %156, %13, %cst_42 {dimension_numbers = #tpu.dot_dimension_numbers<[1], [0], [0], [1], [0, 0, 1, 1], [], []>} : vector<16x128xbf16>, vector<128x512xbf16>, vector<16x512xf32> -> vector<16x512xf32>
    %158 = arith.addf %155, %157 : vector<16x512xf32>
    %159 = vector.extract_strided_slice %158 {offsets = [0, 0], sizes = [16, 128], strides = [1, 1]} : vector<16x512xf32> to vector<16x128xf32>
    %160 = arith.negf %159 : vector<16x128xf32>
    %161 = math.exp %160 : vector<16x128xf32>
    %cst_43 = arith.constant 1.000000e+00 : f32
    %162 = vector.broadcast %cst_43 : f32 to vector<16x128xf32>
    %163 = arith.addf %162, %161 : vector<16x128xf32>
    %164 = arith.divf %162, %163 : vector<16x128xf32>
    %165 = vector.extract_strided_slice %158 {offsets = [0, 128], sizes = [16, 128], strides = [1, 1]} : vector<16x512xf32> to vector<16x128xf32>
    %166 = arith.negf %165 : vector<16x128xf32>
    %167 = math.exp %166 : vector<16x128xf32>
    %cst_44 = arith.constant 1.000000e+00 : f32
    %168 = vector.broadcast %cst_44 : f32 to vector<16x128xf32>
    %169 = arith.addf %168, %167 : vector<16x128xf32>
    %170 = arith.divf %168, %169 : vector<16x128xf32>
    %171 = vector.extract_strided_slice %158 {offsets = [0, 256], sizes = [16, 128], strides = [1, 1]} : vector<16x512xf32> to vector<16x128xf32>
    %172 = math.tanh %171 : vector<16x128xf32>
    %173 = vector.extract_strided_slice %158 {offsets = [0, 384], sizes = [16, 128], strides = [1, 1]} : vector<16x512xf32> to vector<16x128xf32>
    %174 = arith.negf %173 : vector<16x128xf32>
    %175 = math.exp %174 : vector<16x128xf32>
    %cst_45 = arith.constant 1.000000e+00 : f32
    %176 = vector.broadcast %cst_45 : f32 to vector<16x128xf32>
    %177 = arith.addf %176, %175 : vector<16x128xf32>
    %178 = arith.divf %176, %177 : vector<16x128xf32>
    %179 = arith.mulf %170, %106 : vector<16x128xf32>
    %180 = arith.mulf %164, %172 : vector<16x128xf32>
    %181 = arith.addf %179, %180 : vector<16x128xf32>
    %182 = math.tanh %181 : vector<16x128xf32>
    %183 = arith.mulf %178, %182 : vector<16x128xf32>
    %184 = vector.shape_cast %119 : vector<16x1xi1> to vector<16x1xi1>
    %185 = vector.broadcast %184 : vector<16x1xi1> to vector<16x128xi1>
    %186 = arith.select %185, %152, %93 : vector<16x128xi1>, vector<16x128xf32>
    %187 = vector.shape_cast %119 : vector<16x1xi1> to vector<16x1xi1>
    %188 = vector.broadcast %187 : vector<16x1xi1> to vector<16x128xi1>
    %189 = arith.select %188, %150, %96 : vector<16x128xi1>, vector<16x128xf32>
    %190 = arith.maximumf %100, %152 : vector<16x128xf32>
    %191 = vector.shape_cast %119 : vector<16x1xi1> to vector<16x1xi1>
    %192 = vector.broadcast %191 : vector<16x1xi1> to vector<16x128xi1>
    %193 = arith.select %192, %190, %100 : vector<16x128xi1>, vector<16x128xf32>
    %194 = vector.shape_cast %121 : vector<16x1xi1> to vector<16x1xi1>
    %195 = vector.broadcast %194 : vector<16x1xi1> to vector<16x128xi1>
    %196 = arith.select %195, %183, %103 : vector<16x128xi1>, vector<16x128xf32>
    %197 = vector.shape_cast %121 : vector<16x1xi1> to vector<16x1xi1>
    %198 = vector.broadcast %197 : vector<16x1xi1> to vector<16x128xi1>
    %199 = arith.select %198, %181, %106 : vector<16x128xi1>, vector<16x128xf32>
    %200 = arith.maximumf %110, %183 : vector<16x128xf32>
    %201 = vector.shape_cast %121 : vector<16x1xi1> to vector<16x1xi1>
    %202 = vector.broadcast %201 : vector<16x1xi1> to vector<16x128xi1>
    %203 = arith.select %202, %200, %110 : vector<16x128xi1>, vector<16x128xf32>
    %c2_i32 = arith.constant 2 : i32
    %c7_i32_46 = arith.constant 7 : i32
    %204 = arith.subi %c7_i32_46, %c2_i32 : i32
    %205 = arith.index_cast %c2_i32 : i32 to index
    %c0_47 = arith.constant 0 : index
    %c0_48 = arith.constant 0 : index
    %206 = vector.load %arg8[%205, %c0_47, %c0_48] : memref<8x16x512xbf16, #tpu.memory_space<vmem>>, vector<1x16x512xbf16>
    %207 = vector.shape_cast %206 : vector<1x16x512xbf16> to vector<16x512xbf16>
    %208 = arith.index_cast %204 : i32 to index
    %c0_49 = arith.constant 0 : index
    %c0_50 = arith.constant 0 : index
    %209 = vector.load %arg9[%208, %c0_49, %c0_50] : memref<8x16x512xbf16, #tpu.memory_space<vmem>>, vector<1x16x512xbf16>
    %210 = vector.shape_cast %209 : vector<1x16x512xbf16> to vector<16x512xbf16>
    %211 = vector.broadcast %c2_i32 : i32 to vector<16x1xi32>
    %212 = arith.cmpi slt, %211, %0 : vector<16x1xi32>
    %213 = vector.broadcast %204 : i32 to vector<16x1xi32>
    %214 = arith.cmpi slt, %213, %0 : vector<16x1xi32>
    %215 = arith.extf %207 : vector<16x512xbf16> to vector<16x512xf32>
    %216 = vector.broadcast %14 : vector<1x512xf32> to vector<16x512xf32>
    %217 = arith.addf %215, %216 : vector<16x512xf32>
    %218 = arith.truncf %186 : vector<16x128xf32> to vector<16x128xbf16>
    %cst_51 = arith.constant dense<0.000000e+00> : vector<16x512xf32>
    %219 = tpu.matmul %218, %12, %cst_51 {dimension_numbers = #tpu.dot_dimension_numbers<[1], [0], [0], [1], [0, 0, 1, 1], [], []>} : vector<16x128xbf16>, vector<128x512xbf16>, vector<16x512xf32> -> vector<16x512xf32>
    %220 = arith.addf %217, %219 : vector<16x512xf32>
    %221 = vector.extract_strided_slice %220 {offsets = [0, 0], sizes = [16, 128], strides = [1, 1]} : vector<16x512xf32> to vector<16x128xf32>
    %222 = arith.negf %221 : vector<16x128xf32>
    %223 = math.exp %222 : vector<16x128xf32>
    %cst_52 = arith.constant 1.000000e+00 : f32
    %224 = vector.broadcast %cst_52 : f32 to vector<16x128xf32>
    %225 = arith.addf %224, %223 : vector<16x128xf32>
    %226 = arith.divf %224, %225 : vector<16x128xf32>
    %227 = vector.extract_strided_slice %220 {offsets = [0, 128], sizes = [16, 128], strides = [1, 1]} : vector<16x512xf32> to vector<16x128xf32>
    %228 = arith.negf %227 : vector<16x128xf32>
    %229 = math.exp %228 : vector<16x128xf32>
    %cst_53 = arith.constant 1.000000e+00 : f32
    %230 = vector.broadcast %cst_53 : f32 to vector<16x128xf32>
    %231 = arith.addf %230, %229 : vector<16x128xf32>
    %232 = arith.divf %230, %231 : vector<16x128xf32>
    %233 = vector.extract_strided_slice %220 {offsets = [0, 256], sizes = [16, 128], strides = [1, 1]} : vector<16x512xf32> to vector<16x128xf32>
    %234 = math.tanh %233 : vector<16x128xf32>
    %235 = vector.extract_strided_slice %220 {offsets = [0, 384], sizes = [16, 128], strides = [1, 1]} : vector<16x512xf32> to vector<16x128xf32>
    %236 = arith.negf %235 : vector<16x128xf32>
    %237 = math.exp %236 : vector<16x128xf32>
    %cst_54 = arith.constant 1.000000e+00 : f32
    %238 = vector.broadcast %cst_54 : f32 to vector<16x128xf32>
    %239 = arith.addf %238, %237 : vector<16x128xf32>
    %240 = arith.divf %238, %239 : vector<16x128xf32>
    %241 = arith.mulf %232, %189 : vector<16x128xf32>
    %242 = arith.mulf %226, %234 : vector<16x128xf32>
    %243 = arith.addf %241, %242 : vector<16x128xf32>
    %244 = math.tanh %243 : vector<16x128xf32>
    %245 = arith.mulf %240, %244 : vector<16x128xf32>
    %246 = arith.extf %210 : vector<16x512xbf16> to vector<16x512xf32>
    %247 = vector.broadcast %15 : vector<1x512xf32> to vector<16x512xf32>
    %248 = arith.addf %246, %247 : vector<16x512xf32>
    %249 = arith.truncf %196 : vector<16x128xf32> to vector<16x128xbf16>
    %cst_55 = arith.constant dense<0.000000e+00> : vector<16x512xf32>
    %250 = tpu.matmul %249, %13, %cst_55 {dimension_numbers = #tpu.dot_dimension_numbers<[1], [0], [0], [1], [0, 0, 1, 1], [], []>} : vector<16x128xbf16>, vector<128x512xbf16>, vector<16x512xf32> -> vector<16x512xf32>
    %251 = arith.addf %248, %250 : vector<16x512xf32>
    %252 = vector.extract_strided_slice %251 {offsets = [0, 0], sizes = [16, 128], strides = [1, 1]} : vector<16x512xf32> to vector<16x128xf32>
    %253 = arith.negf %252 : vector<16x128xf32>
    %254 = math.exp %253 : vector<16x128xf32>
    %cst_56 = arith.constant 1.000000e+00 : f32
    %255 = vector.broadcast %cst_56 : f32 to vector<16x128xf32>
    %256 = arith.addf %255, %254 : vector<16x128xf32>
    %257 = arith.divf %255, %256 : vector<16x128xf32>
    %258 = vector.extract_strided_slice %251 {offsets = [0, 128], sizes = [16, 128], strides = [1, 1]} : vector<16x512xf32> to vector<16x128xf32>
    %259 = arith.negf %258 : vector<16x128xf32>
    %260 = math.exp %259 : vector<16x128xf32>
    %cst_57 = arith.constant 1.000000e+00 : f32
    %261 = vector.broadcast %cst_57 : f32 to vector<16x128xf32>
    %262 = arith.addf %261, %260 : vector<16x128xf32>
    %263 = arith.divf %261, %262 : vector<16x128xf32>
    %264 = vector.extract_strided_slice %251 {offsets = [0, 256], sizes = [16, 128], strides = [1, 1]} : vector<16x512xf32> to vector<16x128xf32>
    %265 = math.tanh %264 : vector<16x128xf32>
    %266 = vector.extract_strided_slice %251 {offsets = [0, 384], sizes = [16, 128], strides = [1, 1]} : vector<16x512xf32> to vector<16x128xf32>
    %267 = arith.negf %266 : vector<16x128xf32>
    %268 = math.exp %267 : vector<16x128xf32>
    %cst_58 = arith.constant 1.000000e+00 : f32
    %269 = vector.broadcast %cst_58 : f32 to vector<16x128xf32>
    %270 = arith.addf %269, %268 : vector<16x128xf32>
    %271 = arith.divf %269, %270 : vector<16x128xf32>
    %272 = arith.mulf %263, %199 : vector<16x128xf32>
    %273 = arith.mulf %257, %265 : vector<16x128xf32>
    %274 = arith.addf %272, %273 : vector<16x128xf32>
    %275 = math.tanh %274 : vector<16x128xf32>
    %276 = arith.mulf %271, %275 : vector<16x128xf32>
    %277 = vector.shape_cast %212 : vector<16x1xi1> to vector<16x1xi1>
    %278 = vector.broadcast %277 : vector<16x1xi1> to vector<16x128xi1>
    %279 = arith.select %278, %245, %186 : vector<16x128xi1>, vector<16x128xf32>
    %280 = vector.shape_cast %212 : vector<16x1xi1> to vector<16x1xi1>
    %281 = vector.broadcast %280 : vector<16x1xi1> to vector<16x128xi1>
    %282 = arith.select %281, %243, %189 : vector<16x128xi1>, vector<16x128xf32>
    %283 = arith.maximumf %193, %245 : vector<16x128xf32>
    %284 = vector.shape_cast %212 : vector<16x1xi1> to vector<16x1xi1>
    %285 = vector.broadcast %284 : vector<16x1xi1> to vector<16x128xi1>
    %286 = arith.select %285, %283, %193 : vector<16x128xi1>, vector<16x128xf32>
    %287 = vector.shape_cast %214 : vector<16x1xi1> to vector<16x1xi1>
    %288 = vector.broadcast %287 : vector<16x1xi1> to vector<16x128xi1>
    %289 = arith.select %288, %276, %196 : vector<16x128xi1>, vector<16x128xf32>
    %290 = vector.shape_cast %214 : vector<16x1xi1> to vector<16x1xi1>
    %291 = vector.broadcast %290 : vector<16x1xi1> to vector<16x128xi1>
    %292 = arith.select %291, %274, %199 : vector<16x128xi1>, vector<16x128xf32>
    %293 = arith.maximumf %203, %276 : vector<16x128xf32>
    %294 = vector.shape_cast %214 : vector<16x1xi1> to vector<16x1xi1>
    %295 = vector.broadcast %294 : vector<16x1xi1> to vector<16x128xi1>
    %296 = arith.select %295, %293, %203 : vector<16x128xi1>, vector<16x128xf32>
    %c3_i32 = arith.constant 3 : i32
    %c7_i32_59 = arith.constant 7 : i32
    %297 = arith.subi %c7_i32_59, %c3_i32 : i32
    %298 = arith.index_cast %c3_i32 : i32 to index
    %c0_60 = arith.constant 0 : index
    %c0_61 = arith.constant 0 : index
    %299 = vector.load %arg8[%298, %c0_60, %c0_61] : memref<8x16x512xbf16, #tpu.memory_space<vmem>>, vector<1x16x512xbf16>
    %300 = vector.shape_cast %299 : vector<1x16x512xbf16> to vector<16x512xbf16>
    %301 = arith.index_cast %297 : i32 to index
    %c0_62 = arith.constant 0 : index
    %c0_63 = arith.constant 0 : index
    %302 = vector.load %arg9[%301, %c0_62, %c0_63] : memref<8x16x512xbf16, #tpu.memory_space<vmem>>, vector<1x16x512xbf16>
    %303 = vector.shape_cast %302 : vector<1x16x512xbf16> to vector<16x512xbf16>
    %304 = vector.broadcast %c3_i32 : i32 to vector<16x1xi32>
    %305 = arith.cmpi slt, %304, %0 : vector<16x1xi32>
    %306 = vector.broadcast %297 : i32 to vector<16x1xi32>
    %307 = arith.cmpi slt, %306, %0 : vector<16x1xi32>
    %308 = arith.extf %300 : vector<16x512xbf16> to vector<16x512xf32>
    %309 = vector.broadcast %14 : vector<1x512xf32> to vector<16x512xf32>
    %310 = arith.addf %308, %309 : vector<16x512xf32>
    %311 = arith.truncf %279 : vector<16x128xf32> to vector<16x128xbf16>
    %cst_64 = arith.constant dense<0.000000e+00> : vector<16x512xf32>
    %312 = tpu.matmul %311, %12, %cst_64 {dimension_numbers = #tpu.dot_dimension_numbers<[1], [0], [0], [1], [0, 0, 1, 1], [], []>} : vector<16x128xbf16>, vector<128x512xbf16>, vector<16x512xf32> -> vector<16x512xf32>
    %313 = arith.addf %310, %312 : vector<16x512xf32>
    %314 = vector.extract_strided_slice %313 {offsets = [0, 0], sizes = [16, 128], strides = [1, 1]} : vector<16x512xf32> to vector<16x128xf32>
    %315 = arith.negf %314 : vector<16x128xf32>
    %316 = math.exp %315 : vector<16x128xf32>
    %cst_65 = arith.constant 1.000000e+00 : f32
    %317 = vector.broadcast %cst_65 : f32 to vector<16x128xf32>
    %318 = arith.addf %317, %316 : vector<16x128xf32>
    %319 = arith.divf %317, %318 : vector<16x128xf32>
    %320 = vector.extract_strided_slice %313 {offsets = [0, 128], sizes = [16, 128], strides = [1, 1]} : vector<16x512xf32> to vector<16x128xf32>
    %321 = arith.negf %320 : vector<16x128xf32>
    %322 = math.exp %321 : vector<16x128xf32>
    %cst_66 = arith.constant 1.000000e+00 : f32
    %323 = vector.broadcast %cst_66 : f32 to vector<16x128xf32>
    %324 = arith.addf %323, %322 : vector<16x128xf32>
    %325 = arith.divf %323, %324 : vector<16x128xf32>
    %326 = vector.extract_strided_slice %313 {offsets = [0, 256], sizes = [16, 128], strides = [1, 1]} : vector<16x512xf32> to vector<16x128xf32>
    %327 = math.tanh %326 : vector<16x128xf32>
    %328 = vector.extract_strided_slice %313 {offsets = [0, 384], sizes = [16, 128], strides = [1, 1]} : vector<16x512xf32> to vector<16x128xf32>
    %329 = arith.negf %328 : vector<16x128xf32>
    %330 = math.exp %329 : vector<16x128xf32>
    %cst_67 = arith.constant 1.000000e+00 : f32
    %331 = vector.broadcast %cst_67 : f32 to vector<16x128xf32>
    %332 = arith.addf %331, %330 : vector<16x128xf32>
    %333 = arith.divf %331, %332 : vector<16x128xf32>
    %334 = arith.mulf %325, %282 : vector<16x128xf32>
    %335 = arith.mulf %319, %327 : vector<16x128xf32>
    %336 = arith.addf %334, %335 : vector<16x128xf32>
    %337 = math.tanh %336 : vector<16x128xf32>
    %338 = arith.mulf %333, %337 : vector<16x128xf32>
    %339 = arith.extf %303 : vector<16x512xbf16> to vector<16x512xf32>
    %340 = vector.broadcast %15 : vector<1x512xf32> to vector<16x512xf32>
    %341 = arith.addf %339, %340 : vector<16x512xf32>
    %342 = arith.truncf %289 : vector<16x128xf32> to vector<16x128xbf16>
    %cst_68 = arith.constant dense<0.000000e+00> : vector<16x512xf32>
    %343 = tpu.matmul %342, %13, %cst_68 {dimension_numbers = #tpu.dot_dimension_numbers<[1], [0], [0], [1], [0, 0, 1, 1], [], []>} : vector<16x128xbf16>, vector<128x512xbf16>, vector<16x512xf32> -> vector<16x512xf32>
    %344 = arith.addf %341, %343 : vector<16x512xf32>
    %345 = vector.extract_strided_slice %344 {offsets = [0, 0], sizes = [16, 128], strides = [1, 1]} : vector<16x512xf32> to vector<16x128xf32>
    %346 = arith.negf %345 : vector<16x128xf32>
    %347 = math.exp %346 : vector<16x128xf32>
    %cst_69 = arith.constant 1.000000e+00 : f32
    %348 = vector.broadcast %cst_69 : f32 to vector<16x128xf32>
    %349 = arith.addf %348, %347 : vector<16x128xf32>
    %350 = arith.divf %348, %349 : vector<16x128xf32>
    %351 = vector.extract_strided_slice %344 {offsets = [0, 128], sizes = [16, 128], strides = [1, 1]} : vector<16x512xf32> to vector<16x128xf32>
    %352 = arith.negf %351 : vector<16x128xf32>
    %353 = math.exp %352 : vector<16x128xf32>
    %cst_70 = arith.constant 1.000000e+00 : f32
    %354 = vector.broadcast %cst_70 : f32 to vector<16x128xf32>
    %355 = arith.addf %354, %353 : vector<16x128xf32>
    %356 = arith.divf %354, %355 : vector<16x128xf32>
    %357 = vector.extract_strided_slice %344 {offsets = [0, 256], sizes = [16, 128], strides = [1, 1]} : vector<16x512xf32> to vector<16x128xf32>
    %358 = math.tanh %357 : vector<16x128xf32>
    %359 = vector.extract_strided_slice %344 {offsets = [0, 384], sizes = [16, 128], strides = [1, 1]} : vector<16x512xf32> to vector<16x128xf32>
    %360 = arith.negf %359 : vector<16x128xf32>
    %361 = math.exp %360 : vector<16x128xf32>
    %cst_71 = arith.constant 1.000000e+00 : f32
    %362 = vector.broadcast %cst_71 : f32 to vector<16x128xf32>
    %363 = arith.addf %362, %361 : vector<16x128xf32>
    %364 = arith.divf %362, %363 : vector<16x128xf32>
    %365 = arith.mulf %356, %292 : vector<16x128xf32>
    %366 = arith.mulf %350, %358 : vector<16x128xf32>
    %367 = arith.addf %365, %366 : vector<16x128xf32>
    %368 = math.tanh %367 : vector<16x128xf32>
    %369 = arith.mulf %364, %368 : vector<16x128xf32>
    %370 = vector.shape_cast %305 : vector<16x1xi1> to vector<16x1xi1>
    %371 = vector.broadcast %370 : vector<16x1xi1> to vector<16x128xi1>
    %372 = arith.select %371, %338, %279 : vector<16x128xi1>, vector<16x128xf32>
    %373 = vector.shape_cast %305 : vector<16x1xi1> to vector<16x1xi1>
    %374 = vector.broadcast %373 : vector<16x1xi1> to vector<16x128xi1>
    %375 = arith.select %374, %336, %282 : vector<16x128xi1>, vector<16x128xf32>
    %376 = arith.maximumf %286, %338 : vector<16x128xf32>
    %377 = vector.shape_cast %305 : vector<16x1xi1> to vector<16x1xi1>
    %378 = vector.broadcast %377 : vector<16x1xi1> to vector<16x128xi1>
    %379 = arith.select %378, %376, %286 : vector<16x128xi1>, vector<16x128xf32>
    %380 = vector.shape_cast %307 : vector<16x1xi1> to vector<16x1xi1>
    %381 = vector.broadcast %380 : vector<16x1xi1> to vector<16x128xi1>
    %382 = arith.select %381, %369, %289 : vector<16x128xi1>, vector<16x128xf32>
    %383 = vector.shape_cast %307 : vector<16x1xi1> to vector<16x1xi1>
    %384 = vector.broadcast %383 : vector<16x1xi1> to vector<16x128xi1>
    %385 = arith.select %384, %367, %292 : vector<16x128xi1>, vector<16x128xf32>
    %386 = arith.maximumf %296, %369 : vector<16x128xf32>
    %387 = vector.shape_cast %307 : vector<16x1xi1> to vector<16x1xi1>
    %388 = vector.broadcast %387 : vector<16x1xi1> to vector<16x128xi1>
    %389 = arith.select %388, %386, %296 : vector<16x128xi1>, vector<16x128xf32>
    %c4_i32 = arith.constant 4 : i32
    %c7_i32_72 = arith.constant 7 : i32
    %390 = arith.subi %c7_i32_72, %c4_i32 : i32
    %391 = arith.index_cast %c4_i32 : i32 to index
    %c0_73 = arith.constant 0 : index
    %c0_74 = arith.constant 0 : index
    %392 = vector.load %arg8[%391, %c0_73, %c0_74] : memref<8x16x512xbf16, #tpu.memory_space<vmem>>, vector<1x16x512xbf16>
    %393 = vector.shape_cast %392 : vector<1x16x512xbf16> to vector<16x512xbf16>
    %394 = arith.index_cast %390 : i32 to index
    %c0_75 = arith.constant 0 : index
    %c0_76 = arith.constant 0 : index
    %395 = vector.load %arg9[%394, %c0_75, %c0_76] : memref<8x16x512xbf16, #tpu.memory_space<vmem>>, vector<1x16x512xbf16>
    %396 = vector.shape_cast %395 : vector<1x16x512xbf16> to vector<16x512xbf16>
    %397 = vector.broadcast %c4_i32 : i32 to vector<16x1xi32>
    %398 = arith.cmpi slt, %397, %0 : vector<16x1xi32>
    %399 = vector.broadcast %390 : i32 to vector<16x1xi32>
    %400 = arith.cmpi slt, %399, %0 : vector<16x1xi32>
    %401 = arith.extf %393 : vector<16x512xbf16> to vector<16x512xf32>
    %402 = vector.broadcast %14 : vector<1x512xf32> to vector<16x512xf32>
    %403 = arith.addf %401, %402 : vector<16x512xf32>
    %404 = arith.truncf %372 : vector<16x128xf32> to vector<16x128xbf16>
    %cst_77 = arith.constant dense<0.000000e+00> : vector<16x512xf32>
    %405 = tpu.matmul %404, %12, %cst_77 {dimension_numbers = #tpu.dot_dimension_numbers<[1], [0], [0], [1], [0, 0, 1, 1], [], []>} : vector<16x128xbf16>, vector<128x512xbf16>, vector<16x512xf32> -> vector<16x512xf32>
    %406 = arith.addf %403, %405 : vector<16x512xf32>
    %407 = vector.extract_strided_slice %406 {offsets = [0, 0], sizes = [16, 128], strides = [1, 1]} : vector<16x512xf32> to vector<16x128xf32>
    %408 = arith.negf %407 : vector<16x128xf32>
    %409 = math.exp %408 : vector<16x128xf32>
    %cst_78 = arith.constant 1.000000e+00 : f32
    %410 = vector.broadcast %cst_78 : f32 to vector<16x128xf32>
    %411 = arith.addf %410, %409 : vector<16x128xf32>
    %412 = arith.divf %410, %411 : vector<16x128xf32>
    %413 = vector.extract_strided_slice %406 {offsets = [0, 128], sizes = [16, 128], strides = [1, 1]} : vector<16x512xf32> to vector<16x128xf32>
    %414 = arith.negf %413 : vector<16x128xf32>
    %415 = math.exp %414 : vector<16x128xf32>
    %cst_79 = arith.constant 1.000000e+00 : f32
    %416 = vector.broadcast %cst_79 : f32 to vector<16x128xf32>
    %417 = arith.addf %416, %415 : vector<16x128xf32>
    %418 = arith.divf %416, %417 : vector<16x128xf32>
    %419 = vector.extract_strided_slice %406 {offsets = [0, 256], sizes = [16, 128], strides = [1, 1]} : vector<16x512xf32> to vector<16x128xf32>
    %420 = math.tanh %419 : vector<16x128xf32>
    %421 = vector.extract_strided_slice %406 {offsets = [0, 384], sizes = [16, 128], strides = [1, 1]} : vector<16x512xf32> to vector<16x128xf32>
    %422 = arith.negf %421 : vector<16x128xf32>
    %423 = math.exp %422 : vector<16x128xf32>
    %cst_80 = arith.constant 1.000000e+00 : f32
    %424 = vector.broadcast %cst_80 : f32 to vector<16x128xf32>
    %425 = arith.addf %424, %423 : vector<16x128xf32>
    %426 = arith.divf %424, %425 : vector<16x128xf32>
    %427 = arith.mulf %418, %375 : vector<16x128xf32>
    %428 = arith.mulf %412, %420 : vector<16x128xf32>
    %429 = arith.addf %427, %428 : vector<16x128xf32>
    %430 = math.tanh %429 : vector<16x128xf32>
    %431 = arith.mulf %426, %430 : vector<16x128xf32>
    %432 = arith.extf %396 : vector<16x512xbf16> to vector<16x512xf32>
    %433 = vector.broadcast %15 : vector<1x512xf32> to vector<16x512xf32>
    %434 = arith.addf %432, %433 : vector<16x512xf32>
    %435 = arith.truncf %382 : vector<16x128xf32> to vector<16x128xbf16>
    %cst_81 = arith.constant dense<0.000000e+00> : vector<16x512xf32>
    %436 = tpu.matmul %435, %13, %cst_81 {dimension_numbers = #tpu.dot_dimension_numbers<[1], [0], [0], [1], [0, 0, 1, 1], [], []>} : vector<16x128xbf16>, vector<128x512xbf16>, vector<16x512xf32> -> vector<16x512xf32>
    %437 = arith.addf %434, %436 : vector<16x512xf32>
    %438 = vector.extract_strided_slice %437 {offsets = [0, 0], sizes = [16, 128], strides = [1, 1]} : vector<16x512xf32> to vector<16x128xf32>
    %439 = arith.negf %438 : vector<16x128xf32>
    %440 = math.exp %439 : vector<16x128xf32>
    %cst_82 = arith.constant 1.000000e+00 : f32
    %441 = vector.broadcast %cst_82 : f32 to vector<16x128xf32>
    %442 = arith.addf %441, %440 : vector<16x128xf32>
    %443 = arith.divf %441, %442 : vector<16x128xf32>
    %444 = vector.extract_strided_slice %437 {offsets = [0, 128], sizes = [16, 128], strides = [1, 1]} : vector<16x512xf32> to vector<16x128xf32>
    %445 = arith.negf %444 : vector<16x128xf32>
    %446 = math.exp %445 : vector<16x128xf32>
    %cst_83 = arith.constant 1.000000e+00 : f32
    %447 = vector.broadcast %cst_83 : f32 to vector<16x128xf32>
    %448 = arith.addf %447, %446 : vector<16x128xf32>
    %449 = arith.divf %447, %448 : vector<16x128xf32>
    %450 = vector.extract_strided_slice %437 {offsets = [0, 256], sizes = [16, 128], strides = [1, 1]} : vector<16x512xf32> to vector<16x128xf32>
    %451 = math.tanh %450 : vector<16x128xf32>
    %452 = vector.extract_strided_slice %437 {offsets = [0, 384], sizes = [16, 128], strides = [1, 1]} : vector<16x512xf32> to vector<16x128xf32>
    %453 = arith.negf %452 : vector<16x128xf32>
    %454 = math.exp %453 : vector<16x128xf32>
    %cst_84 = arith.constant 1.000000e+00 : f32
    %455 = vector.broadcast %cst_84 : f32 to vector<16x128xf32>
    %456 = arith.addf %455, %454 : vector<16x128xf32>
    %457 = arith.divf %455, %456 : vector<16x128xf32>
    %458 = arith.mulf %449, %385 : vector<16x128xf32>
    %459 = arith.mulf %443, %451 : vector<16x128xf32>
    %460 = arith.addf %458, %459 : vector<16x128xf32>
    %461 = math.tanh %460 : vector<16x128xf32>
    %462 = arith.mulf %457, %461 : vector<16x128xf32>
    %463 = vector.shape_cast %398 : vector<16x1xi1> to vector<16x1xi1>
    %464 = vector.broadcast %463 : vector<16x1xi1> to vector<16x128xi1>
    %465 = arith.select %464, %431, %372 : vector<16x128xi1>, vector<16x128xf32>
    %466 = vector.shape_cast %398 : vector<16x1xi1> to vector<16x1xi1>
    %467 = vector.broadcast %466 : vector<16x1xi1> to vector<16x128xi1>
    %468 = arith.select %467, %429, %375 : vector<16x128xi1>, vector<16x128xf32>
    %469 = arith.maximumf %379, %431 : vector<16x128xf32>
    %470 = vector.shape_cast %398 : vector<16x1xi1> to vector<16x1xi1>
    %471 = vector.broadcast %470 : vector<16x1xi1> to vector<16x128xi1>
    %472 = arith.select %471, %469, %379 : vector<16x128xi1>, vector<16x128xf32>
    %473 = vector.shape_cast %400 : vector<16x1xi1> to vector<16x1xi1>
    %474 = vector.broadcast %473 : vector<16x1xi1> to vector<16x128xi1>
    %475 = arith.select %474, %462, %382 : vector<16x128xi1>, vector<16x128xf32>
    %476 = vector.shape_cast %400 : vector<16x1xi1> to vector<16x1xi1>
    %477 = vector.broadcast %476 : vector<16x1xi1> to vector<16x128xi1>
    %478 = arith.select %477, %460, %385 : vector<16x128xi1>, vector<16x128xf32>
    %479 = arith.maximumf %389, %462 : vector<16x128xf32>
    %480 = vector.shape_cast %400 : vector<16x1xi1> to vector<16x1xi1>
    %481 = vector.broadcast %480 : vector<16x1xi1> to vector<16x128xi1>
    %482 = arith.select %481, %479, %389 : vector<16x128xi1>, vector<16x128xf32>
    %c5_i32 = arith.constant 5 : i32
    %c7_i32_85 = arith.constant 7 : i32
    %483 = arith.subi %c7_i32_85, %c5_i32 : i32
    %484 = arith.index_cast %c5_i32 : i32 to index
    %c0_86 = arith.constant 0 : index
    %c0_87 = arith.constant 0 : index
    %485 = vector.load %arg8[%484, %c0_86, %c0_87] : memref<8x16x512xbf16, #tpu.memory_space<vmem>>, vector<1x16x512xbf16>
    %486 = vector.shape_cast %485 : vector<1x16x512xbf16> to vector<16x512xbf16>
    %487 = arith.index_cast %483 : i32 to index
    %c0_88 = arith.constant 0 : index
    %c0_89 = arith.constant 0 : index
    %488 = vector.load %arg9[%487, %c0_88, %c0_89] : memref<8x16x512xbf16, #tpu.memory_space<vmem>>, vector<1x16x512xbf16>
    %489 = vector.shape_cast %488 : vector<1x16x512xbf16> to vector<16x512xbf16>
    %490 = vector.broadcast %c5_i32 : i32 to vector<16x1xi32>
    %491 = arith.cmpi slt, %490, %0 : vector<16x1xi32>
    %492 = vector.broadcast %483 : i32 to vector<16x1xi32>
    %493 = arith.cmpi slt, %492, %0 : vector<16x1xi32>
    %494 = arith.extf %486 : vector<16x512xbf16> to vector<16x512xf32>
    %495 = vector.broadcast %14 : vector<1x512xf32> to vector<16x512xf32>
    %496 = arith.addf %494, %495 : vector<16x512xf32>
    %497 = arith.truncf %465 : vector<16x128xf32> to vector<16x128xbf16>
    %cst_90 = arith.constant dense<0.000000e+00> : vector<16x512xf32>
    %498 = tpu.matmul %497, %12, %cst_90 {dimension_numbers = #tpu.dot_dimension_numbers<[1], [0], [0], [1], [0, 0, 1, 1], [], []>} : vector<16x128xbf16>, vector<128x512xbf16>, vector<16x512xf32> -> vector<16x512xf32>
    %499 = arith.addf %496, %498 : vector<16x512xf32>
    %500 = vector.extract_strided_slice %499 {offsets = [0, 0], sizes = [16, 128], strides = [1, 1]} : vector<16x512xf32> to vector<16x128xf32>
    %501 = arith.negf %500 : vector<16x128xf32>
    %502 = math.exp %501 : vector<16x128xf32>
    %cst_91 = arith.constant 1.000000e+00 : f32
    %503 = vector.broadcast %cst_91 : f32 to vector<16x128xf32>
    %504 = arith.addf %503, %502 : vector<16x128xf32>
    %505 = arith.divf %503, %504 : vector<16x128xf32>
    %506 = vector.extract_strided_slice %499 {offsets = [0, 128], sizes = [16, 128], strides = [1, 1]} : vector<16x512xf32> to vector<16x128xf32>
    %507 = arith.negf %506 : vector<16x128xf32>
    %508 = math.exp %507 : vector<16x128xf32>
    %cst_92 = arith.constant 1.000000e+00 : f32
    %509 = vector.broadcast %cst_92 : f32 to vector<16x128xf32>
    %510 = arith.addf %509, %508 : vector<16x128xf32>
    %511 = arith.divf %509, %510 : vector<16x128xf32>
    %512 = vector.extract_strided_slice %499 {offsets = [0, 256], sizes = [16, 128], strides = [1, 1]} : vector<16x512xf32> to vector<16x128xf32>
    %513 = math.tanh %512 : vector<16x128xf32>
    %514 = vector.extract_strided_slice %499 {offsets = [0, 384], sizes = [16, 128], strides = [1, 1]} : vector<16x512xf32> to vector<16x128xf32>
    %515 = arith.negf %514 : vector<16x128xf32>
    %516 = math.exp %515 : vector<16x128xf32>
    %cst_93 = arith.constant 1.000000e+00 : f32
    %517 = vector.broadcast %cst_93 : f32 to vector<16x128xf32>
    %518 = arith.addf %517, %516 : vector<16x128xf32>
    %519 = arith.divf %517, %518 : vector<16x128xf32>
    %520 = arith.mulf %511, %468 : vector<16x128xf32>
    %521 = arith.mulf %505, %513 : vector<16x128xf32>
    %522 = arith.addf %520, %521 : vector<16x128xf32>
    %523 = math.tanh %522 : vector<16x128xf32>
    %524 = arith.mulf %519, %523 : vector<16x128xf32>
    %525 = arith.extf %489 : vector<16x512xbf16> to vector<16x512xf32>
    %526 = vector.broadcast %15 : vector<1x512xf32> to vector<16x512xf32>
    %527 = arith.addf %525, %526 : vector<16x512xf32>
    %528 = arith.truncf %475 : vector<16x128xf32> to vector<16x128xbf16>
    %cst_94 = arith.constant dense<0.000000e+00> : vector<16x512xf32>
    %529 = tpu.matmul %528, %13, %cst_94 {dimension_numbers = #tpu.dot_dimension_numbers<[1], [0], [0], [1], [0, 0, 1, 1], [], []>} : vector<16x128xbf16>, vector<128x512xbf16>, vector<16x512xf32> -> vector<16x512xf32>
    %530 = arith.addf %527, %529 : vector<16x512xf32>
    %531 = vector.extract_strided_slice %530 {offsets = [0, 0], sizes = [16, 128], strides = [1, 1]} : vector<16x512xf32> to vector<16x128xf32>
    %532 = arith.negf %531 : vector<16x128xf32>
    %533 = math.exp %532 : vector<16x128xf32>
    %cst_95 = arith.constant 1.000000e+00 : f32
    %534 = vector.broadcast %cst_95 : f32 to vector<16x128xf32>
    %535 = arith.addf %534, %533 : vector<16x128xf32>
    %536 = arith.divf %534, %535 : vector<16x128xf32>
    %537 = vector.extract_strided_slice %530 {offsets = [0, 128], sizes = [16, 128], strides = [1, 1]} : vector<16x512xf32> to vector<16x128xf32>
    %538 = arith.negf %537 : vector<16x128xf32>
    %539 = math.exp %538 : vector<16x128xf32>
    %cst_96 = arith.constant 1.000000e+00 : f32
    %540 = vector.broadcast %cst_96 : f32 to vector<16x128xf32>
    %541 = arith.addf %540, %539 : vector<16x128xf32>
    %542 = arith.divf %540, %541 : vector<16x128xf32>
    %543 = vector.extract_strided_slice %530 {offsets = [0, 256], sizes = [16, 128], strides = [1, 1]} : vector<16x512xf32> to vector<16x128xf32>
    %544 = math.tanh %543 : vector<16x128xf32>
    %545 = vector.extract_strided_slice %530 {offsets = [0, 384], sizes = [16, 128], strides = [1, 1]} : vector<16x512xf32> to vector<16x128xf32>
    %546 = arith.negf %545 : vector<16x128xf32>
    %547 = math.exp %546 : vector<16x128xf32>
    %cst_97 = arith.constant 1.000000e+00 : f32
    %548 = vector.broadcast %cst_97 : f32 to vector<16x128xf32>
    %549 = arith.addf %548, %547 : vector<16x128xf32>
    %550 = arith.divf %548, %549 : vector<16x128xf32>
    %551 = arith.mulf %542, %478 : vector<16x128xf32>
    %552 = arith.mulf %536, %544 : vector<16x128xf32>
    %553 = arith.addf %551, %552 : vector<16x128xf32>
    %554 = math.tanh %553 : vector<16x128xf32>
    %555 = arith.mulf %550, %554 : vector<16x128xf32>
    %556 = vector.shape_cast %491 : vector<16x1xi1> to vector<16x1xi1>
    %557 = vector.broadcast %556 : vector<16x1xi1> to vector<16x128xi1>
    %558 = arith.select %557, %524, %465 : vector<16x128xi1>, vector<16x128xf32>
    %559 = vector.shape_cast %491 : vector<16x1xi1> to vector<16x1xi1>
    %560 = vector.broadcast %559 : vector<16x1xi1> to vector<16x128xi1>
    %561 = arith.select %560, %522, %468 : vector<16x128xi1>, vector<16x128xf32>
    %562 = arith.maximumf %472, %524 : vector<16x128xf32>
    %563 = vector.shape_cast %491 : vector<16x1xi1> to vector<16x1xi1>
    %564 = vector.broadcast %563 : vector<16x1xi1> to vector<16x128xi1>
    %565 = arith.select %564, %562, %472 : vector<16x128xi1>, vector<16x128xf32>
    %566 = vector.shape_cast %493 : vector<16x1xi1> to vector<16x1xi1>
    %567 = vector.broadcast %566 : vector<16x1xi1> to vector<16x128xi1>
    %568 = arith.select %567, %555, %475 : vector<16x128xi1>, vector<16x128xf32>
    %569 = vector.shape_cast %493 : vector<16x1xi1> to vector<16x1xi1>
    %570 = vector.broadcast %569 : vector<16x1xi1> to vector<16x128xi1>
    %571 = arith.select %570, %553, %478 : vector<16x128xi1>, vector<16x128xf32>
    %572 = arith.maximumf %482, %555 : vector<16x128xf32>
    %573 = vector.shape_cast %493 : vector<16x1xi1> to vector<16x1xi1>
    %574 = vector.broadcast %573 : vector<16x1xi1> to vector<16x128xi1>
    %575 = arith.select %574, %572, %482 : vector<16x128xi1>, vector<16x128xf32>
    %c6_i32 = arith.constant 6 : i32
    %c7_i32_98 = arith.constant 7 : i32
    %576 = arith.subi %c7_i32_98, %c6_i32 : i32
    %577 = arith.index_cast %c6_i32 : i32 to index
    %c0_99 = arith.constant 0 : index
    %c0_100 = arith.constant 0 : index
    %578 = vector.load %arg8[%577, %c0_99, %c0_100] : memref<8x16x512xbf16, #tpu.memory_space<vmem>>, vector<1x16x512xbf16>
    %579 = vector.shape_cast %578 : vector<1x16x512xbf16> to vector<16x512xbf16>
    %580 = arith.index_cast %576 : i32 to index
    %c0_101 = arith.constant 0 : index
    %c0_102 = arith.constant 0 : index
    %581 = vector.load %arg9[%580, %c0_101, %c0_102] : memref<8x16x512xbf16, #tpu.memory_space<vmem>>, vector<1x16x512xbf16>
    %582 = vector.shape_cast %581 : vector<1x16x512xbf16> to vector<16x512xbf16>
    %583 = vector.broadcast %c6_i32 : i32 to vector<16x1xi32>
    %584 = arith.cmpi slt, %583, %0 : vector<16x1xi32>
    %585 = vector.broadcast %576 : i32 to vector<16x1xi32>
    %586 = arith.cmpi slt, %585, %0 : vector<16x1xi32>
    %587 = arith.extf %579 : vector<16x512xbf16> to vector<16x512xf32>
    %588 = vector.broadcast %14 : vector<1x512xf32> to vector<16x512xf32>
    %589 = arith.addf %587, %588 : vector<16x512xf32>
    %590 = arith.truncf %558 : vector<16x128xf32> to vector<16x128xbf16>
    %cst_103 = arith.constant dense<0.000000e+00> : vector<16x512xf32>
    %591 = tpu.matmul %590, %12, %cst_103 {dimension_numbers = #tpu.dot_dimension_numbers<[1], [0], [0], [1], [0, 0, 1, 1], [], []>} : vector<16x128xbf16>, vector<128x512xbf16>, vector<16x512xf32> -> vector<16x512xf32>
    %592 = arith.addf %589, %591 : vector<16x512xf32>
    %593 = vector.extract_strided_slice %592 {offsets = [0, 0], sizes = [16, 128], strides = [1, 1]} : vector<16x512xf32> to vector<16x128xf32>
    %594 = arith.negf %593 : vector<16x128xf32>
    %595 = math.exp %594 : vector<16x128xf32>
    %cst_104 = arith.constant 1.000000e+00 : f32
    %596 = vector.broadcast %cst_104 : f32 to vector<16x128xf32>
    %597 = arith.addf %596, %595 : vector<16x128xf32>
    %598 = arith.divf %596, %597 : vector<16x128xf32>
    %599 = vector.extract_strided_slice %592 {offsets = [0, 128], sizes = [16, 128], strides = [1, 1]} : vector<16x512xf32> to vector<16x128xf32>
    %600 = arith.negf %599 : vector<16x128xf32>
    %601 = math.exp %600 : vector<16x128xf32>
    %cst_105 = arith.constant 1.000000e+00 : f32
    %602 = vector.broadcast %cst_105 : f32 to vector<16x128xf32>
    %603 = arith.addf %602, %601 : vector<16x128xf32>
    %604 = arith.divf %602, %603 : vector<16x128xf32>
    %605 = vector.extract_strided_slice %592 {offsets = [0, 256], sizes = [16, 128], strides = [1, 1]} : vector<16x512xf32> to vector<16x128xf32>
    %606 = math.tanh %605 : vector<16x128xf32>
    %607 = vector.extract_strided_slice %592 {offsets = [0, 384], sizes = [16, 128], strides = [1, 1]} : vector<16x512xf32> to vector<16x128xf32>
    %608 = arith.negf %607 : vector<16x128xf32>
    %609 = math.exp %608 : vector<16x128xf32>
    %cst_106 = arith.constant 1.000000e+00 : f32
    %610 = vector.broadcast %cst_106 : f32 to vector<16x128xf32>
    %611 = arith.addf %610, %609 : vector<16x128xf32>
    %612 = arith.divf %610, %611 : vector<16x128xf32>
    %613 = arith.mulf %604, %561 : vector<16x128xf32>
    %614 = arith.mulf %598, %606 : vector<16x128xf32>
    %615 = arith.addf %613, %614 : vector<16x128xf32>
    %616 = math.tanh %615 : vector<16x128xf32>
    %617 = arith.mulf %612, %616 : vector<16x128xf32>
    %618 = arith.extf %582 : vector<16x512xbf16> to vector<16x512xf32>
    %619 = vector.broadcast %15 : vector<1x512xf32> to vector<16x512xf32>
    %620 = arith.addf %618, %619 : vector<16x512xf32>
    %621 = arith.truncf %568 : vector<16x128xf32> to vector<16x128xbf16>
    %cst_107 = arith.constant dense<0.000000e+00> : vector<16x512xf32>
    %622 = tpu.matmul %621, %13, %cst_107 {dimension_numbers = #tpu.dot_dimension_numbers<[1], [0], [0], [1], [0, 0, 1, 1], [], []>} : vector<16x128xbf16>, vector<128x512xbf16>, vector<16x512xf32> -> vector<16x512xf32>
    %623 = arith.addf %620, %622 : vector<16x512xf32>
    %624 = vector.extract_strided_slice %623 {offsets = [0, 0], sizes = [16, 128], strides = [1, 1]} : vector<16x512xf32> to vector<16x128xf32>
    %625 = arith.negf %624 : vector<16x128xf32>
    %626 = math.exp %625 : vector<16x128xf32>
    %cst_108 = arith.constant 1.000000e+00 : f32
    %627 = vector.broadcast %cst_108 : f32 to vector<16x128xf32>
    %628 = arith.addf %627, %626 : vector<16x128xf32>
    %629 = arith.divf %627, %628 : vector<16x128xf32>
    %630 = vector.extract_strided_slice %623 {offsets = [0, 128], sizes = [16, 128], strides = [1, 1]} : vector<16x512xf32> to vector<16x128xf32>
    %631 = arith.negf %630 : vector<16x128xf32>
    %632 = math.exp %631 : vector<16x128xf32>
    %cst_109 = arith.constant 1.000000e+00 : f32
    %633 = vector.broadcast %cst_109 : f32 to vector<16x128xf32>
    %634 = arith.addf %633, %632 : vector<16x128xf32>
    %635 = arith.divf %633, %634 : vector<16x128xf32>
    %636 = vector.extract_strided_slice %623 {offsets = [0, 256], sizes = [16, 128], strides = [1, 1]} : vector<16x512xf32> to vector<16x128xf32>
    %637 = math.tanh %636 : vector<16x128xf32>
    %638 = vector.extract_strided_slice %623 {offsets = [0, 384], sizes = [16, 128], strides = [1, 1]} : vector<16x512xf32> to vector<16x128xf32>
    %639 = arith.negf %638 : vector<16x128xf32>
    %640 = math.exp %639 : vector<16x128xf32>
    %cst_110 = arith.constant 1.000000e+00 : f32
    %641 = vector.broadcast %cst_110 : f32 to vector<16x128xf32>
    %642 = arith.addf %641, %640 : vector<16x128xf32>
    %643 = arith.divf %641, %642 : vector<16x128xf32>
    %644 = arith.mulf %635, %571 : vector<16x128xf32>
    %645 = arith.mulf %629, %637 : vector<16x128xf32>
    %646 = arith.addf %644, %645 : vector<16x128xf32>
    %647 = math.tanh %646 : vector<16x128xf32>
    %648 = arith.mulf %643, %647 : vector<16x128xf32>
    %649 = vector.shape_cast %584 : vector<16x1xi1> to vector<16x1xi1>
    %650 = vector.broadcast %649 : vector<16x1xi1> to vector<16x128xi1>
    %651 = arith.select %650, %617, %558 : vector<16x128xi1>, vector<16x128xf32>
    %652 = vector.shape_cast %584 : vector<16x1xi1> to vector<16x1xi1>
    %653 = vector.broadcast %652 : vector<16x1xi1> to vector<16x128xi1>
    %654 = arith.select %653, %615, %561 : vector<16x128xi1>, vector<16x128xf32>
    %655 = arith.maximumf %565, %617 : vector<16x128xf32>
    %656 = vector.shape_cast %584 : vector<16x1xi1> to vector<16x1xi1>
    %657 = vector.broadcast %656 : vector<16x1xi1> to vector<16x128xi1>
    %658 = arith.select %657, %655, %565 : vector<16x128xi1>, vector<16x128xf32>
    %659 = vector.shape_cast %586 : vector<16x1xi1> to vector<16x1xi1>
    %660 = vector.broadcast %659 : vector<16x1xi1> to vector<16x128xi1>
    %661 = arith.select %660, %648, %568 : vector<16x128xi1>, vector<16x128xf32>
    %662 = vector.shape_cast %586 : vector<16x1xi1> to vector<16x1xi1>
    %663 = vector.broadcast %662 : vector<16x1xi1> to vector<16x128xi1>
    %664 = arith.select %663, %646, %571 : vector<16x128xi1>, vector<16x128xf32>
    %665 = arith.maximumf %575, %648 : vector<16x128xf32>
    %666 = vector.shape_cast %586 : vector<16x1xi1> to vector<16x1xi1>
    %667 = vector.broadcast %666 : vector<16x1xi1> to vector<16x128xi1>
    %668 = arith.select %667, %665, %575 : vector<16x128xi1>, vector<16x128xf32>
    %c7_i32_111 = arith.constant 7 : i32
    %c7_i32_112 = arith.constant 7 : i32
    %669 = arith.subi %c7_i32_112, %c7_i32_111 : i32
    %670 = arith.index_cast %c7_i32_111 : i32 to index
    %c0_113 = arith.constant 0 : index
    %c0_114 = arith.constant 0 : index
    %671 = vector.load %arg8[%670, %c0_113, %c0_114] : memref<8x16x512xbf16, #tpu.memory_space<vmem>>, vector<1x16x512xbf16>
    %672 = vector.shape_cast %671 : vector<1x16x512xbf16> to vector<16x512xbf16>
    %673 = arith.index_cast %669 : i32 to index
    %c0_115 = arith.constant 0 : index
    %c0_116 = arith.constant 0 : index
    %674 = vector.load %arg9[%673, %c0_115, %c0_116] : memref<8x16x512xbf16, #tpu.memory_space<vmem>>, vector<1x16x512xbf16>
    %675 = vector.shape_cast %674 : vector<1x16x512xbf16> to vector<16x512xbf16>
    %676 = vector.broadcast %c7_i32_111 : i32 to vector<16x1xi32>
    %677 = arith.cmpi slt, %676, %0 : vector<16x1xi32>
    %678 = vector.broadcast %669 : i32 to vector<16x1xi32>
    %679 = arith.cmpi slt, %678, %0 : vector<16x1xi32>
    %680 = arith.extf %672 : vector<16x512xbf16> to vector<16x512xf32>
    %681 = vector.broadcast %14 : vector<1x512xf32> to vector<16x512xf32>
    %682 = arith.addf %680, %681 : vector<16x512xf32>
    %683 = arith.truncf %651 : vector<16x128xf32> to vector<16x128xbf16>
    %cst_117 = arith.constant dense<0.000000e+00> : vector<16x512xf32>
    %684 = tpu.matmul %683, %12, %cst_117 {dimension_numbers = #tpu.dot_dimension_numbers<[1], [0], [0], [1], [0, 0, 1, 1], [], []>} : vector<16x128xbf16>, vector<128x512xbf16>, vector<16x512xf32> -> vector<16x512xf32>
    %685 = arith.addf %682, %684 : vector<16x512xf32>
    %686 = vector.extract_strided_slice %685 {offsets = [0, 0], sizes = [16, 128], strides = [1, 1]} : vector<16x512xf32> to vector<16x128xf32>
    %687 = arith.negf %686 : vector<16x128xf32>
    %688 = math.exp %687 : vector<16x128xf32>
    %cst_118 = arith.constant 1.000000e+00 : f32
    %689 = vector.broadcast %cst_118 : f32 to vector<16x128xf32>
    %690 = arith.addf %689, %688 : vector<16x128xf32>
    %691 = arith.divf %689, %690 : vector<16x128xf32>
    %692 = vector.extract_strided_slice %685 {offsets = [0, 128], sizes = [16, 128], strides = [1, 1]} : vector<16x512xf32> to vector<16x128xf32>
    %693 = arith.negf %692 : vector<16x128xf32>
    %694 = math.exp %693 : vector<16x128xf32>
    %cst_119 = arith.constant 1.000000e+00 : f32
    %695 = vector.broadcast %cst_119 : f32 to vector<16x128xf32>
    %696 = arith.addf %695, %694 : vector<16x128xf32>
    %697 = arith.divf %695, %696 : vector<16x128xf32>
    %698 = vector.extract_strided_slice %685 {offsets = [0, 256], sizes = [16, 128], strides = [1, 1]} : vector<16x512xf32> to vector<16x128xf32>
    %699 = math.tanh %698 : vector<16x128xf32>
    %700 = vector.extract_strided_slice %685 {offsets = [0, 384], sizes = [16, 128], strides = [1, 1]} : vector<16x512xf32> to vector<16x128xf32>
    %701 = arith.negf %700 : vector<16x128xf32>
    %702 = math.exp %701 : vector<16x128xf32>
    %cst_120 = arith.constant 1.000000e+00 : f32
    %703 = vector.broadcast %cst_120 : f32 to vector<16x128xf32>
    %704 = arith.addf %703, %702 : vector<16x128xf32>
    %705 = arith.divf %703, %704 : vector<16x128xf32>
    %706 = arith.mulf %697, %654 : vector<16x128xf32>
    %707 = arith.mulf %691, %699 : vector<16x128xf32>
    %708 = arith.addf %706, %707 : vector<16x128xf32>
    %709 = math.tanh %708 : vector<16x128xf32>
    %710 = arith.mulf %705, %709 : vector<16x128xf32>
    %711 = arith.extf %675 : vector<16x512xbf16> to vector<16x512xf32>
    %712 = vector.broadcast %15 : vector<1x512xf32> to vector<16x512xf32>
    %713 = arith.addf %711, %712 : vector<16x512xf32>
    %714 = arith.truncf %661 : vector<16x128xf32> to vector<16x128xbf16>
    %cst_121 = arith.constant dense<0.000000e+00> : vector<16x512xf32>
    %715 = tpu.matmul %714, %13, %cst_121 {dimension_numbers = #tpu.dot_dimension_numbers<[1], [0], [0], [1], [0, 0, 1, 1], [], []>} : vector<16x128xbf16>, vector<128x512xbf16>, vector<16x512xf32> -> vector<16x512xf32>
    %716 = arith.addf %713, %715 : vector<16x512xf32>
    %717 = vector.extract_strided_slice %716 {offsets = [0, 0], sizes = [16, 128], strides = [1, 1]} : vector<16x512xf32> to vector<16x128xf32>
    %718 = arith.negf %717 : vector<16x128xf32>
    %719 = math.exp %718 : vector<16x128xf32>
    %cst_122 = arith.constant 1.000000e+00 : f32
    %720 = vector.broadcast %cst_122 : f32 to vector<16x128xf32>
    %721 = arith.addf %720, %719 : vector<16x128xf32>
    %722 = arith.divf %720, %721 : vector<16x128xf32>
    %723 = vector.extract_strided_slice %716 {offsets = [0, 128], sizes = [16, 128], strides = [1, 1]} : vector<16x512xf32> to vector<16x128xf32>
    %724 = arith.negf %723 : vector<16x128xf32>
    %725 = math.exp %724 : vector<16x128xf32>
    %cst_123 = arith.constant 1.000000e+00 : f32
    %726 = vector.broadcast %cst_123 : f32 to vector<16x128xf32>
    %727 = arith.addf %726, %725 : vector<16x128xf32>
    %728 = arith.divf %726, %727 : vector<16x128xf32>
    %729 = vector.extract_strided_slice %716 {offsets = [0, 256], sizes = [16, 128], strides = [1, 1]} : vector<16x512xf32> to vector<16x128xf32>
    %730 = math.tanh %729 : vector<16x128xf32>
    %731 = vector.extract_strided_slice %716 {offsets = [0, 384], sizes = [16, 128], strides = [1, 1]} : vector<16x512xf32> to vector<16x128xf32>
    %732 = arith.negf %731 : vector<16x128xf32>
    %733 = math.exp %732 : vector<16x128xf32>
    %cst_124 = arith.constant 1.000000e+00 : f32
    %734 = vector.broadcast %cst_124 : f32 to vector<16x128xf32>
    %735 = arith.addf %734, %733 : vector<16x128xf32>
    %736 = arith.divf %734, %735 : vector<16x128xf32>
    %737 = arith.mulf %728, %664 : vector<16x128xf32>
    %738 = arith.mulf %722, %730 : vector<16x128xf32>
    %739 = arith.addf %737, %738 : vector<16x128xf32>
    %740 = math.tanh %739 : vector<16x128xf32>
    %741 = arith.mulf %736, %740 : vector<16x128xf32>
    %742 = vector.shape_cast %677 : vector<16x1xi1> to vector<16x1xi1>
    %743 = vector.broadcast %742 : vector<16x1xi1> to vector<16x128xi1>
    %744 = arith.select %743, %710, %651 : vector<16x128xi1>, vector<16x128xf32>
    %745 = vector.shape_cast %677 : vector<16x1xi1> to vector<16x1xi1>
    %746 = vector.broadcast %745 : vector<16x1xi1> to vector<16x128xi1>
    %747 = arith.select %746, %708, %654 : vector<16x128xi1>, vector<16x128xf32>
    %748 = arith.maximumf %658, %710 : vector<16x128xf32>
    %749 = vector.shape_cast %677 : vector<16x1xi1> to vector<16x1xi1>
    %750 = vector.broadcast %749 : vector<16x1xi1> to vector<16x128xi1>
    %751 = arith.select %750, %748, %658 : vector<16x128xi1>, vector<16x128xf32>
    %752 = vector.shape_cast %679 : vector<16x1xi1> to vector<16x1xi1>
    %753 = vector.broadcast %752 : vector<16x1xi1> to vector<16x128xi1>
    %754 = arith.select %753, %741, %661 : vector<16x128xi1>, vector<16x128xf32>
    %755 = vector.shape_cast %679 : vector<16x1xi1> to vector<16x1xi1>
    %756 = vector.broadcast %755 : vector<16x1xi1> to vector<16x128xi1>
    %757 = arith.select %756, %739, %664 : vector<16x128xi1>, vector<16x128xf32>
    %758 = arith.maximumf %668, %741 : vector<16x128xf32>
    %759 = vector.shape_cast %679 : vector<16x1xi1> to vector<16x1xi1>
    %760 = vector.broadcast %759 : vector<16x1xi1> to vector<16x128xi1>
    %761 = arith.select %760, %758, %668 : vector<16x128xi1>, vector<16x128xf32>
    %c8_i32 = arith.constant 8 : i32
    %762 = tpu.concatenate %751, %761 in 1 : vector<16x128xf32>, vector<16x128xf32> -> vector<16x256xf32>
    %c0_i32_125 = arith.constant 0 : i32
    %763 = vector.broadcast %c0_i32_125 : i32 to vector<16x1xi32>
    %764 = arith.cmpi sgt, %0, %763 : vector<16x1xi32>
    %cst_126 = arith.constant 0.000000e+00 : f32
    %765 = vector.shape_cast %764 : vector<16x1xi1> to vector<16x1xi1>
    %766 = vector.broadcast %765 : vector<16x1xi1> to vector<16x256xi1>
    %767 = vector.broadcast %cst_126 : f32 to vector<16x256xf32>
    %768 = arith.select %766, %762, %767 : vector<16x256xi1>, vector<16x256xf32>
    %c0_127 = arith.constant 0 : index
    %c0_128 = arith.constant 0 : index
    %769 = vector.load %arg7[%c0_127, %c0_128] : memref<16x256xf32, #tpu.memory_space<vmem>>, vector<16x256xf32>
    tpu.vector_store %arg7[%c0_127, %c0_128], %768 {strides = array<i32>} : memref<16x256xf32, #tpu.memory_space<vmem>>, vector<16x256xf32>,
    return
  }
  func.func @transform_0(%arg0: i32) -> (i32, i32, i32) {
    %c0_i32 = arith.constant 0 : i32
    %c0_i32_0 = arith.constant 0 : i32
    %c0_i32_1 = arith.constant 0 : i32
    return %c0_i32, %arg0, %c0_i32_0 : i32, i32, i32
  }
  func.func @transform_1(%arg0: i32) -> (i32, i32) {
    %c0_i32 = arith.constant 0 : i32
    %c0_i32_0 = arith.constant 0 : i32
    return %arg0, %c0_i32 : i32, i32
  }
  func.func @transform_2(%arg0: i32) -> (i32, i32) {
    %c0_i32 = arith.constant 0 : i32
    %c0_i32_0 = arith.constant 0 : i32
    %c0_i32_1 = arith.constant 0 : i32
    return %c0_i32, %c0_i32_0 : i32, i32
  }
  func.func @transform_3(%arg0: i32) -> (i32, i32) {
    %c0_i32 = arith.constant 0 : i32
    %c0_i32_0 = arith.constant 0 : i32
    %c0_i32_1 = arith.constant 0 : i32
    return %c0_i32, %c0_i32_0 : i32, i32
  }
  func.func @transform_4(%arg0: i32) -> (i32, i32) {
    %c0_i32 = arith.constant 0 : i32
    %c0_i32_0 = arith.constant 0 : i32
    %c0_i32_1 = arith.constant 0 : i32
    return %c0_i32, %c0_i32_0 : i32, i32
  }
  func.func @transform_5(%arg0: i32) -> (i32, i32) {
    %c0_i32 = arith.constant 0 : i32
    %c0_i32_0 = arith.constant 0 : i32
    %c0_i32_1 = arith.constant 0 : i32
    return %c0_i32, %c0_i32_0 : i32, i32
  }
  func.func @transform_6(%arg0: i32) -> (i32, i32) {
    %c0_i32 = arith.constant 0 : i32
    %c0_i32_0 = arith.constant 0 : i32
    return %arg0, %c0_i32 : i32, i32
  }
}

</mosaic_0001>

<llo_original>
// kernel: tpu_custom_call.1
$region0: #{tpu_custom_call.1}
  #allocation0 [shape = 'u32[]', space=smem, size = 0x4, offset = 0x4, fixed_abs, tag = 'smem constant byte address 0x4 - core index']
  #allocation1 [shape = 'u32[144,128]{1,0:T(1,128)}', space=vmem, size = 0x12000, scoped, tag = 'internal scratch']
  #allocation2 [shape = 'bf16[8,16,512]{2,1,0:T(8,128)(2,1)}', space=vmem, size = 0x20000, scoped, tag = 'scratch operand']
  #allocation3 [shape = 'bf16[8,16,512]{2,1,0:T(8,128)(2,1)}', space=vmem, size = 0x20000, scoped, tag = 'scratch operand']
  %s0 = inlined_call_operand.hbm [shape: bf16[8,16,128], index: 0, kind: input, shape index: {}]
  %s1 = inlined_call_operand.vmem [shape: s32[16,1], index: 1, kind: input, shape index: {}]
  %s2 = inlined_call_operand.hbm [shape: bf16[128,1024], index: 2, kind: input, shape index: {}]
  %s3 = inlined_call_operand.hbm [shape: bf16[128,512], index: 3, kind: input, shape index: {}]
  %s4 = inlined_call_operand.hbm [shape: bf16[128,512], index: 4, kind: input, shape index: {}]
  %s5 = inlined_call_operand.vmem [shape: f32[1,1024], index: 5, kind: input, shape index: {}]
  %s6 = inlined_call_operand.hbm [shape: f32[16,256], index: 6, kind: output, shape index: {}]
  %s7 = sld [smem:[#allocation0]]
  $region50: #{tpu_custom_call.1} parent=0
    _
  %s9 = ssub.s32 1, %s7
  %s10 = scalar_select 0, %s9, %s7
  $region1: #{tpu_custom_call.1} parent=0
    #allocation4 [shape = 'u8[32768]{0}', space=vmem, size = 0x8000, scoped, tag = 'input window, operand 0, single buffered']
    #allocation5 [shape = 's32[1]{0}', space=sflag, size = 0x4, scoped, tag = 'scoped memory for tpu_custom_call.1']
    #allocation6 [shape = 's32[1]{0}', space=sflag, size = 0x4, scoped, tag = 'scoped memory for tpu_custom_call.1']
    #allocation7 [shape = 'u8[262144]{0}', space=vmem, size = 0x40000, scoped, tag = 'input window, operand 2, single buffered']
    #allocation8 [shape = 's32[1]{0}', space=sflag, size = 0x4, scoped, tag = 'scoped memory for tpu_custom_call.1']
    #allocation9 [shape = 'u8[131072]{0}', space=vmem, size = 0x20000, scoped, tag = 'input window, operand 3, single buffered']
    #allocation10 [shape = 'u8[131072]{0}', space=vmem, size = 0x20000, scoped, tag = 'input window, operand 4, single buffered']
    #allocation11 [shape = 's32[1]{0}', space=sflag, size = 0x4, scoped, tag = 'scoped memory for tpu_custom_call.1']
    #allocation12 [shape = 'u8[16384]{0}', space=vmem, size = 0x4000, scoped, tag = 'output window, operand 0, single buffered']
    %11 = vsyncpa [#allocation5], 0
    %12 = vsyncpa [#allocation8], 0
    %13 = vsyncpa [#allocation11], 0
    %14 = vsyncpa [#allocation6], 0
    // Predicated region
    $region2: #{tpu_custom_call.1} parent=1 // pred_check
      _
    $region3: #{tpu_custom_call.1} parent=1 // pred_check_branch
      %16 = sbr.rel (0) target = $region5
    $region4: #{tpu_custom_call.1} parent=1 // pred_region
      %s18 = ssub.s32 1024, 1024
      %19 = vsyncadd [#allocation5], %s18
      %s20 = sshll.u32 [#allocation4], 4
      %s21 = int_to_ptr.vmem [resolvable:$true] %s20
      %26 = dma.hbm_to_vmem [thread:$0]  %s0, 1024, %s21, [#allocation5], 64, 64, 4
    $region5: #{tpu_custom_call.1} parent=1 // pred_fallthru
      _
    // Predicated region
    $region6: #{tpu_custom_call.1} parent=1 // pred_check
      _
    $region7: #{tpu_custom_call.1} parent=1 // pred_check_branch
      %28 = sbr.rel (0) target = $region9
    $region8: #{tpu_custom_call.1} parent=1 // pred_region
      _
    $region9: #{tpu_custom_call.1} parent=1 // pred_fallthru
      _
    // Predicated region
    $region10: #{tpu_custom_call.1} parent=1 // pred_check
      _
    $region11: #{tpu_custom_call.1} parent=1 // pred_check_branch
      %30 = sbr.rel (0) target = $region13
    $region12: #{tpu_custom_call.1} parent=1 // pred_region
      %s32 = ssub.s32 8192, 8192
      %33 = vsyncadd [#allocation8], %s32
      %s34 = sshll.u32 [#allocation7], 4
      %s35 = int_to_ptr.vmem [resolvable:$true] %s34
      %40 = dma.hbm_to_vmem [thread:$0]  %s2, 8192, %s35, [#allocation8], 512, 512, 32
    $region13: #{tpu_custom_call.1} parent=1 // pred_fallthru
      _
    // Predicated region
    $region14: #{tpu_custom_call.1} parent=1 // pred_check
      _
    $region15: #{tpu_custom_call.1} parent=1 // pred_check_branch
      %42 = sbr.rel (0) target = $region17
    $region16: #{tpu_custom_call.1} parent=1 // pred_region
      %s44 = ssub.s32 4096, 4096
      %45 = vsyncadd [#allocation8], %s44
      %s46 = sshll.u32 [#allocation9], 4
      %s47 = int_to_ptr.vmem [resolvable:$true] %s46
      %52 = dma.hbm_to_vmem [thread:$0]  %s3, 4096, %s47, [#allocation8], 256, 256, 16
    $region17: #{tpu_custom_call.1} parent=1 // pred_fallthru
      _
    // Predicated region
    $region18: #{tpu_custom_call.1} parent=1 // pred_check
      _
    $region19: #{tpu_custom_call.1} parent=1 // pred_check_branch
      %54 = sbr.rel (0) target = $region21
    $region20: #{tpu_custom_call.1} parent=1 // pred_region
      %s56 = ssub.s32 4096, 4096
      %57 = vsyncadd [#allocation11], %s56
      %s58 = sshll.u32 [#allocation10], 4
      %s59 = int_to_ptr.vmem [resolvable:$true] %s58
      %64 = dma.hbm_to_vmem [thread:$0]  %s4, 4096, %s59, [#allocation11], 256, 256, 16
    $region21: #{tpu_custom_call.1} parent=1 // pred_fallthru
      _
    // Predicated region
    $region22: #{tpu_custom_call.1} parent=1 // pred_check
      _
    $region23: #{tpu_custom_call.1} parent=1 // pred_check_branch
      %66 = sbr.rel (0) target = $region25
    $region24: #{tpu_custom_call.1} parent=1 // pred_region
      _
    $region25: #{tpu_custom_call.1} parent=1 // pred_fallthru
      _
    // Predicated region
    $region26: #{tpu_custom_call.1} parent=1 // pred_check
      _
    $region27: #{tpu_custom_call.1} parent=1 // pred_check_branch
      %68 = sbr.rel (0) target = $region29
    $region28: #{tpu_custom_call.1} parent=1 // pred_region
      %69 = dma.done [#allocation5], 1024
    $region29: #{tpu_custom_call.1} parent=1 // pred_fallthru
      _
    // Predicated region
    $region30: #{tpu_custom_call.1} parent=1 // pred_check
      _
    $region31: #{tpu_custom_call.1} parent=1 // pred_check_branch
      %71 = sbr.rel (0) target = $region33
    $region32: #{tpu_custom_call.1} parent=1 // pred_region
      %72 = dma.done [#allocation8], 8192
    $region33: #{tpu_custom_call.1} parent=1 // pred_fallthru
      _
    // Predicated region
    $region34: #{tpu_custom_call.1} parent=1 // pred_check
      _
    $region35: #{tpu_custom_call.1} parent=1 // pred_check_branch
      %74 = sbr.rel (0) target = $region37
    $region36: #{tpu_custom_call.1} parent=1 // pred_region
      %75 = dma.done [#allocation8], 4096
    $region37: #{tpu_custom_call.1} parent=1 // pred_fallthru
      _
    // Predicated region
    $region38: #{tpu_custom_call.1} parent=1 // pred_check
      _
    $region39: #{tpu_custom_call.1} parent=1 // pred_check_branch
      %77 = sbr.rel (0) target = $region41
    $region40: #{tpu_custom_call.1} parent=1 // pred_region
      %78 = dma.done [#allocation11], 4096
    $region41: #{tpu_custom_call.1} parent=1 // pred_fallthru
      _
    %v80 = vld [vmem:[%s1] sm:$0xff]
    %v81 = vld [vmem:[%s1 + $0x8] sm:$0xff]
    %v82 = vld [vmem:[#allocation7] sm:$0xff]
    %v83 = vld [vmem:[#allocation7 + $0x8] sm:$0xff]
    %v84 = vld [vmem:[#allocation7 + $0x10] sm:$0xff]
    %v85 = vld [vmem:[#allocation7 + $0x18] sm:$0xff]
    %v86 = vld [vmem:[#allocation7 + $0x20] sm:$0xff]
    %v87 = vld [vmem:[#allocation7 + $0x28] sm:$0xff]
    %v88 = vld [vmem:[#allocation7 + $0x30] sm:$0xff]
    %v89 = vld [vmem:[#allocation7 + $0x38] sm:$0xff]
    %v90 = vld [vmem:[#allocation7 + $0x40] sm:$0xff]
    %v91 = vld [vmem:[#allocation7 + $0x48] sm:$0xff]
    %v92 = vld [vmem:[#allocation7 + $0x50] sm:$0xff]
    %v93 = vld [vmem:[#allocation7 + $0x58] sm:$0xff]
    %v94 = vld [vmem:[#allocation7 + $0x60] sm:$0xff]
    %v95 = vld [vmem:[#allocation7 + $0x68] sm:$0xff]
    %v96 = vld [vmem:[#allocation7 + $0x70] sm:$0xff]
    %v97 = vld [vmem:[#allocation7 + $0x78] sm:$0xff]
    %v98 = vld [vmem:[#allocation7 + $0x80] sm:$0xff]
    %v99 = vld [vmem:[#allocation7 + $0x88] sm:$0xff]
    %v100 = vld [vmem:[#allocation7 + $0x90] sm:$0xff]
    %v101 = vld [vmem:[#allocation7 + $0x98] sm:$0xff]
    %v102 = vld [vmem:[#allocation7 + $0xa0] sm:$0xff]
    %v103 = vld [vmem:[#allocation7 + $0xa8] sm:$0xff]
    %v104 = vld [vmem:[#allocation7 + $0xb0] sm:$0xff]
    %v105 = vld [vmem:[#allocation7 + $0xb8] sm:$0xff]
    %v106 = vld [vmem:[#allocation7 + $0xc0] sm:$0xff]
    %v107 = vld [vmem:[#allocation7 + $0xc8] sm:$0xff]
    %v108 = vld [vmem:[#allocation7 + $0xd0] sm:$0xff]
    %v109 = vld [vmem:[#allocation7 + $0xd8] sm:$0xff]
    %v110 = vld [vmem:[#allocation7 + $0xe0] sm:$0xff]
    %v111 = vld [vmem:[#allocation7 + $0xe8] sm:$0xff]
    %v112 = vld [vmem:[#allocation7 + $0xf0] sm:$0xff]
    %v113 = vld [vmem:[#allocation7 + $0xf8] sm:$0xff]
    %v114 = vld [vmem:[#allocation7 + $0x100] sm:$0xff]
    %v115 = vld [vmem:[#allocation7 + $0x108] sm:$0xff]
    %v116 = vld [vmem:[#allocation7 + $0x110] sm:$0xff]
    %v117 = vld [vmem:[#allocation7 + $0x118] sm:$0xff]
    %v118 = vld [vmem:[#allocation7 + $0x120] sm:$0xff]
    %v119 = vld [vmem:[#allocation7 + $0x128] sm:$0xff]
    %v120 = vld [vmem:[#allocation7 + $0x130] sm:$0xff]
    %v121 = vld [vmem:[#allocation7 + $0x138] sm:$0xff]
    %v122 = vld [vmem:[#allocation7 + $0x140] sm:$0xff]
    %v123 = vld [vmem:[#allocation7 + $0x148] sm:$0xff]
    %v124 = vld [vmem:[#allocation7 + $0x150] sm:$0xff]
    %v125 = vld [vmem:[#allocation7 + $0x158] sm:$0xff]
    %v126 = vld [vmem:[#allocation7 + $0x160] sm:$0xff]
    %v127 = vld [vmem:[#allocation7 + $0x168] sm:$0xff]
    %v128 = vld [vmem:[#allocation7 + $0x170] sm:$0xff]
    %v129 = vld [vmem:[#allocation7 + $0x178] sm:$0xff]
    %v130 = vld [vmem:[#allocation7 + $0x180] sm:$0xff]
    %v131 = vld [vmem:[#allocation7 + $0x188] sm:$0xff]
    %v132 = vld [vmem:[#allocation7 + $0x190] sm:$0xff]
    %v133 = vld [vmem:[#allocation7 + $0x198] sm:$0xff]
    %v134 = vld [vmem:[#allocation7 + $0x1a0] sm:$0xff]
    %v135 = vld [vmem:[#allocation7 + $0x1a8] sm:$0xff]
    %v136 = vld [vmem:[#allocation7 + $0x1b0] sm:$0xff]
    %v137 = vld [vmem:[#allocation7 + $0x1b8] sm:$0xff]
    %v138 = vld [vmem:[#allocation7 + $0x1c0] sm:$0xff]
    %v139 = vld [vmem:[#allocation7 + $0x1c8] sm:$0xff]
    %v140 = vld [vmem:[#allocation7 + $0x1d0] sm:$0xff]
    %v141 = vld [vmem:[#allocation7 + $0x1d8] sm:$0xff]
    %v142 = vld [vmem:[#allocation7 + $0x1e0] sm:$0xff]
    %v143 = vld [vmem:[#allocation7 + $0x1e8] sm:$0xff]
    %v144 = vld [vmem:[#allocation7 + $0x1f0] sm:$0xff]
    %v145 = vld [vmem:[#allocation7 + $0x1f8] sm:$0xff]
    %v146 = vld [vmem:[#allocation4] sm:$0xf]
    %v147 = vld [vmem:[#allocation4 + $0x4] sm:$0xf]
    %v148 = vld [vmem:[#allocation4 + $0x8] sm:$0xf]
    %v149 = vld [vmem:[#allocation4 + $0xc] sm:$0xf]
    %v150 = vld [vmem:[#allocation4 + $0x10] sm:$0xf]
    %v151 = vld [vmem:[#allocation4 + $0x14] sm:$0xf]
    %v152 = vld [vmem:[#allocation4 + $0x18] sm:$0xf]
    %v153 = vld [vmem:[#allocation4 + $0x1c] sm:$0xf]
    %v154 = vld [vmem:[#allocation4 + $0x20] sm:$0xf]
    %v155 = vld [vmem:[#allocation4 + $0x24] sm:$0xf]
    %v156 = vld [vmem:[#allocation4 + $0x28] sm:$0xf]
    %v157 = vld [vmem:[#allocation4 + $0x2c] sm:$0xf]
    %v158 = vld [vmem:[#allocation4 + $0x30] sm:$0xf]
    %v159 = vld [vmem:[#allocation4 + $0x34] sm:$0xf]
    %v160 = vld [vmem:[#allocation4 + $0x38] sm:$0xf]
    %v161 = vld [vmem:[#allocation4 + $0x3c] sm:$0xf]
    %v178 = vunpack.c.l.b16 %v146
    %v179 = vunpack.c.l.b16 %v147
    %v180 = vunpack.c.l.b16 %v148
    %v181 = vunpack.c.l.b16 %v149
    %v182 = vunpack.c.l.b16 %v150
    %v183 = vunpack.c.l.b16 %v151
    %v184 = vunpack.c.l.b16 %v152
    %v185 = vunpack.c.l.b16 %v153
    %v186 = vunpack.c.l.b16 %v154
    %v187 = vunpack.c.l.b16 %v155
    %v188 = vunpack.c.l.b16 %v156
    %v189 = vunpack.c.l.b16 %v157
    %v190 = vunpack.c.l.b16 %v158
    %v191 = vunpack.c.l.b16 %v159
    %v192 = vunpack.c.l.b16 %v160
    %v193 = vunpack.c.l.b16 %v161
    %v194 = vpack.c.b16 %v179, %v178
    %v195 = vpack.c.b16 %v181, %v180
    %v196 = vpack.c.b16 %v183, %v182
    %v197 = vpack.c.b16 %v185, %v184
    %v198 = vpack.c.b16 %v187, %v186
    %v199 = vpack.c.b16 %v189, %v188
    %v200 = vpack.c.b16 %v191, %v190
    %v201 = vpack.c.b16 %v193, %v192
    %v274 = vunpack.c.l.b16 %v82
    %v275 = vunpack.c.h.b16 %v82
    %v276 = vunpack.c.l.b16 %v83
    %v277 = vunpack.c.h.b16 %v83
    %v278 = vunpack.c.l.b16 %v84
    %v279 = vunpack.c.h.b16 %v84
    %v280 = vunpack.c.l.b16 %v85
    %v281 = vunpack.c.h.b16 %v85
    %v282 = vunpack.c.l.b16 %v86
    %v283 = vunpack.c.h.b16 %v86
    %v284 = vunpack.c.l.b16 %v87
    %v285 = vunpack.c.h.b16 %v87
    %v286 = vunpack.c.l.b16 %v88
    %v287 = vunpack.c.h.b16 %v88
    %v288 = vunpack.c.l.b16 %v89
    %v289 = vunpack.c.h.b16 %v89
    %v290 = vunpack.c.l.b16 %v90
    %v291 = vunpack.c.h.b16 %v90
    %v292 = vunpack.c.l.b16 %v91
    %v293 = vunpack.c.h.b16 %v91
    %v294 = vunpack.c.l.b16 %v92
    %v295 = vunpack.c.h.b16 %v92
    %v296 = vunpack.c.l.b16 %v93
    %v297 = vunpack.c.h.b16 %v93
    %v298 = vunpack.c.l.b16 %v94
    %v299 = vunpack.c.h.b16 %v94
    %v300 = vunpack.c.l.b16 %v95
    %v301 = vunpack.c.h.b16 %v95
    %v302 = vunpack.c.l.b16 %v96
    %v303 = vunpack.c.h.b16 %v96
    %v304 = vunpack.c.l.b16 %v97
    %v305 = vunpack.c.h.b16 %v97
    %v306 = vunpack.c.l.b16 %v98
    %v307 = vunpack.c.h.b16 %v98
    %v308 = vunpack.c.l.b16 %v99
    %v309 = vunpack.c.h.b16 %v99
    %v310 = vunpack.c.l.b16 %v100
    %v311 = vunpack.c.h.b16 %v100
    %v312 = vunpack.c.l.b16 %v101
    %v313 = vunpack.c.h.b16 %v101
    %v314 = vunpack.c.l.b16 %v102
    %v315 = vunpack.c.h.b16 %v102
    %v316 = vunpack.c.l.b16 %v103
    %v317 = vunpack.c.h.b16 %v103
    %v318 = vunpack.c.l.b16 %v104
    %v319 = vunpack.c.h.b16 %v104
    %v320 = vunpack.c.l.b16 %v105
    %v321 = vunpack.c.h.b16 %v105
    %v322 = vunpack.c.l.b16 %v106
    %v323 = vunpack.c.h.b16 %v106
    %v324 = vunpack.c.l.b16 %v107
    %v325 = vunpack.c.h.b16 %v107
    %v326 = vunpack.c.l.b16 %v108
    %v327 = vunpack.c.h.b16 %v108
    %v328 = vunpack.c.l.b16 %v109
    %v329 = vunpack.c.h.b16 %v109
    %v330 = vunpack.c.l.b16 %v110
    %v331 = vunpack.c.h.b16 %v110
    %v332 = vunpack.c.l.b16 %v111
    %v333 = vunpack.c.h.b16 %v111
    %v334 = vunpack.c.l.b16 %v112
    %v335 = vunpack.c.h.b16 %v112
    %v336 = vunpack.c.l.b16 %v113
    %v337 = vunpack.c.h.b16 %v113
    %v338 = vunpack.c.l.b16 %v114
    %v339 = vunpack.c.h.b16 %v114
    %v340 = vunpack.c.l.b16 %v115
    %v341 = vunpack.c.h.b16 %v115
    %v342 = vunpack.c.l.b16 %v116
    %v343 = vunpack.c.h.b16 %v116
    %v344 = vunpack.c.l.b16 %v117
    %v345 = vunpack.c.h.b16 %v117
    %v346 = vunpack.c.l.b16 %v118
    %v347 = vunpack.c.h.b16 %v118
    %v348 = vunpack.c.l.b16 %v119
    %v349 = vunpack.c.h.b16 %v119
    %v350 = vunpack.c.l.b16 %v120
    %v351 = vunpack.c.h.b16 %v120
    %v352 = vunpack.c.l.b16 %v121
    %v353 = vunpack.c.h.b16 %v121
    %v354 = vunpack.c.l.b16 %v122
    %v355 = vunpack.c.h.b16 %v122
    %v356 = vunpack.c.l.b16 %v123
    %v357 = vunpack.c.h.b16 %v123
    %v358 = vunpack.c.l.b16 %v124
    %v359 = vunpack.c.h.b16 %v124
    %v360 = vunpack.c.l.b16 %v125
    %v361 = vunpack.c.h.b16 %v125
    %v362 = vunpack.c.l.b16 %v126
    %v363 = vunpack.c.h.b16 %v126
    %v364 = vunpack.c.l.b16 %v127
    %v365 = vunpack.c.h.b16 %v127
    %v366 = vunpack.c.l.b16 %v128
    %v367 = vunpack.c.h.b16 %v128
    %v368 = vunpack.c.l.b16 %v129
    %v369 = vunpack.c.h.b16 %v129
    %v370 = vunpack.c.l.b16 %v130
    %v371 = vunpack.c.h.b16 %v130
    %v372 = vunpack.c.l.b16 %v131
    %v373 = vunpack.c.h.b16 %v131
    %v374 = vunpack.c.l.b16 %v132
    %v375 = vunpack.c.h.b16 %v132
    %v376 = vunpack.c.l.b16 %v133
    %v377 = vunpack.c.h.b16 %v133
    %v378 = vunpack.c.l.b16 %v134
    %v379 = vunpack.c.h.b16 %v134
    %v380 = vunpack.c.l.b16 %v135
    %v381 = vunpack.c.h.b16 %v135
    %v382 = vunpack.c.l.b16 %v136
    %v383 = vunpack.c.h.b16 %v136
    %v384 = vunpack.c.l.b16 %v137
    %v385 = vunpack.c.h.b16 %v137
    %v386 = vunpack.c.l.b16 %v138
    %v387 = vunpack.c.h.b16 %v138
    %v388 = vunpack.c.l.b16 %v139
    %v389 = vunpack.c.h.b16 %v139
    %v390 = vunpack.c.l.b16 %v140
    %v391 = vunpack.c.h.b16 %v140
    %v392 = vunpack.c.l.b16 %v141
    %v393 = vunpack.c.h.b16 %v141
    %v394 = vunpack.c.l.b16 %v142
    %v395 = vunpack.c.h.b16 %v142
    %v396 = vunpack.c.l.b16 %v143
    %v397 = vunpack.c.h.b16 %v143
    %v398 = vunpack.c.l.b16 %v144
    %v399 = vunpack.c.h.b16 %v144
    %v400 = vunpack.c.l.b16 %v145
    %v401 = vunpack.c.h.b16 %v145
    %v402 = vpack.c.b16 %v282, %v274
    %v403 = vpack.c.b16 %v283, %v275
    %v404 = vpack.c.b16 %v284, %v276
    %v405 = vpack.c.b16 %v285, %v277
    %v406 = vpack.c.b16 %v286, %v278
    %v407 = vpack.c.b16 %v287, %v279
    %v408 = vpack.c.b16 %v288, %v280
    %v409 = vpack.c.b16 %v289, %v281
    %v410 = vpack.c.b16 %v298, %v290
    %v411 = vpack.c.b16 %v299, %v291
    %v412 = vpack.c.b16 %v300, %v292
    %v413 = vpack.c.b16 %v301, %v293
    %v414 = vpack.c.b16 %v302, %v294
    %v415 = vpack.c.b16 %v303, %v295
    %v416 = vpack.c.b16 %v304, %v296
    %v417 = vpack.c.b16 %v305, %v297
    %v418 = vpack.c.b16 %v314, %v306
    %v419 = vpack.c.b16 %v315, %v307
    %v420 = vpack.c.b16 %v316, %v308
    %v421 = vpack.c.b16 %v317, %v309
    %v422 = vpack.c.b16 %v318, %v310
    %v423 = vpack.c.b16 %v319, %v311
    %v424 = vpack.c.b16 %v320, %v312
    %v425 = vpack.c.b16 %v321, %v313
    %v426 = vpack.c.b16 %v330, %v322
    %v427 = vpack.c.b16 %v331, %v323
    %v428 = vpack.c.b16 %v332, %v324
    %v429 = vpack.c.b16 %v333, %v325
    %v430 = vpack.c.b16 %v334, %v326
    %v431 = vpack.c.b16 %v335, %v327
    %v432 = vpack.c.b16 %v336, %v328
    %v433 = vpack.c.b16 %v337, %v329
    %v434 = vpack.c.b16 %v346, %v338
    %v435 = vpack.c.b16 %v347, %v339
    %v436 = vpack.c.b16 %v348, %v340
    %v437 = vpack.c.b16 %v349, %v341
    %v438 = vpack.c.b16 %v350, %v342
    %v439 = vpack.c.b16 %v351, %v343
    %v440 = vpack.c.b16 %v352, %v344
    %v441 = vpack.c.b16 %v353, %v345
    %v442 = vpack.c.b16 %v362, %v354
    %v443 = vpack.c.b16 %v363, %v355
    %v444 = vpack.c.b16 %v364, %v356
    %v445 = vpack.c.b16 %v365, %v357
    %v446 = vpack.c.b16 %v366, %v358
    %v447 = vpack.c.b16 %v367, %v359
    %v448 = vpack.c.b16 %v368, %v360
    %v449 = vpack.c.b16 %v369, %v361
    %v450 = vpack.c.b16 %v378, %v370
    %v451 = vpack.c.b16 %v379, %v371
    %v452 = vpack.c.b16 %v380, %v372
    %v453 = vpack.c.b16 %v381, %v373
    %v454 = vpack.c.b16 %v382, %v374
    %v455 = vpack.c.b16 %v383, %v375
    %v456 = vpack.c.b16 %v384, %v376
    %v457 = vpack.c.b16 %v385, %v377
    %v458 = vpack.c.b16 %v394, %v386
    %v459 = vpack.c.b16 %v395, %v387
    %v460 = vpack.c.b16 %v396, %v388
    %v461 = vpack.c.b16 %v397, %v389
    %v462 = vpack.c.b16 %v398, %v390
    %v463 = vpack.c.b16 %v399, %v391
    %v464 = vpack.c.b16 %v400, %v392
    %v465 = vpack.c.b16 %v401, %v393
    %530 = vmatprep.subr.bf16.mxu0 %v459
    %531 = vmatpush1.bf16.msra.mxu0 %v458
    %532 = vmatprep.subr.bf16.mxu0 %v451
    %533 = vmatpush1.bf16.msra.mxu0 %v450
    %534 = vmatprep.subr.bf16.mxu0 %v443
    %535 = vmatpush1.bf16.msra.mxu0 %v442
    %536 = vmatprep.subr.bf16.mxu0 %v435
    %537 = vmatpush1.bf16.msra.mxu0 %v434
    %538 = vmatprep.subr.bf16.mxu0 %v427
    %539 = vmatpush1.bf16.msra.mxu0 %v426
    %540 = vmatprep.subr.bf16.mxu0 %v419
    %541 = vmatpush1.bf16.msra.mxu0 %v418
    %542 = vmatprep.subr.bf16.mxu0 %v411
    %543 = vmatpush1.bf16.msra.mxu0 %v410
    %544 = vmatprep.subr.bf16.mxu0 %v403
    %545 = vmatpush1.bf16.msra.mxu0 %v402
    %546 = vmatprep.subr.bf16.mxu0 0
    %547 = vmatpush2.bf16.msra.mxu0 0
    %548 = vmatprep.subr.bf16.mxu0 0
    %549 = vmatpush2.bf16.msra.mxu0 0
    %550 = vmatprep.subr.bf16.mxu0 0
    %551 = vmatpush2.bf16.msra.mxu0 0
    %552 = vmatprep.subr.bf16.mxu0 0
    %553 = vmatpush2.bf16.msra.mxu0 0
    %554 = vmatprep.subr.bf16.mxu0 0
    %555 = vmatpush2.bf16.msra.mxu0 0
    %556 = vmatprep.subr.bf16.mxu0 0
    %557 = vmatpush2.bf16.msra.mxu0 0
    %558 = vmatprep.subr.bf16.mxu0 0
    %559 = vmatpush2.bf16.msra.mxu0 0
    %560 = vmatprep.subr.bf16.mxu0 0
    %561 = vmatpush2.bf16.msra.mxu0 0
    %562 = vmatprep.mubr.bf16.mxu0 0
    %563 = vmatmul.mubr.bf16.gmra.mxu0 %v194
    %v564 = vpop.f32.mrf.mxu0
    %v565 = vadd.f32 0.0, %v564
    %v566 = vpop.f32.mrf.mxu0
    %v567 = vadd.f32 0.0, %v566
    %v568 = vpop.f32.mrf.mxu0
    %v569 = vadd.f32 0.0, %v568
    %v570 = vpop.f32.mrf.mxu0
    %v571 = vadd.f32 0.0, %v570
    %572 = vmatprep.mubr.bf16.mxu0 0
    %573 = vmatmul.mubr.bf16.gmra.mxu0 %v195
    %v574 = vpop.f32.mrf.mxu0
    %v575 = vadd.f32 0.0, %v574
    %v576 = vpop.f32.mrf.mxu0
    %v577 = vadd.f32 0.0, %v576
    %v578 = vpop.f32.mrf.mxu0
    %v579 = vadd.f32 0.0, %v578
    %v580 = vpop.f32.mrf.mxu0
    %v581 = vadd.f32 0.0, %v580
    %582 = vmatprep.mubr.bf16.mxu0 0
    %583 = vmatmul.mubr.bf16.gmra.mxu0 %v196
    %v584 = vpop.f32.mrf.mxu0
    %v585 = vadd.f32 0.0, %v584
    %v586 = vpop.f32.mrf.mxu0
    %v587 = vadd.f32 0.0, %v586
    %v588 = vpop.f32.mrf.mxu0
    %v589 = vadd.f32 0.0, %v588
    %v590 = vpop.f32.mrf.mxu0
    %v591 = vadd.f32 0.0, %v590
    %592 = vmatprep.mubr.bf16.mxu0 0
    %593 = vmatmul.mubr.bf16.gmra.mxu0 %v197
    %v594 = vpop.f32.mrf.mxu0
    %v595 = vadd.f32 0.0, %v594
    %v596 = vpop.f32.mrf.mxu0
    %v597 = vadd.f32 0.0, %v596
    %v598 = vpop.f32.mrf.mxu0
    %v599 = vadd.f32 0.0, %v598
    %v600 = vpop.f32.mrf.mxu0
    %v601 = vadd.f32 0.0, %v600
    %602 = vmatprep.mubr.bf16.mxu0 0
    %603 = vmatmul.mubr.bf16.gmra.mxu0 %v198
    %v604 = vpop.f32.mrf.mxu0
    %v605 = vadd.f32 0.0, %v604
    %v606 = vpop.f32.mrf.mxu0
    %v607 = vadd.f32 0.0, %v606
    %v608 = vpop.f32.mrf.mxu0
    %v609 = vadd.f32 0.0, %v608
    %v610 = vpop.f32.mrf.mxu0
    %v611 = vadd.f32 0.0, %v610
    %612 = vmatprep.mubr.bf16.mxu0 0
    %613 = vmatmul.mubr.bf16.gmra.mxu0 %v199
    %v614 = vpop.f32.mrf.mxu0
    %v615 = vadd.f32 0.0, %v614
    %v616 = vpop.f32.mrf.mxu0
    %v617 = vadd.f32 0.0, %v616
    %v618 = vpop.f32.mrf.mxu0
    %v619 = vadd.f32 0.0, %v618
    %v620 = vpop.f32.mrf.mxu0
    %v621 = vadd.f32 0.0, %v620
    %622 = vmatprep.mubr.bf16.mxu0 0
    %623 = vmatmul.mubr.bf16.gmra.mxu0 %v200
    %v624 = vpop.f32.mrf.mxu0
    %v625 = vadd.f32 0.0, %v624
    %v626 = vpop.f32.mrf.mxu0
    %v627 = vadd.f32 0.0, %v626
    %v628 = vpop.f32.mrf.mxu0
    %v629 = vadd.f32 0.0, %v628
    %v630 = vpop.f32.mrf.mxu0
    %v631 = vadd.f32 0.0, %v630
    %632 = vmatprep.mubr.bf16.mxu0 0
    %633 = vmatmul.mubr.bf16.gmra.mxu0 %v201
    %v634 = vpop.f32.mrf.mxu0
    %v635 = vadd.f32 0.0, %v634
    %v636 = vpop.f32.mrf.mxu0
    %v637 = vadd.f32 0.0, %v636
    %v638 = vpop.f32.mrf.mxu0
    %v639 = vadd.f32 0.0, %v638
    %v640 = vpop.f32.mrf.mxu0
    %v641 = vadd.f32 0.0, %v640
    %642 = vdwg.mxu0
    %643 = vmatprep.subr.bf16.mxu0 %v461
    %644 = vmatpush1.bf16.msra.mxu0 %v460
    %645 = vmatprep.subr.bf16.mxu0 %v453
    %646 = vmatpush1.bf16.msra.mxu0 %v452
    %647 = vmatprep.subr.bf16.mxu0 %v445
    %648 = vmatpush1.bf16.msra.mxu0 %v444
    %649 = vmatprep.subr.bf16.mxu0 %v437
    %650 = vmatpush1.bf16.msra.mxu0 %v436
    %651 = vmatprep.subr.bf16.mxu0 %v429
    %652 = vmatpush1.bf16.msra.mxu0 %v428
    %653 = vmatprep.subr.bf16.mxu0 %v421
    %654 = vmatpush1.bf16.msra.mxu0 %v420
    %655 = vmatprep.subr.bf16.mxu0 %v413
    %656 = vmatpush1.bf16.msra.mxu0 %v412
    %657 = vmatprep.subr.bf16.mxu0 %v405
    %658 = vmatpush1.bf16.msra.mxu0 %v404
    %659 = vmatprep.subr.bf16.mxu0 0
    %660 = vmatpush2.bf16.msra.mxu0 0
    %661 = vmatprep.subr.bf16.mxu0 0
    %662 = vmatpush2.bf16.msra.mxu0 0
    %663 = vmatprep.subr.bf16.mxu0 0
    %664 = vmatpush2.bf16.msra.mxu0 0
    %665 = vmatprep.subr.bf16.mxu0 0
    %666 = vmatpush2.bf16.msra.mxu0 0
    %667 = vmatprep.subr.bf16.mxu0 0
    %668 = vmatpush2.bf16.msra.mxu0 0
    %669 = vmatprep.subr.bf16.mxu0 0
    %670 = vmatpush2.bf16.msra.mxu0 0
    %671 = vmatprep.subr.bf16.mxu0 0
    %672 = vmatpush2.bf16.msra.mxu0 0
    %673 = vmatprep.subr.bf16.mxu0 0
    %674 = vmatpush2.bf16.msra.mxu0 0
    %675 = vmatprep.mubr.bf16.mxu0 0
    %676 = vmatmul.mubr.bf16.gmra.mxu0 %v194
    %v677 = vpop.f32.mrf.mxu0
    %v678 = vadd.f32 0.0, %v677
    %v679 = vpop.f32.mrf.mxu0
    %v680 = vadd.f32 0.0, %v679
    %v681 = vpop.f32.mrf.mxu0
    %v682 = vadd.f32 0.0, %v681
    %v683 = vpop.f32.mrf.mxu0
    %v684 = vadd.f32 0.0, %v683
    %685 = vmatprep.mubr.bf16.mxu0 0
    %686 = vmatmul.mubr.bf16.gmra.mxu0 %v195
    %v687 = vpop.f32.mrf.mxu0
    %v688 = vadd.f32 0.0, %v687
    %v689 = vpop.f32.mrf.mxu0
    %v690 = vadd.f32 0.0, %v689
    %v691 = vpop.f32.mrf.mxu0
    %v692 = vadd.f32 0.0, %v691
    %v693 = vpop.f32.mrf.mxu0
    %v694 = vadd.f32 0.0, %v693
    %695 = vmatprep.mubr.bf16.mxu0 0
    %696 = vmatmul.mubr.bf16.gmra.mxu0 %v196
    %v697 = vpop.f32.mrf.mxu0
    %v698 = vadd.f32 0.0, %v697
    %v699 = vpop.f32.mrf.mxu0
    %v700 = vadd.f32 0.0, %v699
    %v701 = vpop.f32.mrf.mxu0
    %v702 = vadd.f32 0.0, %v701
    %v703 = vpop.f32.mrf.mxu0
    %v704 = vadd.f32 0.0, %v703
    %705 = vmatprep.mubr.bf16.mxu0 0
    %706 = vmatmul.mubr.bf16.gmra.mxu0 %v197
    %v707 = vpop.f32.mrf.mxu0
    %v708 = vadd.f32 0.0, %v707
    %v709 = vpop.f32.mrf.mxu0
    %v710 = vadd.f32 0.0, %v709
    %v711 = vpop.f32.mrf.mxu0
    %v712 = vadd.f32 0.0, %v711
    %v713 = vpop.f32.mrf.mxu0
    %v714 = vadd.f32 0.0, %v713
    %715 = vmatprep.mubr.bf16.mxu0 0
    %716 = vmatmul.mubr.bf16.gmra.mxu0 %v198
    %v717 = vpop.f32.mrf.mxu0
    %v718 = vadd.f32 0.0, %v717
    %v719 = vpop.f32.mrf.mxu0
    %v720 = vadd.f32 0.0, %v719
    %v721 = vpop.f32.mrf.mxu0
    %v722 = vadd.f32 0.0, %v721
    %v723 = vpop.f32.mrf.mxu0
    %v724 = vadd.f32 0.0, %v723
    %725 = vmatprep.mubr.bf16.mxu0 0
    %726 = vmatmul.mubr.bf16.gmra.mxu0 %v199
    %v727 = vpop.f32.mrf.mxu0
    %v728 = vadd.f32 0.0, %v727
    %v729 = vpop.f32.mrf.mxu0
    %v730 = vadd.f32 0.0, %v729
    %v731 = vpop.f32.mrf.mxu0
    %v732 = vadd.f32 0.0, %v731
    %v733 = vpop.f32.mrf.mxu0
    %v734 = vadd.f32 0.0, %v733
    %735 = vmatprep.mubr.bf16.mxu0 0
    %736 = vmatmul.mubr.bf16.gmra.mxu0 %v200
    %v737 = vpop.f32.mrf.mxu0
    %v738 = vadd.f32 0.0, %v737
    %v739 = vpop.f32.mrf.mxu0
    %v740 = vadd.f32 0.0, %v739
    %v741 = vpop.f32.mrf.mxu0
    %v742 = vadd.f32 0.0, %v741
    %v743 = vpop.f32.mrf.mxu0
    %v744 = vadd.f32 0.0, %v743
    %745 = vmatprep.mubr.bf16.mxu0 0
    %746 = vmatmul.mubr.bf16.gmra.mxu0 %v201
    %v747 = vpop.f32.mrf.mxu0
    %v748 = vadd.f32 0.0, %v747
    %v749 = vpop.f32.mrf.mxu0
    %v750 = vadd.f32 0.0, %v749
    %v751 = vpop.f32.mrf.mxu0
    %v752 = vadd.f32 0.0, %v751
    %v753 = vpop.f32.mrf.mxu0
    %v754 = vadd.f32 0.0, %v753
    %755 = vdwg.mxu0
    %756 = vmatprep.subr.bf16.mxu0 %v463
    %757 = vmatpush1.bf16.msra.mxu0 %v462
    %758 = vmatprep.subr.bf16.mxu0 %v455
    %759 = vmatpush1.bf16.msra.mxu0 %v454
    %760 = vmatprep.subr.bf16.mxu0 %v447
    %761 = vmatpush1.bf16.msra.mxu0 %v446
    %762 = vmatprep.subr.bf16.mxu0 %v439
    %763 = vmatpush1.bf16.msra.mxu0 %v438
    %764 = vmatprep.subr.bf16.mxu0 %v431
    %765 = vmatpush1.bf16.msra.mxu0 %v430
    %766 = vmatprep.subr.bf16.mxu0 %v423
    %767 = vmatpush1.bf16.msra.mxu0 %v422
    %768 = vmatprep.subr.bf16.mxu0 %v415
    %769 = vmatpush1.bf16.msra.mxu0 %v414
    %770 = vmatprep.subr.bf16.mxu0 %v407
    %771 = vmatpush1.bf16.msra.mxu0 %v406
    %772 = vmatprep.subr.bf16.mxu0 0
    %773 = vmatpush2.bf16.msra.mxu0 0
    %774 = vmatprep.subr.bf16.mxu0 0
    %775 = vmatpush2.bf16.msra.mxu0 0
    %776 = vmatprep.subr.bf16.mxu0 0
    %777 = vmatpush2.bf16.msra.mxu0 0
    %778 = vmatprep.subr.bf16.mxu0 0
    %779 = vmatpush2.bf16.msra.mxu0 0
    %780 = vmatprep.subr.bf16.mxu0 0
    %781 = vmatpush2.bf16.msra.mxu0 0
    %782 = vmatprep.subr.bf16.mxu0 0
    %783 = vmatpush2.bf16.msra.mxu0 0
    %784 = vmatprep.subr.bf16.mxu0 0
    %785 = vmatpush2.bf16.msra.mxu0 0
    %786 = vmatprep.subr.bf16.mxu0 0
    %787 = vmatpush2.bf16.msra.mxu0 0
    %788 = vmatprep.mubr.bf16.mxu0 0
    %789 = vmatmul.mubr.bf16.gmra.mxu0 %v194
    %v790 = vpop.f32.mrf.mxu0
    %v791 = vadd.f32 0.0, %v790
    %v792 = vpop.f32.mrf.mxu0
    %v793 = vadd.f32 0.0, %v792
    %v794 = vpop.f32.mrf.mxu0
    %v795 = vadd.f32 0.0, %v794
    %v796 = vpop.f32.mrf.mxu0
    %v797 = vadd.f32 0.0, %v796
    %798 = vmatprep.mubr.bf16.mxu0 0
    %799 = vmatmul.mubr.bf16.gmra.mxu0 %v195
    %v800 = vpop.f32.mrf.mxu0
    %v801 = vadd.f32 0.0, %v800
    %v802 = vpop.f32.mrf.mxu0
    %v803 = vadd.f32 0.0, %v802
    %v804 = vpop.f32.mrf.mxu0
    %v805 = vadd.f32 0.0, %v804
    %v806 = vpop.f32.mrf.mxu0
    %v807 = vadd.f32 0.0, %v806
    %808 = vmatprep.mubr.bf16.mxu0 0
    %809 = vmatmul.mubr.bf16.gmra.mxu0 %v196
    %v810 = vpop.f32.mrf.mxu0
    %v811 = vadd.f32 0.0, %v810
    %v812 = vpop.f32.mrf.mxu0
    %v813 = vadd.f32 0.0, %v812
    %v814 = vpop.f32.mrf.mxu0
    %v815 = vadd.f32 0.0, %v814
    %v816 = vpop.f32.mrf.mxu0
    %v817 = vadd.f32 0.0, %v816
    %818 = vmatprep.mubr.bf16.mxu0 0
    %819 = vmatmul.mubr.bf16.gmra.mxu0 %v197
    %v820 = vpop.f32.mrf.mxu0
    %v821 = vadd.f32 0.0, %v820
    %v822 = vpop.f32.mrf.mxu0
    %v823 = vadd.f32 0.0, %v822
    %v824 = vpop.f32.mrf.mxu0
    %v825 = vadd.f32 0.0, %v824
    %v826 = vpop.f32.mrf.mxu0
    %v827 = vadd.f32 0.0, %v826
    %828 = vmatprep.mubr.bf16.mxu0 0
    %829 = vmatmul.mubr.bf16.gmra.mxu0 %v198
    %v830 = vpop.f32.mrf.mxu0
    %v831 = vadd.f32 0.0, %v830
    %v832 = vpop.f32.mrf.mxu0
    %v833 = vadd.f32 0.0, %v832
    %v834 = vpop.f32.mrf.mxu0
    %v835 = vadd.f32 0.0, %v834
    %v836 = vpop.f32.mrf.mxu0
    %v837 = vadd.f32 0.0, %v836
    %838 = vmatprep.mubr.bf16.mxu0 0
    %839 = vmatmul.mubr.bf16.gmra.mxu0 %v199
    %v840 = vpop.f32.mrf.mxu0
    %v841 = vadd.f32 0.0, %v840
    %v842 = vpop.f32.mrf.mxu0
    %v843 = vadd.f32 0.0, %v842
    %v844 = vpop.f32.mrf.mxu0
    %v845 = vadd.f32 0.0, %v844
    %v846 = vpop.f32.mrf.mxu0
    %v847 = vadd.f32 0.0, %v846
    %848 = vmatprep.mubr.bf16.mxu0 0
    %849 = vmatmul.mubr.bf16.gmra.mxu0 %v200
    %v850 = vpop.f32.mrf.mxu0
    %v851 = vadd.f32 0.0, %v850
    %v852 = vpop.f32.mrf.mxu0
    %v853 = vadd.f32 0.0, %v852
    %v854 = vpop.f32.mrf.mxu0
    %v855 = vadd.f32 0.0, %v854
    %v856 = vpop.f32.mrf.mxu0
    %v857 = vadd.f32 0.0, %v856
    %858 = vmatprep.mubr.bf16.mxu0 0
    %859 = vmatmul.mubr.bf16.gmra.mxu0 %v201
    %v860 = vpop.f32.mrf.mxu0
    %v861 = vadd.f32 0.0, %v860
    %v862 = vpop.f32.mrf.mxu0
    %v863 = vadd.f32 0.0, %v862
    %v864 = vpop.f32.mrf.mxu0
    %v865 = vadd.f32 0.0, %v864
    %v866 = vpop.f32.mrf.mxu0
    %v867 = vadd.f32 0.0, %v866
    %868 = vdwg.mxu0
    %869 = vmatprep.subr.bf16.mxu0 %v465
    %870 = vmatpush1.bf16.msra.mxu0 %v464
    %871 = vmatprep.subr.bf16.mxu0 %v457
    %872 = vmatpush1.bf16.msra.mxu0 %v456
    %873 = vmatprep.subr.bf16.mxu0 %v449
    %874 = vmatpush1.bf16.msra.mxu0 %v448
    %875 = vmatprep.subr.bf16.mxu0 %v441
    %876 = vmatpush1.bf16.msra.mxu0 %v440
    %877 = vmatprep.subr.bf16.mxu0 %v433
    %878 = vmatpush1.bf16.msra.mxu0 %v432
    %879 = vmatprep.subr.bf16.mxu0 %v425
    %880 = vmatpush1.bf16.msra.mxu0 %v424
    %881 = vmatprep.subr.bf16.mxu0 %v417
    %882 = vmatpush1.bf16.msra.mxu0 %v416
    %883 = vmatprep.subr.bf16.mxu0 %v409
    %884 = vmatpush1.bf16.msra.mxu0 %v408
    %885 = vmatprep.subr.bf16.mxu0 0
    %886 = vmatpush2.bf16.msra.mxu0 0
    %887 = vmatprep.subr.bf16.mxu0 0
    %888 = vmatpush2.bf16.msra.mxu0 0
    %889 = vmatprep.subr.bf16.mxu0 0
    %890 = vmatpush2.bf16.msra.mxu0 0
    %891 = vmatprep.subr.bf16.mxu0 0
    %892 = vmatpush2.bf16.msra.mxu0 0
    %893 = vmatprep.subr.bf16.mxu0 0
    %894 = vmatpush2.bf16.msra.mxu0 0
    %895 = vmatprep.subr.bf16.mxu0 0
    %896 = vmatpush2.bf16.msra.mxu0 0
    %897 = vmatprep.subr.bf16.mxu0 0
    %898 = vmatpush2.bf16.msra.mxu0 0
    %899 = vmatprep.subr.bf16.mxu0 0
    %900 = vmatpush2.bf16.msra.mxu0 0
    %901 = vmatprep.mubr.bf16.mxu0 0
    %902 = vmatmul.mubr.bf16.gmra.mxu0 %v194
    %v903 = vpop.f32.mrf.mxu0
    %v904 = vadd.f32 0.0, %v903
    %v905 = vpop.f32.mrf.mxu0
    %v906 = vadd.f32 0.0, %v905
    %v907 = vpop.f32.mrf.mxu0
    %v908 = vadd.f32 0.0, %v907
    %v909 = vpop.f32.mrf.mxu0
    %v910 = vadd.f32 0.0, %v909
    %911 = vmatprep.mubr.bf16.mxu0 0
    %912 = vmatmul.mubr.bf16.gmra.mxu0 %v195
    %v913 = vpop.f32.mrf.mxu0
    %v914 = vadd.f32 0.0, %v913
    %v915 = vpop.f32.mrf.mxu0
    %v916 = vadd.f32 0.0, %v915
    %v917 = vpop.f32.mrf.mxu0
    %v918 = vadd.f32 0.0, %v917
    %v919 = vpop.f32.mrf.mxu0
    %v920 = vadd.f32 0.0, %v919
    %921 = vmatprep.mubr.bf16.mxu0 0
    %922 = vmatmul.mubr.bf16.gmra.mxu0 %v196
    %v923 = vpop.f32.mrf.mxu0
    %v924 = vadd.f32 0.0, %v923
    %v925 = vpop.f32.mrf.mxu0
    %v926 = vadd.f32 0.0, %v925
    %v927 = vpop.f32.mrf.mxu0
    %v928 = vadd.f32 0.0, %v927
    %v929 = vpop.f32.mrf.mxu0
    %v930 = vadd.f32 0.0, %v929
    %931 = vmatprep.mubr.bf16.mxu0 0
    %932 = vmatmul.mubr.bf16.gmra.mxu0 %v197
    %v933 = vpop.f32.mrf.mxu0
    %v934 = vadd.f32 0.0, %v933
    %v935 = vpop.f32.mrf.mxu0
    %v936 = vadd.f32 0.0, %v935
    %v937 = vpop.f32.mrf.mxu0
    %v938 = vadd.f32 0.0, %v937
    %v939 = vpop.f32.mrf.mxu0
    %v940 = vadd.f32 0.0, %v939
    %941 = vmatprep.mubr.bf16.mxu0 0
    %942 = vmatmul.mubr.bf16.gmra.mxu0 %v198
    %v943 = vpop.f32.mrf.mxu0
    %v944 = vadd.f32 0.0, %v943
    %v945 = vpop.f32.mrf.mxu0
    %v946 = vadd.f32 0.0, %v945
    %v947 = vpop.f32.mrf.mxu0
    %v948 = vadd.f32 0.0, %v947
    %v949 = vpop.f32.mrf.mxu0
    %v950 = vadd.f32 0.0, %v949
    %951 = vmatprep.mubr.bf16.mxu0 0
    %952 = vmatmul.mubr.bf16.gmra.mxu0 %v199
    %v953 = vpop.f32.mrf.mxu0
    %v954 = vadd.f32 0.0, %v953
    %v955 = vpop.f32.mrf.mxu0
    %v956 = vadd.f32 0.0, %v955
    %v957 = vpop.f32.mrf.mxu0
    %v958 = vadd.f32 0.0, %v957
    %v959 = vpop.f32.mrf.mxu0
    %v960 = vadd.f32 0.0, %v959
    %961 = vmatprep.mubr.bf16.mxu0 0
    %962 = vmatmul.mubr.bf16.gmra.mxu0 %v200
    %v963 = vpop.f32.mrf.mxu0
    %v964 = vadd.f32 0.0, %v963
    %v965 = vpop.f32.mrf.mxu0
    %v966 = vadd.f32 0.0, %v965
    %v967 = vpop.f32.mrf.mxu0
    %v968 = vadd.f32 0.0, %v967
    %v969 = vpop.f32.mrf.mxu0
    %v970 = vadd.f32 0.0, %v969
    %971 = vmatprep.mubr.bf16.mxu0 0
    %972 = vmatmul.mubr.bf16.gmra.mxu0 %v201
    %v973 = vpop.f32.mrf.mxu0
    %v974 = vadd.f32 0.0, %v973
    %v975 = vpop.f32.mrf.mxu0
    %v976 = vadd.f32 0.0, %v975
    %v977 = vpop.f32.mrf.mxu0
    %v978 = vadd.f32 0.0, %v977
    %v979 = vpop.f32.mrf.mxu0
    %v980 = vadd.f32 0.0, %v979
    %981 = vdwg.mxu0
    %v982 = vpack.c.bf16 %v569, %v565
    %v983 = vpack.c.bf16 %v571, %v567
    %v984 = vpack.c.bf16 %v682, %v678
    %v985 = vpack.c.bf16 %v684, %v680
    %v986 = vpack.c.bf16 %v795, %v791
    %v987 = vpack.c.bf16 %v797, %v793
    %v988 = vpack.c.bf16 %v908, %v904
    %v989 = vpack.c.bf16 %v910, %v906
    %v990 = vpack.c.bf16 %v579, %v575
    %v991 = vpack.c.bf16 %v581, %v577
    %v992 = vpack.c.bf16 %v692, %v688
    %v993 = vpack.c.bf16 %v694, %v690
    %v994 = vpack.c.bf16 %v805, %v801
    %v995 = vpack.c.bf16 %v807, %v803
    %v996 = vpack.c.bf16 %v918, %v914
    %v997 = vpack.c.bf16 %v920, %v916
    %v998 = vpack.c.bf16 %v589, %v585
    %v999 = vpack.c.bf16 %v591, %v587
    %v1000 = vpack.c.bf16 %v702, %v698
    %v1001 = vpack.c.bf16 %v704, %v700
    %v1002 = vpack.c.bf16 %v815, %v811
    %v1003 = vpack.c.bf16 %v817, %v813
    %v1004 = vpack.c.bf16 %v928, %v924
    %v1005 = vpack.c.bf16 %v930, %v926
    %v1006 = vpack.c.bf16 %v599, %v595
    %v1007 = vpack.c.bf16 %v601, %v597
    %v1008 = vpack.c.bf16 %v712, %v708
    %v1009 = vpack.c.bf16 %v714, %v710
    %v1010 = vpack.c.bf16 %v825, %v821
    %v1011 = vpack.c.bf16 %v827, %v823
    %v1012 = vpack.c.bf16 %v938, %v934
    %v1013 = vpack.c.bf16 %v940, %v936
    %v1014 = vpack.c.bf16 %v609, %v605
    %v1015 = vpack.c.bf16 %v611, %v607
    %v1016 = vpack.c.bf16 %v722, %v718
    %v1017 = vpack.c.bf16 %v724, %v720
    %v1018 = vpack.c.bf16 %v835, %v831
    %v1019 = vpack.c.bf16 %v837, %v833
    %v1020 = vpack.c.bf16 %v948, %v944
    %v1021 = vpack.c.bf16 %v950, %v946
    %v1022 = vpack.c.bf16 %v619, %v615
    %v1023 = vpack.c.bf16 %v621, %v617
    %v1024 = vpack.c.bf16 %v732, %v728
    %v1025 = vpack.c.bf16 %v734, %v730
    %v1026 = vpack.c.bf16 %v845, %v841
    %v1027 = vpack.c.bf16 %v847, %v843
    %v1028 = vpack.c.bf16 %v958, %v954
    %v1029 = vpack.c.bf16 %v960, %v956
    %v1030 = vpack.c.bf16 %v629, %v625
    %v1031 = vpack.c.bf16 %v631, %v627
    %v1032 = vpack.c.bf16 %v742, %v738
    %v1033 = vpack.c.bf16 %v744, %v740
    %v1034 = vpack.c.bf16 %v855, %v851
    %v1035 = vpack.c.bf16 %v857, %v853
    %v1036 = vpack.c.bf16 %v968, %v964
    %v1037 = vpack.c.bf16 %v970, %v966
    %v1038 = vpack.c.bf16 %v639, %v635
    %v1039 = vpack.c.bf16 %v641, %v637
    %v1040 = vpack.c.bf16 %v752, %v748
    %v1041 = vpack.c.bf16 %v754, %v750
    %v1042 = vpack.c.bf16 %v865, %v861
    %v1043 = vpack.c.bf16 %v867, %v863
    %v1044 = vpack.c.bf16 %v978, %v974
    %v1045 = vpack.c.bf16 %v980, %v976
    %v1078 = vunpack.c.l.b16 %v982
    %v1079 = vunpack.c.l.b16 %v983
    %v1080 = vunpack.c.l.b16 %v984
    %v1081 = vunpack.c.l.b16 %v985
    %v1082 = vunpack.c.h.b16 %v982
    %v1083 = vunpack.c.h.b16 %v983
    %v1084 = vunpack.c.h.b16 %v984
    %v1085 = vunpack.c.h.b16 %v985
    %v1086 = vunpack.c.l.b16 %v990
    %v1087 = vunpack.c.l.b16 %v991
    %v1088 = vunpack.c.l.b16 %v992
    %v1089 = vunpack.c.l.b16 %v993
    %v1090 = vunpack.c.h.b16 %v990
    %v1091 = vunpack.c.h.b16 %v991
    %v1092 = vunpack.c.h.b16 %v992
    %v1093 = vunpack.c.h.b16 %v993
    %v1094 = vunpack.c.l.b16 %v998
    %v1095 = vunpack.c.l.b16 %v999
    %v1096 = vunpack.c.l.b16 %v1000
    %v1097 = vunpack.c.l.b16 %v1001
    %v1098 = vunpack.c.h.b16 %v998
    %v1099 = vunpack.c.h.b16 %v999
    %v1100 = vunpack.c.h.b16 %v1000
    %v1101 = vunpack.c.h.b16 %v1001
    %v1102 = vunpack.c.l.b16 %v1006
    %v1103 = vunpack.c.l.b16 %v1007
    %v1104 = vunpack.c.l.b16 %v1008
    %v1105 = vunpack.c.l.b16 %v1009
    %v1106 = vunpack.c.h.b16 %v1006
    %v1107 = vunpack.c.h.b16 %v1007
    %v1108 = vunpack.c.h.b16 %v1008
    %v1109 = vunpack.c.h.b16 %v1009
    %v1110 = vunpack.c.l.b16 %v1014
    %v1111 = vunpack.c.l.b16 %v1015
    %v1112 = vunpack.c.l.b16 %v1016
    %v1113 = vunpack.c.l.b16 %v1017
    %v1114 = vunpack.c.h.b16 %v1014
    %v1115 = vunpack.c.h.b16 %v1015
    %v1116 = vunpack.c.h.b16 %v1016
    %v1117 = vunpack.c.h.b16 %v1017
    %v1118 = vunpack.c.l.b16 %v1022
    %v1119 = vunpack.c.l.b16 %v1023
    %v1120 = vunpack.c.l.b16 %v1024
    %v1121 = vunpack.c.l.b16 %v1025
    %v1122 = vunpack.c.h.b16 %v1022
    %v1123 = vunpack.c.h.b16 %v1023
    %v1124 = vunpack.c.h.b16 %v1024
    %v1125 = vunpack.c.h.b16 %v1025
    %v1126 = vunpack.c.l.b16 %v1030
    %v1127 = vunpack.c.l.b16 %v1031
    %v1128 = vunpack.c.l.b16 %v1032
    %v1129 = vunpack.c.l.b16 %v1033
    %v1130 = vunpack.c.h.b16 %v1030
    %v1131 = vunpack.c.h.b16 %v1031
    %v1132 = vunpack.c.h.b16 %v1032
    %v1133 = vunpack.c.h.b16 %v1033
    %v1134 = vunpack.c.l.b16 %v1038
    %v1135 = vunpack.c.l.b16 %v1039
    %v1136 = vunpack.c.l.b16 %v1040
    %v1137 = vunpack.c.l.b16 %v1041
    %v1138 = vunpack.c.h.b16 %v1038
    %v1139 = vunpack.c.h.b16 %v1039
    %v1140 = vunpack.c.h.b16 %v1040
    %v1141 = vunpack.c.h.b16 %v1041
    %v1142 = vpack.c.b16 %v1079, %v1078
    %v1143 = vpack.c.b16 %v1081, %v1080
    %v1144 = vpack.c.b16 %v1083, %v1082
    %v1145 = vpack.c.b16 %v1085, %v1084
    %v1146 = vpack.c.b16 %v1087, %v1086
    %v1147 = vpack.c.b16 %v1089, %v1088
    %v1148 = vpack.c.b16 %v1091, %v1090
    %v1149 = vpack.c.b16 %v1093, %v1092
    %v1150 = vpack.c.b16 %v1095, %v1094
    %v1151 = vpack.c.b16 %v1097, %v1096
    %v1152 = vpack.c.b16 %v1099, %v1098
    %v1153 = vpack.c.b16 %v1101, %v1100
    %v1154 = vpack.c.b16 %v1103, %v1102
    %v1155 = vpack.c.b16 %v1105, %v1104
    %v1156 = vpack.c.b16 %v1107, %v1106
    %v1157 = vpack.c.b16 %v1109, %v1108
    %v1158 = vpack.c.b16 %v1111, %v1110
    %v1159 = vpack.c.b16 %v1113, %v1112
    %v1160 = vpack.c.b16 %v1115, %v1114
    %v1161 = vpack.c.b16 %v1117, %v1116
    %v1162 = vpack.c.b16 %v1119, %v1118
    %v1163 = vpack.c.b16 %v1121, %v1120
    %v1164 = vpack.c.b16 %v1123, %v1122
    %v1165 = vpack.c.b16 %v1125, %v1124
    %v1166 = vpack.c.b16 %v1127, %v1126
    %v1167 = vpack.c.b16 %v1129, %v1128
    %v1168 = vpack.c.b16 %v1131, %v1130
    %v1169 = vpack.c.b16 %v1133, %v1132
    %v1170 = vpack.c.b16 %v1135, %v1134
    %v1171 = vpack.c.b16 %v1137, %v1136
    %v1172 = vpack.c.b16 %v1139, %v1138
    %v1173 = vpack.c.b16 %v1141, %v1140
    %1206 = vst [vmem:[#allocation2] sm:$0xff] %v1142
    %1207 = vst [vmem:[#allocation2 + $0x8] sm:$0xff] %v1143
    %1208 = vst [vmem:[#allocation2 + $0x10] sm:$0xff] %v1144
    %1209 = vst [vmem:[#allocation2 + $0x18] sm:$0xff] %v1145
    %1210 = vst [vmem:[#allocation2 + $0x20] sm:$0xff] %v1146
    %1211 = vst [vmem:[#allocation2 + $0x28] sm:$0xff] %v1147
    %1212 = vst [vmem:[#allocation2 + $0x30] sm:$0xff] %v1148
    %1213 = vst [vmem:[#allocation2 + $0x38] sm:$0xff] %v1149
    %1214 = vst [vmem:[#allocation2 + $0x40] sm:$0xff] %v1150
    %1215 = vst [vmem:[#allocation2 + $0x48] sm:$0xff] %v1151
    %1216 = vst [vmem:[#allocation2 + $0x50] sm:$0xff] %v1152
    %1217 = vst [vmem:[#allocation2 + $0x58] sm:$0xff] %v1153
    %1218 = vst [vmem:[#allocation2 + $0x60] sm:$0xff] %v1154
    %1219 = vst [vmem:[#allocation2 + $0x68] sm:$0xff] %v1155
    %1220 = vst [vmem:[#allocation2 + $0x70] sm:$0xff] %v1156
    %1221 = vst [vmem:[#allocation2 + $0x78] sm:$0xff] %v1157
    %1222 = vst [vmem:[#allocation2 + $0x80] sm:$0xff] %v1158
    %1223 = vst [vmem:[#allocation2 + $0x88] sm:$0xff] %v1159
    %1224 = vst [vmem:[#allocation2 + $0x90] sm:$0xff] %v1160
    %1225 = vst [vmem:[#allocation2 + $0x98] sm:$0xff] %v1161
    %1226 = vst [vmem:[#allocation2 + $0xa0] sm:$0xff] %v1162
    %1227 = vst [vmem:[#allocation2 + $0xa8] sm:$0xff] %v1163
    %1228 = vst [vmem:[#allocation2 + $0xb0] sm:$0xff] %v1164
    %1229 = vst [vmem:[#allocation2 + $0xb8] sm:$0xff] %v1165
    %1230 = vst [vmem:[#allocation2 + $0xc0] sm:$0xff] %v1166
    %1231 = vst [vmem:[#allocation2 + $0xc8] sm:$0xff] %v1167
    %1232 = vst [vmem:[#allocation2 + $0xd0] sm:$0xff] %v1168
    %1233 = vst [vmem:[#allocation2 + $0xd8] sm:$0xff] %v1169
    %1234 = vst [vmem:[#allocation2 + $0xe0] sm:$0xff] %v1170
    %1235 = vst [vmem:[#allocation2 + $0xe8] sm:$0xff] %v1171
    %1236 = vst [vmem:[#allocation2 + $0xf0] sm:$0xff] %v1172
    %1237 = vst [vmem:[#allocation2 + $0xf8] sm:$0xff] %v1173
    %v1270 = vunpack.c.l.b16 %v986
    %v1271 = vunpack.c.l.b16 %v987
    %v1272 = vunpack.c.l.b16 %v988
    %v1273 = vunpack.c.l.b16 %v989
    %v1274 = vunpack.c.h.b16 %v986
    %v1275 = vunpack.c.h.b16 %v987
    %v1276 = vunpack.c.h.b16 %v988
    %v1277 = vunpack.c.h.b16 %v989
    %v1278 = vunpack.c.l.b16 %v994
    %v1279 = vunpack.c.l.b16 %v995
    %v1280 = vunpack.c.l.b16 %v996
    %v1281 = vunpack.c.l.b16 %v997
    %v1282 = vunpack.c.h.b16 %v994
    %v1283 = vunpack.c.h.b16 %v995
    %v1284 = vunpack.c.h.b16 %v996
    %v1285 = vunpack.c.h.b16 %v997
    %v1286 = vunpack.c.l.b16 %v1002
    %v1287 = vunpack.c.l.b16 %v1003
    %v1288 = vunpack.c.l.b16 %v1004
    %v1289 = vunpack.c.l.b16 %v1005
    %v1290 = vunpack.c.h.b16 %v1002
    %v1291 = vunpack.c.h.b16 %v1003
    %v1292 = vunpack.c.h.b16 %v1004
    %v1293 = vunpack.c.h.b16 %v1005
    %v1294 = vunpack.c.l.b16 %v1010
    %v1295 = vunpack.c.l.b16 %v1011
    %v1296 = vunpack.c.l.b16 %v1012
    %v1297 = vunpack.c.l.b16 %v1013
    %v1298 = vunpack.c.h.b16 %v1010
    %v1299 = vunpack.c.h.b16 %v1011
    %v1300 = vunpack.c.h.b16 %v1012
    %v1301 = vunpack.c.h.b16 %v1013
    %v1302 = vunpack.c.l.b16 %v1018
    %v1303 = vunpack.c.l.b16 %v1019
    %v1304 = vunpack.c.l.b16 %v1020
    %v1305 = vunpack.c.l.b16 %v1021
    %v1306 = vunpack.c.h.b16 %v1018
    %v1307 = vunpack.c.h.b16 %v1019
    %v1308 = vunpack.c.h.b16 %v1020
    %v1309 = vunpack.c.h.b16 %v1021
    %v1310 = vunpack.c.l.b16 %v1026
    %v1311 = vunpack.c.l.b16 %v1027
    %v1312 = vunpack.c.l.b16 %v1028
    %v1313 = vunpack.c.l.b16 %v1029
    %v1314 = vunpack.c.h.b16 %v1026
    %v1315 = vunpack.c.h.b16 %v1027
    %v1316 = vunpack.c.h.b16 %v1028
    %v1317 = vunpack.c.h.b16 %v1029
    %v1318 = vunpack.c.l.b16 %v1034
    %v1319 = vunpack.c.l.b16 %v1035
    %v1320 = vunpack.c.l.b16 %v1036
    %v1321 = vunpack.c.l.b16 %v1037
    %v1322 = vunpack.c.h.b16 %v1034
    %v1323 = vunpack.c.h.b16 %v1035
    %v1324 = vunpack.c.h.b16 %v1036
    %v1325 = vunpack.c.h.b16 %v1037
    %v1326 = vunpack.c.l.b16 %v1042
    %v1327 = vunpack.c.l.b16 %v1043
    %v1328 = vunpack.c.l.b16 %v1044
    %v1329 = vunpack.c.l.b16 %v1045
    %v1330 = vunpack.c.h.b16 %v1042
    %v1331 = vunpack.c.h.b16 %v1043
    %v1332 = vunpack.c.h.b16 %v1044
    %v1333 = vunpack.c.h.b16 %v1045
    %v1334 = vpack.c.b16 %v1271, %v1270
    %v1335 = vpack.c.b16 %v1273, %v1272
    %v1336 = vpack.c.b16 %v1275, %v1274
    %v1337 = vpack.c.b16 %v1277, %v1276
    %v1338 = vpack.c.b16 %v1279, %v1278
    %v1339 = vpack.c.b16 %v1281, %v1280
    %v1340 = vpack.c.b16 %v1283, %v1282
    %v1341 = vpack.c.b16 %v1285, %v1284
    %v1342 = vpack.c.b16 %v1287, %v1286
    %v1343 = vpack.c.b16 %v1289, %v1288
    %v1344 = vpack.c.b16 %v1291, %v1290
    %v1345 = vpack.c.b16 %v1293, %v1292
    %v1346 = vpack.c.b16 %v1295, %v1294
    %v1347 = vpack.c.b16 %v1297, %v1296
    %v1348 = vpack.c.b16 %v1299, %v1298
    %v1349 = vpack.c.b16 %v1301, %v1300
    %v1350 = vpack.c.b16 %v1303, %v1302
    %v1351 = vpack.c.b16 %v1305, %v1304
    %v1352 = vpack.c.b16 %v1307, %v1306
    %v1353 = vpack.c.b16 %v1309, %v1308
    %v1354 = vpack.c.b16 %v1311, %v1310
    %v1355 = vpack.c.b16 %v1313, %v1312
    %v1356 = vpack.c.b16 %v1315, %v1314
    %v1357 = vpack.c.b16 %v1317, %v1316
    %v1358 = vpack.c.b16 %v1319, %v1318
    %v1359 = vpack.c.b16 %v1321, %v1320
    %v1360 = vpack.c.b16 %v1323, %v1322
    %v1361 = vpack.c.b16 %v1325, %v1324
    %v1362 = vpack.c.b16 %v1327, %v1326
    %v1363 = vpack.c.b16 %v1329, %v1328
    %v1364 = vpack.c.b16 %v1331, %v1330
    %v1365 = vpack.c.b16 %v1333, %v1332
    %1398 = vst [vmem:[#allocation3] sm:$0xff] %v1334
    %1399 = vst [vmem:[#allocation3 + $0x8] sm:$0xff] %v1335
    %1400 = vst [vmem:[#allocation3 + $0x10] sm:$0xff] %v1336
    %1401 = vst [vmem:[#allocation3 + $0x18] sm:$0xff] %v1337
    %1402 = vst [vmem:[#allocation3 + $0x20] sm:$0xff] %v1338
    %1403 = vst [vmem:[#allocation3 + $0x28] sm:$0xff] %v1339
    %1404 = vst [vmem:[#allocation3 + $0x30] sm:$0xff] %v1340
    %1405 = vst [vmem:[#allocation3 + $0x38] sm:$0xff] %v1341
    %1406 = vst [vmem:[#allocation3 + $0x40] sm:$0xff] %v1342
    %1407 = vst [vmem:[#allocation3 + $0x48] sm:$0xff] %v1343
    %1408 = vst [vmem:[#allocation3 + $0x50] sm:$0xff] %v1344
    %1409 = vst [vmem:[#allocation3 + $0x58] sm:$0xff] %v1345
    %1410 = vst [vmem:[#allocation3 + $0x60] sm:$0xff] %v1346
    %1411 = vst [vmem:[#allocation3 + $0x68] sm:$0xff] %v1347
    %1412 = vst [vmem:[#allocation3 + $0x70] sm:$0xff] %v1348
    %1413 = vst [vmem:[#allocation3 + $0x78] sm:$0xff] %v1349
    %1414 = vst [vmem:[#allocation3 + $0x80] sm:$0xff] %v1350
    %1415 = vst [vmem:[#allocation3 + $0x88] sm:$0xff] %v1351
    %1416 = vst [vmem:[#allocation3 + $0x90] sm:$0xff] %v1352
    %1417 = vst [vmem:[#allocation3 + $0x98] sm:$0xff] %v1353
    %1418 = vst [vmem:[#allocation3 + $0xa0] sm:$0xff] %v1354
    %1419 = vst [vmem:[#allocation3 + $0xa8] sm:$0xff] %v1355
    %1420 = vst [vmem:[#allocation3 + $0xb0] sm:$0xff] %v1356
    %1421 = vst [vmem:[#allocation3 + $0xb8] sm:$0xff] %v1357
    %1422 = vst [vmem:[#allocation3 + $0xc0] sm:$0xff] %v1358
    %1423 = vst [vmem:[#allocation3 + $0xc8] sm:$0xff] %v1359
    %1424 = vst [vmem:[#allocation3 + $0xd0] sm:$0xff] %v1360
    %1425 = vst [vmem:[#allocation3 + $0xd8] sm:$0xff] %v1361
    %1426 = vst [vmem:[#allocation3 + $0xe0] sm:$0xff] %v1362
    %1427 = vst [vmem:[#allocation3 + $0xe8] sm:$0xff] %v1363
    %1428 = vst [vmem:[#allocation3 + $0xf0] sm:$0xff] %v1364
    %1429 = vst [vmem:[#allocation3 + $0xf8] sm:$0xff] %v1365
    %v1430 = vld [vmem:[#allocation9] sm:$0xff]
    %v1431 = vld [vmem:[#allocation9 + $0x8] sm:$0xff]
    %v1432 = vld [vmem:[#allocation9 + $0x10] sm:$0xff]
    %v1433 = vld [vmem:[#allocation9 + $0x18] sm:$0xff]
    %v1434 = vld [vmem:[#allocation9 + $0x20] sm:$0xff]
    %v1435 = vld [vmem:[#allocation9 + $0x28] sm:$0xff]
    %v1436 = vld [vmem:[#allocation9 + $0x30] sm:$0xff]
    %v1437 = vld [vmem:[#allocation9 + $0x38] sm:$0xff]
    %v1438 = vld [vmem:[#allocation9 + $0x40] sm:$0xff]
    %v1439 = vld [vmem:[#allocation9 + $0x48] sm:$0xff]
    %v1440 = vld [vmem:[#allocation9 + $0x50] sm:$0xff]
    %v1441 = vld [vmem:[#allocation9 + $0x58] sm:$0xff]
    %v1442 = vld [vmem:[#allocation9 + $0x60] sm:$0xff]
    %v1443 = vld [vmem:[#allocation9 + $0x68] sm:$0xff]
    %v1444 = vld [vmem:[#allocation9 + $0x70] sm:$0xff]
    %v1445 = vld [vmem:[#allocation9 + $0x78] sm:$0xff]
    %v1446 = vld [vmem:[#allocation9 + $0x80] sm:$0xff]
    %v1447 = vld [vmem:[#allocation9 + $0x88] sm:$0xff]
    %v1448 = vld [vmem:[#allocation9 + $0x90] sm:$0xff]
    %v1449 = vld [vmem:[#allocation9 + $0x98] sm:$0xff]
    %v1450 = vld [vmem:[#allocation9 + $0xa0] sm:$0xff]
    %v1451 = vld [vmem:[#allocation9 + $0xa8] sm:$0xff]
    %v1452 = vld [vmem:[#allocation9 + $0xb0] sm:$0xff]
    %v1453 = vld [vmem:[#allocation9 + $0xb8] sm:$0xff]
    %v1454 = vld [vmem:[#allocation9 + $0xc0] sm:$0xff]
    %v1455 = vld [vmem:[#allocation9 + $0xc8] sm:$0xff]
    %v1456 = vld [vmem:[#allocation9 + $0xd0] sm:$0xff]
    %v1457 = vld [vmem:[#allocation9 + $0xd8] sm:$0xff]
    %v1458 = vld [vmem:[#allocation9 + $0xe0] sm:$0xff]
    %v1459 = vld [vmem:[#allocation9 + $0xe8] sm:$0xff]
    %v1460 = vld [vmem:[#allocation9 + $0xf0] sm:$0xff]
    %v1461 = vld [vmem:[#allocation9 + $0xf8] sm:$0xff]
    %v1462 = vld [vmem:[#allocation10] sm:$0xff]
    %v1463 = vld [vmem:[#allocation10 + $0x8] sm:$0xff]
    %v1464 = vld [vmem:[#allocation10 + $0x10] sm:$0xff]
    %v1465 = vld [vmem:[#allocation10 + $0x18] sm:$0xff]
    %v1466 = vld [vmem:[#allocation10 + $0x20] sm:$0xff]
    %v1467 = vld [vmem:[#allocation10 + $0x28] sm:$0xff]
    %v1468 = vld [vmem:[#allocation10 + $0x30] sm:$0xff]
    %v1469 = vld [vmem:[#allocation10 + $0x38] sm:$0xff]
    %v1470 = vld [vmem:[#allocation10 + $0x40] sm:$0xff]
    %v1471 = vld [vmem:[#allocation10 + $0x48] sm:$0xff]
    %v1472 = vld [vmem:[#allocation10 + $0x50] sm:$0xff]
    %v1473 = vld [vmem:[#allocation10 + $0x58] sm:$0xff]
    %v1474 = vld [vmem:[#allocation10 + $0x60] sm:$0xff]
    %v1475 = vld [vmem:[#allocation10 + $0x68] sm:$0xff]
    %v1476 = vld [vmem:[#allocation10 + $0x70] sm:$0xff]
    %v1477 = vld [vmem:[#allocation10 + $0x78] sm:$0xff]
    %v1478 = vld [vmem:[#allocation10 + $0x80] sm:$0xff]
    %v1479 = vld [vmem:[#allocation10 + $0x88] sm:$0xff]
    %v1480 = vld [vmem:[#allocation10 + $0x90] sm:$0xff]
    %v1481 = vld [vmem:[#allocation10 + $0x98] sm:$0xff]
    %v1482 = vld [vmem:[#allocation10 + $0xa0] sm:$0xff]
    %v1483 = vld [vmem:[#allocation10 + $0xa8] sm:$0xff]
    %v1484 = vld [vmem:[#allocation10 + $0xb0] sm:$0xff]
    %v1485 = vld [vmem:[#allocation10 + $0xb8] sm:$0xff]
    %v1486 = vld [vmem:[#allocation10 + $0xc0] sm:$0xff]
    %v1487 = vld [vmem:[#allocation10 + $0xc8] sm:$0xff]
    %v1488 = vld [vmem:[#allocation10 + $0xd0] sm:$0xff]
    %v1489 = vld [vmem:[#allocation10 + $0xd8] sm:$0xff]
    %v1490 = vld [vmem:[#allocation10 + $0xe0] sm:$0xff]
    %v1491 = vld [vmem:[#allocation10 + $0xe8] sm:$0xff]
    %v1492 = vld [vmem:[#allocation10 + $0xf0] sm:$0xff]
    %v1493 = vld [vmem:[#allocation10 + $0xf8] sm:$0xff]
    %v1494 = vld [vmem:[%s5] sm:$0xf]
    %v1495 = vld [vmem:[%s5 + $0x4] sm:$0xf]
    %v1496 = vld [vmem:[#allocation2] sm:$0xff]
    %v1497 = vld [vmem:[#allocation2 + $0x8] sm:$0xff]
    %v1498 = vld [vmem:[#allocation2 + $0x10] sm:$0xff]
    %v1499 = vld [vmem:[#allocation2 + $0x18] sm:$0xff]
    %s1500 = scalar_lea.vmem [#allocation3], 224
    %v1501 = vld [vmem:[%s1500] sm:$0xff]
    %v1502 = vld [vmem:[%s1500 + $0x8] sm:$0xff]
    %v1503 = vld [vmem:[%s1500 + $0x10] sm:$0xff]
    %v1504 = vld [vmem:[%s1500 + $0x18] sm:$0xff]
    %vm1505 = vcmp.gt.s32.totalorder %v80, 0
    %vm1506 = vcmp.gt.s32.totalorder %v81, 0
    %vm1507 = vcmp.gt.s32.totalorder %v80, 7
    %vm1508 = vcmp.gt.s32.totalorder %v81, 7
    %v1509 = vunpack.c.l.bf16 %v1496
    %v1510 = vunpack.c.h.bf16 %v1496
    %v1511 = vunpack.c.l.bf16 %v1497
    %v1512 = vunpack.c.h.bf16 %v1497
    %v1513 = vunpack.c.l.bf16 %v1498
    %v1514 = vunpack.c.h.bf16 %v1498
    %v1515 = vunpack.c.l.bf16 %v1499
    %v1516 = vunpack.c.h.bf16 %v1499
    %v1518 = vlaneseq
    %v1519 = vshrl.u32 %v1518, 7
    %v1520 = vsub.s32 0, %v1519
    %v1521 = vrot.slane %v1494, %v1520
    %v1522 = vlaneseq
    %v1523 = vshrl.u32 %v1522, 7
    %v1524 = vsub.s32 1, %v1523
    %v1525 = vrot.slane %v1494, %v1524
    %v1526 = vlaneseq
    %v1527 = vshrl.u32 %v1526, 7
    %v1528 = vsub.s32 2, %v1527
    %v1529 = vrot.slane %v1494, %v1528
    %v1530 = vlaneseq
    %v1531 = vshrl.u32 %v1530, 7
    %v1532 = vsub.s32 3, %v1531
    %v1533 = vrot.slane %v1494, %v1532
    %v1538 = vadd.f32 %v1509, %v1521
    %v1539 = vadd.f32 %v1510, %v1525
    %v1540 = vadd.f32 %v1511, %v1529
    %v1541 = vadd.f32 %v1512, %v1533
    %v1542 = vadd.f32 %v1513, %v1521
    %v1543 = vadd.f32 %v1514, %v1525
    %v1544 = vadd.f32 %v1515, %v1529
    %v1545 = vadd.f32 %v1516, %v1533
    %v1578 = vunpack.c.l.b16 %v1430
    %v1579 = vunpack.c.h.b16 %v1430
    %v1580 = vunpack.c.l.b16 %v1431
    %v1581 = vunpack.c.h.b16 %v1431
    %v1582 = vunpack.c.l.b16 %v1432
    %v1583 = vunpack.c.h.b16 %v1432
    %v1584 = vunpack.c.l.b16 %v1433
    %v1585 = vunpack.c.h.b16 %v1433
    %v1586 = vunpack.c.l.b16 %v1434
    %v1587 = vunpack.c.h.b16 %v1434
    %v1588 = vunpack.c.l.b16 %v1435
    %v1589 = vunpack.c.h.b16 %v1435
    %v1590 = vunpack.c.l.b16 %v1436
    %v1591 = vunpack.c.h.b16 %v1436
    %v1592 = vunpack.c.l.b16 %v1437
    %v1593 = vunpack.c.h.b16 %v1437
    %v1594 = vunpack.c.l.b16 %v1438
    %v1595 = vunpack.c.h.b16 %v1438
    %v1596 = vunpack.c.l.b16 %v1439
    %v1597 = vunpack.c.h.b16 %v1439
    %v1598 = vunpack.c.l.b16 %v1440
    %v1599 = vunpack.c.h.b16 %v1440
    %v1600 = vunpack.c.l.b16 %v1441
    %v1601 = vunpack.c.h.b16 %v1441
    %v1602 = vunpack.c.l.b16 %v1442
    %v1603 = vunpack.c.h.b16 %v1442
    %v1604 = vunpack.c.l.b16 %v1443
    %v1605 = vunpack.c.h.b16 %v1443
    %v1606 = vunpack.c.l.b16 %v1444
    %v1607 = vunpack.c.h.b16 %v1444
    %v1608 = vunpack.c.l.b16 %v1445
    %v1609 = vunpack.c.h.b16 %v1445
    %v1610 = vunpack.c.l.b16 %v1446
    %v1611 = vunpack.c.h.b16 %v1446
    %v1612 = vunpack.c.l.b16 %v1447
    %v1613 = vunpack.c.h.b16 %v1447
    %v1614 = vunpack.c.l.b16 %v1448
    %v1615 = vunpack.c.h.b16 %v1448
    %v1616 = vunpack.c.l.b16 %v1449
    %v1617 = vunpack.c.h.b16 %v1449
    %v1618 = vunpack.c.l.b16 %v1450
    %v1619 = vunpack.c.h.b16 %v1450
    %v1620 = vunpack.c.l.b16 %v1451
    %v1621 = vunpack.c.h.b16 %v1451
    %v1622 = vunpack.c.l.b16 %v1452
    %v1623 = vunpack.c.h.b16 %v1452
    %v1624 = vunpack.c.l.b16 %v1453
    %v1625 = vunpack.c.h.b16 %v1453
    %v1626 = vunpack.c.l.b16 %v1454
    %v1627 = vunpack.c.h.b16 %v1454
    %v1628 = vunpack.c.l.b16 %v1455
    %v1629 = vunpack.c.h.b16 %v1455
    %v1630 = vunpack.c.l.b16 %v1456
    %v1631 = vunpack.c.h.b16 %v1456
    %v1632 = vunpack.c.l.b16 %v1457
    %v1633 = vunpack.c.h.b16 %v1457
    %v1634 = vunpack.c.l.b16 %v1458
    %v1635 = vunpack.c.h.b16 %v1458
    %v1636 = vunpack.c.l.b16 %v1459
    %v1637 = vunpack.c.h.b16 %v1459
    %v1638 = vunpack.c.l.b16 %v1460
    %v1639 = vunpack.c.h.b16 %v1460
    %v1640 = vunpack.c.l.b16 %v1461
    %v1641 = vunpack.c.h.b16 %v1461
    %v1642 = vpack.c.b16 %v1582, %v1578
    %v1643 = vpack.c.b16 %v1583, %v1579
    %v1644 = vpack.c.b16 %v1584, %v1580
    %v1645 = vpack.c.b16 %v1585, %v1581
    %v1646 = vpack.c.b16 %v1590, %v1586
    %v1647 = vpack.c.b16 %v1591, %v1587
    %v1648 = vpack.c.b16 %v1592, %v1588
    %v1649 = vpack.c.b16 %v1593, %v1589
    %v1650 = vpack.c.b16 %v1598, %v1594
    %v1651 = vpack.c.b16 %v1599, %v1595
    %v1652 = vpack.c.b16 %v1600, %v1596
    %v1653 = vpack.c.b16 %v1601, %v1597
    %v1654 = vpack.c.b16 %v1606, %v1602
    %v1655 = vpack.c.b16 %v1607, %v1603
    %v1656 = vpack.c.b16 %v1608, %v1604
    %v1657 = vpack.c.b16 %v1609, %v1605
    %v1658 = vpack.c.b16 %v1614, %v1610
    %v1659 = vpack.c.b16 %v1615, %v1611
    %v1660 = vpack.c.b16 %v1616, %v1612
    %v1661 = vpack.c.b16 %v1617, %v1613
    %v1662 = vpack.c.b16 %v1622, %v1618
    %v1663 = vpack.c.b16 %v1623, %v1619
    %v1664 = vpack.c.b16 %v1624, %v1620
    %v1665 = vpack.c.b16 %v1625, %v1621
    %v1666 = vpack.c.b16 %v1630, %v1626
    %v1667 = vpack.c.b16 %v1631, %v1627
    %v1668 = vpack.c.b16 %v1632, %v1628
    %v1669 = vpack.c.b16 %v1633, %v1629
    %v1670 = vpack.c.b16 %v1638, %v1634
    %v1671 = vpack.c.b16 %v1639, %v1635
    %v1672 = vpack.c.b16 %v1640, %v1636
    %v1673 = vpack.c.b16 %v1641, %v1637
    %1706 = vmatprep.subr.bf16.mxu0 %v1671
    %1707 = vmatpush1.bf16.msra.mxu0 %v1670
    %1708 = vmatprep.subr.bf16.mxu0 %v1667
    %1709 = vmatpush1.bf16.msra.mxu0 %v1666
    %1710 = vmatprep.subr.bf16.mxu0 %v1663
    %1711 = vmatpush1.bf16.msra.mxu0 %v1662
    %1712 = vmatprep.subr.bf16.mxu0 %v1659
    %1713 = vmatpush1.bf16.msra.mxu0 %v1658
    %1714 = vmatprep.subr.bf16.mxu0 %v1655
    %1715 = vmatpush1.bf16.msra.mxu0 %v1654
    %1716 = vmatprep.subr.bf16.mxu0 %v1651
    %1717 = vmatpush1.bf16.msra.mxu0 %v1650
    %1718 = vmatprep.subr.bf16.mxu0 %v1647
    %1719 = vmatpush1.bf16.msra.mxu0 %v1646
    %1720 = vmatprep.subr.bf16.mxu0 %v1643
    %1721 = vmatpush1.bf16.msra.mxu0 %v1642
    %1722 = vmatprep.subr.bf16.mxu0 0
    %1723 = vmatpush2.bf16.msra.mxu0 0
    %1724 = vmatprep.subr.bf16.mxu0 0
    %1725 = vmatpush2.bf16.msra.mxu0 0
    %1726 = vmatprep.subr.bf16.mxu0 0
    %1727 = vmatpush2.bf16.msra.mxu0 0
    %1728 = vmatprep.subr.bf16.mxu0 0
    %1729 = vmatpush2.bf16.msra.mxu0 0
    %1730 = vmatprep.subr.bf16.mxu0 0
    %1731 = vmatpush2.bf16.msra.mxu0 0
    %1732 = vmatprep.subr.bf16.mxu0 0
    %1733 = vmatpush2.bf16.msra.mxu0 0
    %1734 = vmatprep.subr.bf16.mxu0 0
    %1735 = vmatpush2.bf16.msra.mxu0 0
    %1736 = vmatprep.subr.bf16.mxu0 0
    %1737 = vmatpush2.bf16.msra.mxu0 0
    %1738 = vmatprep.mubr.bf16.mxu0 0
    %1739 = vmatmul.mubr.bf16.gmra.mxu0 0
    %v1740 = vpop.f32.mrf.mxu0
    %v1741 = vadd.f32 0.0, %v1740
    %v1742 = vpop.f32.mrf.mxu0
    %v1743 = vadd.f32 0.0, %v1742
    %v1744 = vpop.f32.mrf.mxu0
    %v1745 = vadd.f32 0.0, %v1744
    %v1746 = vpop.f32.mrf.mxu0
    %v1747 = vadd.f32 0.0, %v1746
    %1748 = vdwg.mxu0
    %1749 = vmatprep.subr.bf16.mxu0 %v1673
    %1750 = vmatpush1.bf16.msra.mxu0 %v1672
    %1751 = vmatprep.subr.bf16.mxu0 %v1669
    %1752 = vmatpush1.bf16.msra.mxu0 %v1668
    %1753 = vmatprep.subr.bf16.mxu0 %v1665
    %1754 = vmatpush1.bf16.msra.mxu0 %v1664
    %1755 = vmatprep.subr.bf16.mxu0 %v1661
    %1756 = vmatpush1.bf16.msra.mxu0 %v1660
    %1757 = vmatprep.subr.bf16.mxu0 %v1657
    %1758 = vmatpush1.bf16.msra.mxu0 %v1656
    %1759 = vmatprep.subr.bf16.mxu0 %v1653
    %1760 = vmatpush1.bf16.msra.mxu0 %v1652
    %1761 = vmatprep.subr.bf16.mxu0 %v1649
    %1762 = vmatpush1.bf16.msra.mxu0 %v1648
    %1763 = vmatprep.subr.bf16.mxu0 %v1645
    %1764 = vmatpush1.bf16.msra.mxu0 %v1644
    %1765 = vmatprep.subr.bf16.mxu0 0
    %1766 = vmatpush2.bf16.msra.mxu0 0
    %1767 = vmatprep.subr.bf16.mxu0 0
    %1768 = vmatpush2.bf16.msra.mxu0 0
    %1769 = vmatprep.subr.bf16.mxu0 0
    %1770 = vmatpush2.bf16.msra.mxu0 0
    %1771 = vmatprep.subr.bf16.mxu0 0
    %1772 = vmatpush2.bf16.msra.mxu0 0
    %1773 = vmatprep.subr.bf16.mxu0 0
    %1774 = vmatpush2.bf16.msra.mxu0 0
    %1775 = vmatprep.subr.bf16.mxu0 0
    %1776 = vmatpush2.bf16.msra.mxu0 0
    %1777 = vmatprep.subr.bf16.mxu0 0
    %1778 = vmatpush2.bf16.msra.mxu0 0
    %1779 = vmatprep.subr.bf16.mxu0 0
    %1780 = vmatpush2.bf16.msra.mxu0 0
    %1781 = vmatprep.mubr.bf16.mxu0 0
    %1782 = vmatmul.mubr.bf16.gmra.mxu0 0
    %v1783 = vpop.f32.mrf.mxu0
    %v1784 = vadd.f32 0.0, %v1783
    %v1785 = vpop.f32.mrf.mxu0
    %v1786 = vadd.f32 0.0, %v1785
    %v1787 = vpop.f32.mrf.mxu0
    %v1788 = vadd.f32 0.0, %v1787
    %v1789 = vpop.f32.mrf.mxu0
    %v1790 = vadd.f32 0.0, %v1789
    %1791 = vdwg.mxu0
    %v1792 = vadd.f32 %v1538, %v1741
    %v1793 = vadd.f32 %v1539, %v1743
    %v1794 = vadd.f32 %v1540, %v1784
    %v1795 = vadd.f32 %v1541, %v1786
    %v1796 = vadd.f32 %v1542, %v1745
    %v1797 = vadd.f32 %v1543, %v1747
    %v1798 = vadd.f32 %v1544, %v1788
    %v1799 = vadd.f32 %v1545, %v1790
    %v1800 = vxor.u32 %v1792, 2147483648
    %v1801 = vxor.u32 %v1796, 2147483648
    %v1802 = vmul.f32 %v1800, 1.442695
    %v1803 = vpow.pop %v1802
    %v1804 = vmul.f32 %v1801, 1.442695
    %v1805 = vpow.pop %v1804
    %v1806 = vadd.f32 %v1803, 1.0
    %v1807 = vadd.f32 %v1805, 1.0
    %v1808 = vrcp.pop %v1806
    %v1809 = vmul.f32 1.0, %v1808
    %v1810 = vrcp.pop %v1807
    %v1811 = vmul.f32 1.0, %v1810
    %v1812 = vxor.u32 %v1793, 2147483648
    %v1813 = vxor.u32 %v1797, 2147483648
    %v1814 = vmul.f32 %v1812, 1.442695
    %v1815 = vpow.pop %v1814
    %v1816 = vmul.f32 %v1813, 1.442695
    %v1817 = vpow.pop %v1816
    %v1818 = vadd.f32 %v1815, 1.0
    %v1819 = vadd.f32 %v1817, 1.0
    %v1820 = vrcp.pop %v1818
    %v1821 = vmul.f32 1.0, %v1820
    %v1822 = vrcp.pop %v1819
    %v1823 = vmul.f32 1.0, %v1822
    %v1824 = vtanh.pop %v1794
    %v1825 = vtanh.pop %v1798
    %v1826 = vxor.u32 %v1795, 2147483648
    %v1827 = vxor.u32 %v1799, 2147483648
    %v1828 = vmul.f32 %v1826, 1.442695
    %v1829 = vpow.pop %v1828
    %v1830 = vmul.f32 %v1827, 1.442695
    %v1831 = vpow.pop %v1830
    %v1832 = vadd.f32 %v1829, 1.0
    %v1833 = vadd.f32 %v1831, 1.0
    %v1834 = vrcp.pop %v1832
    %v1835 = vmul.f32 1.0, %v1834
    %v1836 = vrcp.pop %v1833
    %v1837 = vmul.f32 1.0, %v1836
    %v1838 = vmul.f32 %v1821, 0.0
    %v1839 = vmul.f32 %v1823, 0.0
    %v1840 = vmul.f32 %v1809, %v1824
    %v1841 = vmul.f32 %v1811, %v1825
    %v1842 = vadd.f32 %v1838, %v1840
    %v1843 = vadd.f32 %v1839, %v1841
    %v1844 = vtanh.pop %v1842
    %v1845 = vtanh.pop %v1843
    %v1846 = vmul.f32 %v1835, %v1844
    %v1847 = vmul.f32 %v1837, %v1845
    %v1848 = vunpack.c.l.bf16 %v1501
    %v1849 = vunpack.c.h.bf16 %v1501
    %v1850 = vunpack.c.l.bf16 %v1502
    %v1851 = vunpack.c.h.bf16 %v1502
    %v1852 = vunpack.c.l.bf16 %v1503
    %v1853 = vunpack.c.h.bf16 %v1503
    %v1854 = vunpack.c.l.bf16 %v1504
    %v1855 = vunpack.c.h.bf16 %v1504
    %v1857 = vlaneseq
    %v1858 = vshrl.u32 %v1857, 7
    %v1859 = vsub.s32 0, %v1858
    %v1860 = vrot.slane %v1495, %v1859
    %v1861 = vlaneseq
    %v1862 = vshrl.u32 %v1861, 7
    %v1863 = vsub.s32 1, %v1862
    %v1864 = vrot.slane %v1495, %v1863
    %v1865 = vlaneseq
    %v1866 = vshrl.u32 %v1865, 7
    %v1867 = vsub.s32 2, %v1866
    %v1868 = vrot.slane %v1495, %v1867
    %v1869 = vlaneseq
    %v1870 = vshrl.u32 %v1869, 7
    %v1871 = vsub.s32 3, %v1870
    %v1872 = vrot.slane %v1495, %v1871
    %v1877 = vadd.f32 %v1848, %v1860
    %v1878 = vadd.f32 %v1849, %v1864
    %v1879 = vadd.f32 %v1850, %v1868
    %v1880 = vadd.f32 %v1851, %v1872
    %v1881 = vadd.f32 %v1852, %v1860
    %v1882 = vadd.f32 %v1853, %v1864
    %v1883 = vadd.f32 %v1854, %v1868
    %v1884 = vadd.f32 %v1855, %v1872
    %v1917 = vunpack.c.l.b16 %v1462
    %v1918 = vunpack.c.h.b16 %v1462
    %v1919 = vunpack.c.l.b16 %v1463
    %v1920 = vunpack.c.h.b16 %v1463
    %v1921 = vunpack.c.l.b16 %v1464
    %v1922 = vunpack.c.h.b16 %v1464
    %v1923 = vunpack.c.l.b16 %v1465
    %v1924 = vunpack.c.h.b16 %v1465
    %v1925 = vunpack.c.l.b16 %v1466
    %v1926 = vunpack.c.h.b16 %v1466
    %v1927 = vunpack.c.l.b16 %v1467
    %v1928 = vunpack.c.h.b16 %v1467
    %v1929 = vunpack.c.l.b16 %v1468
    %v1930 = vunpack.c.h.b16 %v1468
    %v1931 = vunpack.c.l.b16 %v1469
    %v1932 = vunpack.c.h.b16 %v1469
    %v1933 = vunpack.c.l.b16 %v1470
    %v1934 = vunpack.c.h.b16 %v1470
    %v1935 = vunpack.c.l.b16 %v1471
    %v1936 = vunpack.c.h.b16 %v1471
    %v1937 = vunpack.c.l.b16 %v1472
    %v1938 = vunpack.c.h.b16 %v1472
    %v1939 = vunpack.c.l.b16 %v1473
    %v1940 = vunpack.c.h.b16 %v1473
    %v1941 = vunpack.c.l.b16 %v1474
    %v1942 = vunpack.c.h.b16 %v1474
    %v1943 = vunpack.c.l.b16 %v1475
    %v1944 = vunpack.c.h.b16 %v1475
    %v1945 = vunpack.c.l.b16 %v1476
    %v1946 = vunpack.c.h.b16 %v1476
    %v1947 = vunpack.c.l.b16 %v1477
    %v1948 = vunpack.c.h.b16 %v1477
    %v1949 = vunpack.c.l.b16 %v1478
    %v1950 = vunpack.c.h.b16 %v1478
    %v1951 = vunpack.c.l.b16 %v1479
    %v1952 = vunpack.c.h.b16 %v1479
    %v1953 = vunpack.c.l.b16 %v1480
    %v1954 = vunpack.c.h.b16 %v1480
    %v1955 = vunpack.c.l.b16 %v1481
    %v1956 = vunpack.c.h.b16 %v1481
    %v1957 = vunpack.c.l.b16 %v1482
    %v1958 = vunpack.c.h.b16 %v1482
    %v1959 = vunpack.c.l.b16 %v1483
    %v1960 = vunpack.c.h.b16 %v1483
    %v1961 = vunpack.c.l.b16 %v1484
    %v1962 = vunpack.c.h.b16 %v1484
    %v1963 = vunpack.c.l.b16 %v1485
    %v1964 = vunpack.c.h.b16 %v1485
    %v1965 = vunpack.c.l.b16 %v1486
    %v1966 = vunpack.c.h.b16 %v1486
    %v1967 = vunpack.c.l.b16 %v1487
    %v1968 = vunpack.c.h.b16 %v1487
    %v1969 = vunpack.c.l.b16 %v1488
    %v1970 = vunpack.c.h.b16 %v1488
    %v1971 = vunpack.c.l.b16 %v1489
    %v1972 = vunpack.c.h.b16 %v1489
    %v1973 = vunpack.c.l.b16 %v1490
    %v1974 = vunpack.c.h.b16 %v1490
    %v1975 = vunpack.c.l.b16 %v1491
    %v1976 = vunpack.c.h.b16 %v1491
    %v1977 = vunpack.c.l.b16 %v1492
    %v1978 = vunpack.c.h.b16 %v1492
    %v1979 = vunpack.c.l.b16 %v1493
    %v1980 = vunpack.c.h.b16 %v1493
    %v1981 = vpack.c.b16 %v1921, %v1917
    %v1982 = vpack.c.b16 %v1922, %v1918
    %v1983 = vpack.c.b16 %v1923, %v1919
    %v1984 = vpack.c.b16 %v1924, %v1920
    %v1985 = vpack.c.b16 %v1929, %v1925
    %v1986 = vpack.c.b16 %v1930, %v1926
    %v1987 = vpack.c.b16 %v1931, %v1927
    %v1988 = vpack.c.b16 %v1932, %v1928
    %v1989 = vpack.c.b16 %v1937, %v1933
    %v1990 = vpack.c.b16 %v1938, %v1934
    %v1991 = vpack.c.b16 %v1939, %v1935
    %v1992 = vpack.c.b16 %v1940, %v1936
    %v1993 = vpack.c.b16 %v1945, %v1941
    %v1994 = vpack.c.b16 %v1946, %v1942
    %v1995 = vpack.c.b16 %v1947, %v1943
    %v1996 = vpack.c.b16 %v1948, %v1944
    %v1997 = vpack.c.b16 %v1953, %v1949
    %v1998 = vpack.c.b16 %v1954, %v1950
    %v1999 = vpack.c.b16 %v1955, %v1951
    %v2000 = vpack.c.b16 %v1956, %v1952
    %v2001 = vpack.c.b16 %v1961, %v1957
    %v2002 = vpack.c.b16 %v1962, %v1958
    %v2003 = vpack.c.b16 %v1963, %v1959
    %v2004 = vpack.c.b16 %v1964, %v1960
    %v2005 = vpack.c.b16 %v1969, %v1965
    %v2006 = vpack.c.b16 %v1970, %v1966
    %v2007 = vpack.c.b16 %v1971, %v1967
    %v2008 = vpack.c.b16 %v1972, %v1968
    %v2009 = vpack.c.b16 %v1977, %v1973
    %v2010 = vpack.c.b16 %v1978, %v1974
    %v2011 = vpack.c.b16 %v1979, %v1975
    %v2012 = vpack.c.b16 %v1980, %v1976
    %2045 = vmatprep.subr.bf16.mxu0 %v2010
    %2046 = vmatpush1.bf16.msra.mxu0 %v2009
    %2047 = vmatprep.subr.bf16.mxu0 %v2006
    %2048 = vmatpush1.bf16.msra.mxu0 %v2005
    %2049 = vmatprep.subr.bf16.mxu0 %v2002
    %2050 = vmatpush1.bf16.msra.mxu0 %v2001
    %2051 = vmatprep.subr.bf16.mxu0 %v1998
    %2052 = vmatpush1.bf16.msra.mxu0 %v1997
    %2053 = vmatprep.subr.bf16.mxu0 %v1994
    %2054 = vmatpush1.bf16.msra.mxu0 %v1993
    %2055 = vmatprep.subr.bf16.mxu0 %v1990
    %2056 = vmatpush1.bf16.msra.mxu0 %v1989
    %2057 = vmatprep.subr.bf16.mxu0 %v1986
    %2058 = vmatpush1.bf16.msra.mxu0 %v1985
    %2059 = vmatprep.subr.bf16.mxu0 %v1982
    %2060 = vmatpush1.bf16.msra.mxu0 %v1981
    %2061 = vmatprep.subr.bf16.mxu0 0
    %2062 = vmatpush2.bf16.msra.mxu0 0
    %2063 = vmatprep.subr.bf16.mxu0 0
    %2064 = vmatpush2.bf16.msra.mxu0 0
    %2065 = vmatprep.subr.bf16.mxu0 0
    %2066 = vmatpush2.bf16.msra.mxu0 0
    %2067 = vmatprep.subr.bf16.mxu0 0
    %2068 = vmatpush2.bf16.msra.mxu0 0
    %2069 = vmatprep.subr.bf16.mxu0 0
    %2070 = vmatpush2.bf16.msra.mxu0 0
    %2071 = vmatprep.subr.bf16.mxu0 0
    %2072 = vmatpush2.bf16.msra.mxu0 0
    %2073 = vmatprep.subr.bf16.mxu0 0
    %2074 = vmatpush2.bf16.msra.mxu0 0
    %2075 = vmatprep.subr.bf16.mxu0 0
    %2076 = vmatpush2.bf16.msra.mxu0 0
    %2077 = vmatprep.mubr.bf16.mxu0 0
    %2078 = vmatmul.mubr.bf16.gmra.mxu0 0
    %v2079 = vpop.f32.mrf.mxu0
    %v2080 = vadd.f32 0.0, %v2079
    %v2081 = vpop.f32.mrf.mxu0
    %v2082 = vadd.f32 0.0, %v2081
    %v2083 = vpop.f32.mrf.mxu0
    %v2084 = vadd.f32 0.0, %v2083
    %v2085 = vpop.f32.mrf.mxu0
    %v2086 = vadd.f32 0.0, %v2085
    %2087 = vdwg.mxu0
    %2088 = vmatprep.subr.bf16.mxu0 %v2012
    %2089 = vmatpush1.bf16.msra.mxu0 %v2011
    %2090 = vmatprep.subr.bf16.mxu0 %v2008
    %2091 = vmatpush1.bf16.msra.mxu0 %v2007
    %2092 = vmatprep.subr.bf16.mxu0 %v2004
    %2093 = vmatpush1.bf16.msra.mxu0 %v2003
    %2094 = vmatprep.subr.bf16.mxu0 %v2000
    %2095 = vmatpush1.bf16.msra.mxu0 %v1999
    %2096 = vmatprep.subr.bf16.mxu0 %v1996
    %2097 = vmatpush1.bf16.msra.mxu0 %v1995
    %2098 = vmatprep.subr.bf16.mxu0 %v1992
    %2099 = vmatpush1.bf16.msra.mxu0 %v1991
    %2100 = vmatprep.subr.bf16.mxu0 %v1988
    %2101 = vmatpush1.bf16.msra.mxu0 %v1987
    %2102 = vmatprep.subr.bf16.mxu0 %v1984
    %2103 = vmatpush1.bf16.msra.mxu0 %v1983
    %2104 = vmatprep.subr.bf16.mxu0 0
    %2105 = vmatpush2.bf16.msra.mxu0 0
    %2106 = vmatprep.subr.bf16.mxu0 0
    %2107 = vmatpush2.bf16.msra.mxu0 0
    %2108 = vmatprep.subr.bf16.mxu0 0
    %2109 = vmatpush2.bf16.msra.mxu0 0
    %2110 = vmatprep.subr.bf16.mxu0 0
    %2111 = vmatpush2.bf16.msra.mxu0 0
    %2112 = vmatprep.subr.bf16.mxu0 0
    %2113 = vmatpush2.bf16.msra.mxu0 0
    %2114 = vmatprep.subr.bf16.mxu0 0
    %2115 = vmatpush2.bf16.msra.mxu0 0
    %2116 = vmatprep.subr.bf16.mxu0 0
    %2117 = vmatpush2.bf16.msra.mxu0 0
    %2118 = vmatprep.subr.bf16.mxu0 0
    %2119 = vmatpush2.bf16.msra.mxu0 0
    %2120 = vmatprep.mubr.bf16.mxu0 0
    %2121 = vmatmul.mubr.bf16.gmra.mxu0 0
    %v2122 = vpop.f32.mrf.mxu0
    %v2123 = vadd.f32 0.0, %v2122
    %v2124 = vpop.f32.mrf.mxu0
    %v2125 = vadd.f32 0.0, %v2124
    %v2126 = vpop.f32.mrf.mxu0
    %v2127 = vadd.f32 0.0, %v2126
    %v2128 = vpop.f32.mrf.mxu0
    %v2129 = vadd.f32 0.0, %v2128
    %2130 = vdwg.mxu0
    %v2131 = vadd.f32 %v1877, %v2080
    %v2132 = vadd.f32 %v1878, %v2082
    %v2133 = vadd.f32 %v1879, %v2123
    %v2134 = vadd.f32 %v1880, %v2125
    %v2135 = vadd.f32 %v1881, %v2084
    %v2136 = vadd.f32 %v1882, %v2086
    %v2137 = vadd.f32 %v1883, %v2127
    %v2138 = vadd.f32 %v1884, %v2129
    %v2139 = vxor.u32 %v2131, 2147483648
    %v2140 = vxor.u32 %v2135, 2147483648
    %v2141 = vmul.f32 %v2139, 1.442695
    %v2142 = vpow.pop %v2141
    %v2143 = vmul.f32 %v2140, 1.442695
    %v2144 = vpow.pop %v2143
    %v2145 = vadd.f32 %v2142, 1.0
    %v2146 = vadd.f32 %v2144, 1.0
    %v2147 = vrcp.pop %v2145
    %v2148 = vmul.f32 1.0, %v2147
    %v2149 = vrcp.pop %v2146
    %v2150 = vmul.f32 1.0, %v2149
    %v2151 = vxor.u32 %v2132, 2147483648
    %v2152 = vxor.u32 %v2136, 2147483648
    %v2153 = vmul.f32 %v2151, 1.442695
    %v2154 = vpow.pop %v2153
    %v2155 = vmul.f32 %v2152, 1.442695
    %v2156 = vpow.pop %v2155
    %v2157 = vadd.f32 %v2154, 1.0
    %v2158 = vadd.f32 %v2156, 1.0
    %v2159 = vrcp.pop %v2157
    %v2160 = vmul.f32 1.0, %v2159
    %v2161 = vrcp.pop %v2158
    %v2162 = vmul.f32 1.0, %v2161
    %v2163 = vtanh.pop %v2133
    %v2164 = vtanh.pop %v2137
    %v2165 = vxor.u32 %v2134, 2147483648
    %v2166 = vxor.u32 %v2138, 2147483648
    %v2167 = vmul.f32 %v2165, 1.442695
    %v2168 = vpow.pop %v2167
    %v2169 = vmul.f32 %v2166, 1.442695
    %v2170 = vpow.pop %v2169
    %v2171 = vadd.f32 %v2168, 1.0
    %v2172 = vadd.f32 %v2170, 1.0
    %v2173 = vrcp.pop %v2171
    %v2174 = vmul.f32 1.0, %v2173
    %v2175 = vrcp.pop %v2172
    %v2176 = vmul.f32 1.0, %v2175
    %v2177 = vmul.f32 %v2160, 0.0
    %v2178 = vmul.f32 %v2162, 0.0
    %v2179 = vmul.f32 %v2148, %v2163
    %v2180 = vmul.f32 %v2150, %v2164
    %v2181 = vadd.f32 %v2177, %v2179
    %v2182 = vadd.f32 %v2178, %v2180
    %v2183 = vtanh.pop %v2181
    %v2184 = vtanh.pop %v2182
    %v2185 = vmul.f32 %v2174, %v2183
    %v2186 = vmul.f32 %v2176, %v2184
    %v2187 = vsel %vm1505, 1, 0
    %v2188 = vsel %vm1506, 1, 0
    %2189 = vset.pattern.permute.xlu0 0
    %2190 = vperm.xlu0 %2189, %v2187
    %v2191 = vpop.permute.xlu0 %2190
    %2192 = vset.pattern.permute.xlu0 0
    %2193 = vperm.xlu0 %2192, %v2188
    %v2194 = vpop.permute.xlu0 %2193
    %vm2195 = vcmp.eq.s32.totalorder %v2191, 1
    %vm2196 = vcmp.eq.s32.totalorder %v2194, 1
    %v2197 = vsel %vm2195, %v1846, 0.0
    %v2198 = vsel %vm2196, %v1847, 0.0
    %v2199 = vsel %vm2195, %v1842, 0.0
    %v2200 = vsel %vm2196, %v1843, 0.0
    %v2201 = vmax.f32 %v1846, -1e+09
    %v2202 = vmax.f32 %v1847, -1e+09
    %v2203 = vsel %vm2195, %v2201, -1e+09
    %v2204 = vsel %vm2196, %v2202, -1e+09
    %v2205 = vsel %vm1507, 1, 0
    %v2206 = vsel %vm1508, 1, 0
    %2207 = vset.pattern.permute.xlu0 0
    %2208 = vperm.xlu0 %2207, %v2205
    %v2209 = vpop.permute.xlu0 %2208
    %2210 = vset.pattern.permute.xlu0 0
    %2211 = vperm.xlu0 %2210, %v2206
    %v2212 = vpop.permute.xlu0 %2211
    %vm2213 = vcmp.eq.s32.totalorder %v2209, 1
    %vm2214 = vcmp.eq.s32.totalorder %v2212, 1
    %v2215 = vsel %vm2213, %v2185, 0.0
    %v2216 = vsel %vm2214, %v2186, 0.0
    %v2217 = vsel %vm2213, %v2181, 0.0
    %v2218 = vsel %vm2214, %v2182, 0.0
    %v2219 = vmax.f32 %v2185, -1e+09
    %v2220 = vmax.f32 %v2186, -1e+09
    %v2221 = vsel %vm2213, %v2219, -1e+09
    %v2222 = vsel %vm2214, %v2220, -1e+09
    %s2223 = scalar_lea.vmem [#allocation2], 32
    %v2224 = vld [vmem:[%s2223] sm:$0xff]
    %v2225 = vld [vmem:[%s2223 + $0x8] sm:$0xff]
    %v2226 = vld [vmem:[%s2223 + $0x10] sm:$0xff]
    %v2227 = vld [vmem:[%s2223 + $0x18] sm:$0xff]
    %s2228 = scalar_lea.vmem [#allocation3], 192
    %v2229 = vld [vmem:[%s2228] sm:$0xff]
    %v2230 = vld [vmem:[%s2228 + $0x8] sm:$0xff]
    %v2231 = vld [vmem:[%s2228 + $0x10] sm:$0xff]
    %v2232 = vld [vmem:[%s2228 + $0x18] sm:$0xff]
    %vm2233 = vcmp.gt.s32.totalorder %v80, 1
    %vm2234 = vcmp.gt.s32.totalorder %v81, 1
    %vm2235 = vcmp.gt.s32.totalorder %v80, 6
    %vm2236 = vcmp.gt.s32.totalorder %v81, 6
    %v2237 = vunpack.c.l.bf16 %v2224
    %v2238 = vunpack.c.h.bf16 %v2224
    %v2239 = vunpack.c.l.bf16 %v2225
    %v2240 = vunpack.c.h.bf16 %v2225
    %v2241 = vunpack.c.l.bf16 %v2226
    %v2242 = vunpack.c.h.bf16 %v2226
    %v2243 = vunpack.c.l.bf16 %v2227
    %v2244 = vunpack.c.h.bf16 %v2227
    %v2245 = vadd.f32 %v2237, %v1521
    %v2246 = vadd.f32 %v2238, %v1525
    %v2247 = vadd.f32 %v2239, %v1529
    %v2248 = vadd.f32 %v2240, %v1533
    %v2249 = vadd.f32 %v2241, %v1521
    %v2250 = vadd.f32 %v2242, %v1525
    %v2251 = vadd.f32 %v2243, %v1529
    %v2252 = vadd.f32 %v2244, %v1533
    %v2253 = vpack.c.bf16 %v2198, %v2197
    %2254 = vmatprep.subr.bf16.mxu0 %v1671
    %2255 = vmatpush1.bf16.msra.mxu0 %v1670
    %2256 = vmatprep.subr.bf16.mxu0 %v1667
    %2257 = vmatpush1.bf16.msra.mxu0 %v1666
    %2258 = vmatprep.subr.bf16.mxu0 %v1663
    %2259 = vmatpush1.bf16.msra.mxu0 %v1662
    %2260 = vmatprep.subr.bf16.mxu0 %v1659
    %2261 = vmatpush1.bf16.msra.mxu0 %v1658
    %2262 = vmatprep.subr.bf16.mxu0 %v1655
    %2263 = vmatpush1.bf16.msra.mxu0 %v1654
    %2264 = vmatprep.subr.bf16.mxu0 %v1651
    %2265 = vmatpush1.bf16.msra.mxu0 %v1650
    %2266 = vmatprep.subr.bf16.mxu0 %v1647
    %2267 = vmatpush1.bf16.msra.mxu0 %v1646
    %2268 = vmatprep.subr.bf16.mxu0 %v1643
    %2269 = vmatpush1.bf16.msra.mxu0 %v1642
    %2270 = vmatprep.subr.bf16.mxu0 0
    %2271 = vmatpush2.bf16.msra.mxu0 0
    %2272 = vmatprep.subr.bf16.mxu0 0
    %2273 = vmatpush2.bf16.msra.mxu0 0
    %2274 = vmatprep.subr.bf16.mxu0 0
    %2275 = vmatpush2.bf16.msra.mxu0 0
    %2276 = vmatprep.subr.bf16.mxu0 0
    %2277 = vmatpush2.bf16.msra.mxu0 0
    %2278 = vmatprep.subr.bf16.mxu0 0
    %2279 = vmatpush2.bf16.msra.mxu0 0
    %2280 = vmatprep.subr.bf16.mxu0 0
    %2281 = vmatpush2.bf16.msra.mxu0 0
    %2282 = vmatprep.subr.bf16.mxu0 0
    %2283 = vmatpush2.bf16.msra.mxu0 0
    %2284 = vmatprep.subr.bf16.mxu0 0
    %2285 = vmatpush2.bf16.msra.mxu0 0
    %2286 = vmatprep.mubr.bf16.mxu0 0
    %2287 = vmatmul.mubr.bf16.gmra.mxu0 %v2253
    %v2288 = vpop.f32.mrf.mxu0
    %v2289 = vadd.f32 0.0, %v2288
    %v2290 = vpop.f32.mrf.mxu0
    %v2291 = vadd.f32 0.0, %v2290
    %v2292 = vpop.f32.mrf.mxu0
    %v2293 = vadd.f32 0.0, %v2292
    %v2294 = vpop.f32.mrf.mxu0
    %v2295 = vadd.f32 0.0, %v2294
    %2296 = vdwg.mxu0
    %2297 = vmatprep.subr.bf16.mxu0 %v1673
    %2298 = vmatpush1.bf16.msra.mxu0 %v1672
    %2299 = vmatprep.subr.bf16.mxu0 %v1669
    %2300 = vmatpush1.bf16.msra.mxu0 %v1668
    %2301 = vmatprep.subr.bf16.mxu0 %v1665
    %2302 = vmatpush1.bf16.msra.mxu0 %v1664
    %2303 = vmatprep.subr.bf16.mxu0 %v1661
    %2304 = vmatpush1.bf16.msra.mxu0 %v1660
    %2305 = vmatprep.subr.bf16.mxu0 %v1657
    %2306 = vmatpush1.bf16.msra.mxu0 %v1656
    %2307 = vmatprep.subr.bf16.mxu0 %v1653
    %2308 = vmatpush1.bf16.msra.mxu0 %v1652
    %2309 = vmatprep.subr.bf16.mxu0 %v1649
    %2310 = vmatpush1.bf16.msra.mxu0 %v1648
    %2311 = vmatprep.subr.bf16.mxu0 %v1645
    %2312 = vmatpush1.bf16.msra.mxu0 %v1644
    %2313 = vmatprep.subr.bf16.mxu0 0
    %2314 = vmatpush2.bf16.msra.mxu0 0
    %2315 = vmatprep.subr.bf16.mxu0 0
    %2316 = vmatpush2.bf16.msra.mxu0 0
    %2317 = vmatprep.subr.bf16.mxu0 0
    %2318 = vmatpush2.bf16.msra.mxu0 0
    %2319 = vmatprep.subr.bf16.mxu0 0
    %2320 = vmatpush2.bf16.msra.mxu0 0
    %2321 = vmatprep.subr.bf16.mxu0 0
    %2322 = vmatpush2.bf16.msra.mxu0 0
    %2323 = vmatprep.subr.bf16.mxu0 0
    %2324 = vmatpush2.bf16.msra.mxu0 0
    %2325 = vmatprep.subr.bf16.mxu0 0
    %2326 = vmatpush2.bf16.msra.mxu0 0
    %2327 = vmatprep.subr.bf16.mxu0 0
    %2328 = vmatpush2.bf16.msra.mxu0 0
    %2329 = vmatprep.mubr.bf16.mxu0 0
    %2330 = vmatmul.mubr.bf16.gmra.mxu0 %v2253
    %v2331 = vpop.f32.mrf.mxu0
    %v2332 = vadd.f32 0.0, %v2331
    %v2333 = vpop.f32.mrf.mxu0
    %v2334 = vadd.f32 0.0, %v2333
    %v2335 = vpop.f32.mrf.mxu0
    %v2336 = vadd.f32 0.0, %v2335
    %v2337 = vpop.f32.mrf.mxu0
    %v2338 = vadd.f32 0.0, %v2337
    %2339 = vdwg.mxu0
    %v2340 = vadd.f32 %v2245, %v2289
    %v2341 = vadd.f32 %v2246, %v2291
    %v2342 = vadd.f32 %v2247, %v2332
    %v2343 = vadd.f32 %v2248, %v2334
    %v2344 = vadd.f32 %v2249, %v2293
    %v2345 = vadd.f32 %v2250, %v2295
    %v2346 = vadd.f32 %v2251, %v2336
    %v2347 = vadd.f32 %v2252, %v2338
    %v2348 = vxor.u32 %v2340, 2147483648
    %v2349 = vxor.u32 %v2344, 2147483648
    %v2350 = vmul.f32 %v2348, 1.442695
    %v2351 = vpow.pop %v2350
    %v2352 = vmul.f32 %v2349, 1.442695
    %v2353 = vpow.pop %v2352
    %v2354 = vadd.f32 %v2351, 1.0
    %v2355 = vadd.f32 %v2353, 1.0
    %v2356 = vrcp.pop %v2354
    %v2357 = vmul.f32 1.0, %v2356
    %v2358 = vrcp.pop %v2355
    %v2359 = vmul.f32 1.0, %v2358
    %v2360 = vxor.u32 %v2341, 2147483648
    %v2361 = vxor.u32 %v2345, 2147483648
    %v2362 = vmul.f32 %v2360, 1.442695
    %v2363 = vpow.pop %v2362
    %v2364 = vmul.f32 %v2361, 1.442695
    %v2365 = vpow.pop %v2364
    %v2366 = vadd.f32 %v2363, 1.0
    %v2367 = vadd.f32 %v2365, 1.0
    %v2368 = vrcp.pop %v2366
    %v2369 = vmul.f32 1.0, %v2368
    %v2370 = vrcp.pop %v2367
    %v2371 = vmul.f32 1.0, %v2370
    %v2372 = vtanh.pop %v2342
    %v2373 = vtanh.pop %v2346
    %v2374 = vxor.u32 %v2343, 2147483648
    %v2375 = vxor.u32 %v2347, 2147483648
    %v2376 = vmul.f32 %v2374, 1.442695
    %v2377 = vpow.pop %v2376
    %v2378 = vmul.f32 %v2375, 1.442695
    %v2379 = vpow.pop %v2378
    %v2380 = vadd.f32 %v2377, 1.0
    %v2381 = vadd.f32 %v2379, 1.0
    %v2382 = vrcp.pop %v2380
    %v2383 = vmul.f32 1.0, %v2382
    %v2384 = vrcp.pop %v2381
    %v2385 = vmul.f32 1.0, %v2384
    %v2386 = vmul.f32 %v2369, %v2199
    %v2387 = vmul.f32 %v2371, %v2200
    %v2388 = vmul.f32 %v2357, %v2372
    %v2389 = vmul.f32 %v2359, %v2373
    %v2390 = vadd.f32 %v2386, %v2388
    %v2391 = vadd.f32 %v2387, %v2389
    %v2392 = vtanh.pop %v2390
    %v2393 = vtanh.pop %v2391
    %v2394 = vmul.f32 %v2383, %v2392
    %v2395 = vmul.f32 %v2385, %v2393
    %v2396 = vunpack.c.l.bf16 %v2229
    %v2397 = vunpack.c.h.bf16 %v2229
    %v2398 = vunpack.c.l.bf16 %v2230
    %v2399 = vunpack.c.h.bf16 %v2230
    %v2400 = vunpack.c.l.bf16 %v2231
    %v2401 = vunpack.c.h.bf16 %v2231
    %v2402 = vunpack.c.l.bf16 %v2232
    %v2403 = vunpack.c.h.bf16 %v2232
    %v2404 = vadd.f32 %v2396, %v1860
    %v2405 = vadd.f32 %v2397, %v1864
    %v2406 = vadd.f32 %v2398, %v1868
    %v2407 = vadd.f32 %v2399, %v1872
    %v2408 = vadd.f32 %v2400, %v1860
    %v2409 = vadd.f32 %v2401, %v1864
    %v2410 = vadd.f32 %v2402, %v1868
    %v2411 = vadd.f32 %v2403, %v1872
    %v2412 = vpack.c.bf16 %v2216, %v2215
    %2413 = vmatprep.subr.bf16.mxu0 %v2010
    %2414 = vmatpush1.bf16.msra.mxu0 %v2009
    %2415 = vmatprep.subr.bf16.mxu0 %v2006
    %2416 = vmatpush1.bf16.msra.mxu0 %v2005
    %2417 = vmatprep.subr.bf16.mxu0 %v2002
    %2418 = vmatpush1.bf16.msra.mxu0 %v2001
    %2419 = vmatprep.subr.bf16.mxu0 %v1998
    %2420 = vmatpush1.bf16.msra.mxu0 %v1997
    %2421 = vmatprep.subr.bf16.mxu0 %v1994
    %2422 = vmatpush1.bf16.msra.mxu0 %v1993
    %2423 = vmatprep.subr.bf16.mxu0 %v1990
    %2424 = vmatpush1.bf16.msra.mxu0 %v1989
    %2425 = vmatprep.subr.bf16.mxu0 %v1986
    %2426 = vmatpush1.bf16.msra.mxu0 %v1985
    %2427 = vmatprep.subr.bf16.mxu0 %v1982
    %2428 = vmatpush1.bf16.msra.mxu0 %v1981
    %2429 = vmatprep.subr.bf16.mxu0 0
    %2430 = vmatpush2.bf16.msra.mxu0 0
    %2431 = vmatprep.subr.bf16.mxu0 0
    %2432 = vmatpush2.bf16.msra.mxu0 0
    %2433 = vmatprep.subr.bf16.mxu0 0
    %2434 = vmatpush2.bf16.msra.mxu0 0
    %2435 = vmatprep.subr.bf16.mxu0 0
    %2436 = vmatpush2.bf16.msra.mxu0 0
    %2437 = vmatprep.subr.bf16.mxu0 0
    %2438 = vmatpush2.bf16.msra.mxu0 0
    %2439 = vmatprep.subr.bf16.mxu0 0
    %2440 = vmatpush2.bf16.msra.mxu0 0
    %2441 = vmatprep.subr.bf16.mxu0 0
    %2442 = vmatpush2.bf16.msra.mxu0 0
    %2443 = vmatprep.subr.bf16.mxu0 0
    %2444 = vmatpush2.bf16.msra.mxu0 0
    %2445 = vmatprep.mubr.bf16.mxu0 0
    %2446 = vmatmul.mubr.bf16.gmra.mxu0 %v2412
    %v2447 = vpop.f32.mrf.mxu0
    %v2448 = vadd.f32 0.0, %v2447
    %v2449 = vpop.f32.mrf.mxu0
    %v2450 = vadd.f32 0.0, %v2449
    %v2451 = vpop.f32.mrf.mxu0
    %v2452 = vadd.f32 0.0, %v2451
    %v2453 = vpop.f32.mrf.mxu0
    %v2454 = vadd.f32 0.0, %v2453
    %2455 = vdwg.mxu0
    %2456 = vmatprep.subr.bf16.mxu0 %v2012
    %2457 = vmatpush1.bf16.msra.mxu0 %v2011
    %2458 = vmatprep.subr.bf16.mxu0 %v2008
    %2459 = vmatpush1.bf16.msra.mxu0 %v2007
    %2460 = vmatprep.subr.bf16.mxu0 %v2004
    %2461 = vmatpush1.bf16.msra.mxu0 %v2003
    %2462 = vmatprep.subr.bf16.mxu0 %v2000
    %2463 = vmatpush1.bf16.msra.mxu0 %v1999
    %2464 = vmatprep.subr.bf16.mxu0 %v1996
    %2465 = vmatpush1.bf16.msra.mxu0 %v1995
    %2466 = vmatprep.subr.bf16.mxu0 %v1992
    %2467 = vmatpush1.bf16.msra.mxu0 %v1991
    %2468 = vmatprep.subr.bf16.mxu0 %v1988
    %2469 = vmatpush1.bf16.msra.mxu0 %v1987
    %2470 = vmatprep.subr.bf16.mxu0 %v1984
    %2471 = vmatpush1.bf16.msra.mxu0 %v1983
    %2472 = vmatprep.subr.bf16.mxu0 0
    %2473 = vmatpush2.bf16.msra.mxu0 0
    %2474 = vmatprep.subr.bf16.mxu0 0
    %2475 = vmatpush2.bf16.msra.mxu0 0
    %2476 = vmatprep.subr.bf16.mxu0 0
    %2477 = vmatpush2.bf16.msra.mxu0 0
    %2478 = vmatprep.subr.bf16.mxu0 0
    %2479 = vmatpush2.bf16.msra.mxu0 0
    %2480 = vmatprep.subr.bf16.mxu0 0
    %2481 = vmatpush2.bf16.msra.mxu0 0
    %2482 = vmatprep.subr.bf16.mxu0 0
    %2483 = vmatpush2.bf16.msra.mxu0 0
    %2484 = vmatprep.subr.bf16.mxu0 0
    %2485 = vmatpush2.bf16.msra.mxu0 0
    %2486 = vmatprep.subr.bf16.mxu0 0
    %2487 = vmatpush2.bf16.msra.mxu0 0
    %2488 = vmatprep.mubr.bf16.mxu0 0
    %2489 = vmatmul.mubr.bf16.gmra.mxu0 %v2412
    %v2490 = vpop.f32.mrf.mxu0
    %v2491 = vadd.f32 0.0, %v2490
    %v2492 = vpop.f32.mrf.mxu0
    %v2493 = vadd.f32 0.0, %v2492
    %v2494 = vpop.f32.mrf.mxu0
    %v2495 = vadd.f32 0.0, %v2494
    %v2496 = vpop.f32.mrf.mxu0
    %v2497 = vadd.f32 0.0, %v2496
    %2498 = vdwg.mxu0
    %v2499 = vadd.f32 %v2404, %v2448
    %v2500 = vadd.f32 %v2405, %v2450
    %v2501 = vadd.f32 %v2406, %v2491
    %v2502 = vadd.f32 %v2407, %v2493
    %v2503 = vadd.f32 %v2408, %v2452
    %v2504 = vadd.f32 %v2409, %v2454
    %v2505 = vadd.f32 %v2410, %v2495
    %v2506 = vadd.f32 %v2411, %v2497
    %v2507 = vxor.u32 %v2499, 2147483648
    %v2508 = vxor.u32 %v2503, 2147483648
    %v2509 = vmul.f32 %v2507, 1.442695
    %v2510 = vpow.pop %v2509
    %v2511 = vmul.f32 %v2508, 1.442695
    %v2512 = vpow.pop %v2511
    %v2513 = vadd.f32 %v2510, 1.0
    %v2514 = vadd.f32 %v2512, 1.0
    %v2515 = vrcp.pop %v2513
    %v2516 = vmul.f32 1.0, %v2515
    %v2517 = vrcp.pop %v2514
    %v2518 = vmul.f32 1.0, %v2517
    %v2519 = vxor.u32 %v2500, 2147483648
    %v2520 = vxor.u32 %v2504, 2147483648
    %v2521 = vmul.f32 %v2519, 1.442695
    %v2522 = vpow.pop %v2521
    %v2523 = vmul.f32 %v2520, 1.442695
    %v2524 = vpow.pop %v2523
    %v2525 = vadd.f32 %v2522, 1.0
    %v2526 = vadd.f32 %v2524, 1.0
    %v2527 = vrcp.pop %v2525
    %v2528 = vmul.f32 1.0, %v2527
    %v2529 = vrcp.pop %v2526
    %v2530 = vmul.f32 1.0, %v2529
    %v2531 = vtanh.pop %v2501
    %v2532 = vtanh.pop %v2505
    %v2533 = vxor.u32 %v2502, 2147483648
    %v2534 = vxor.u32 %v2506, 2147483648
    %v2535 = vmul.f32 %v2533, 1.442695
    %v2536 = vpow.pop %v2535
    %v2537 = vmul.f32 %v2534, 1.442695
    %v2538 = vpow.pop %v2537
    %v2539 = vadd.f32 %v2536, 1.0
    %v2540 = vadd.f32 %v2538, 1.0
    %v2541 = vrcp.pop %v2539
    %v2542 = vmul.f32 1.0, %v2541
    %v2543 = vrcp.pop %v2540
    %v2544 = vmul.f32 1.0, %v2543
    %v2545 = vmul.f32 %v2528, %v2217
    %v2546 = vmul.f32 %v2530, %v2218
    %v2547 = vmul.f32 %v2516, %v2531
    %v2548 = vmul.f32 %v2518, %v2532
    %v2549 = vadd.f32 %v2545, %v2547
    %v2550 = vadd.f32 %v2546, %v2548
    %v2551 = vtanh.pop %v2549
    %v2552 = vtanh.pop %v2550
    %v2553 = vmul.f32 %v2542, %v2551
    %v2554 = vmul.f32 %v2544, %v2552
    %v2555 = vsel %vm2233, 1, 0
    %v2556 = vsel %vm2234, 1, 0
    %2557 = vset.pattern.permute.xlu0 0
    %2558 = vperm.xlu0 %2557, %v2555
    %v2559 = vpop.permute.xlu0 %2558
    %2560 = vset.pattern.permute.xlu0 0
    %2561 = vperm.xlu0 %2560, %v2556
    %v2562 = vpop.permute.xlu0 %2561
    %vm2563 = vcmp.eq.s32.totalorder %v2559, 1
    %vm2564 = vcmp.eq.s32.totalorder %v2562, 1
    %v2565 = vsel %vm2563, %v2394, %v2197
    %v2566 = vsel %vm2564, %v2395, %v2198
    %v2567 = vsel %vm2563, %v2390, %v2199
    %v2568 = vsel %vm2564, %v2391, %v2200
    %v2569 = vmax.f32 %v2203, %v2394
    %v2570 = vmax.f32 %v2204, %v2395
    %v2571 = vsel %vm2563, %v2569, %v2203
    %v2572 = vsel %vm2564, %v2570, %v2204
    %v2573 = vsel %vm2235, 1, 0
    %v2574 = vsel %vm2236, 1, 0
    %2575 = vset.pattern.permute.xlu0 0
    %2576 = vperm.xlu0 %2575, %v2573
    %v2577 = vpop.permute.xlu0 %2576
    %2578 = vset.pattern.permute.xlu0 0
    %2579 = vperm.xlu0 %2578, %v2574
    %v2580 = vpop.permute.xlu0 %2579
    %vm2581 = vcmp.eq.s32.totalorder %v2577, 1
    %vm2582 = vcmp.eq.s32.totalorder %v2580, 1
    %v2583 = vsel %vm2581, %v2553, %v2215
    %v2584 = vsel %vm2582, %v2554, %v2216
    %v2585 = vsel %vm2581, %v2549, %v2217
    %v2586 = vsel %vm2582, %v2550, %v2218
    %v2587 = vmax.f32 %v2221, %v2553
    %v2588 = vmax.f32 %v2222, %v2554
    %v2589 = vsel %vm2581, %v2587, %v2221
    %v2590 = vsel %vm2582, %v2588, %v2222
    %s2591 = scalar_lea.vmem [#allocation2], 64
    %v2592 = vld [vmem:[%s2591] sm:$0xff]
    %v2593 = vld [vmem:[%s2591 + $0x8] sm:$0xff]
    %v2594 = vld [vmem:[%s2591 + $0x10] sm:$0xff]
    %v2595 = vld [vmem:[%s2591 + $0x18] sm:$0xff]
    %s2596 = scalar_lea.vmem [#allocation3], 160
    %v2597 = vld [vmem:[%s2596] sm:$0xff]
    %v2598 = vld [vmem:[%s2596 + $0x8] sm:$0xff]
    %v2599 = vld [vmem:[%s2596 + $0x10] sm:$0xff]
    %v2600 = vld [vmem:[%s2596 + $0x18] sm:$0xff]
    %vm2601 = vcmp.gt.s32.totalorder %v80, 2
    %vm2602 = vcmp.gt.s32.totalorder %v81, 2
    %vm2603 = vcmp.gt.s32.totalorder %v80, 5
    %vm2604 = vcmp.gt.s32.totalorder %v81, 5
    %v2605 = vunpack.c.l.bf16 %v2592
    %v2606 = vunpack.c.h.bf16 %v2592
    %v2607 = vunpack.c.l.bf16 %v2593
    %v2608 = vunpack.c.h.bf16 %v2593
    %v2609 = vunpack.c.l.bf16 %v2594
    %v2610 = vunpack.c.h.bf16 %v2594
    %v2611 = vunpack.c.l.bf16 %v2595
    %v2612 = vunpack.c.h.bf16 %v2595
    %v2613 = vadd.f32 %v2605, %v1521
    %v2614 = vadd.f32 %v2606, %v1525
    %v2615 = vadd.f32 %v2607, %v1529
    %v2616 = vadd.f32 %v2608, %v1533
    %v2617 = vadd.f32 %v2609, %v1521
    %v2618 = vadd.f32 %v2610, %v1525
    %v2619 = vadd.f32 %v2611, %v1529
    %v2620 = vadd.f32 %v2612, %v1533
    %v2621 = vpack.c.bf16 %v2566, %v2565
    %2622 = vmatprep.subr.bf16.mxu0 %v1671
    %2623 = vmatpush1.bf16.msra.mxu0 %v1670
    %2624 = vmatprep.subr.bf16.mxu0 %v1667
    %2625 = vmatpush1.bf16.msra.mxu0 %v1666
    %2626 = vmatprep.subr.bf16.mxu0 %v1663
    %2627 = vmatpush1.bf16.msra.mxu0 %v1662
    %2628 = vmatprep.subr.bf16.mxu0 %v1659
    %2629 = vmatpush1.bf16.msra.mxu0 %v1658
    %2630 = vmatprep.subr.bf16.mxu0 %v1655
    %2631 = vmatpush1.bf16.msra.mxu0 %v1654
    %2632 = vmatprep.subr.bf16.mxu0 %v1651
    %2633 = vmatpush1.bf16.msra.mxu0 %v1650
    %2634 = vmatprep.subr.bf16.mxu0 %v1647
    %2635 = vmatpush1.bf16.msra.mxu0 %v1646
    %2636 = vmatprep.subr.bf16.mxu0 %v1643
    %2637 = vmatpush1.bf16.msra.mxu0 %v1642
    %2638 = vmatprep.subr.bf16.mxu0 0
    %2639 = vmatpush2.bf16.msra.mxu0 0
    %2640 = vmatprep.subr.bf16.mxu0 0
    %2641 = vmatpush2.bf16.msra.mxu0 0
    %2642 = vmatprep.subr.bf16.mxu0 0
    %2643 = vmatpush2.bf16.msra.mxu0 0
    %2644 = vmatprep.subr.bf16.mxu0 0
    %2645 = vmatpush2.bf16.msra.mxu0 0
    %2646 = vmatprep.subr.bf16.mxu0 0
    %2647 = vmatpush2.bf16.msra.mxu0 0
    %2648 = vmatprep.subr.bf16.mxu0 0
    %2649 = vmatpush2.bf16.msra.mxu0 0
    %2650 = vmatprep.subr.bf16.mxu0 0
    %2651 = vmatpush2.bf16.msra.mxu0 0
    %2652 = vmatprep.subr.bf16.mxu0 0
    %2653 = vmatpush2.bf16.msra.mxu0 0
    %2654 = vmatprep.mubr.bf16.mxu0 0
    %2655 = vmatmul.mubr.bf16.gmra.mxu0 %v2621
    %v2656 = vpop.f32.mrf.mxu0
    %v2657 = vadd.f32 0.0, %v2656
    %v2658 = vpop.f32.mrf.mxu0
    %v2659 = vadd.f32 0.0, %v2658
    %v2660 = vpop.f32.mrf.mxu0
    %v2661 = vadd.f32 0.0, %v2660
    %v2662 = vpop.f32.mrf.mxu0
    %v2663 = vadd.f32 0.0, %v2662
    %2664 = vdwg.mxu0
    %2665 = vmatprep.subr.bf16.mxu0 %v1673
    %2666 = vmatpush1.bf16.msra.mxu0 %v1672
    %2667 = vmatprep.subr.bf16.mxu0 %v1669
    %2668 = vmatpush1.bf16.msra.mxu0 %v1668
    %2669 = vmatprep.subr.bf16.mxu0 %v1665
    %2670 = vmatpush1.bf16.msra.mxu0 %v1664
    %2671 = vmatprep.subr.bf16.mxu0 %v1661
    %2672 = vmatpush1.bf16.msra.mxu0 %v1660
    %2673 = vmatprep.subr.bf16.mxu0 %v1657
    %2674 = vmatpush1.bf16.msra.mxu0 %v1656
    %2675 = vmatprep.subr.bf16.mxu0 %v1653
    %2676 = vmatpush1.bf16.msra.mxu0 %v1652
    %2677 = vmatprep.subr.bf16.mxu0 %v1649
    %2678 = vmatpush1.bf16.msra.mxu0 %v1648
    %2679 = vmatprep.subr.bf16.mxu0 %v1645
    %2680 = vmatpush1.bf16.msra.mxu0 %v1644
    %2681 = vmatprep.subr.bf16.mxu0 0
    %2682 = vmatpush2.bf16.msra.mxu0 0
    %2683 = vmatprep.subr.bf16.mxu0 0
    %2684 = vmatpush2.bf16.msra.mxu0 0
    %2685 = vmatprep.subr.bf16.mxu0 0
    %2686 = vmatpush2.bf16.msra.mxu0 0
    %2687 = vmatprep.subr.bf16.mxu0 0
    %2688 = vmatpush2.bf16.msra.mxu0 0
    %2689 = vmatprep.subr.bf16.mxu0 0
    %2690 = vmatpush2.bf16.msra.mxu0 0
    %2691 = vmatprep.subr.bf16.mxu0 0
    %2692 = vmatpush2.bf16.msra.mxu0 0
    %2693 = vmatprep.subr.bf16.mxu0 0
    %2694 = vmatpush2.bf16.msra.mxu0 0
    %2695 = vmatprep.subr.bf16.mxu0 0
    %2696 = vmatpush2.bf16.msra.mxu0 0
    %2697 = vmatprep.mubr.bf16.mxu0 0
    %2698 = vmatmul.mubr.bf16.gmra.mxu0 %v2621
    %v2699 = vpop.f32.mrf.mxu0
    %v2700 = vadd.f32 0.0, %v2699
    %v2701 = vpop.f32.mrf.mxu0
    %v2702 = vadd.f32 0.0, %v2701
    %v2703 = vpop.f32.mrf.mxu0
    %v2704 = vadd.f32 0.0, %v2703
    %v2705 = vpop.f32.mrf.mxu0
    %v2706 = vadd.f32 0.0, %v2705
    %2707 = vdwg.mxu0
    %v2708 = vadd.f32 %v2613, %v2657
    %v2709 = vadd.f32 %v2614, %v2659
    %v2710 = vadd.f32 %v2615, %v2700
    %v2711 = vadd.f32 %v2616, %v2702
    %v2712 = vadd.f32 %v2617, %v2661
    %v2713 = vadd.f32 %v2618, %v2663
    %v2714 = vadd.f32 %v2619, %v2704
    %v2715 = vadd.f32 %v2620, %v2706
    %v2716 = vxor.u32 %v2708, 2147483648
    %v2717 = vxor.u32 %v2712, 2147483648
    %v2718 = vmul.f32 %v2716, 1.442695
    %v2719 = vpow.pop %v2718
    %v2720 = vmul.f32 %v2717, 1.442695
    %v2721 = vpow.pop %v2720
    %v2722 = vadd.f32 %v2719, 1.0
    %v2723 = vadd.f32 %v2721, 1.0
    %v2724 = vrcp.pop %v2722
    %v2725 = vmul.f32 1.0, %v2724
    %v2726 = vrcp.pop %v2723
    %v2727 = vmul.f32 1.0, %v2726
    %v2728 = vxor.u32 %v2709, 2147483648
    %v2729 = vxor.u32 %v2713, 2147483648
    %v2730 = vmul.f32 %v2728, 1.442695
    %v2731 = vpow.pop %v2730
    %v2732 = vmul.f32 %v2729, 1.442695
    %v2733 = vpow.pop %v2732
    %v2734 = vadd.f32 %v2731, 1.0
    %v2735 = vadd.f32 %v2733, 1.0
    %v2736 = vrcp.pop %v2734
    %v2737 = vmul.f32 1.0, %v2736
    %v2738 = vrcp.pop %v2735
    %v2739 = vmul.f32 1.0, %v2738
    %v2740 = vtanh.pop %v2710
    %v2741 = vtanh.pop %v2714
    %v2742 = vxor.u32 %v2711, 2147483648
    %v2743 = vxor.u32 %v2715, 2147483648
    %v2744 = vmul.f32 %v2742, 1.442695
    %v2745 = vpow.pop %v2744
    %v2746 = vmul.f32 %v2743, 1.442695
    %v2747 = vpow.pop %v2746
    %v2748 = vadd.f32 %v2745, 1.0
    %v2749 = vadd.f32 %v2747, 1.0
    %v2750 = vrcp.pop %v2748
    %v2751 = vmul.f32 1.0, %v2750
    %v2752 = vrcp.pop %v2749
    %v2753 = vmul.f32 1.0, %v2752
    %v2754 = vmul.f32 %v2737, %v2567
    %v2755 = vmul.f32 %v2739, %v2568
    %v2756 = vmul.f32 %v2725, %v2740
    %v2757 = vmul.f32 %v2727, %v2741
    %v2758 = vadd.f32 %v2754, %v2756
    %v2759 = vadd.f32 %v2755, %v2757
    %v2760 = vtanh.pop %v2758
    %v2761 = vtanh.pop %v2759
    %v2762 = vmul.f32 %v2751, %v2760
    %v2763 = vmul.f32 %v2753, %v2761
    %v2764 = vunpack.c.l.bf16 %v2597
    %v2765 = vunpack.c.h.bf16 %v2597
    %v2766 = vunpack.c.l.bf16 %v2598
    %v2767 = vunpack.c.h.bf16 %v2598
    %v2768 = vunpack.c.l.bf16 %v2599
    %v2769 = vunpack.c.h.bf16 %v2599
    %v2770 = vunpack.c.l.bf16 %v2600
    %v2771 = vunpack.c.h.bf16 %v2600
    %v2772 = vadd.f32 %v2764, %v1860
    %v2773 = vadd.f32 %v2765, %v1864
    %v2774 = vadd.f32 %v2766, %v1868
    %v2775 = vadd.f32 %v2767, %v1872
    %v2776 = vadd.f32 %v2768, %v1860
    %v2777 = vadd.f32 %v2769, %v1864
    %v2778 = vadd.f32 %v2770, %v1868
    %v2779 = vadd.f32 %v2771, %v1872
    %v2780 = vpack.c.bf16 %v2584, %v2583
    %2781 = vmatprep.subr.bf16.mxu0 %v2010
    %2782 = vmatpush1.bf16.msra.mxu0 %v2009
    %2783 = vmatprep.subr.bf16.mxu0 %v2006
    %2784 = vmatpush1.bf16.msra.mxu0 %v2005
    %2785 = vmatprep.subr.bf16.mxu0 %v2002
    %2786 = vmatpush1.bf16.msra.mxu0 %v2001
    %2787 = vmatprep.subr.bf16.mxu0 %v1998
    %2788 = vmatpush1.bf16.msra.mxu0 %v1997
    %2789 = vmatprep.subr.bf16.mxu0 %v1994
    %2790 = vmatpush1.bf16.msra.mxu0 %v1993
    %2791 = vmatprep.subr.bf16.mxu0 %v1990
    %2792 = vmatpush1.bf16.msra.mxu0 %v1989
    %2793 = vmatprep.subr.bf16.mxu0 %v1986
    %2794 = vmatpush1.bf16.msra.mxu0 %v1985
    %2795 = vmatprep.subr.bf16.mxu0 %v1982
    %2796 = vmatpush1.bf16.msra.mxu0 %v1981
    %2797 = vmatprep.subr.bf16.mxu0 0
    %2798 = vmatpush2.bf16.msra.mxu0 0
    %2799 = vmatprep.subr.bf16.mxu0 0
    %2800 = vmatpush2.bf16.msra.mxu0 0
    %2801 = vmatprep.subr.bf16.mxu0 0
    %2802 = vmatpush2.bf16.msra.mxu0 0
    %2803 = vmatprep.subr.bf16.mxu0 0
    %2804 = vmatpush2.bf16.msra.mxu0 0
    %2805 = vmatprep.subr.bf16.mxu0 0
    %2806 = vmatpush2.bf16.msra.mxu0 0
    %2807 = vmatprep.subr.bf16.mxu0 0
    %2808 = vmatpush2.bf16.msra.mxu0 0
    %2809 = vmatprep.subr.bf16.mxu0 0
    %2810 = vmatpush2.bf16.msra.mxu0 0
    %2811 = vmatprep.subr.bf16.mxu0 0
    %2812 = vmatpush2.bf16.msra.mxu0 0
    %2813 = vmatprep.mubr.bf16.mxu0 0
    %2814 = vmatmul.mubr.bf16.gmra.mxu0 %v2780
    %v2815 = vpop.f32.mrf.mxu0
    %v2816 = vadd.f32 0.0, %v2815
    %v2817 = vpop.f32.mrf.mxu0
    %v2818 = vadd.f32 0.0, %v2817
    %v2819 = vpop.f32.mrf.mxu0
    %v2820 = vadd.f32 0.0, %v2819
    %v2821 = vpop.f32.mrf.mxu0
    %v2822 = vadd.f32 0.0, %v2821
    %2823 = vdwg.mxu0
    %2824 = vmatprep.subr.bf16.mxu0 %v2012
    %2825 = vmatpush1.bf16.msra.mxu0 %v2011
    %2826 = vmatprep.subr.bf16.mxu0 %v2008
    %2827 = vmatpush1.bf16.msra.mxu0 %v2007
    %2828 = vmatprep.subr.bf16.mxu0 %v2004
    %2829 = vmatpush1.bf16.msra.mxu0 %v2003
    %2830 = vmatprep.subr.bf16.mxu0 %v2000
    %2831 = vmatpush1.bf16.msra.mxu0 %v1999
    %2832 = vmatprep.subr.bf16.mxu0 %v1996
    %2833 = vmatpush1.bf16.msra.mxu0 %v1995
    %2834 = vmatprep.subr.bf16.mxu0 %v1992
    %2835 = vmatpush1.bf16.msra.mxu0 %v1991
    %2836 = vmatprep.subr.bf16.mxu0 %v1988
    %2837 = vmatpush1.bf16.msra.mxu0 %v1987
    %2838 = vmatprep.subr.bf16.mxu0 %v1984
    %2839 = vmatpush1.bf16.msra.mxu0 %v1983
    %2840 = vmatprep.subr.bf16.mxu0 0
    %2841 = vmatpush2.bf16.msra.mxu0 0
    %2842 = vmatprep.subr.bf16.mxu0 0
    %2843 = vmatpush2.bf16.msra.mxu0 0
    %2844 = vmatprep.subr.bf16.mxu0 0
    %2845 = vmatpush2.bf16.msra.mxu0 0
    %2846 = vmatprep.subr.bf16.mxu0 0
    %2847 = vmatpush2.bf16.msra.mxu0 0
    %2848 = vmatprep.subr.bf16.mxu0 0
    %2849 = vmatpush2.bf16.msra.mxu0 0
    %2850 = vmatprep.subr.bf16.mxu0 0
    %2851 = vmatpush2.bf16.msra.mxu0 0
    %2852 = vmatprep.subr.bf16.mxu0 0
    %2853 = vmatpush2.bf16.msra.mxu0 0
    %2854 = vmatprep.subr.bf16.mxu0 0
    %2855 = vmatpush2.bf16.msra.mxu0 0
    %2856 = vmatprep.mubr.bf16.mxu0 0
    %2857 = vmatmul.mubr.bf16.gmra.mxu0 %v2780
    %v2858 = vpop.f32.mrf.mxu0
    %v2859 = vadd.f32 0.0, %v2858
    %v2860 = vpop.f32.mrf.mxu0
    %v2861 = vadd.f32 0.0, %v2860
    %v2862 = vpop.f32.mrf.mxu0
    %v2863 = vadd.f32 0.0, %v2862
    %v2864 = vpop.f32.mrf.mxu0
    %v2865 = vadd.f32 0.0, %v2864
    %2866 = vdwg.mxu0
    %v2867 = vadd.f32 %v2772, %v2816
    %v2868 = vadd.f32 %v2773, %v2818
    %v2869 = vadd.f32 %v2774, %v2859
    %v2870 = vadd.f32 %v2775, %v2861
    %v2871 = vadd.f32 %v2776, %v2820
    %v2872 = vadd.f32 %v2777, %v2822
    %v2873 = vadd.f32 %v2778, %v2863
    %v2874 = vadd.f32 %v2779, %v2865
    %v2875 = vxor.u32 %v2867, 2147483648
    %v2876 = vxor.u32 %v2871, 2147483648
    %v2877 = vmul.f32 %v2875, 1.442695
    %v2878 = vpow.pop %v2877
    %v2879 = vmul.f32 %v2876, 1.442695
    %v2880 = vpow.pop %v2879
    %v2881 = vadd.f32 %v2878, 1.0
    %v2882 = vadd.f32 %v2880, 1.0
    %v2883 = vrcp.pop %v2881
    %v2884 = vmul.f32 1.0, %v2883
    %v2885 = vrcp.pop %v2882
    %v2886 = vmul.f32 1.0, %v2885
    %v2887 = vxor.u32 %v2868, 2147483648
    %v2888 = vxor.u32 %v2872, 2147483648
    %v2889 = vmul.f32 %v2887, 1.442695
    %v2890 = vpow.pop %v2889
    %v2891 = vmul.f32 %v2888, 1.442695
    %v2892 = vpow.pop %v2891
    %v2893 = vadd.f32 %v2890, 1.0
    %v2894 = vadd.f32 %v2892, 1.0
    %v2895 = vrcp.pop %v2893
    %v2896 = vmul.f32 1.0, %v2895
    %v2897 = vrcp.pop %v2894
    %v2898 = vmul.f32 1.0, %v2897
    %v2899 = vtanh.pop %v2869
    %v2900 = vtanh.pop %v2873
    %v2901 = vxor.u32 %v2870, 2147483648
    %v2902 = vxor.u32 %v2874, 2147483648
    %v2903 = vmul.f32 %v2901, 1.442695
    %v2904 = vpow.pop %v2903
    %v2905 = vmul.f32 %v2902, 1.442695
    %v2906 = vpow.pop %v2905
    %v2907 = vadd.f32 %v2904, 1.0
    %v2908 = vadd.f32 %v2906, 1.0
    %v2909 = vrcp.pop %v2907
    %v2910 = vmul.f32 1.0, %v2909
    %v2911 = vrcp.pop %v2908
    %v2912 = vmul.f32 1.0, %v2911
    %v2913 = vmul.f32 %v2896, %v2585
    %v2914 = vmul.f32 %v2898, %v2586
    %v2915 = vmul.f32 %v2884, %v2899
    %v2916 = vmul.f32 %v2886, %v2900
    %v2917 = vadd.f32 %v2913, %v2915
    %v2918 = vadd.f32 %v2914, %v2916
    %v2919 = vtanh.pop %v2917
    %v2920 = vtanh.pop %v2918
    %v2921 = vmul.f32 %v2910, %v2919
    %v2922 = vmul.f32 %v2912, %v2920
    %v2923 = vsel %vm2601, 1, 0
    %v2924 = vsel %vm2602, 1, 0
    %2925 = vset.pattern.permute.xlu0 0
    %2926 = vperm.xlu0 %2925, %v2923
    %v2927 = vpop.permute.xlu0 %2926
    %2928 = vset.pattern.permute.xlu0 0
    %2929 = vperm.xlu0 %2928, %v2924
    %v2930 = vpop.permute.xlu0 %2929
    %vm2931 = vcmp.eq.s32.totalorder %v2927, 1
    %vm2932 = vcmp.eq.s32.totalorder %v2930, 1
    %v2933 = vsel %vm2931, %v2762, %v2565
    %v2934 = vsel %vm2932, %v2763, %v2566
    %v2935 = vsel %vm2931, %v2758, %v2567
    %v2936 = vsel %vm2932, %v2759, %v2568
    %v2937 = vmax.f32 %v2571, %v2762
    %v2938 = vmax.f32 %v2572, %v2763
    %v2939 = vsel %vm2931, %v2937, %v2571
    %v2940 = vsel %vm2932, %v2938, %v2572
    %v2941 = vsel %vm2603, 1, 0
    %v2942 = vsel %vm2604, 1, 0
    %2943 = vset.pattern.permute.xlu0 0
    %2944 = vperm.xlu0 %2943, %v2941
    %v2945 = vpop.permute.xlu0 %2944
    %2946 = vset.pattern.permute.xlu0 0
    %2947 = vperm.xlu0 %2946, %v2942
    %v2948 = vpop.permute.xlu0 %2947
    %vm2949 = vcmp.eq.s32.totalorder %v2945, 1
    %vm2950 = vcmp.eq.s32.totalorder %v2948, 1
    %v2951 = vsel %vm2949, %v2921, %v2583
    %v2952 = vsel %vm2950, %v2922, %v2584
    %v2953 = vsel %vm2949, %v2917, %v2585
    %v2954 = vsel %vm2950, %v2918, %v2586
    %v2955 = vmax.f32 %v2589, %v2921
    %v2956 = vmax.f32 %v2590, %v2922
    %v2957 = vsel %vm2949, %v2955, %v2589
    %v2958 = vsel %vm2950, %v2956, %v2590
    %s2959 = scalar_lea.vmem [#allocation2], 96
    %v2960 = vld [vmem:[%s2959] sm:$0xff]
    %v2961 = vld [vmem:[%s2959 + $0x8] sm:$0xff]
    %v2962 = vld [vmem:[%s2959 + $0x10] sm:$0xff]
    %v2963 = vld [vmem:[%s2959 + $0x18] sm:$0xff]
    %s2964 = scalar_lea.vmem [#allocation3], 128
    %v2965 = vld [vmem:[%s2964] sm:$0xff]
    %v2966 = vld [vmem:[%s2964 + $0x8] sm:$0xff]
    %v2967 = vld [vmem:[%s2964 + $0x10] sm:$0xff]
    %v2968 = vld [vmem:[%s2964 + $0x18] sm:$0xff]
    %vm2969 = vcmp.gt.s32.totalorder %v80, 3
    %vm2970 = vcmp.gt.s32.totalorder %v81, 3
    %vm2971 = vcmp.gt.s32.totalorder %v80, 4
    %vm2972 = vcmp.gt.s32.totalorder %v81, 4
    %v2973 = vunpack.c.l.bf16 %v2960
    %v2974 = vunpack.c.h.bf16 %v2960
    %v2975 = vunpack.c.l.bf16 %v2961
    %v2976 = vunpack.c.h.bf16 %v2961
    %v2977 = vunpack.c.l.bf16 %v2962
    %v2978 = vunpack.c.h.bf16 %v2962
    %v2979 = vunpack.c.l.bf16 %v2963
    %v2980 = vunpack.c.h.bf16 %v2963
    %v2981 = vadd.f32 %v2973, %v1521
    %v2982 = vadd.f32 %v2974, %v1525
    %v2983 = vadd.f32 %v2975, %v1529
    %v2984 = vadd.f32 %v2976, %v1533
    %v2985 = vadd.f32 %v2977, %v1521
    %v2986 = vadd.f32 %v2978, %v1525
    %v2987 = vadd.f32 %v2979, %v1529
    %v2988 = vadd.f32 %v2980, %v1533
    %v2989 = vpack.c.bf16 %v2934, %v2933
    %2990 = vmatprep.subr.bf16.mxu0 %v1671
    %2991 = vmatpush1.bf16.msra.mxu0 %v1670
    %2992 = vmatprep.subr.bf16.mxu0 %v1667
    %2993 = vmatpush1.bf16.msra.mxu0 %v1666
    %2994 = vmatprep.subr.bf16.mxu0 %v1663
    %2995 = vmatpush1.bf16.msra.mxu0 %v1662
    %2996 = vmatprep.subr.bf16.mxu0 %v1659
    %2997 = vmatpush1.bf16.msra.mxu0 %v1658
    %2998 = vmatprep.subr.bf16.mxu0 %v1655
    %2999 = vmatpush1.bf16.msra.mxu0 %v1654
    %3000 = vmatprep.subr.bf16.mxu0 %v1651
    %3001 = vmatpush1.bf16.msra.mxu0 %v1650
    %3002 = vmatprep.subr.bf16.mxu0 %v1647
    %3003 = vmatpush1.bf16.msra.mxu0 %v1646
    %3004 = vmatprep.subr.bf16.mxu0 %v1643
    %3005 = vmatpush1.bf16.msra.mxu0 %v1642
    %3006 = vmatprep.subr.bf16.mxu0 0
    %3007 = vmatpush2.bf16.msra.mxu0 0
    %3008 = vmatprep.subr.bf16.mxu0 0
    %3009 = vmatpush2.bf16.msra.mxu0 0
    %3010 = vmatprep.subr.bf16.mxu0 0
    %3011 = vmatpush2.bf16.msra.mxu0 0
    %3012 = vmatprep.subr.bf16.mxu0 0
    %3013 = vmatpush2.bf16.msra.mxu0 0
    %3014 = vmatprep.subr.bf16.mxu0 0
    %3015 = vmatpush2.bf16.msra.mxu0 0
    %3016 = vmatprep.subr.bf16.mxu0 0
    %3017 = vmatpush2.bf16.msra.mxu0 0
    %3018 = vmatprep.subr.bf16.mxu0 0
    %3019 = vmatpush2.bf16.msra.mxu0 0
    %3020 = vmatprep.subr.bf16.mxu0 0
    %3021 = vmatpush2.bf16.msra.mxu0 0
    %3022 = vmatprep.mubr.bf16.mxu0 0
    %3023 = vmatmul.mubr.bf16.gmra.mxu0 %v2989
    %v3024 = vpop.f32.mrf.mxu0
    %v3025 = vadd.f32 0.0, %v3024
    %v3026 = vpop.f32.mrf.mxu0
    %v3027 = vadd.f32 0.0, %v3026
    %v3028 = vpop.f32.mrf.mxu0
    %v3029 = vadd.f32 0.0, %v3028
    %v3030 = vpop.f32.mrf.mxu0
    %v3031 = vadd.f32 0.0, %v3030
    %3032 = vdwg.mxu0
    %3033 = vmatprep.subr.bf16.mxu0 %v1673
    %3034 = vmatpush1.bf16.msra.mxu0 %v1672
    %3035 = vmatprep.subr.bf16.mxu0 %v1669
    %3036 = vmatpush1.bf16.msra.mxu0 %v1668
    %3037 = vmatprep.subr.bf16.mxu0 %v1665
    %3038 = vmatpush1.bf16.msra.mxu0 %v1664
    %3039 = vmatprep.subr.bf16.mxu0 %v1661
    %3040 = vmatpush1.bf16.msra.mxu0 %v1660
    %3041 = vmatprep.subr.bf16.mxu0 %v1657
    %3042 = vmatpush1.bf16.msra.mxu0 %v1656
    %3043 = vmatprep.subr.bf16.mxu0 %v1653
    %3044 = vmatpush1.bf16.msra.mxu0 %v1652
    %3045 = vmatprep.subr.bf16.mxu0 %v1649
    %3046 = vmatpush1.bf16.msra.mxu0 %v1648
    %3047 = vmatprep.subr.bf16.mxu0 %v1645
    %3048 = vmatpush1.bf16.msra.mxu0 %v1644
    %3049 = vmatprep.subr.bf16.mxu0 0
    %3050 = vmatpush2.bf16.msra.mxu0 0
    %3051 = vmatprep.subr.bf16.mxu0 0
    %3052 = vmatpush2.bf16.msra.mxu0 0
    %3053 = vmatprep.subr.bf16.mxu0 0
    %3054 = vmatpush2.bf16.msra.mxu0 0
    %3055 = vmatprep.subr.bf16.mxu0 0
    %3056 = vmatpush2.bf16.msra.mxu0 0
    %3057 = vmatprep.subr.bf16.mxu0 0
    %3058 = vmatpush2.bf16.msra.mxu0 0
    %3059 = vmatprep.subr.bf16.mxu0 0
    %3060 = vmatpush2.bf16.msra.mxu0 0
    %3061 = vmatprep.subr.bf16.mxu0 0
    %3062 = vmatpush2.bf16.msra.mxu0 0
    %3063 = vmatprep.subr.bf16.mxu0 0
    %3064 = vmatpush2.bf16.msra.mxu0 0
    %3065 = vmatprep.mubr.bf16.mxu0 0
    %3066 = vmatmul.mubr.bf16.gmra.mxu0 %v2989
    %v3067 = vpop.f32.mrf.mxu0
    %v3068 = vadd.f32 0.0, %v3067
    %v3069 = vpop.f32.mrf.mxu0
    %v3070 = vadd.f32 0.0, %v3069
    %v3071 = vpop.f32.mrf.mxu0
    %v3072 = vadd.f32 0.0, %v3071
    %v3073 = vpop.f32.mrf.mxu0
    %v3074 = vadd.f32 0.0, %v3073
    %3075 = vdwg.mxu0
    %v3076 = vadd.f32 %v2981, %v3025
    %v3077 = vadd.f32 %v2982, %v3027
    %v3078 = vadd.f32 %v2983, %v3068
    %v3079 = vadd.f32 %v2984, %v3070
    %v3080 = vadd.f32 %v2985, %v3029
    %v3081 = vadd.f32 %v2986, %v3031
    %v3082 = vadd.f32 %v2987, %v3072
    %v3083 = vadd.f32 %v2988, %v3074
    %v3084 = vxor.u32 %v3076, 2147483648
    %v3085 = vxor.u32 %v3080, 2147483648
    %v3086 = vmul.f32 %v3084, 1.442695
    %v3087 = vpow.pop %v3086
    %v3088 = vmul.f32 %v3085, 1.442695
    %v3089 = vpow.pop %v3088
    %v3090 = vadd.f32 %v3087, 1.0
    %v3091 = vadd.f32 %v3089, 1.0
    %v3092 = vrcp.pop %v3090
    %v3093 = vmul.f32 1.0, %v3092
    %v3094 = vrcp.pop %v3091
    %v3095 = vmul.f32 1.0, %v3094
    %v3096 = vxor.u32 %v3077, 2147483648
    %v3097 = vxor.u32 %v3081, 2147483648
    %v3098 = vmul.f32 %v3096, 1.442695
    %v3099 = vpow.pop %v3098
    %v3100 = vmul.f32 %v3097, 1.442695
    %v3101 = vpow.pop %v3100
    %v3102 = vadd.f32 %v3099, 1.0
    %v3103 = vadd.f32 %v3101, 1.0
    %v3104 = vrcp.pop %v3102
    %v3105 = vmul.f32 1.0, %v3104
    %v3106 = vrcp.pop %v3103
    %v3107 = vmul.f32 1.0, %v3106
    %v3108 = vtanh.pop %v3078
    %v3109 = vtanh.pop %v3082
    %v3110 = vxor.u32 %v3079, 2147483648
    %v3111 = vxor.u32 %v3083, 2147483648
    %v3112 = vmul.f32 %v3110, 1.442695
    %v3113 = vpow.pop %v3112
    %v3114 = vmul.f32 %v3111, 1.442695
    %v3115 = vpow.pop %v3114
    %v3116 = vadd.f32 %v3113, 1.0
    %v3117 = vadd.f32 %v3115, 1.0
    %v3118 = vrcp.pop %v3116
    %v3119 = vmul.f32 1.0, %v3118
    %v3120 = vrcp.pop %v3117
    %v3121 = vmul.f32 1.0, %v3120
    %v3122 = vmul.f32 %v3105, %v2935
    %v3123 = vmul.f32 %v3107, %v2936
    %v3124 = vmul.f32 %v3093, %v3108
    %v3125 = vmul.f32 %v3095, %v3109
    %v3126 = vadd.f32 %v3122, %v3124
    %v3127 = vadd.f32 %v3123, %v3125
    %v3128 = vtanh.pop %v3126
    %v3129 = vtanh.pop %v3127
    %v3130 = vmul.f32 %v3119, %v3128
    %v3131 = vmul.f32 %v3121, %v3129
    %v3132 = vunpack.c.l.bf16 %v2965
    %v3133 = vunpack.c.h.bf16 %v2965
    %v3134 = vunpack.c.l.bf16 %v2966
    %v3135 = vunpack.c.h.bf16 %v2966
    %v3136 = vunpack.c.l.bf16 %v2967
    %v3137 = vunpack.c.h.bf16 %v2967
    %v3138 = vunpack.c.l.bf16 %v2968
    %v3139 = vunpack.c.h.bf16 %v2968
    %v3140 = vadd.f32 %v3132, %v1860
    %v3141 = vadd.f32 %v3133, %v1864
    %v3142 = vadd.f32 %v3134, %v1868
    %v3143 = vadd.f32 %v3135, %v1872
    %v3144 = vadd.f32 %v3136, %v1860
    %v3145 = vadd.f32 %v3137, %v1864
    %v3146 = vadd.f32 %v3138, %v1868
    %v3147 = vadd.f32 %v3139, %v1872
    %v3148 = vpack.c.bf16 %v2952, %v2951
    %3149 = vmatprep.subr.bf16.mxu0 %v2010
    %3150 = vmatpush1.bf16.msra.mxu0 %v2009
    %3151 = vmatprep.subr.bf16.mxu0 %v2006
    %3152 = vmatpush1.bf16.msra.mxu0 %v2005
    %3153 = vmatprep.subr.bf16.mxu0 %v2002
    %3154 = vmatpush1.bf16.msra.mxu0 %v2001
    %3155 = vmatprep.subr.bf16.mxu0 %v1998
    %3156 = vmatpush1.bf16.msra.mxu0 %v1997
    %3157 = vmatprep.subr.bf16.mxu0 %v1994
    %3158 = vmatpush1.bf16.msra.mxu0 %v1993
    %3159 = vmatprep.subr.bf16.mxu0 %v1990
    %3160 = vmatpush1.bf16.msra.mxu0 %v1989
    %3161 = vmatprep.subr.bf16.mxu0 %v1986
    %3162 = vmatpush1.bf16.msra.mxu0 %v1985
    %3163 = vmatprep.subr.bf16.mxu0 %v1982
    %3164 = vmatpush1.bf16.msra.mxu0 %v1981
    %3165 = vmatprep.subr.bf16.mxu0 0
    %3166 = vmatpush2.bf16.msra.mxu0 0
    %3167 = vmatprep.subr.bf16.mxu0 0
    %3168 = vmatpush2.bf16.msra.mxu0 0
    %3169 = vmatprep.subr.bf16.mxu0 0
    %3170 = vmatpush2.bf16.msra.mxu0 0
    %3171 = vmatprep.subr.bf16.mxu0 0
    %3172 = vmatpush2.bf16.msra.mxu0 0
    %3173 = vmatprep.subr.bf16.mxu0 0
    %3174 = vmatpush2.bf16.msra.mxu0 0
    %3175 = vmatprep.subr.bf16.mxu0 0
    %3176 = vmatpush2.bf16.msra.mxu0 0
    %3177 = vmatprep.subr.bf16.mxu0 0
    %3178 = vmatpush2.bf16.msra.mxu0 0
    %3179 = vmatprep.subr.bf16.mxu0 0
    %3180 = vmatpush2.bf16.msra.mxu0 0
    %3181 = vmatprep.mubr.bf16.mxu0 0
    %3182 = vmatmul.mubr.bf16.gmra.mxu0 %v3148
    %v3183 = vpop.f32.mrf.mxu0
    %v3184 = vadd.f32 0.0, %v3183
    %v3185 = vpop.f32.mrf.mxu0
    %v3186 = vadd.f32 0.0, %v3185
    %v3187 = vpop.f32.mrf.mxu0
    %v3188 = vadd.f32 0.0, %v3187
    %v3189 = vpop.f32.mrf.mxu0
    %v3190 = vadd.f32 0.0, %v3189
    %3191 = vdwg.mxu0
    %3192 = vmatprep.subr.bf16.mxu0 %v2012
    %3193 = vmatpush1.bf16.msra.mxu0 %v2011
    %3194 = vmatprep.subr.bf16.mxu0 %v2008
    %3195 = vmatpush1.bf16.msra.mxu0 %v2007
    %3196 = vmatprep.subr.bf16.mxu0 %v2004
    %3197 = vmatpush1.bf16.msra.mxu0 %v2003
    %3198 = vmatprep.subr.bf16.mxu0 %v2000
    %3199 = vmatpush1.bf16.msra.mxu0 %v1999
    %3200 = vmatprep.subr.bf16.mxu0 %v1996
    %3201 = vmatpush1.bf16.msra.mxu0 %v1995
    %3202 = vmatprep.subr.bf16.mxu0 %v1992
    %3203 = vmatpush1.bf16.msra.mxu0 %v1991
    %3204 = vmatprep.subr.bf16.mxu0 %v1988
    %3205 = vmatpush1.bf16.msra.mxu0 %v1987
    %3206 = vmatprep.subr.bf16.mxu0 %v1984
    %3207 = vmatpush1.bf16.msra.mxu0 %v1983
    %3208 = vmatprep.subr.bf16.mxu0 0
    %3209 = vmatpush2.bf16.msra.mxu0 0
    %3210 = vmatprep.subr.bf16.mxu0 0
    %3211 = vmatpush2.bf16.msra.mxu0 0
    %3212 = vmatprep.subr.bf16.mxu0 0
    %3213 = vmatpush2.bf16.msra.mxu0 0
    %3214 = vmatprep.subr.bf16.mxu0 0
    %3215 = vmatpush2.bf16.msra.mxu0 0
    %3216 = vmatprep.subr.bf16.mxu0 0
    %3217 = vmatpush2.bf16.msra.mxu0 0
    %3218 = vmatprep.subr.bf16.mxu0 0
    %3219 = vmatpush2.bf16.msra.mxu0 0
    %3220 = vmatprep.subr.bf16.mxu0 0
    %3221 = vmatpush2.bf16.msra.mxu0 0
    %3222 = vmatprep.subr.bf16.mxu0 0
    %3223 = vmatpush2.bf16.msra.mxu0 0
    %3224 = vmatprep.mubr.bf16.mxu0 0
    %3225 = vmatmul.mubr.bf16.gmra.mxu0 %v3148
    %v3226 = vpop.f32.mrf.mxu0
    %v3227 = vadd.f32 0.0, %v3226
    %v3228 = vpop.f32.mrf.mxu0
    %v3229 = vadd.f32 0.0, %v3228
    %v3230 = vpop.f32.mrf.mxu0
    %v3231 = vadd.f32 0.0, %v3230
    %v3232 = vpop.f32.mrf.mxu0
    %v3233 = vadd.f32 0.0, %v3232
    %3234 = vdwg.mxu0
    %v3235 = vadd.f32 %v3140, %v3184
    %v3236 = vadd.f32 %v3141, %v3186
    %v3237 = vadd.f32 %v3142, %v3227
    %v3238 = vadd.f32 %v3143, %v3229
    %v3239 = vadd.f32 %v3144, %v3188
    %v3240 = vadd.f32 %v3145, %v3190
    %v3241 = vadd.f32 %v3146, %v3231
    %v3242 = vadd.f32 %v3147, %v3233
    %v3243 = vxor.u32 %v3235, 2147483648
    %v3244 = vxor.u32 %v3239, 2147483648
    %v3245 = vmul.f32 %v3243, 1.442695
    %v3246 = vpow.pop %v3245
    %v3247 = vmul.f32 %v3244, 1.442695
    %v3248 = vpow.pop %v3247
    %v3249 = vadd.f32 %v3246, 1.0
    %v3250 = vadd.f32 %v3248, 1.0
    %v3251 = vrcp.pop %v3249
    %v3252 = vmul.f32 1.0, %v3251
    %v3253 = vrcp.pop %v3250
    %v3254 = vmul.f32 1.0, %v3253
    %v3255 = vxor.u32 %v3236, 2147483648
    %v3256 = vxor.u32 %v3240, 2147483648
    %v3257 = vmul.f32 %v3255, 1.442695
    %v3258 = vpow.pop %v3257
    %v3259 = vmul.f32 %v3256, 1.442695
    %v3260 = vpow.pop %v3259
    %v3261 = vadd.f32 %v3258, 1.0
    %v3262 = vadd.f32 %v3260, 1.0
    %v3263 = vrcp.pop %v3261
    %v3264 = vmul.f32 1.0, %v3263
    %v3265 = vrcp.pop %v3262
    %v3266 = vmul.f32 1.0, %v3265
    %v3267 = vtanh.pop %v3237
    %v3268 = vtanh.pop %v3241
    %v3269 = vxor.u32 %v3238, 2147483648
    %v3270 = vxor.u32 %v3242, 2147483648
    %v3271 = vmul.f32 %v3269, 1.442695
    %v3272 = vpow.pop %v3271
    %v3273 = vmul.f32 %v3270, 1.442695
    %v3274 = vpow.pop %v3273
    %v3275 = vadd.f32 %v3272, 1.0
    %v3276 = vadd.f32 %v3274, 1.0
    %v3277 = vrcp.pop %v3275
    %v3278 = vmul.f32 1.0, %v3277
    %v3279 = vrcp.pop %v3276
    %v3280 = vmul.f32 1.0, %v3279
    %v3281 = vmul.f32 %v3264, %v2953
    %v3282 = vmul.f32 %v3266, %v2954
    %v3283 = vmul.f32 %v3252, %v3267
    %v3284 = vmul.f32 %v3254, %v3268
    %v3285 = vadd.f32 %v3281, %v3283
    %v3286 = vadd.f32 %v3282, %v3284
    %v3287 = vtanh.pop %v3285
    %v3288 = vtanh.pop %v3286
    %v3289 = vmul.f32 %v3278, %v3287
    %v3290 = vmul.f32 %v3280, %v3288
    %v3291 = vsel %vm2969, 1, 0
    %v3292 = vsel %vm2970, 1, 0
    %3293 = vset.pattern.permute.xlu0 0
    %3294 = vperm.xlu0 %3293, %v3291
    %v3295 = vpop.permute.xlu0 %3294
    %3296 = vset.pattern.permute.xlu0 0
    %3297 = vperm.xlu0 %3296, %v3292
    %v3298 = vpop.permute.xlu0 %3297
    %vm3299 = vcmp.eq.s32.totalorder %v3295, 1
    %vm3300 = vcmp.eq.s32.totalorder %v3298, 1
    %v3301 = vsel %vm3299, %v3130, %v2933
    %v3302 = vsel %vm3300, %v3131, %v2934
    %v3303 = vsel %vm3299, %v3126, %v2935
    %v3304 = vsel %vm3300, %v3127, %v2936
    %v3305 = vmax.f32 %v2939, %v3130
    %v3306 = vmax.f32 %v2940, %v3131
    %v3307 = vsel %vm3299, %v3305, %v2939
    %v3308 = vsel %vm3300, %v3306, %v2940
    %v3309 = vsel %vm2971, 1, 0
    %v3310 = vsel %vm2972, 1, 0
    %3311 = vset.pattern.permute.xlu0 0
    %3312 = vperm.xlu0 %3311, %v3309
    %v3313 = vpop.permute.xlu0 %3312
    %3314 = vset.pattern.permute.xlu0 0
    %3315 = vperm.xlu0 %3314, %v3310
    %v3316 = vpop.permute.xlu0 %3315
    %vm3317 = vcmp.eq.s32.totalorder %v3313, 1
    %vm3318 = vcmp.eq.s32.totalorder %v3316, 1
    %v3319 = vsel %vm3317, %v3289, %v2951
    %v3320 = vsel %vm3318, %v3290, %v2952
    %v3321 = vsel %vm3317, %v3285, %v2953
    %v3322 = vsel %vm3318, %v3286, %v2954
    %v3323 = vmax.f32 %v2957, %v3289
    %v3324 = vmax.f32 %v2958, %v3290
    %v3325 = vsel %vm3317, %v3323, %v2957
    %v3326 = vsel %vm3318, %v3324, %v2958
    %s3327 = scalar_lea.vmem [#allocation2], 128
    %v3328 = vld [vmem:[%s3327] sm:$0xff]
    %v3329 = vld [vmem:[%s3327 + $0x8] sm:$0xff]
    %v3330 = vld [vmem:[%s3327 + $0x10] sm:$0xff]
    %v3331 = vld [vmem:[%s3327 + $0x18] sm:$0xff]
    %s3332 = scalar_lea.vmem [#allocation3], 96
    %v3333 = vld [vmem:[%s3332] sm:$0xff]
    %v3334 = vld [vmem:[%s3332 + $0x8] sm:$0xff]
    %v3335 = vld [vmem:[%s3332 + $0x10] sm:$0xff]
    %v3336 = vld [vmem:[%s3332 + $0x18] sm:$0xff]
    %v3337 = vunpack.c.l.bf16 %v3328
    %v3338 = vunpack.c.h.bf16 %v3328
    %v3339 = vunpack.c.l.bf16 %v3329
    %v3340 = vunpack.c.h.bf16 %v3329
    %v3341 = vunpack.c.l.bf16 %v3330
    %v3342 = vunpack.c.h.bf16 %v3330
    %v3343 = vunpack.c.l.bf16 %v3331
    %v3344 = vunpack.c.h.bf16 %v3331
    %v3345 = vadd.f32 %v3337, %v1521
    %v3346 = vadd.f32 %v3338, %v1525
    %v3347 = vadd.f32 %v3339, %v1529
    %v3348 = vadd.f32 %v3340, %v1533
    %v3349 = vadd.f32 %v3341, %v1521
    %v3350 = vadd.f32 %v3342, %v1525
    %v3351 = vadd.f32 %v3343, %v1529
    %v3352 = vadd.f32 %v3344, %v1533
    %v3353 = vpack.c.bf16 %v3302, %v3301
    %3354 = vmatprep.subr.bf16.mxu0 %v1671
    %3355 = vmatpush1.bf16.msra.mxu0 %v1670
    %3356 = vmatprep.subr.bf16.mxu0 %v1667
    %3357 = vmatpush1.bf16.msra.mxu0 %v1666
    %3358 = vmatprep.subr.bf16.mxu0 %v1663
    %3359 = vmatpush1.bf16.msra.mxu0 %v1662
    %3360 = vmatprep.subr.bf16.mxu0 %v1659
    %3361 = vmatpush1.bf16.msra.mxu0 %v1658
    %3362 = vmatprep.subr.bf16.mxu0 %v1655
    %3363 = vmatpush1.bf16.msra.mxu0 %v1654
    %3364 = vmatprep.subr.bf16.mxu0 %v1651
    %3365 = vmatpush1.bf16.msra.mxu0 %v1650
    %3366 = vmatprep.subr.bf16.mxu0 %v1647
    %3367 = vmatpush1.bf16.msra.mxu0 %v1646
    %3368 = vmatprep.subr.bf16.mxu0 %v1643
    %3369 = vmatpush1.bf16.msra.mxu0 %v1642
    %3370 = vmatprep.subr.bf16.mxu0 0
    %3371 = vmatpush2.bf16.msra.mxu0 0
    %3372 = vmatprep.subr.bf16.mxu0 0
    %3373 = vmatpush2.bf16.msra.mxu0 0
    %3374 = vmatprep.subr.bf16.mxu0 0
    %3375 = vmatpush2.bf16.msra.mxu0 0
    %3376 = vmatprep.subr.bf16.mxu0 0
    %3377 = vmatpush2.bf16.msra.mxu0 0
    %3378 = vmatprep.subr.bf16.mxu0 0
    %3379 = vmatpush2.bf16.msra.mxu0 0
    %3380 = vmatprep.subr.bf16.mxu0 0
    %3381 = vmatpush2.bf16.msra.mxu0 0
    %3382 = vmatprep.subr.bf16.mxu0 0
    %3383 = vmatpush2.bf16.msra.mxu0 0
    %3384 = vmatprep.subr.bf16.mxu0 0
    %3385 = vmatpush2.bf16.msra.mxu0 0
    %3386 = vmatprep.mubr.bf16.mxu0 0
    %3387 = vmatmul.mubr.bf16.gmra.mxu0 %v3353
    %v3388 = vpop.f32.mrf.mxu0
    %v3389 = vadd.f32 0.0, %v3388
    %v3390 = vpop.f32.mrf.mxu0
    %v3391 = vadd.f32 0.0, %v3390
    %v3392 = vpop.f32.mrf.mxu0
    %v3393 = vadd.f32 0.0, %v3392
    %v3394 = vpop.f32.mrf.mxu0
    %v3395 = vadd.f32 0.0, %v3394
    %3396 = vdwg.mxu0
    %3397 = vmatprep.subr.bf16.mxu0 %v1673
    %3398 = vmatpush1.bf16.msra.mxu0 %v1672
    %3399 = vmatprep.subr.bf16.mxu0 %v1669
    %3400 = vmatpush1.bf16.msra.mxu0 %v1668
    %3401 = vmatprep.subr.bf16.mxu0 %v1665
    %3402 = vmatpush1.bf16.msra.mxu0 %v1664
    %3403 = vmatprep.subr.bf16.mxu0 %v1661
    %3404 = vmatpush1.bf16.msra.mxu0 %v1660
    %3405 = vmatprep.subr.bf16.mxu0 %v1657
    %3406 = vmatpush1.bf16.msra.mxu0 %v1656
    %3407 = vmatprep.subr.bf16.mxu0 %v1653
    %3408 = vmatpush1.bf16.msra.mxu0 %v1652
    %3409 = vmatprep.subr.bf16.mxu0 %v1649
    %3410 = vmatpush1.bf16.msra.mxu0 %v1648
    %3411 = vmatprep.subr.bf16.mxu0 %v1645
    %3412 = vmatpush1.bf16.msra.mxu0 %v1644
    %3413 = vmatprep.subr.bf16.mxu0 0
    %3414 = vmatpush2.bf16.msra.mxu0 0
    %3415 = vmatprep.subr.bf16.mxu0 0
    %3416 = vmatpush2.bf16.msra.mxu0 0
    %3417 = vmatprep.subr.bf16.mxu0 0
    %3418 = vmatpush2.bf16.msra.mxu0 0
    %3419 = vmatprep.subr.bf16.mxu0 0
    %3420 = vmatpush2.bf16.msra.mxu0 0
    %3421 = vmatprep.subr.bf16.mxu0 0
    %3422 = vmatpush2.bf16.msra.mxu0 0
    %3423 = vmatprep.subr.bf16.mxu0 0
    %3424 = vmatpush2.bf16.msra.mxu0 0
    %3425 = vmatprep.subr.bf16.mxu0 0
    %3426 = vmatpush2.bf16.msra.mxu0 0
    %3427 = vmatprep.subr.bf16.mxu0 0
    %3428 = vmatpush2.bf16.msra.mxu0 0
    %3429 = vmatprep.mubr.bf16.mxu0 0
    %3430 = vmatmul.mubr.bf16.gmra.mxu0 %v3353
    %v3431 = vpop.f32.mrf.mxu0
    %v3432 = vadd.f32 0.0, %v3431
    %v3433 = vpop.f32.mrf.mxu0
    %v3434 = vadd.f32 0.0, %v3433
    %v3435 = vpop.f32.mrf.mxu0
    %v3436 = vadd.f32 0.0, %v3435
    %v3437 = vpop.f32.mrf.mxu0
    %v3438 = vadd.f32 0.0, %v3437
    %3439 = vdwg.mxu0
    %v3440 = vadd.f32 %v3345, %v3389
    %v3441 = vadd.f32 %v3346, %v3391
    %v3442 = vadd.f32 %v3347, %v3432
    %v3443 = vadd.f32 %v3348, %v3434
    %v3444 = vadd.f32 %v3349, %v3393
    %v3445 = vadd.f32 %v3350, %v3395
    %v3446 = vadd.f32 %v3351, %v3436
    %v3447 = vadd.f32 %v3352, %v3438
    %v3448 = vxor.u32 %v3440, 2147483648
    %v3449 = vxor.u32 %v3444, 2147483648
    %v3450 = vmul.f32 %v3448, 1.442695
    %v3451 = vpow.pop %v3450
    %v3452 = vmul.f32 %v3449, 1.442695
    %v3453 = vpow.pop %v3452
    %v3454 = vadd.f32 %v3451, 1.0
    %v3455 = vadd.f32 %v3453, 1.0
    %v3456 = vrcp.pop %v3454
    %v3457 = vmul.f32 1.0, %v3456
    %v3458 = vrcp.pop %v3455
    %v3459 = vmul.f32 1.0, %v3458
    %v3460 = vxor.u32 %v3441, 2147483648
    %v3461 = vxor.u32 %v3445, 2147483648
    %v3462 = vmul.f32 %v3460, 1.442695
    %v3463 = vpow.pop %v3462
    %v3464 = vmul.f32 %v3461, 1.442695
    %v3465 = vpow.pop %v3464
    %v3466 = vadd.f32 %v3463, 1.0
    %v3467 = vadd.f32 %v3465, 1.0
    %v3468 = vrcp.pop %v3466
    %v3469 = vmul.f32 1.0, %v3468
    %v3470 = vrcp.pop %v3467
    %v3471 = vmul.f32 1.0, %v3470
    %v3472 = vtanh.pop %v3442
    %v3473 = vtanh.pop %v3446
    %v3474 = vxor.u32 %v3443, 2147483648
    %v3475 = vxor.u32 %v3447, 2147483648
    %v3476 = vmul.f32 %v3474, 1.442695
    %v3477 = vpow.pop %v3476
    %v3478 = vmul.f32 %v3475, 1.442695
    %v3479 = vpow.pop %v3478
    %v3480 = vadd.f32 %v3477, 1.0
    %v3481 = vadd.f32 %v3479, 1.0
    %v3482 = vrcp.pop %v3480
    %v3483 = vmul.f32 1.0, %v3482
    %v3484 = vrcp.pop %v3481
    %v3485 = vmul.f32 1.0, %v3484
    %v3486 = vmul.f32 %v3469, %v3303
    %v3487 = vmul.f32 %v3471, %v3304
    %v3488 = vmul.f32 %v3457, %v3472
    %v3489 = vmul.f32 %v3459, %v3473
    %v3490 = vadd.f32 %v3486, %v3488
    %v3491 = vadd.f32 %v3487, %v3489
    %v3492 = vtanh.pop %v3490
    %v3493 = vtanh.pop %v3491
    %v3494 = vmul.f32 %v3483, %v3492
    %v3495 = vmul.f32 %v3485, %v3493
    %v3496 = vunpack.c.l.bf16 %v3333
    %v3497 = vunpack.c.h.bf16 %v3333
    %v3498 = vunpack.c.l.bf16 %v3334
    %v3499 = vunpack.c.h.bf16 %v3334
    %v3500 = vunpack.c.l.bf16 %v3335
    %v3501 = vunpack.c.h.bf16 %v3335
    %v3502 = vunpack.c.l.bf16 %v3336
    %v3503 = vunpack.c.h.bf16 %v3336
    %v3504 = vadd.f32 %v3496, %v1860
    %v3505 = vadd.f32 %v3497, %v1864
    %v3506 = vadd.f32 %v3498, %v1868
    %v3507 = vadd.f32 %v3499, %v1872
    %v3508 = vadd.f32 %v3500, %v1860
    %v3509 = vadd.f32 %v3501, %v1864
    %v3510 = vadd.f32 %v3502, %v1868
    %v3511 = vadd.f32 %v3503, %v1872
    %v3512 = vpack.c.bf16 %v3320, %v3319
    %3513 = vmatprep.subr.bf16.mxu0 %v2010
    %3514 = vmatpush1.bf16.msra.mxu0 %v2009
    %3515 = vmatprep.subr.bf16.mxu0 %v2006
    %3516 = vmatpush1.bf16.msra.mxu0 %v2005
    %3517 = vmatprep.subr.bf16.mxu0 %v2002
    %3518 = vmatpush1.bf16.msra.mxu0 %v2001
    %3519 = vmatprep.subr.bf16.mxu0 %v1998
    %3520 = vmatpush1.bf16.msra.mxu0 %v1997
    %3521 = vmatprep.subr.bf16.mxu0 %v1994
    %3522 = vmatpush1.bf16.msra.mxu0 %v1993
    %3523 = vmatprep.subr.bf16.mxu0 %v1990
    %3524 = vmatpush1.bf16.msra.mxu0 %v1989
    %3525 = vmatprep.subr.bf16.mxu0 %v1986
    %3526 = vmatpush1.bf16.msra.mxu0 %v1985
    %3527 = vmatprep.subr.bf16.mxu0 %v1982
    %3528 = vmatpush1.bf16.msra.mxu0 %v1981
    %3529 = vmatprep.subr.bf16.mxu0 0
    %3530 = vmatpush2.bf16.msra.mxu0 0
    %3531 = vmatprep.subr.bf16.mxu0 0
    %3532 = vmatpush2.bf16.msra.mxu0 0
    %3533 = vmatprep.subr.bf16.mxu0 0
    %3534 = vmatpush2.bf16.msra.mxu0 0
    %3535 = vmatprep.subr.bf16.mxu0 0
    %3536 = vmatpush2.bf16.msra.mxu0 0
    %3537 = vmatprep.subr.bf16.mxu0 0
    %3538 = vmatpush2.bf16.msra.mxu0 0
    %3539 = vmatprep.subr.bf16.mxu0 0
    %3540 = vmatpush2.bf16.msra.mxu0 0
    %3541 = vmatprep.subr.bf16.mxu0 0
    %3542 = vmatpush2.bf16.msra.mxu0 0
    %3543 = vmatprep.subr.bf16.mxu0 0
    %3544 = vmatpush2.bf16.msra.mxu0 0
    %3545 = vmatprep.mubr.bf16.mxu0 0
    %3546 = vmatmul.mubr.bf16.gmra.mxu0 %v3512
    %v3547 = vpop.f32.mrf.mxu0
    %v3548 = vadd.f32 0.0, %v3547
    %v3549 = vpop.f32.mrf.mxu0
    %v3550 = vadd.f32 0.0, %v3549
    %v3551 = vpop.f32.mrf.mxu0
    %v3552 = vadd.f32 0.0, %v3551
    %v3553 = vpop.f32.mrf.mxu0
    %v3554 = vadd.f32 0.0, %v3553
    %3555 = vdwg.mxu0
    %3556 = vmatprep.subr.bf16.mxu0 %v2012
    %3557 = vmatpush1.bf16.msra.mxu0 %v2011
    %3558 = vmatprep.subr.bf16.mxu0 %v2008
    %3559 = vmatpush1.bf16.msra.mxu0 %v2007
    %3560 = vmatprep.subr.bf16.mxu0 %v2004
    %3561 = vmatpush1.bf16.msra.mxu0 %v2003
    %3562 = vmatprep.subr.bf16.mxu0 %v2000
    %3563 = vmatpush1.bf16.msra.mxu0 %v1999
    %3564 = vmatprep.subr.bf16.mxu0 %v1996
    %3565 = vmatpush1.bf16.msra.mxu0 %v1995
    %3566 = vmatprep.subr.bf16.mxu0 %v1992
    %3567 = vmatpush1.bf16.msra.mxu0 %v1991
    %3568 = vmatprep.subr.bf16.mxu0 %v1988
    %3569 = vmatpush1.bf16.msra.mxu0 %v1987
    %3570 = vmatprep.subr.bf16.mxu0 %v1984
    %3571 = vmatpush1.bf16.msra.mxu0 %v1983
    %3572 = vmatprep.subr.bf16.mxu0 0
    %3573 = vmatpush2.bf16.msra.mxu0 0
    %3574 = vmatprep.subr.bf16.mxu0 0
    %3575 = vmatpush2.bf16.msra.mxu0 0
    %3576 = vmatprep.subr.bf16.mxu0 0
    %3577 = vmatpush2.bf16.msra.mxu0 0
    %3578 = vmatprep.subr.bf16.mxu0 0
    %3579 = vmatpush2.bf16.msra.mxu0 0
    %3580 = vmatprep.subr.bf16.mxu0 0
    %3581 = vmatpush2.bf16.msra.mxu0 0
    %3582 = vmatprep.subr.bf16.mxu0 0
    %3583 = vmatpush2.bf16.msra.mxu0 0
    %3584 = vmatprep.subr.bf16.mxu0 0
    %3585 = vmatpush2.bf16.msra.mxu0 0
    %3586 = vmatprep.subr.bf16.mxu0 0
    %3587 = vmatpush2.bf16.msra.mxu0 0
    %3588 = vmatprep.mubr.bf16.mxu0 0
    %3589 = vmatmul.mubr.bf16.gmra.mxu0 %v3512
    %v3590 = vpop.f32.mrf.mxu0
    %v3591 = vadd.f32 0.0, %v3590
    %v3592 = vpop.f32.mrf.mxu0
    %v3593 = vadd.f32 0.0, %v3592
    %v3594 = vpop.f32.mrf.mxu0
    %v3595 = vadd.f32 0.0, %v3594
    %v3596 = vpop.f32.mrf.mxu0
    %v3597 = vadd.f32 0.0, %v3596
    %3598 = vdwg.mxu0
    %v3599 = vadd.f32 %v3504, %v3548
    %v3600 = vadd.f32 %v3505, %v3550
    %v3601 = vadd.f32 %v3506, %v3591
    %v3602 = vadd.f32 %v3507, %v3593
    %v3603 = vadd.f32 %v3508, %v3552
    %v3604 = vadd.f32 %v3509, %v3554
    %v3605 = vadd.f32 %v3510, %v3595
    %v3606 = vadd.f32 %v3511, %v3597
    %v3607 = vxor.u32 %v3599, 2147483648
    %v3608 = vxor.u32 %v3603, 2147483648
    %v3609 = vmul.f32 %v3607, 1.442695
    %v3610 = vpow.pop %v3609
    %v3611 = vmul.f32 %v3608, 1.442695
    %v3612 = vpow.pop %v3611
    %v3613 = vadd.f32 %v3610, 1.0
    %v3614 = vadd.f32 %v3612, 1.0
    %v3615 = vrcp.pop %v3613
    %v3616 = vmul.f32 1.0, %v3615
    %v3617 = vrcp.pop %v3614
    %v3618 = vmul.f32 1.0, %v3617
    %v3619 = vxor.u32 %v3600, 2147483648
    %v3620 = vxor.u32 %v3604, 2147483648
    %v3621 = vmul.f32 %v3619, 1.442695
    %v3622 = vpow.pop %v3621
    %v3623 = vmul.f32 %v3620, 1.442695
    %v3624 = vpow.pop %v3623
    %v3625 = vadd.f32 %v3622, 1.0
    %v3626 = vadd.f32 %v3624, 1.0
    %v3627 = vrcp.pop %v3625
    %v3628 = vmul.f32 1.0, %v3627
    %v3629 = vrcp.pop %v3626
    %v3630 = vmul.f32 1.0, %v3629
    %v3631 = vtanh.pop %v3601
    %v3632 = vtanh.pop %v3605
    %v3633 = vxor.u32 %v3602, 2147483648
    %v3634 = vxor.u32 %v3606, 2147483648
    %v3635 = vmul.f32 %v3633, 1.442695
    %v3636 = vpow.pop %v3635
    %v3637 = vmul.f32 %v3634, 1.442695
    %v3638 = vpow.pop %v3637
    %v3639 = vadd.f32 %v3636, 1.0
    %v3640 = vadd.f32 %v3638, 1.0
    %v3641 = vrcp.pop %v3639
    %v3642 = vmul.f32 1.0, %v3641
    %v3643 = vrcp.pop %v3640
    %v3644 = vmul.f32 1.0, %v3643
    %v3645 = vmul.f32 %v3628, %v3321
    %v3646 = vmul.f32 %v3630, %v3322
    %v3647 = vmul.f32 %v3616, %v3631
    %v3648 = vmul.f32 %v3618, %v3632
    %v3649 = vadd.f32 %v3645, %v3647
    %v3650 = vadd.f32 %v3646, %v3648
    %v3651 = vtanh.pop %v3649
    %v3652 = vtanh.pop %v3650
    %v3653 = vmul.f32 %v3642, %v3651
    %v3654 = vmul.f32 %v3644, %v3652
    %v3655 = vsel %vm3317, %v3494, %v3301
    %v3656 = vsel %vm3318, %v3495, %v3302
    %v3657 = vsel %vm3317, %v3490, %v3303
    %v3658 = vsel %vm3318, %v3491, %v3304
    %v3659 = vmax.f32 %v3307, %v3494
    %v3660 = vmax.f32 %v3308, %v3495
    %v3661 = vsel %vm3317, %v3659, %v3307
    %v3662 = vsel %vm3318, %v3660, %v3308
    %v3663 = vsel %vm3299, %v3653, %v3319
    %v3664 = vsel %vm3300, %v3654, %v3320
    %v3665 = vsel %vm3299, %v3649, %v3321
    %v3666 = vsel %vm3300, %v3650, %v3322
    %v3667 = vmax.f32 %v3325, %v3653
    %v3668 = vmax.f32 %v3326, %v3654
    %v3669 = vsel %vm3299, %v3667, %v3325
    %v3670 = vsel %vm3300, %v3668, %v3326
    %s3671 = scalar_lea.vmem [#allocation2], 160
    %v3672 = vld [vmem:[%s3671] sm:$0xff]
    %v3673 = vld [vmem:[%s3671 + $0x8] sm:$0xff]
    %v3674 = vld [vmem:[%s3671 + $0x10] sm:$0xff]
    %v3675 = vld [vmem:[%s3671 + $0x18] sm:$0xff]
    %s3676 = scalar_lea.vmem [#allocation3], 64
    %v3677 = vld [vmem:[%s3676] sm:$0xff]
    %v3678 = vld [vmem:[%s3676 + $0x8] sm:$0xff]
    %v3679 = vld [vmem:[%s3676 + $0x10] sm:$0xff]
    %v3680 = vld [vmem:[%s3676 + $0x18] sm:$0xff]
    %v3681 = vunpack.c.l.bf16 %v3672
    %v3682 = vunpack.c.h.bf16 %v3672
    %v3683 = vunpack.c.l.bf16 %v3673
    %v3684 = vunpack.c.h.bf16 %v3673
    %v3685 = vunpack.c.l.bf16 %v3674
    %v3686 = vunpack.c.h.bf16 %v3674
    %v3687 = vunpack.c.l.bf16 %v3675
    %v3688 = vunpack.c.h.bf16 %v3675
    %v3689 = vadd.f32 %v3681, %v1521
    %v3690 = vadd.f32 %v3682, %v1525
    %v3691 = vadd.f32 %v3683, %v1529
    %v3692 = vadd.f32 %v3684, %v1533
    %v3693 = vadd.f32 %v3685, %v1521
    %v3694 = vadd.f32 %v3686, %v1525
    %v3695 = vadd.f32 %v3687, %v1529
    %v3696 = vadd.f32 %v3688, %v1533
    %v3697 = vpack.c.bf16 %v3656, %v3655
    %3698 = vmatprep.subr.bf16.mxu0 %v1671
    %3699 = vmatpush1.bf16.msra.mxu0 %v1670
    %3700 = vmatprep.subr.bf16.mxu0 %v1667
    %3701 = vmatpush1.bf16.msra.mxu0 %v1666
    %3702 = vmatprep.subr.bf16.mxu0 %v1663
    %3703 = vmatpush1.bf16.msra.mxu0 %v1662
    %3704 = vmatprep.subr.bf16.mxu0 %v1659
    %3705 = vmatpush1.bf16.msra.mxu0 %v1658
    %3706 = vmatprep.subr.bf16.mxu0 %v1655
    %3707 = vmatpush1.bf16.msra.mxu0 %v1654
    %3708 = vmatprep.subr.bf16.mxu0 %v1651
    %3709 = vmatpush1.bf16.msra.mxu0 %v1650
    %3710 = vmatprep.subr.bf16.mxu0 %v1647
    %3711 = vmatpush1.bf16.msra.mxu0 %v1646
    %3712 = vmatprep.subr.bf16.mxu0 %v1643
    %3713 = vmatpush1.bf16.msra.mxu0 %v1642
    %3714 = vmatprep.subr.bf16.mxu0 0
    %3715 = vmatpush2.bf16.msra.mxu0 0
    %3716 = vmatprep.subr.bf16.mxu0 0
    %3717 = vmatpush2.bf16.msra.mxu0 0
    %3718 = vmatprep.subr.bf16.mxu0 0
    %3719 = vmatpush2.bf16.msra.mxu0 0
    %3720 = vmatprep.subr.bf16.mxu0 0
    %3721 = vmatpush2.bf16.msra.mxu0 0
    %3722 = vmatprep.subr.bf16.mxu0 0
    %3723 = vmatpush2.bf16.msra.mxu0 0
    %3724 = vmatprep.subr.bf16.mxu0 0
    %3725 = vmatpush2.bf16.msra.mxu0 0
    %3726 = vmatprep.subr.bf16.mxu0 0
    %3727 = vmatpush2.bf16.msra.mxu0 0
    %3728 = vmatprep.subr.bf16.mxu0 0
    %3729 = vmatpush2.bf16.msra.mxu0 0
    %3730 = vmatprep.mubr.bf16.mxu0 0
    %3731 = vmatmul.mubr.bf16.gmra.mxu0 %v3697
    %v3732 = vpop.f32.mrf.mxu0
    %v3733 = vadd.f32 0.0, %v3732
    %v3734 = vpop.f32.mrf.mxu0
    %v3735 = vadd.f32 0.0, %v3734
    %v3736 = vpop.f32.mrf.mxu0
    %v3737 = vadd.f32 0.0, %v3736
    %v3738 = vpop.f32.mrf.mxu0
    %v3739 = vadd.f32 0.0, %v3738
    %3740 = vdwg.mxu0
    %3741 = vmatprep.subr.bf16.mxu0 %v1673
    %3742 = vmatpush1.bf16.msra.mxu0 %v1672
    %3743 = vmatprep.subr.bf16.mxu0 %v1669
    %3744 = vmatpush1.bf16.msra.mxu0 %v1668
    %3745 = vmatprep.subr.bf16.mxu0 %v1665
    %3746 = vmatpush1.bf16.msra.mxu0 %v1664
    %3747 = vmatprep.subr.bf16.mxu0 %v1661
    %3748 = vmatpush1.bf16.msra.mxu0 %v1660
    %3749 = vmatprep.subr.bf16.mxu0 %v1657
    %3750 = vmatpush1.bf16.msra.mxu0 %v1656
    %3751 = vmatprep.subr.bf16.mxu0 %v1653
    %3752 = vmatpush1.bf16.msra.mxu0 %v1652
    %3753 = vmatprep.subr.bf16.mxu0 %v1649
    %3754 = vmatpush1.bf16.msra.mxu0 %v1648
    %3755 = vmatprep.subr.bf16.mxu0 %v1645
    %3756 = vmatpush1.bf16.msra.mxu0 %v1644
    %3757 = vmatprep.subr.bf16.mxu0 0
    %3758 = vmatpush2.bf16.msra.mxu0 0
    %3759 = vmatprep.subr.bf16.mxu0 0
    %3760 = vmatpush2.bf16.msra.mxu0 0
    %3761 = vmatprep.subr.bf16.mxu0 0
    %3762 = vmatpush2.bf16.msra.mxu0 0
    %3763 = vmatprep.subr.bf16.mxu0 0
    %3764 = vmatpush2.bf16.msra.mxu0 0
    %3765 = vmatprep.subr.bf16.mxu0 0
    %3766 = vmatpush2.bf16.msra.mxu0 0
    %3767 = vmatprep.subr.bf16.mxu0 0
    %3768 = vmatpush2.bf16.msra.mxu0 0
    %3769 = vmatprep.subr.bf16.mxu0 0
    %3770 = vmatpush2.bf16.msra.mxu0 0
    %3771 = vmatprep.subr.bf16.mxu0 0
    %3772 = vmatpush2.bf16.msra.mxu0 0
    %3773 = vmatprep.mubr.bf16.mxu0 0
    %3774 = vmatmul.mubr.bf16.gmra.mxu0 %v3697
    %v3775 = vpop.f32.mrf.mxu0
    %v3776 = vadd.f32 0.0, %v3775
    %v3777 = vpop.f32.mrf.mxu0
    %v3778 = vadd.f32 0.0, %v3777
    %v3779 = vpop.f32.mrf.mxu0
    %v3780 = vadd.f32 0.0, %v3779
    %v3781 = vpop.f32.mrf.mxu0
    %v3782 = vadd.f32 0.0, %v3781
    %3783 = vdwg.mxu0
    %v3784 = vadd.f32 %v3689, %v3733
    %v3785 = vadd.f32 %v3690, %v3735
    %v3786 = vadd.f32 %v3691, %v3776
    %v3787 = vadd.f32 %v3692, %v3778
    %v3788 = vadd.f32 %v3693, %v3737
    %v3789 = vadd.f32 %v3694, %v3739
    %v3790 = vadd.f32 %v3695, %v3780
    %v3791 = vadd.f32 %v3696, %v3782
    %v3792 = vxor.u32 %v3784, 2147483648
    %v3793 = vxor.u32 %v3788, 2147483648
    %v3794 = vmul.f32 %v3792, 1.442695
    %v3795 = vpow.pop %v3794
    %v3796 = vmul.f32 %v3793, 1.442695
    %v3797 = vpow.pop %v3796
    %v3798 = vadd.f32 %v3795, 1.0
    %v3799 = vadd.f32 %v3797, 1.0
    %v3800 = vrcp.pop %v3798
    %v3801 = vmul.f32 1.0, %v3800
    %v3802 = vrcp.pop %v3799
    %v3803 = vmul.f32 1.0, %v3802
    %v3804 = vxor.u32 %v3785, 2147483648
    %v3805 = vxor.u32 %v3789, 2147483648
    %v3806 = vmul.f32 %v3804, 1.442695
    %v3807 = vpow.pop %v3806
    %v3808 = vmul.f32 %v3805, 1.442695
    %v3809 = vpow.pop %v3808
    %v3810 = vadd.f32 %v3807, 1.0
    %v3811 = vadd.f32 %v3809, 1.0
    %v3812 = vrcp.pop %v3810
    %v3813 = vmul.f32 1.0, %v3812
    %v3814 = vrcp.pop %v3811
    %v3815 = vmul.f32 1.0, %v3814
    %v3816 = vtanh.pop %v3786
    %v3817 = vtanh.pop %v3790
    %v3818 = vxor.u32 %v3787, 2147483648
    %v3819 = vxor.u32 %v3791, 2147483648
    %v3820 = vmul.f32 %v3818, 1.442695
    %v3821 = vpow.pop %v3820
    %v3822 = vmul.f32 %v3819, 1.442695
    %v3823 = vpow.pop %v3822
    %v3824 = vadd.f32 %v3821, 1.0
    %v3825 = vadd.f32 %v3823, 1.0
    %v3826 = vrcp.pop %v3824
    %v3827 = vmul.f32 1.0, %v3826
    %v3828 = vrcp.pop %v3825
    %v3829 = vmul.f32 1.0, %v3828
    %v3830 = vmul.f32 %v3813, %v3657
    %v3831 = vmul.f32 %v3815, %v3658
    %v3832 = vmul.f32 %v3801, %v3816
    %v3833 = vmul.f32 %v3803, %v3817
    %v3834 = vadd.f32 %v3830, %v3832
    %v3835 = vadd.f32 %v3831, %v3833
    %v3836 = vtanh.pop %v3834
    %v3837 = vtanh.pop %v3835
    %v3838 = vmul.f32 %v3827, %v3836
    %v3839 = vmul.f32 %v3829, %v3837
    %v3840 = vunpack.c.l.bf16 %v3677
    %v3841 = vunpack.c.h.bf16 %v3677
    %v3842 = vunpack.c.l.bf16 %v3678
    %v3843 = vunpack.c.h.bf16 %v3678
    %v3844 = vunpack.c.l.bf16 %v3679
    %v3845 = vunpack.c.h.bf16 %v3679
    %v3846 = vunpack.c.l.bf16 %v3680
    %v3847 = vunpack.c.h.bf16 %v3680
    %v3848 = vadd.f32 %v3840, %v1860
    %v3849 = vadd.f32 %v3841, %v1864
    %v3850 = vadd.f32 %v3842, %v1868
    %v3851 = vadd.f32 %v3843, %v1872
    %v3852 = vadd.f32 %v3844, %v1860
    %v3853 = vadd.f32 %v3845, %v1864
    %v3854 = vadd.f32 %v3846, %v1868
    %v3855 = vadd.f32 %v3847, %v1872
    %v3856 = vpack.c.bf16 %v3664, %v3663
    %3857 = vmatprep.subr.bf16.mxu0 %v2010
    %3858 = vmatpush1.bf16.msra.mxu0 %v2009
    %3859 = vmatprep.subr.bf16.mxu0 %v2006
    %3860 = vmatpush1.bf16.msra.mxu0 %v2005
    %3861 = vmatprep.subr.bf16.mxu0 %v2002
    %3862 = vmatpush1.bf16.msra.mxu0 %v2001
    %3863 = vmatprep.subr.bf16.mxu0 %v1998
    %3864 = vmatpush1.bf16.msra.mxu0 %v1997
    %3865 = vmatprep.subr.bf16.mxu0 %v1994
    %3866 = vmatpush1.bf16.msra.mxu0 %v1993
    %3867 = vmatprep.subr.bf16.mxu0 %v1990
    %3868 = vmatpush1.bf16.msra.mxu0 %v1989
    %3869 = vmatprep.subr.bf16.mxu0 %v1986
    %3870 = vmatpush1.bf16.msra.mxu0 %v1985
    %3871 = vmatprep.subr.bf16.mxu0 %v1982
    %3872 = vmatpush1.bf16.msra.mxu0 %v1981
    %3873 = vmatprep.subr.bf16.mxu0 0
    %3874 = vmatpush2.bf16.msra.mxu0 0
    %3875 = vmatprep.subr.bf16.mxu0 0
    %3876 = vmatpush2.bf16.msra.mxu0 0
    %3877 = vmatprep.subr.bf16.mxu0 0
    %3878 = vmatpush2.bf16.msra.mxu0 0
    %3879 = vmatprep.subr.bf16.mxu0 0
    %3880 = vmatpush2.bf16.msra.mxu0 0
    %3881 = vmatprep.subr.bf16.mxu0 0
    %3882 = vmatpush2.bf16.msra.mxu0 0
    %3883 = vmatprep.subr.bf16.mxu0 0
    %3884 = vmatpush2.bf16.msra.mxu0 0
    %3885 = vmatprep.subr.bf16.mxu0 0
    %3886 = vmatpush2.bf16.msra.mxu0 0
    %3887 = vmatprep.subr.bf16.mxu0 0
    %3888 = vmatpush2.bf16.msra.mxu0 0
    %3889 = vmatprep.mubr.bf16.mxu0 0
    %3890 = vmatmul.mubr.bf16.gmra.mxu0 %v3856
    %v3891 = vpop.f32.mrf.mxu0
    %v3892 = vadd.f32 0.0, %v3891
    %v3893 = vpop.f32.mrf.mxu0
    %v3894 = vadd.f32 0.0, %v3893
    %v3895 = vpop.f32.mrf.mxu0
    %v3896 = vadd.f32 0.0, %v3895
    %v3897 = vpop.f32.mrf.mxu0
    %v3898 = vadd.f32 0.0, %v3897
    %3899 = vdwg.mxu0
    %3900 = vmatprep.subr.bf16.mxu0 %v2012
    %3901 = vmatpush1.bf16.msra.mxu0 %v2011
    %3902 = vmatprep.subr.bf16.mxu0 %v2008
    %3903 = vmatpush1.bf16.msra.mxu0 %v2007
    %3904 = vmatprep.subr.bf16.mxu0 %v2004
    %3905 = vmatpush1.bf16.msra.mxu0 %v2003
    %3906 = vmatprep.subr.bf16.mxu0 %v2000
    %3907 = vmatpush1.bf16.msra.mxu0 %v1999
    %3908 = vmatprep.subr.bf16.mxu0 %v1996
    %3909 = vmatpush1.bf16.msra.mxu0 %v1995
    %3910 = vmatprep.subr.bf16.mxu0 %v1992
    %3911 = vmatpush1.bf16.msra.mxu0 %v1991
    %3912 = vmatprep.subr.bf16.mxu0 %v1988
    %3913 = vmatpush1.bf16.msra.mxu0 %v1987
    %3914 = vmatprep.subr.bf16.mxu0 %v1984
    %3915 = vmatpush1.bf16.msra.mxu0 %v1983
    %3916 = vmatprep.subr.bf16.mxu0 0
    %3917 = vmatpush2.bf16.msra.mxu0 0
    %3918 = vmatprep.subr.bf16.mxu0 0
    %3919 = vmatpush2.bf16.msra.mxu0 0
    %3920 = vmatprep.subr.bf16.mxu0 0
    %3921 = vmatpush2.bf16.msra.mxu0 0
    %3922 = vmatprep.subr.bf16.mxu0 0
    %3923 = vmatpush2.bf16.msra.mxu0 0
    %3924 = vmatprep.subr.bf16.mxu0 0
    %3925 = vmatpush2.bf16.msra.mxu0 0
    %3926 = vmatprep.subr.bf16.mxu0 0
    %3927 = vmatpush2.bf16.msra.mxu0 0
    %3928 = vmatprep.subr.bf16.mxu0 0
    %3929 = vmatpush2.bf16.msra.mxu0 0
    %3930 = vmatprep.subr.bf16.mxu0 0
    %3931 = vmatpush2.bf16.msra.mxu0 0
    %3932 = vmatprep.mubr.bf16.mxu0 0
    %3933 = vmatmul.mubr.bf16.gmra.mxu0 %v3856
    %v3934 = vpop.f32.mrf.mxu0
    %v3935 = vadd.f32 0.0, %v3934
    %v3936 = vpop.f32.mrf.mxu0
    %v3937 = vadd.f32 0.0, %v3936
    %v3938 = vpop.f32.mrf.mxu0
    %v3939 = vadd.f32 0.0, %v3938
    %v3940 = vpop.f32.mrf.mxu0
    %v3941 = vadd.f32 0.0, %v3940
    %3942 = vdwg.mxu0
    %v3943 = vadd.f32 %v3848, %v3892
    %v3944 = vadd.f32 %v3849, %v3894
    %v3945 = vadd.f32 %v3850, %v3935
    %v3946 = vadd.f32 %v3851, %v3937
    %v3947 = vadd.f32 %v3852, %v3896
    %v3948 = vadd.f32 %v3853, %v3898
    %v3949 = vadd.f32 %v3854, %v3939
    %v3950 = vadd.f32 %v3855, %v3941
    %v3951 = vxor.u32 %v3943, 2147483648
    %v3952 = vxor.u32 %v3947, 2147483648
    %v3953 = vmul.f32 %v3951, 1.442695
    %v3954 = vpow.pop %v3953
    %v3955 = vmul.f32 %v3952, 1.442695
    %v3956 = vpow.pop %v3955
    %v3957 = vadd.f32 %v3954, 1.0
    %v3958 = vadd.f32 %v3956, 1.0
    %v3959 = vrcp.pop %v3957
    %v3960 = vmul.f32 1.0, %v3959
    %v3961 = vrcp.pop %v3958
    %v3962 = vmul.f32 1.0, %v3961
    %v3963 = vxor.u32 %v3944, 2147483648
    %v3964 = vxor.u32 %v3948, 2147483648
    %v3965 = vmul.f32 %v3963, 1.442695
    %v3966 = vpow.pop %v3965
    %v3967 = vmul.f32 %v3964, 1.442695
    %v3968 = vpow.pop %v3967
    %v3969 = vadd.f32 %v3966, 1.0
    %v3970 = vadd.f32 %v3968, 1.0
    %v3971 = vrcp.pop %v3969
    %v3972 = vmul.f32 1.0, %v3971
    %v3973 = vrcp.pop %v3970
    %v3974 = vmul.f32 1.0, %v3973
    %v3975 = vtanh.pop %v3945
    %v3976 = vtanh.pop %v3949
    %v3977 = vxor.u32 %v3946, 2147483648
    %v3978 = vxor.u32 %v3950, 2147483648
    %v3979 = vmul.f32 %v3977, 1.442695
    %v3980 = vpow.pop %v3979
    %v3981 = vmul.f32 %v3978, 1.442695
    %v3982 = vpow.pop %v3981
    %v3983 = vadd.f32 %v3980, 1.0
    %v3984 = vadd.f32 %v3982, 1.0
    %v3985 = vrcp.pop %v3983
    %v3986 = vmul.f32 1.0, %v3985
    %v3987 = vrcp.pop %v3984
    %v3988 = vmul.f32 1.0, %v3987
    %v3989 = vmul.f32 %v3972, %v3665
    %v3990 = vmul.f32 %v3974, %v3666
    %v3991 = vmul.f32 %v3960, %v3975
    %v3992 = vmul.f32 %v3962, %v3976
    %v3993 = vadd.f32 %v3989, %v3991
    %v3994 = vadd.f32 %v3990, %v3992
    %v3995 = vtanh.pop %v3993
    %v3996 = vtanh.pop %v3994
    %v3997 = vmul.f32 %v3986, %v3995
    %v3998 = vmul.f32 %v3988, %v3996
    %v3999 = vsel %vm2949, %v3838, %v3655
    %v4000 = vsel %vm2950, %v3839, %v3656
    %v4001 = vsel %vm2949, %v3834, %v3657
    %v4002 = vsel %vm2950, %v3835, %v3658
    %v4003 = vmax.f32 %v3661, %v3838
    %v4004 = vmax.f32 %v3662, %v3839
    %v4005 = vsel %vm2949, %v4003, %v3661
    %v4006 = vsel %vm2950, %v4004, %v3662
    %v4007 = vsel %vm2931, %v3997, %v3663
    %v4008 = vsel %vm2932, %v3998, %v3664
    %v4009 = vsel %vm2931, %v3993, %v3665
    %v4010 = vsel %vm2932, %v3994, %v3666
    %v4011 = vmax.f32 %v3669, %v3997
    %v4012 = vmax.f32 %v3670, %v3998
    %v4013 = vsel %vm2931, %v4011, %v3669
    %v4014 = vsel %vm2932, %v4012, %v3670
    %s4015 = scalar_lea.vmem [#allocation2], 192
    %v4016 = vld [vmem:[%s4015] sm:$0xff]
    %v4017 = vld [vmem:[%s4015 + $0x8] sm:$0xff]
    %v4018 = vld [vmem:[%s4015 + $0x10] sm:$0xff]
    %v4019 = vld [vmem:[%s4015 + $0x18] sm:$0xff]
    %s4020 = scalar_lea.vmem [#allocation3], 32
    %v4021 = vld [vmem:[%s4020] sm:$0xff]
    %v4022 = vld [vmem:[%s4020 + $0x8] sm:$0xff]
    %v4023 = vld [vmem:[%s4020 + $0x10] sm:$0xff]
    %v4024 = vld [vmem:[%s4020 + $0x18] sm:$0xff]
    %v4025 = vunpack.c.l.bf16 %v4016
    %v4026 = vunpack.c.h.bf16 %v4016
    %v4027 = vunpack.c.l.bf16 %v4017
    %v4028 = vunpack.c.h.bf16 %v4017
    %v4029 = vunpack.c.l.bf16 %v4018
    %v4030 = vunpack.c.h.bf16 %v4018
    %v4031 = vunpack.c.l.bf16 %v4019
    %v4032 = vunpack.c.h.bf16 %v4019
    %v4033 = vadd.f32 %v4025, %v1521
    %v4034 = vadd.f32 %v4026, %v1525
    %v4035 = vadd.f32 %v4027, %v1529
    %v4036 = vadd.f32 %v4028, %v1533
    %v4037 = vadd.f32 %v4029, %v1521
    %v4038 = vadd.f32 %v4030, %v1525
    %v4039 = vadd.f32 %v4031, %v1529
    %v4040 = vadd.f32 %v4032, %v1533
    %v4041 = vpack.c.bf16 %v4000, %v3999
    %4042 = vmatprep.subr.bf16.mxu0 %v1671
    %4043 = vmatpush1.bf16.msra.mxu0 %v1670
    %4044 = vmatprep.subr.bf16.mxu0 %v1667
    %4045 = vmatpush1.bf16.msra.mxu0 %v1666
    %4046 = vmatprep.subr.bf16.mxu0 %v1663
    %4047 = vmatpush1.bf16.msra.mxu0 %v1662
    %4048 = vmatprep.subr.bf16.mxu0 %v1659
    %4049 = vmatpush1.bf16.msra.mxu0 %v1658
    %4050 = vmatprep.subr.bf16.mxu0 %v1655
    %4051 = vmatpush1.bf16.msra.mxu0 %v1654
    %4052 = vmatprep.subr.bf16.mxu0 %v1651
    %4053 = vmatpush1.bf16.msra.mxu0 %v1650
    %4054 = vmatprep.subr.bf16.mxu0 %v1647
    %4055 = vmatpush1.bf16.msra.mxu0 %v1646
    %4056 = vmatprep.subr.bf16.mxu0 %v1643
    %4057 = vmatpush1.bf16.msra.mxu0 %v1642
    %4058 = vmatprep.subr.bf16.mxu0 0
    %4059 = vmatpush2.bf16.msra.mxu0 0
    %4060 = vmatprep.subr.bf16.mxu0 0
    %4061 = vmatpush2.bf16.msra.mxu0 0
    %4062 = vmatprep.subr.bf16.mxu0 0
    %4063 = vmatpush2.bf16.msra.mxu0 0
    %4064 = vmatprep.subr.bf16.mxu0 0
    %4065 = vmatpush2.bf16.msra.mxu0 0
    %4066 = vmatprep.subr.bf16.mxu0 0
    %4067 = vmatpush2.bf16.msra.mxu0 0
    %4068 = vmatprep.subr.bf16.mxu0 0
    %4069 = vmatpush2.bf16.msra.mxu0 0
    %4070 = vmatprep.subr.bf16.mxu0 0
    %4071 = vmatpush2.bf16.msra.mxu0 0
    %4072 = vmatprep.subr.bf16.mxu0 0
    %4073 = vmatpush2.bf16.msra.mxu0 0
    %4074 = vmatprep.mubr.bf16.mxu0 0
    %4075 = vmatmul.mubr.bf16.gmra.mxu0 %v4041
    %v4076 = vpop.f32.mrf.mxu0
    %v4077 = vadd.f32 0.0, %v4076
    %v4078 = vpop.f32.mrf.mxu0
    %v4079 = vadd.f32 0.0, %v4078
    %v4080 = vpop.f32.mrf.mxu0
    %v4081 = vadd.f32 0.0, %v4080
    %v4082 = vpop.f32.mrf.mxu0
    %v4083 = vadd.f32 0.0, %v4082
    %4084 = vdwg.mxu0
    %4085 = vmatprep.subr.bf16.mxu0 %v1673
    %4086 = vmatpush1.bf16.msra.mxu0 %v1672
    %4087 = vmatprep.subr.bf16.mxu0 %v1669
    %4088 = vmatpush1.bf16.msra.mxu0 %v1668
    %4089 = vmatprep.subr.bf16.mxu0 %v1665
    %4090 = vmatpush1.bf16.msra.mxu0 %v1664
    %4091 = vmatprep.subr.bf16.mxu0 %v1661
    %4092 = vmatpush1.bf16.msra.mxu0 %v1660
    %4093 = vmatprep.subr.bf16.mxu0 %v1657
    %4094 = vmatpush1.bf16.msra.mxu0 %v1656
    %4095 = vmatprep.subr.bf16.mxu0 %v1653
    %4096 = vmatpush1.bf16.msra.mxu0 %v1652
    %4097 = vmatprep.subr.bf16.mxu0 %v1649
    %4098 = vmatpush1.bf16.msra.mxu0 %v1648
    %4099 = vmatprep.subr.bf16.mxu0 %v1645
    %4100 = vmatpush1.bf16.msra.mxu0 %v1644
    %4101 = vmatprep.subr.bf16.mxu0 0
    %4102 = vmatpush2.bf16.msra.mxu0 0
    %4103 = vmatprep.subr.bf16.mxu0 0
    %4104 = vmatpush2.bf16.msra.mxu0 0
    %4105 = vmatprep.subr.bf16.mxu0 0
    %4106 = vmatpush2.bf16.msra.mxu0 0
    %4107 = vmatprep.subr.bf16.mxu0 0
    %4108 = vmatpush2.bf16.msra.mxu0 0
    %4109 = vmatprep.subr.bf16.mxu0 0
    %4110 = vmatpush2.bf16.msra.mxu0 0
    %4111 = vmatprep.subr.bf16.mxu0 0
    %4112 = vmatpush2.bf16.msra.mxu0 0
    %4113 = vmatprep.subr.bf16.mxu0 0
    %4114 = vmatpush2.bf16.msra.mxu0 0
    %4115 = vmatprep.subr.bf16.mxu0 0
    %4116 = vmatpush2.bf16.msra.mxu0 0
    %4117 = vmatprep.mubr.bf16.mxu0 0
    %4118 = vmatmul.mubr.bf16.gmra.mxu0 %v4041
    %v4119 = vpop.f32.mrf.mxu0
    %v4120 = vadd.f32 0.0, %v4119
    %v4121 = vpop.f32.mrf.mxu0
    %v4122 = vadd.f32 0.0, %v4121
    %v4123 = vpop.f32.mrf.mxu0
    %v4124 = vadd.f32 0.0, %v4123
    %v4125 = vpop.f32.mrf.mxu0
    %v4126 = vadd.f32 0.0, %v4125
    %4127 = vdwg.mxu0
    %v4128 = vadd.f32 %v4033, %v4077
    %v4129 = vadd.f32 %v4034, %v4079
    %v4130 = vadd.f32 %v4035, %v4120
    %v4131 = vadd.f32 %v4036, %v4122
    %v4132 = vadd.f32 %v4037, %v4081
    %v4133 = vadd.f32 %v4038, %v4083
    %v4134 = vadd.f32 %v4039, %v4124
    %v4135 = vadd.f32 %v4040, %v4126
    %v4136 = vxor.u32 %v4128, 2147483648
    %v4137 = vxor.u32 %v4132, 2147483648
    %v4138 = vmul.f32 %v4136, 1.442695
    %v4139 = vpow.pop %v4138
    %v4140 = vmul.f32 %v4137, 1.442695
    %v4141 = vpow.pop %v4140
    %v4142 = vadd.f32 %v4139, 1.0
    %v4143 = vadd.f32 %v4141, 1.0
    %v4144 = vrcp.pop %v4142
    %v4145 = vmul.f32 1.0, %v4144
    %v4146 = vrcp.pop %v4143
    %v4147 = vmul.f32 1.0, %v4146
    %v4148 = vxor.u32 %v4129, 2147483648
    %v4149 = vxor.u32 %v4133, 2147483648
    %v4150 = vmul.f32 %v4148, 1.442695
    %v4151 = vpow.pop %v4150
    %v4152 = vmul.f32 %v4149, 1.442695
    %v4153 = vpow.pop %v4152
    %v4154 = vadd.f32 %v4151, 1.0
    %v4155 = vadd.f32 %v4153, 1.0
    %v4156 = vrcp.pop %v4154
    %v4157 = vmul.f32 1.0, %v4156
    %v4158 = vrcp.pop %v4155
    %v4159 = vmul.f32 1.0, %v4158
    %v4160 = vtanh.pop %v4130
    %v4161 = vtanh.pop %v4134
    %v4162 = vxor.u32 %v4131, 2147483648
    %v4163 = vxor.u32 %v4135, 2147483648
    %v4164 = vmul.f32 %v4162, 1.442695
    %v4165 = vpow.pop %v4164
    %v4166 = vmul.f32 %v4163, 1.442695
    %v4167 = vpow.pop %v4166
    %v4168 = vadd.f32 %v4165, 1.0
    %v4169 = vadd.f32 %v4167, 1.0
    %v4170 = vrcp.pop %v4168
    %v4171 = vmul.f32 1.0, %v4170
    %v4172 = vrcp.pop %v4169
    %v4173 = vmul.f32 1.0, %v4172
    %v4174 = vmul.f32 %v4157, %v4001
    %v4175 = vmul.f32 %v4159, %v4002
    %v4176 = vmul.f32 %v4145, %v4160
    %v4177 = vmul.f32 %v4147, %v4161
    %v4178 = vadd.f32 %v4174, %v4176
    %v4179 = vadd.f32 %v4175, %v4177
    %v4180 = vtanh.pop %v4178
    %v4181 = vtanh.pop %v4179
    %v4182 = vmul.f32 %v4171, %v4180
    %v4183 = vmul.f32 %v4173, %v4181
    %v4184 = vunpack.c.l.bf16 %v4021
    %v4185 = vunpack.c.h.bf16 %v4021
    %v4186 = vunpack.c.l.bf16 %v4022
    %v4187 = vunpack.c.h.bf16 %v4022
    %v4188 = vunpack.c.l.bf16 %v4023
    %v4189 = vunpack.c.h.bf16 %v4023
    %v4190 = vunpack.c.l.bf16 %v4024
    %v4191 = vunpack.c.h.bf16 %v4024
    %v4192 = vadd.f32 %v4184, %v1860
    %v4193 = vadd.f32 %v4185, %v1864
    %v4194 = vadd.f32 %v4186, %v1868
    %v4195 = vadd.f32 %v4187, %v1872
    %v4196 = vadd.f32 %v4188, %v1860
    %v4197 = vadd.f32 %v4189, %v1864
    %v4198 = vadd.f32 %v4190, %v1868
    %v4199 = vadd.f32 %v4191, %v1872
    %v4200 = vpack.c.bf16 %v4008, %v4007
    %4201 = vmatprep.subr.bf16.mxu0 %v2010
    %4202 = vmatpush1.bf16.msra.mxu0 %v2009
    %4203 = vmatprep.subr.bf16.mxu0 %v2006
    %4204 = vmatpush1.bf16.msra.mxu0 %v2005
    %4205 = vmatprep.subr.bf16.mxu0 %v2002
    %4206 = vmatpush1.bf16.msra.mxu0 %v2001
    %4207 = vmatprep.subr.bf16.mxu0 %v1998
    %4208 = vmatpush1.bf16.msra.mxu0 %v1997
    %4209 = vmatprep.subr.bf16.mxu0 %v1994
    %4210 = vmatpush1.bf16.msra.mxu0 %v1993
    %4211 = vmatprep.subr.bf16.mxu0 %v1990
    %4212 = vmatpush1.bf16.msra.mxu0 %v1989
    %4213 = vmatprep.subr.bf16.mxu0 %v1986
    %4214 = vmatpush1.bf16.msra.mxu0 %v1985
    %4215 = vmatprep.subr.bf16.mxu0 %v1982
    %4216 = vmatpush1.bf16.msra.mxu0 %v1981
    %4217 = vmatprep.subr.bf16.mxu0 0
    %4218 = vmatpush2.bf16.msra.mxu0 0
    %4219 = vmatprep.subr.bf16.mxu0 0
    %4220 = vmatpush2.bf16.msra.mxu0 0
    %4221 = vmatprep.subr.bf16.mxu0 0
    %4222 = vmatpush2.bf16.msra.mxu0 0
    %4223 = vmatprep.subr.bf16.mxu0 0
    %4224 = vmatpush2.bf16.msra.mxu0 0
    %4225 = vmatprep.subr.bf16.mxu0 0
    %4226 = vmatpush2.bf16.msra.mxu0 0
    %4227 = vmatprep.subr.bf16.mxu0 0
    %4228 = vmatpush2.bf16.msra.mxu0 0
    %4229 = vmatprep.subr.bf16.mxu0 0
    %4230 = vmatpush2.bf16.msra.mxu0 0
    %4231 = vmatprep.subr.bf16.mxu0 0
    %4232 = vmatpush2.bf16.msra.mxu0 0
    %4233 = vmatprep.mubr.bf16.mxu0 0
    %4234 = vmatmul.mubr.bf16.gmra.mxu0 %v4200
    %v4235 = vpop.f32.mrf.mxu0
    %v4236 = vadd.f32 0.0, %v4235
    %v4237 = vpop.f32.mrf.mxu0
    %v4238 = vadd.f32 0.0, %v4237
    %v4239 = vpop.f32.mrf.mxu0
    %v4240 = vadd.f32 0.0, %v4239
    %v4241 = vpop.f32.mrf.mxu0
    %v4242 = vadd.f32 0.0, %v4241
    %4243 = vdwg.mxu0
    %4244 = vmatprep.subr.bf16.mxu0 %v2012
    %4245 = vmatpush1.bf16.msra.mxu0 %v2011
    %4246 = vmatprep.subr.bf16.mxu0 %v2008
    %4247 = vmatpush1.bf16.msra.mxu0 %v2007
    %4248 = vmatprep.subr.bf16.mxu0 %v2004
    %4249 = vmatpush1.bf16.msra.mxu0 %v2003
    %4250 = vmatprep.subr.bf16.mxu0 %v2000
    %4251 = vmatpush1.bf16.msra.mxu0 %v1999
    %4252 = vmatprep.subr.bf16.mxu0 %v1996
    %4253 = vmatpush1.bf16.msra.mxu0 %v1995
    %4254 = vmatprep.subr.bf16.mxu0 %v1992
    %4255 = vmatpush1.bf16.msra.mxu0 %v1991
    %4256 = vmatprep.subr.bf16.mxu0 %v1988
    %4257 = vmatpush1.bf16.msra.mxu0 %v1987
    %4258 = vmatprep.subr.bf16.mxu0 %v1984
    %4259 = vmatpush1.bf16.msra.mxu0 %v1983
    %4260 = vmatprep.subr.bf16.mxu0 0
    %4261 = vmatpush2.bf16.msra.mxu0 0
    %4262 = vmatprep.subr.bf16.mxu0 0
    %4263 = vmatpush2.bf16.msra.mxu0 0
    %4264 = vmatprep.subr.bf16.mxu0 0
    %4265 = vmatpush2.bf16.msra.mxu0 0
    %4266 = vmatprep.subr.bf16.mxu0 0
    %4267 = vmatpush2.bf16.msra.mxu0 0
    %4268 = vmatprep.subr.bf16.mxu0 0
    %4269 = vmatpush2.bf16.msra.mxu0 0
    %4270 = vmatprep.subr.bf16.mxu0 0
    %4271 = vmatpush2.bf16.msra.mxu0 0
    %4272 = vmatprep.subr.bf16.mxu0 0
    %4273 = vmatpush2.bf16.msra.mxu0 0
    %4274 = vmatprep.subr.bf16.mxu0 0
    %4275 = vmatpush2.bf16.msra.mxu0 0
    %4276 = vmatprep.mubr.bf16.mxu0 0
    %4277 = vmatmul.mubr.bf16.gmra.mxu0 %v4200
    %v4278 = vpop.f32.mrf.mxu0
    %v4279 = vadd.f32 0.0, %v4278
    %v4280 = vpop.f32.mrf.mxu0
    %v4281 = vadd.f32 0.0, %v4280
    %v4282 = vpop.f32.mrf.mxu0
    %v4283 = vadd.f32 0.0, %v4282
    %v4284 = vpop.f32.mrf.mxu0
    %v4285 = vadd.f32 0.0, %v4284
    %4286 = vdwg.mxu0
    %v4287 = vadd.f32 %v4192, %v4236
    %v4288 = vadd.f32 %v4193, %v4238
    %v4289 = vadd.f32 %v4194, %v4279
    %v4290 = vadd.f32 %v4195, %v4281
    %v4291 = vadd.f32 %v4196, %v4240
    %v4292 = vadd.f32 %v4197, %v4242
    %v4293 = vadd.f32 %v4198, %v4283
    %v4294 = vadd.f32 %v4199, %v4285
    %v4295 = vxor.u32 %v4287, 2147483648
    %v4296 = vxor.u32 %v4291, 2147483648
    %v4297 = vmul.f32 %v4295, 1.442695
    %v4298 = vpow.pop %v4297
    %v4299 = vmul.f32 %v4296, 1.442695
    %v4300 = vpow.pop %v4299
    %v4301 = vadd.f32 %v4298, 1.0
    %v4302 = vadd.f32 %v4300, 1.0
    %v4303 = vrcp.pop %v4301
    %v4304 = vmul.f32 1.0, %v4303
    %v4305 = vrcp.pop %v4302
    %v4306 = vmul.f32 1.0, %v4305
    %v4307 = vxor.u32 %v4288, 2147483648
    %v4308 = vxor.u32 %v4292, 2147483648
    %v4309 = vmul.f32 %v4307, 1.442695
    %v4310 = vpow.pop %v4309
    %v4311 = vmul.f32 %v4308, 1.442695
    %v4312 = vpow.pop %v4311
    %v4313 = vadd.f32 %v4310, 1.0
    %v4314 = vadd.f32 %v4312, 1.0
    %v4315 = vrcp.pop %v4313
    %v4316 = vmul.f32 1.0, %v4315
    %v4317 = vrcp.pop %v4314
    %v4318 = vmul.f32 1.0, %v4317
    %v4319 = vtanh.pop %v4289
    %v4320 = vtanh.pop %v4293
    %v4321 = vxor.u32 %v4290, 2147483648
    %v4322 = vxor.u32 %v4294, 2147483648
    %v4323 = vmul.f32 %v4321, 1.442695
    %v4324 = vpow.pop %v4323
    %v4325 = vmul.f32 %v4322, 1.442695
    %v4326 = vpow.pop %v4325
    %v4327 = vadd.f32 %v4324, 1.0
    %v4328 = vadd.f32 %v4326, 1.0
    %v4329 = vrcp.pop %v4327
    %v4330 = vmul.f32 1.0, %v4329
    %v4331 = vrcp.pop %v4328
    %v4332 = vmul.f32 1.0, %v4331
    %v4333 = vmul.f32 %v4316, %v4009
    %v4334 = vmul.f32 %v4318, %v4010
    %v4335 = vmul.f32 %v4304, %v4319
    %v4336 = vmul.f32 %v4306, %v4320
    %v4337 = vadd.f32 %v4333, %v4335
    %v4338 = vadd.f32 %v4334, %v4336
    %v4339 = vtanh.pop %v4337
    %v4340 = vtanh.pop %v4338
    %v4341 = vmul.f32 %v4330, %v4339
    %v4342 = vmul.f32 %v4332, %v4340
    %v4343 = vsel %vm2581, %v4182, %v3999
    %v4344 = vsel %vm2582, %v4183, %v4000
    %v4345 = vsel %vm2581, %v4178, %v4001
    %v4346 = vsel %vm2582, %v4179, %v4002
    %v4347 = vmax.f32 %v4005, %v4182
    %v4348 = vmax.f32 %v4006, %v4183
    %v4349 = vsel %vm2581, %v4347, %v4005
    %v4350 = vsel %vm2582, %v4348, %v4006
    %v4351 = vsel %vm2563, %v4341, %v4007
    %v4352 = vsel %vm2564, %v4342, %v4008
    %v4353 = vsel %vm2563, %v4337, %v4009
    %v4354 = vsel %vm2564, %v4338, %v4010
    %v4355 = vmax.f32 %v4013, %v4341
    %v4356 = vmax.f32 %v4014, %v4342
    %v4357 = vsel %vm2563, %v4355, %v4013
    %v4358 = vsel %vm2564, %v4356, %v4014
    %s4359 = scalar_lea.vmem [#allocation2], 224
    %v4360 = vld [vmem:[%s4359] sm:$0xff]
    %v4361 = vld [vmem:[%s4359 + $0x8] sm:$0xff]
    %v4362 = vld [vmem:[%s4359 + $0x10] sm:$0xff]
    %v4363 = vld [vmem:[%s4359 + $0x18] sm:$0xff]
    %v4364 = vld [vmem:[#allocation3] sm:$0xff]
    %v4365 = vld [vmem:[#allocation3 + $0x8] sm:$0xff]
    %v4366 = vld [vmem:[#allocation3 + $0x10] sm:$0xff]
    %v4367 = vld [vmem:[#allocation3 + $0x18] sm:$0xff]
    %v4368 = vunpack.c.l.bf16 %v4360
    %v4369 = vunpack.c.h.bf16 %v4360
    %v4370 = vunpack.c.l.bf16 %v4361
    %v4371 = vunpack.c.h.bf16 %v4361
    %v4372 = vunpack.c.l.bf16 %v4362
    %v4373 = vunpack.c.h.bf16 %v4362
    %v4374 = vunpack.c.l.bf16 %v4363
    %v4375 = vunpack.c.h.bf16 %v4363
    %v4376 = vadd.f32 %v4368, %v1521
    %v4377 = vadd.f32 %v4369, %v1525
    %v4378 = vadd.f32 %v4370, %v1529
    %v4379 = vadd.f32 %v4371, %v1533
    %v4380 = vadd.f32 %v4372, %v1521
    %v4381 = vadd.f32 %v4373, %v1525
    %v4382 = vadd.f32 %v4374, %v1529
    %v4383 = vadd.f32 %v4375, %v1533
    %v4384 = vpack.c.bf16 %v4344, %v4343
    %4385 = vmatprep.subr.bf16.mxu0 %v1671
    %4386 = vmatpush1.bf16.msra.mxu0 %v1670
    %4387 = vmatprep.subr.bf16.mxu0 %v1667
    %4388 = vmatpush1.bf16.msra.mxu0 %v1666
    %4389 = vmatprep.subr.bf16.mxu0 %v1663
    %4390 = vmatpush1.bf16.msra.mxu0 %v1662
    %4391 = vmatprep.subr.bf16.mxu0 %v1659
    %4392 = vmatpush1.bf16.msra.mxu0 %v1658
    %4393 = vmatprep.subr.bf16.mxu0 %v1655
    %4394 = vmatpush1.bf16.msra.mxu0 %v1654
    %4395 = vmatprep.subr.bf16.mxu0 %v1651
    %4396 = vmatpush1.bf16.msra.mxu0 %v1650
    %4397 = vmatprep.subr.bf16.mxu0 %v1647
    %4398 = vmatpush1.bf16.msra.mxu0 %v1646
    %4399 = vmatprep.subr.bf16.mxu0 %v1643
    %4400 = vmatpush1.bf16.msra.mxu0 %v1642
    %4401 = vmatprep.subr.bf16.mxu0 0
    %4402 = vmatpush2.bf16.msra.mxu0 0
    %4403 = vmatprep.subr.bf16.mxu0 0
    %4404 = vmatpush2.bf16.msra.mxu0 0
    %4405 = vmatprep.subr.bf16.mxu0 0
    %4406 = vmatpush2.bf16.msra.mxu0 0
    %4407 = vmatprep.subr.bf16.mxu0 0
    %4408 = vmatpush2.bf16.msra.mxu0 0
    %4409 = vmatprep.subr.bf16.mxu0 0
    %4410 = vmatpush2.bf16.msra.mxu0 0
    %4411 = vmatprep.subr.bf16.mxu0 0
    %4412 = vmatpush2.bf16.msra.mxu0 0
    %4413 = vmatprep.subr.bf16.mxu0 0
    %4414 = vmatpush2.bf16.msra.mxu0 0
    %4415 = vmatprep.subr.bf16.mxu0 0
    %4416 = vmatpush2.bf16.msra.mxu0 0
    %4417 = vmatprep.mubr.bf16.mxu0 0
    %4418 = vmatmul.mubr.bf16.gmra.mxu0 %v4384
    %v4419 = vpop.f32.mrf.mxu0
    %v4420 = vadd.f32 0.0, %v4419
    %v4421 = vpop.f32.mrf.mxu0
    %v4422 = vadd.f32 0.0, %v4421
    %v4423 = vpop.f32.mrf.mxu0
    %v4424 = vadd.f32 0.0, %v4423
    %v4425 = vpop.f32.mrf.mxu0
    %v4426 = vadd.f32 0.0, %v4425
    %4427 = vdwg.mxu0
    %4428 = vmatprep.subr.bf16.mxu0 %v1673
    %4429 = vmatpush1.bf16.msra.mxu0 %v1672
    %4430 = vmatprep.subr.bf16.mxu0 %v1669
    %4431 = vmatpush1.bf16.msra.mxu0 %v1668
    %4432 = vmatprep.subr.bf16.mxu0 %v1665
    %4433 = vmatpush1.bf16.msra.mxu0 %v1664
    %4434 = vmatprep.subr.bf16.mxu0 %v1661
    %4435 = vmatpush1.bf16.msra.mxu0 %v1660
    %4436 = vmatprep.subr.bf16.mxu0 %v1657
    %4437 = vmatpush1.bf16.msra.mxu0 %v1656
    %4438 = vmatprep.subr.bf16.mxu0 %v1653
    %4439 = vmatpush1.bf16.msra.mxu0 %v1652
    %4440 = vmatprep.subr.bf16.mxu0 %v1649
    %4441 = vmatpush1.bf16.msra.mxu0 %v1648
    %4442 = vmatprep.subr.bf16.mxu0 %v1645
    %4443 = vmatpush1.bf16.msra.mxu0 %v1644
    %4444 = vmatprep.subr.bf16.mxu0 0
    %4445 = vmatpush2.bf16.msra.mxu0 0
    %4446 = vmatprep.subr.bf16.mxu0 0
    %4447 = vmatpush2.bf16.msra.mxu0 0
    %4448 = vmatprep.subr.bf16.mxu0 0
    %4449 = vmatpush2.bf16.msra.mxu0 0
    %4450 = vmatprep.subr.bf16.mxu0 0
    %4451 = vmatpush2.bf16.msra.mxu0 0
    %4452 = vmatprep.subr.bf16.mxu0 0
    %4453 = vmatpush2.bf16.msra.mxu0 0
    %4454 = vmatprep.subr.bf16.mxu0 0
    %4455 = vmatpush2.bf16.msra.mxu0 0
    %4456 = vmatprep.subr.bf16.mxu0 0
    %4457 = vmatpush2.bf16.msra.mxu0 0
    %4458 = vmatprep.subr.bf16.mxu0 0
    %4459 = vmatpush2.bf16.msra.mxu0 0
    %4460 = vmatprep.mubr.bf16.mxu0 0
    %4461 = vmatmul.mubr.bf16.gmra.mxu0 %v4384
    %v4462 = vpop.f32.mrf.mxu0
    %v4463 = vadd.f32 0.0, %v4462
    %v4464 = vpop.f32.mrf.mxu0
    %v4465 = vadd.f32 0.0, %v4464
    %v4466 = vpop.f32.mrf.mxu0
    %v4467 = vadd.f32 0.0, %v4466
    %v4468 = vpop.f32.mrf.mxu0
    %v4469 = vadd.f32 0.0, %v4468
    %4470 = vdwg.mxu0
    %v4471 = vadd.f32 %v4376, %v4420
    %v4472 = vadd.f32 %v4377, %v4422
    %v4473 = vadd.f32 %v4378, %v4463
    %v4474 = vadd.f32 %v4379, %v4465
    %v4475 = vadd.f32 %v4380, %v4424
    %v4476 = vadd.f32 %v4381, %v4426
    %v4477 = vadd.f32 %v4382, %v4467
    %v4478 = vadd.f32 %v4383, %v4469
    %v4479 = vxor.u32 %v4471, 2147483648
    %v4480 = vxor.u32 %v4475, 2147483648
    %v4481 = vmul.f32 %v4479, 1.442695
    %v4482 = vpow.pop %v4481
    %v4483 = vmul.f32 %v4480, 1.442695
    %v4484 = vpow.pop %v4483
    %v4485 = vadd.f32 %v4482, 1.0
    %v4486 = vadd.f32 %v4484, 1.0
    %v4487 = vrcp.pop %v4485
    %v4488 = vmul.f32 1.0, %v4487
    %v4489 = vrcp.pop %v4486
    %v4490 = vmul.f32 1.0, %v4489
    %v4491 = vxor.u32 %v4472, 2147483648
    %v4492 = vxor.u32 %v4476, 2147483648
    %v4493 = vmul.f32 %v4491, 1.442695
    %v4494 = vpow.pop %v4493
    %v4495 = vmul.f32 %v4492, 1.442695
    %v4496 = vpow.pop %v4495
    %v4497 = vadd.f32 %v4494, 1.0
    %v4498 = vadd.f32 %v4496, 1.0
    %v4499 = vrcp.pop %v4497
    %v4500 = vmul.f32 1.0, %v4499
    %v4501 = vrcp.pop %v4498
    %v4502 = vmul.f32 1.0, %v4501
    %v4503 = vtanh.pop %v4473
    %v4504 = vtanh.pop %v4477
    %v4505 = vxor.u32 %v4474, 2147483648
    %v4506 = vxor.u32 %v4478, 2147483648
    %v4507 = vmul.f32 %v4505, 1.442695
    %v4508 = vpow.pop %v4507
    %v4509 = vmul.f32 %v4506, 1.442695
    %v4510 = vpow.pop %v4509
    %v4511 = vadd.f32 %v4508, 1.0
    %v4512 = vadd.f32 %v4510, 1.0
    %v4513 = vrcp.pop %v4511
    %v4514 = vmul.f32 1.0, %v4513
    %v4515 = vrcp.pop %v4512
    %v4516 = vmul.f32 1.0, %v4515
    %v4517 = vmul.f32 %v4500, %v4345
    %v4518 = vmul.f32 %v4502, %v4346
    %v4519 = vmul.f32 %v4488, %v4503
    %v4520 = vmul.f32 %v4490, %v4504
    %v4521 = vadd.f32 %v4517, %v4519
    %v4522 = vadd.f32 %v4518, %v4520
    %v4523 = vtanh.pop %v4521
    %v4524 = vtanh.pop %v4522
    %v4525 = vmul.f32 %v4514, %v4523
    %v4526 = vmul.f32 %v4516, %v4524
    %v4527 = vunpack.c.l.bf16 %v4364
    %v4528 = vunpack.c.h.bf16 %v4364
    %v4529 = vunpack.c.l.bf16 %v4365
    %v4530 = vunpack.c.h.bf16 %v4365
    %v4531 = vunpack.c.l.bf16 %v4366
    %v4532 = vunpack.c.h.bf16 %v4366
    %v4533 = vunpack.c.l.bf16 %v4367
    %v4534 = vunpack.c.h.bf16 %v4367
    %v4535 = vadd.f32 %v4527, %v1860
    %v4536 = vadd.f32 %v4528, %v1864
    %v4537 = vadd.f32 %v4529, %v1868
    %v4538 = vadd.f32 %v4530, %v1872
    %v4539 = vadd.f32 %v4531, %v1860
    %v4540 = vadd.f32 %v4532, %v1864
    %v4541 = vadd.f32 %v4533, %v1868
    %v4542 = vadd.f32 %v4534, %v1872
    %v4543 = vpack.c.bf16 %v4352, %v4351
    %4544 = vmatprep.subr.bf16.mxu0 %v2010
    %4545 = vmatpush1.bf16.msra.mxu0 %v2009
    %4546 = vmatprep.subr.bf16.mxu0 %v2006
    %4547 = vmatpush1.bf16.msra.mxu0 %v2005
    %4548 = vmatprep.subr.bf16.mxu0 %v2002
    %4549 = vmatpush1.bf16.msra.mxu0 %v2001
    %4550 = vmatprep.subr.bf16.mxu0 %v1998
    %4551 = vmatpush1.bf16.msra.mxu0 %v1997
    %4552 = vmatprep.subr.bf16.mxu0 %v1994
    %4553 = vmatpush1.bf16.msra.mxu0 %v1993
    %4554 = vmatprep.subr.bf16.mxu0 %v1990
    %4555 = vmatpush1.bf16.msra.mxu0 %v1989
    %4556 = vmatprep.subr.bf16.mxu0 %v1986
    %4557 = vmatpush1.bf16.msra.mxu0 %v1985
    %4558 = vmatprep.subr.bf16.mxu0 %v1982
    %4559 = vmatpush1.bf16.msra.mxu0 %v1981
    %4560 = vmatprep.subr.bf16.mxu0 0
    %4561 = vmatpush2.bf16.msra.mxu0 0
    %4562 = vmatprep.subr.bf16.mxu0 0
    %4563 = vmatpush2.bf16.msra.mxu0 0
    %4564 = vmatprep.subr.bf16.mxu0 0
    %4565 = vmatpush2.bf16.msra.mxu0 0
    %4566 = vmatprep.subr.bf16.mxu0 0
    %4567 = vmatpush2.bf16.msra.mxu0 0
    %4568 = vmatprep.subr.bf16.mxu0 0
    %4569 = vmatpush2.bf16.msra.mxu0 0
    %4570 = vmatprep.subr.bf16.mxu0 0
    %4571 = vmatpush2.bf16.msra.mxu0 0
    %4572 = vmatprep.subr.bf16.mxu0 0
    %4573 = vmatpush2.bf16.msra.mxu0 0
    %4574 = vmatprep.subr.bf16.mxu0 0
    %4575 = vmatpush2.bf16.msra.mxu0 0
    %4576 = vmatprep.mubr.bf16.mxu0 0
    %4577 = vmatmul.mubr.bf16.gmra.mxu0 %v4543
    %v4578 = vpop.f32.mrf.mxu0
    %v4579 = vadd.f32 0.0, %v4578
    %v4580 = vpop.f32.mrf.mxu0
    %v4581 = vadd.f32 0.0, %v4580
    %v4582 = vpop.f32.mrf.mxu0
    %v4583 = vadd.f32 0.0, %v4582
    %v4584 = vpop.f32.mrf.mxu0
    %v4585 = vadd.f32 0.0, %v4584
    %4586 = vdwg.mxu0
    %4587 = vmatprep.subr.bf16.mxu0 %v2012
    %4588 = vmatpush1.bf16.msra.mxu0 %v2011
    %4589 = vmatprep.subr.bf16.mxu0 %v2008
    %4590 = vmatpush1.bf16.msra.mxu0 %v2007
    %4591 = vmatprep.subr.bf16.mxu0 %v2004
    %4592 = vmatpush1.bf16.msra.mxu0 %v2003
    %4593 = vmatprep.subr.bf16.mxu0 %v2000
    %4594 = vmatpush1.bf16.msra.mxu0 %v1999
    %4595 = vmatprep.subr.bf16.mxu0 %v1996
    %4596 = vmatpush1.bf16.msra.mxu0 %v1995
    %4597 = vmatprep.subr.bf16.mxu0 %v1992
    %4598 = vmatpush1.bf16.msra.mxu0 %v1991
    %4599 = vmatprep.subr.bf16.mxu0 %v1988
    %4600 = vmatpush1.bf16.msra.mxu0 %v1987
    %4601 = vmatprep.subr.bf16.mxu0 %v1984
    %4602 = vmatpush1.bf16.msra.mxu0 %v1983
    %4603 = vmatprep.subr.bf16.mxu0 0
    %4604 = vmatpush2.bf16.msra.mxu0 0
    %4605 = vmatprep.subr.bf16.mxu0 0
    %4606 = vmatpush2.bf16.msra.mxu0 0
    %4607 = vmatprep.subr.bf16.mxu0 0
    %4608 = vmatpush2.bf16.msra.mxu0 0
    %4609 = vmatprep.subr.bf16.mxu0 0
    %4610 = vmatpush2.bf16.msra.mxu0 0
    %4611 = vmatprep.subr.bf16.mxu0 0
    %4612 = vmatpush2.bf16.msra.mxu0 0
    %4613 = vmatprep.subr.bf16.mxu0 0
    %4614 = vmatpush2.bf16.msra.mxu0 0
    %4615 = vmatprep.subr.bf16.mxu0 0
    %4616 = vmatpush2.bf16.msra.mxu0 0
    %4617 = vmatprep.subr.bf16.mxu0 0
    %4618 = vmatpush2.bf16.msra.mxu0 0
    %4619 = vmatprep.mubr.bf16.mxu0 0
    %4620 = vmatmul.mubr.bf16.gmra.mxu0 %v4543
    %v4621 = vpop.f32.mrf.mxu0
    %v4622 = vadd.f32 0.0, %v4621
    %v4623 = vpop.f32.mrf.mxu0
    %v4624 = vadd.f32 0.0, %v4623
    %v4625 = vpop.f32.mrf.mxu0
    %v4626 = vadd.f32 0.0, %v4625
    %v4627 = vpop.f32.mrf.mxu0
    %v4628 = vadd.f32 0.0, %v4627
    %4629 = vdwg.mxu0
    %v4630 = vadd.f32 %v4535, %v4579
    %v4631 = vadd.f32 %v4536, %v4581
    %v4632 = vadd.f32 %v4537, %v4622
    %v4633 = vadd.f32 %v4538, %v4624
    %v4634 = vadd.f32 %v4539, %v4583
    %v4635 = vadd.f32 %v4540, %v4585
    %v4636 = vadd.f32 %v4541, %v4626
    %v4637 = vadd.f32 %v4542, %v4628
    %v4638 = vxor.u32 %v4630, 2147483648
    %v4639 = vxor.u32 %v4634, 2147483648
    %v4640 = vmul.f32 %v4638, 1.442695
    %v4641 = vpow.pop %v4640
    %v4642 = vmul.f32 %v4639, 1.442695
    %v4643 = vpow.pop %v4642
    %v4644 = vadd.f32 %v4641, 1.0
    %v4645 = vadd.f32 %v4643, 1.0
    %v4646 = vrcp.pop %v4644
    %v4647 = vmul.f32 1.0, %v4646
    %v4648 = vrcp.pop %v4645
    %v4649 = vmul.f32 1.0, %v4648
    %v4650 = vxor.u32 %v4631, 2147483648
    %v4651 = vxor.u32 %v4635, 2147483648
    %v4652 = vmul.f32 %v4650, 1.442695
    %v4653 = vpow.pop %v4652
    %v4654 = vmul.f32 %v4651, 1.442695
    %v4655 = vpow.pop %v4654
    %v4656 = vadd.f32 %v4653, 1.0
    %v4657 = vadd.f32 %v4655, 1.0
    %v4658 = vrcp.pop %v4656
    %v4659 = vmul.f32 1.0, %v4658
    %v4660 = vrcp.pop %v4657
    %v4661 = vmul.f32 1.0, %v4660
    %v4662 = vtanh.pop %v4632
    %v4663 = vtanh.pop %v4636
    %v4664 = vxor.u32 %v4633, 2147483648
    %v4665 = vxor.u32 %v4637, 2147483648
    %v4666 = vmul.f32 %v4664, 1.442695
    %v4667 = vpow.pop %v4666
    %v4668 = vmul.f32 %v4665, 1.442695
    %v4669 = vpow.pop %v4668
    %v4670 = vadd.f32 %v4667, 1.0
    %v4671 = vadd.f32 %v4669, 1.0
    %v4672 = vrcp.pop %v4670
    %v4673 = vmul.f32 1.0, %v4672
    %v4674 = vrcp.pop %v4671
    %v4675 = vmul.f32 1.0, %v4674
    %v4676 = vmul.f32 %v4659, %v4353
    %v4677 = vmul.f32 %v4661, %v4354
    %v4678 = vmul.f32 %v4647, %v4662
    %v4679 = vmul.f32 %v4649, %v4663
    %v4680 = vadd.f32 %v4676, %v4678
    %v4681 = vadd.f32 %v4677, %v4679
    %v4682 = vtanh.pop %v4680
    %v4683 = vtanh.pop %v4681
    %v4684 = vmul.f32 %v4673, %v4682
    %v4685 = vmul.f32 %v4675, %v4683
    %v4686 = vmax.f32 %v4349, %v4525
    %v4687 = vmax.f32 %v4350, %v4526
    %v4688 = vsel %vm2213, %v4686, %v4349
    %v4689 = vsel %vm2214, %v4687, %v4350
    %v4690 = vmax.f32 %v4357, %v4684
    %v4691 = vmax.f32 %v4358, %v4685
    %v4692 = vsel %vm2195, %v4690, %v4357
    %v4693 = vsel %vm2196, %v4691, %v4358
    %v4694 = vsel %vm2195, %v4688, 0.0
    %v4695 = vsel %vm2195, %v4692, 0.0
    %v4696 = vsel %vm2196, %v4689, 0.0
    %v4697 = vsel %vm2196, %v4693, 0.0
    %4698 = vst [vmem:[#allocation12] sm:$0xff] %v4694
    %4699 = vst [vmem:[#allocation12 + $0x8] sm:$0xff] %v4695
    %4700 = vst [vmem:[#allocation12 + $0x10] sm:$0xff] %v4696
    %4701 = vst [vmem:[#allocation12 + $0x18] sm:$0xff] %v4697
    // Predicated region
    $region42: #{tpu_custom_call.1} parent=1 // pred_check
      _
    $region43: #{tpu_custom_call.1} parent=1 // pred_check_branch
      %4703 = sbr.rel (0) target = $region45
    $region44: #{tpu_custom_call.1} parent=1 // pred_region
      %s4705 = ssub.s32 512, 512
      %4706 = vsyncadd [#allocation6], %s4705
      %s4707 = sshll.u32 [#allocation12], 4
      %s4708 = int_to_ptr.vmem [resolvable:$true] %s4707
      %4713 = dma.vmem_to_hbm [thread:$0]  %s4708, 512, %s6, [#allocation6], 256, 256, 16
    $region45: #{tpu_custom_call.1} parent=1 // pred_fallthru
      _
    // Predicated region
    $region46: #{tpu_custom_call.1} parent=1 // pred_check
      _
    $region47: #{tpu_custom_call.1} parent=1 // pred_check_branch
      %4715 = sbr.rel (0) target = $region49
    $region48: #{tpu_custom_call.1} parent=1 // pred_region
      %4716 = dma.done [#allocation6], 512
    $region49: #{tpu_custom_call.1} parent=1 // pred_fallthru
      _
    %4717 = vsyncpa [#allocation5], 1
    %4718 = vsyncpa [#allocation8], 1
    %4719 = vsyncpa [#allocation11], 1
    %4720 = vsyncpa [#allocation6], 1

// kernel: tpu_custom_call.1
$region0: #{tpu_custom_call.1}
  #allocation0 [shape = 'u32[]', space=smem, size = 0x4, offset = 0x4, fixed_abs, tag = 'smem constant byte address 0x4 - core index']
  #allocation1 [shape = 'u32[144,128]{1,0:T(1,128)}', space=vmem, size = 0x12000, scoped, tag = 'internal scratch']
  #allocation2 [shape = 'bf16[8,16,512]{2,1,0:T(8,128)(2,1)}', space=vmem, size = 0x20000, scoped, tag = 'scratch operand']
  #allocation3 [shape = 'bf16[8,16,512]{2,1,0:T(8,128)(2,1)}', space=vmem, size = 0x20000, scoped, tag = 'scratch operand']
  %s0 = inlined_call_operand.hbm [shape: bf16[8,16,128], index: 0, kind: input, shape index: {}]
  %s1 = inlined_call_operand.vmem [shape: s32[16,1], index: 1, kind: input, shape index: {}]
  %s2 = inlined_call_operand.hbm [shape: bf16[128,1024], index: 2, kind: input, shape index: {}]
  %s3 = inlined_call_operand.hbm [shape: bf16[128,512], index: 3, kind: input, shape index: {}]
  %s4 = inlined_call_operand.hbm [shape: bf16[128,512], index: 4, kind: input, shape index: {}]
  %s5 = inlined_call_operand.vmem [shape: f32[1,1024], index: 5, kind: input, shape index: {}]
  %s6 = inlined_call_operand.hbm [shape: f32[16,256], index: 6, kind: output, shape index: {}]
  %s7 = sld [smem:[#allocation0]]
  $region50: #{tpu_custom_call.1} parent=0
    _
  %s9 = ssub.s32 1, %s7
  %s10 = scalar_select 0, %s9, %s7
  $region1: #{tpu_custom_call.1} parent=0
    #allocation4 [shape = 'u8[32768]{0}', space=vmem, size = 0x8000, scoped, tag = 'input window, operand 0, single buffered']
    #allocation5 [shape = 's32[1]{0}', space=sflag, size = 0x4, scoped, tag = 'scoped memory for tpu_custom_call.1']
    #allocation6 [shape = 's32[1]{0}', space=sflag, size = 0x4, scoped, tag = 'scoped memory for tpu_custom_call.1']
    #allocation7 [shape = 'u8[262144]{0}', space=vmem, size = 0x40000, scoped, tag = 'input window, operand 2, single buffered']
    #allocation8 [shape = 's32[1]{0}', space=sflag, size = 0x4, scoped, tag = 'scoped memory for tpu_custom_call.1']
    #allocation9 [shape = 'u8[131072]{0}', space=vmem, size = 0x20000, scoped, tag = 'input window, operand 3, single buffered']
    #allocation10 [shape = 'u8[131072]{0}', space=vmem, size = 0x20000, scoped, tag = 'input window, operand 4, single buffered']
    #allocation11 [shape = 's32[1]{0}', space=sflag, size = 0x4, scoped, tag = 'scoped memory for tpu_custom_call.1']
    #allocation12 [shape = 'u8[16384]{0}', space=vmem, size = 0x4000, scoped, tag = 'output window, operand 0, single buffered']
    %11 = vsyncpa [#allocation5], 0
    %12 = vsyncpa [#allocation8], 0
    %13 = vsyncpa [#allocation11], 0
    %14 = vsyncpa [#allocation6], 0
    // Predicated region
    $region2: #{tpu_custom_call.1} parent=1 // pred_check
      _
    $region3: #{tpu_custom_call.1} parent=1 // pred_check_branch
      %16 = sbr.rel (0) target = $region5
    $region4: #{tpu_custom_call.1} parent=1 // pred_region
      %s18 = ssub.s32 1024, 1024
      %19 = vsyncadd [#allocation5], %s18
      %s20 = sshll.u32 [#allocation4], 4
      %s21 = int_to_ptr.vmem [resolvable:$true] %s20
      %26 = dma.hbm_to_vmem [thread:$0]  %s0, 1024, %s21, [#allocation5], 64, 64, 4
    $region5: #{tpu_custom_call.1} parent=1 // pred_fallthru
      _
    // Predicated region
    $region6: #{tpu_custom_call.1} parent=1 // pred_check
      _
    $region7: #{tpu_custom_call.1} parent=1 // pred_check_branch
      %28 = sbr.rel (0) target = $region9
    $region8: #{tpu_custom_call.1} parent=1 // pred_region
      _
    $region9: #{tpu_custom_call.1} parent=1 // pred_fallthru
      _
    // Predicated region
    $region10: #{tpu_custom_call.1} parent=1 // pred_check
      _
    $region11: #{tpu_custom_call.1} parent=1 // pred_check_branch
      %30 = sbr.rel (0) target = $region13
    $region12: #{tpu_custom_call.1} parent=1 // pred_region
      %s32 = ssub.s32 8192, 8192
      %33 = vsyncadd [#allocation8], %s32
      %s34 = sshll.u32 [#allocation7], 4
      %s35 = int_to_ptr.vmem [resolvable:$true] %s34
      %40 = dma.hbm_to_vmem [thread:$0]  %s2, 8192, %s35, [#allocation8], 512, 512, 32
    $region13: #{tpu_custom_call.1} parent=1 // pred_fallthru
      _
    // Predicated region
    $region14: #{tpu_custom_call.1} parent=1 // pred_check
      _
    $region15: #{tpu_custom_call.1} parent=1 // pred_check_branch
      %42 = sbr.rel (0) target = $region17
    $region16: #{tpu_custom_call.1} parent=1 // pred_region
      %s44 = ssub.s32 4096, 4096
      %45 = vsyncadd [#allocation8], %s44
      %s46 = sshll.u32 [#allocation9], 4
      %s47 = int_to_ptr.vmem [resolvable:$true] %s46
      %52 = dma.hbm_to_vmem [thread:$0]  %s3, 4096, %s47, [#allocation8], 256, 256, 16
    $region17: #{tpu_custom_call.1} parent=1 // pred_fallthru
      _
    // Predicated region
    $region18: #{tpu_custom_call.1} parent=1 // pred_check
      _
    $region19: #{tpu_custom_call.1} parent=1 // pred_check_branch
      %54 = sbr.rel (0) target = $region21
    $region20: #{tpu_custom_call.1} parent=1 // pred_region
      %s56 = ssub.s32 4096, 4096
      %57 = vsyncadd [#allocation11], %s56
      %s58 = sshll.u32 [#allocation10], 4
      %s59 = int_to_ptr.vmem [resolvable:$true] %s58
      %64 = dma.hbm_to_vmem [thread:$0]  %s4, 4096, %s59, [#allocation11], 256, 256, 16
    $region21: #{tpu_custom_call.1} parent=1 // pred_fallthru
      _
    // Predicated region
    $region22: #{tpu_custom_call.1} parent=1 // pred_check
      _
    $region23: #{tpu_custom_call.1} parent=1 // pred_check_branch
      %66 = sbr.rel (0) target = $region25
    $region24: #{tpu_custom_call.1} parent=1 // pred_region
      _
    $region25: #{tpu_custom_call.1} parent=1 // pred_fallthru
      _
    // Predicated region
    $region26: #{tpu_custom_call.1} parent=1 // pred_check
      _
    $region27: #{tpu_custom_call.1} parent=1 // pred_check_branch
      %68 = sbr.rel (0) target = $region29
    $region28: #{tpu_custom_call.1} parent=1 // pred_region
      %69 = dma.done [#allocation5], 1024
    $region29: #{tpu_custom_call.1} parent=1 // pred_fallthru
      _
    // Predicated region
    $region30: #{tpu_custom_call.1} parent=1 // pred_check
      _
    $region31: #{tpu_custom_call.1} parent=1 // pred_check_branch
      %71 = sbr.rel (0) target = $region33
    $region32: #{tpu_custom_call.1} parent=1 // pred_region
      %72 = dma.done [#allocation8], 8192
    $region33: #{tpu_custom_call.1} parent=1 // pred_fallthru
      _
    // Predicated region
    $region34: #{tpu_custom_call.1} parent=1 // pred_check
      _
    $region35: #{tpu_custom_call.1} parent=1 // pred_check_branch
      %74 = sbr.rel (0) target = $region37
    $region36: #{tpu_custom_call.1} parent=1 // pred_region
      %75 = dma.done [#allocation8], 4096
    $region37: #{tpu_custom_call.1} parent=1 // pred_fallthru
      _
    // Predicated region
    $region38: #{tpu_custom_call.1} parent=1 // pred_check
      _
    $region39: #{tpu_custom_call.1} parent=1 // pred_check_branch
      %77 = sbr.rel (0) target = $region41
    $region40: #{tpu_custom_call.1} parent=1 // pred_region
      %78 = dma.done [#allocation11], 4096
    $region41: #{tpu_custom_call.1} parent=1 // pred_fallthru
      _
    %v80 = vld [vmem:[%s1] sm:$0xff]
    %v81 = vld [vmem:[%s1 + $0x8] sm:$0xff]
    %v82 = vld [vmem:[#allocation7] sm:$0xff]
    %v83 = vld [vmem:[#allocation7 + $0x8] sm:$0xff]
    %v84 = vld [vmem:[#allocation7 + $0x10] sm:$0xff]
    %v85 = vld [vmem:[#allocation7 + $0x18] sm:$0xff]
    %v86 = vld [vmem:[#allocation7 + $0x20] sm:$0xff]
    %v87 = vld [vmem:[#allocation7 + $0x28] sm:$0xff]
    %v88 = vld [vmem:[#allocation7 + $0x30] sm:$0xff]
    %v89 = vld [vmem:[#allocation7 + $0x38] sm:$0xff]
    %v90 = vld [vmem:[#allocation7 + $0x40] sm:$0xff]
    %v91 = vld [vmem:[#allocation7 + $0x48] sm:$0xff]
    %v92 = vld [vmem:[#allocation7 + $0x50] sm:$0xff]
    %v93 = vld [vmem:[#allocation7 + $0x58] sm:$0xff]
    %v94 = vld [vmem:[#allocation7 + $0x60] sm:$0xff]
    %v95 = vld [vmem:[#allocation7 + $0x68] sm:$0xff]
    %v96 = vld [vmem:[#allocation7 + $0x70] sm:$0xff]
    %v97 = vld [vmem:[#allocation7 + $0x78] sm:$0xff]
    %v98 = vld [vmem:[#allocation7 + $0x80] sm:$0xff]
    %v99 = vld [vmem:[#allocation7 + $0x88] sm:$0xff]
    %v100 = vld [vmem:[#allocation7 + $0x90] sm:$0xff]
    %v101 = vld [vmem:[#allocation7 + $0x98] sm:$0xff]
    %v102 = vld [vmem:[#allocation7 + $0xa0] sm:$0xff]
    %v103 = vld [vmem:[#allocation7 + $0xa8] sm:$0xff]
    %v104 = vld [vmem:[#allocation7 + $0xb0] sm:$0xff]
    %v105 = vld [vmem:[#allocation7 + $0xb8] sm:$0xff]
    %v106 = vld [vmem:[#allocation7 + $0xc0] sm:$0xff]
    %v107 = vld [vmem:[#allocation7 + $0xc8] sm:$0xff]
    %v108 = vld [vmem:[#allocation7 + $0xd0] sm:$0xff]
    %v109 = vld [vmem:[#allocation7 + $0xd8] sm:$0xff]
    %v110 = vld [vmem:[#allocation7 + $0xe0] sm:$0xff]
    %v111 = vld [vmem:[#allocation7 + $0xe8] sm:$0xff]
    %v112 = vld [vmem:[#allocation7 + $0xf0] sm:$0xff]
    %v113 = vld [vmem:[#allocation7 + $0xf8] sm:$0xff]
    %v114 = vld [vmem:[#allocation7 + $0x100] sm:$0xff]
    %v115 = vld [vmem:[#allocation7 + $0x108] sm:$0xff]
    %v116 = vld [vmem:[#allocation7 + $0x110] sm:$0xff]
    %v117 = vld [vmem:[#allocation7 + $0x118] sm:$0xff]
    %v118 = vld [vmem:[#allocation7 + $0x120] sm:$0xff]
    %v119 = vld [vmem:[#allocation7 + $0x128] sm:$0xff]
    %v120 = vld [vmem:[#allocation7 + $0x130] sm:$0xff]
    %v121 = vld [vmem:[#allocation7 + $0x138] sm:$0xff]
    %v122 = vld [vmem:[#allocation7 + $0x140] sm:$0xff]
    %v123 = vld [vmem:[#allocation7 + $0x148] sm:$0xff]
    %v124 = vld [vmem:[#allocation7 + $0x150] sm:$0xff]
    %v125 = vld [vmem:[#allocation7 + $0x158] sm:$0xff]
    %v126 = vld [vmem:[#allocation7 + $0x160] sm:$0xff]
    %v127 = vld [vmem:[#allocation7 + $0x168] sm:$0xff]
    %v128 = vld [vmem:[#allocation7 + $0x170] sm:$0xff]
    %v129 = vld [vmem:[#allocation7 + $0x178] sm:$0xff]
    %v130 = vld [vmem:[#allocation7 + $0x180] sm:$0xff]
    %v131 = vld [vmem:[#allocation7 + $0x188] sm:$0xff]
    %v132 = vld [vmem:[#allocation7 + $0x190] sm:$0xff]
    %v133 = vld [vmem:[#allocation7 + $0x198] sm:$0xff]
    %v134 = vld [vmem:[#allocation7 + $0x1a0] sm:$0xff]
    %v135 = vld [vmem:[#allocation7 + $0x1a8] sm:$0xff]
    %v136 = vld [vmem:[#allocation7 + $0x1b0] sm:$0xff]
    %v137 = vld [vmem:[#allocation7 + $0x1b8] sm:$0xff]
    %v138 = vld [vmem:[#allocation7 + $0x1c0] sm:$0xff]
    %v139 = vld [vmem:[#allocation7 + $0x1c8] sm:$0xff]
    %v140 = vld [vmem:[#allocation7 + $0x1d0] sm:$0xff]
    %v141 = vld [vmem:[#allocation7 + $0x1d8] sm:$0xff]
    %v142 = vld [vmem:[#allocation7 + $0x1e0] sm:$0xff]
    %v143 = vld [vmem:[#allocation7 + $0x1e8] sm:$0xff]
    %v144 = vld [vmem:[#allocation7 + $0x1f0] sm:$0xff]
    %v145 = vld [vmem:[#allocation7 + $0x1f8] sm:$0xff]
    %v146 = vld [vmem:[#allocation4] sm:$0xf]
    %v147 = vld [vmem:[#allocation4 + $0x4] sm:$0xf]
    %v148 = vld [vmem:[#allocation4 + $0x8] sm:$0xf]
    %v149 = vld [vmem:[#allocation4 + $0xc] sm:$0xf]
    %v150 = vld [vmem:[#allocation4 + $0x10] sm:$0xf]
    %v151 = vld [vmem:[#allocation4 + $0x14] sm:$0xf]
    %v152 = vld [vmem:[#allocation4 + $0x18] sm:$0xf]
    %v153 = vld [vmem:[#allocation4 + $0x1c] sm:$0xf]
    %v154 = vld [vmem:[#allocation4 + $0x20] sm:$0xf]
    %v155 = vld [vmem:[#allocation4 + $0x24] sm:$0xf]
    %v156 = vld [vmem:[#allocation4 + $0x28] sm:$0xf]
    %v157 = vld [vmem:[#allocation4 + $0x2c] sm:$0xf]
    %v158 = vld [vmem:[#allocation4 + $0x30] sm:$0xf]
    %v159 = vld [vmem:[#allocation4 + $0x34] sm:$0xf]
    %v160 = vld [vmem:[#allocation4 + $0x38] sm:$0xf]
    %v161 = vld [vmem:[#allocation4 + $0x3c] sm:$0xf]
    %v178 = vunpack.c.l.b16 %v146
    %v179 = vunpack.c.l.b16 %v147
    %v180 = vunpack.c.l.b16 %v148
    %v181 = vunpack.c.l.b16 %v149
    %v182 = vunpack.c.l.b16 %v150
    %v183 = vunpack.c.l.b16 %v151
    %v184 = vunpack.c.l.b16 %v152
    %v185 = vunpack.c.l.b16 %v153
    %v186 = vunpack.c.l.b16 %v154
    %v187 = vunpack.c.l.b16 %v155
    %v188 = vunpack.c.l.b16 %v156
    %v189 = vunpack.c.l.b16 %v157
    %v190 = vunpack.c.l.b16 %v158
    %v191 = vunpack.c.l.b16 %v159
    %v192 = vunpack.c.l.b16 %v160
    %v193 = vunpack.c.l.b16 %v161
    %v194 = vpack.c.b16 %v179, %v178
    %v195 = vpack.c.b16 %v181, %v180
    %v196 = vpack.c.b16 %v183, %v182
    %v197 = vpack.c.b16 %v185, %v184
    %v198 = vpack.c.b16 %v187, %v186
    %v199 = vpack.c.b16 %v189, %v188
    %v200 = vpack.c.b16 %v191, %v190
    %v201 = vpack.c.b16 %v193, %v192
    %v274 = vunpack.c.l.b16 %v82
    %v275 = vunpack.c.h.b16 %v82
    %v276 = vunpack.c.l.b16 %v83
    %v277 = vunpack.c.h.b16 %v83
    %v278 = vunpack.c.l.b16 %v84
    %v279 = vunpack.c.h.b16 %v84
    %v280 = vunpack.c.l.b16 %v85
    %v281 = vunpack.c.h.b16 %v85
    %v282 = vunpack.c.l.b16 %v86
    %v283 = vunpack.c.h.b16 %v86
    %v284 = vunpack.c.l.b16 %v87
    %v285 = vunpack.c.h.b16 %v87
    %v286 = vunpack.c.l.b16 %v88
    %v287 = vunpack.c.h.b16 %v88
    %v288 = vunpack.c.l.b16 %v89
    %v289 = vunpack.c.h.b16 %v89
    %v290 = vunpack.c.l.b16 %v90
    %v291 = vunpack.c.h.b16 %v90
    %v292 = vunpack.c.l.b16 %v91
    %v293 = vunpack.c.h.b16 %v91
    %v294 = vunpack.c.l.b16 %v92
    %v295 = vunpack.c.h.b16 %v92
    %v296 = vunpack.c.l.b16 %v93
    %v297 = vunpack.c.h.b16 %v93
    %v298 = vunpack.c.l.b16 %v94
    %v299 = vunpack.c.h.b16 %v94
    %v300 = vunpack.c.l.b16 %v95
    %v301 = vunpack.c.h.b16 %v95
    %v302 = vunpack.c.l.b16 %v96
    %v303 = vunpack.c.h.b16 %v96
    %v304 = vunpack.c.l.b16 %v97
    %v305 = vunpack.c.h.b16 %v97
    %v306 = vunpack.c.l.b16 %v98
    %v307 = vunpack.c.h.b16 %v98
    %v308 = vunpack.c.l.b16 %v99
    %v309 = vunpack.c.h.b16 %v99
    %v310 = vunpack.c.l.b16 %v100
    %v311 = vunpack.c.h.b16 %v100
    %v312 = vunpack.c.l.b16 %v101
    %v313 = vunpack.c.h.b16 %v101
    %v314 = vunpack.c.l.b16 %v102
    %v315 = vunpack.c.h.b16 %v102
    %v316 = vunpack.c.l.b16 %v103
    %v317 = vunpack.c.h.b16 %v103
    %v318 = vunpack.c.l.b16 %v104
    %v319 = vunpack.c.h.b16 %v104
    %v320 = vunpack.c.l.b16 %v105
    %v321 = vunpack.c.h.b16 %v105
    %v322 = vunpack.c.l.b16 %v106
    %v323 = vunpack.c.h.b16 %v106
    %v324 = vunpack.c.l.b16 %v107
    %v325 = vunpack.c.h.b16 %v107
    %v326 = vunpack.c.l.b16 %v108
    %v327 = vunpack.c.h.b16 %v108
    %v328 = vunpack.c.l.b16 %v109
    %v329 = vunpack.c.h.b16 %v109
    %v330 = vunpack.c.l.b16 %v110
    %v331 = vunpack.c.h.b16 %v110
    %v332 = vunpack.c.l.b16 %v111
    %v333 = vunpack.c.h.b16 %v111
    %v334 = vunpack.c.l.b16 %v112
    %v335 = vunpack.c.h.b16 %v112
    %v336 = vunpack.c.l.b16 %v113
    %v337 = vunpack.c.h.b16 %v113
    %v338 = vunpack.c.l.b16 %v114
    %v339 = vunpack.c.h.b16 %v114
    %v340 = vunpack.c.l.b16 %v115
    %v341 = vunpack.c.h.b16 %v115
    %v342 = vunpack.c.l.b16 %v116
    %v343 = vunpack.c.h.b16 %v116
    %v344 = vunpack.c.l.b16 %v117
    %v345 = vunpack.c.h.b16 %v117
    %v346 = vunpack.c.l.b16 %v118
    %v347 = vunpack.c.h.b16 %v118
    %v348 = vunpack.c.l.b16 %v119
    %v349 = vunpack.c.h.b16 %v119
    %v350 = vunpack.c.l.b16 %v120
    %v351 = vunpack.c.h.b16 %v120
    %v352 = vunpack.c.l.b16 %v121
    %v353 = vunpack.c.h.b16 %v121
    %v354 = vunpack.c.l.b16 %v122
    %v355 = vunpack.c.h.b16 %v122
    %v356 = vunpack.c.l.b16 %v123
    %v357 = vunpack.c.h.b16 %v123
    %v358 = vunpack.c.l.b16 %v124
    %v359 = vunpack.c.h.b16 %v124
    %v360 = vunpack.c.l.b16 %v125
    %v361 = vunpack.c.h.b16 %v125
    %v362 = vunpack.c.l.b16 %v126
    %v363 = vunpack.c.h.b16 %v126
    %v364 = vunpack.c.l.b16 %v127
    %v365 = vunpack.c.h.b16 %v127
    %v366 = vunpack.c.l.b16 %v128
    %v367 = vunpack.c.h.b16 %v128
    %v368 = vunpack.c.l.b16 %v129
    %v369 = vunpack.c.h.b16 %v129
    %v370 = vunpack.c.l.b16 %v130
    %v371 = vunpack.c.h.b16 %v130
    %v372 = vunpack.c.l.b16 %v131
    %v373 = vunpack.c.h.b16 %v131
    %v374 = vunpack.c.l.b16 %v132
    %v375 = vunpack.c.h.b16 %v132
    %v376 = vunpack.c.l.b16 %v133
    %v377 = vunpack.c.h.b16 %v133
    %v378 = vunpack.c.l.b16 %v134
    %v379 = vunpack.c.h.b16 %v134
    %v380 = vunpack.c.l.b16 %v135
    %v381 = vunpack.c.h.b16 %v135
    %v382 = vunpack.c.l.b16 %v136
    %v383 = vunpack.c.h.b16 %v136
    %v384 = vunpack.c.l.b16 %v137
    %v385 = vunpack.c.h.b16 %v137
    %v386 = vunpack.c.l.b16 %v138
    %v387 = vunpack.c.h.b16 %v138
    %v388 = vunpack.c.l.b16 %v139
    %v389 = vunpack.c.h.b16 %v139
    %v390 = vunpack.c.l.b16 %v140
    %v391 = vunpack.c.h.b16 %v140
    %v392 = vunpack.c.l.b16 %v141
    %v393 = vunpack.c.h.b16 %v141
    %v394 = vunpack.c.l.b16 %v142
    %v395 = vunpack.c.h.b16 %v142
    %v396 = vunpack.c.l.b16 %v143
    %v397 = vunpack.c.h.b16 %v143
    %v398 = vunpack.c.l.b16 %v144
    %v399 = vunpack.c.h.b16 %v144
    %v400 = vunpack.c.l.b16 %v145
    %v401 = vunpack.c.h.b16 %v145
    %v402 = vpack.c.b16 %v282, %v274
    %v403 = vpack.c.b16 %v283, %v275
    %v404 = vpack.c.b16 %v284, %v276
    %v405 = vpack.c.b16 %v285, %v277
    %v406 = vpack.c.b16 %v286, %v278
    %v407 = vpack.c.b16 %v287, %v279
    %v408 = vpack.c.b16 %v288, %v280
    %v409 = vpack.c.b16 %v289, %v281
    %v410 = vpack.c.b16 %v298, %v290
    %v411 = vpack.c.b16 %v299, %v291
    %v412 = vpack.c.b16 %v300, %v292
    %v413 = vpack.c.b16 %v301, %v293
    %v414 = vpack.c.b16 %v302, %v294
    %v415 = vpack.c.b16 %v303, %v295
    %v416 = vpack.c.b16 %v304, %v296
    %v417 = vpack.c.b16 %v305, %v297
    %v418 = vpack.c.b16 %v314, %v306
    %v419 = vpack.c.b16 %v315, %v307
    %v420 = vpack.c.b16 %v316, %v308
    %v421 = vpack.c.b16 %v317, %v309
    %v422 = vpack.c.b16 %v318, %v310
    %v423 = vpack.c.b16 %v319, %v311
    %v424 = vpack.c.b16 %v320, %v312
    %v425 = vpack.c.b16 %v321, %v313
    %v426 = vpack.c.b16 %v330, %v322
    %v427 = vpack.c.b16 %v331, %v323
    %v428 = vpack.c.b16 %v332, %v324
    %v429 = vpack.c.b16 %v333, %v325
    %v430 = vpack.c.b16 %v334, %v326
    %v431 = vpack.c.b16 %v335, %v327
    %v432 = vpack.c.b16 %v336, %v328
    %v433 = vpack.c.b16 %v337, %v329
    %v434 = vpack.c.b16 %v346, %v338
    %v435 = vpack.c.b16 %v347, %v339
    %v436 = vpack.c.b16 %v348, %v340
    %v437 = vpack.c.b16 %v349, %v341
    %v438 = vpack.c.b16 %v350, %v342
    %v439 = vpack.c.b16 %v351, %v343
    %v440 = vpack.c.b16 %v352, %v344
    %v441 = vpack.c.b16 %v353, %v345
    %v442 = vpack.c.b16 %v362, %v354
    %v443 = vpack.c.b16 %v363, %v355
    %v444 = vpack.c.b16 %v364, %v356
    %v445 = vpack.c.b16 %v365, %v357
    %v446 = vpack.c.b16 %v366, %v358
    %v447 = vpack.c.b16 %v367, %v359
    %v448 = vpack.c.b16 %v368, %v360
    %v449 = vpack.c.b16 %v369, %v361
    %v450 = vpack.c.b16 %v378, %v370
    %v451 = vpack.c.b16 %v379, %v371
    %v452 = vpack.c.b16 %v380, %v372
    %v453 = vpack.c.b16 %v381, %v373
    %v454 = vpack.c.b16 %v382, %v374
    %v455 = vpack.c.b16 %v383, %v375
    %v456 = vpack.c.b16 %v384, %v376
    %v457 = vpack.c.b16 %v385, %v377
    %v458 = vpack.c.b16 %v394, %v386
    %v459 = vpack.c.b16 %v395, %v387
    %v460 = vpack.c.b16 %v396, %v388
    %v461 = vpack.c.b16 %v397, %v389
    %v462 = vpack.c.b16 %v398, %v390
    %v463 = vpack.c.b16 %v399, %v391
    %v464 = vpack.c.b16 %v400, %v392
    %v465 = vpack.c.b16 %v401, %v393
    %530 = vmatprep.subr.bf16.mxu0 %v459
    %531 = vmatpush1.bf16.msra.mxu0 %v458
    %532 = vmatprep.subr.bf16.mxu0 %v451
    %533 = vmatpush1.bf16.msra.mxu0 %v450
    %534 = vmatprep.subr.bf16.mxu0 %v443
    %535 = vmatpush1.bf16.msra.mxu0 %v442
    %536 = vmatprep.subr.bf16.mxu0 %v435
    %537 = vmatpush1.bf16.msra.mxu0 %v434
    %538 = vmatprep.subr.bf16.mxu0 %v427
    %539 = vmatpush1.bf16.msra.mxu0 %v426
    %540 = vmatprep.subr.bf16.mxu0 %v419
    %541 = vmatpush1.bf16.msra.mxu0 %v418
    %542 = vmatprep.subr.bf16.mxu0 %v411
    %543 = vmatpush1.bf16.msra.mxu0 %v410
    %544 = vmatprep.subr.bf16.mxu0 %v403
    %545 = vmatpush1.bf16.msra.mxu0 %v402
    %546 = vmatprep.subr.bf16.mxu0 0
    %547 = vmatpush2.bf16.msra.mxu0 0
    %548 = vmatprep.subr.bf16.mxu0 0
    %549 = vmatpush2.bf16.msra.mxu0 0
    %550 = vmatprep.subr.bf16.mxu0 0
    %551 = vmatpush2.bf16.msra.mxu0 0
    %552 = vmatprep.subr.bf16.mxu0 0
    %553 = vmatpush2.bf16.msra.mxu0 0
    %554 = vmatprep.subr.bf16.mxu0 0
    %555 = vmatpush2.bf16.msra.mxu0 0
    %556 = vmatprep.subr.bf16.mxu0 0
    %557 = vmatpush2.bf16.msra.mxu0 0
    %558 = vmatprep.subr.bf16.mxu0 0
    %559 = vmatpush2.bf16.msra.mxu0 0
    %560 = vmatprep.subr.bf16.mxu0 0
    %561 = vmatpush2.bf16.msra.mxu0 0
    %562 = vmatprep.mubr.bf16.mxu0 0
    %563 = vmatmul.mubr.bf16.gmra.mxu0 %v194
    %v564 = vpop.f32.mrf.mxu0
    %v565 = vadd.f32 0.0, %v564
    %v566 = vpop.f32.mrf.mxu0
    %v567 = vadd.f32 0.0, %v566
    %v568 = vpop.f32.mrf.mxu0
    %v569 = vadd.f32 0.0, %v568
    %v570 = vpop.f32.mrf.mxu0
    %v571 = vadd.f32 0.0, %v570
    %572 = vmatprep.mubr.bf16.mxu0 0
    %573 = vmatmul.mubr.bf16.gmra.mxu0 %v195
    %v574 = vpop.f32.mrf.mxu0
    %v575 = vadd.f32 0.0, %v574
    %v576 = vpop.f32.mrf.mxu0
    %v577 = vadd.f32 0.0, %v576
    %v578 = vpop.f32.mrf.mxu0
    %v579 = vadd.f32 0.0, %v578
    %v580 = vpop.f32.mrf.mxu0
    %v581 = vadd.f32 0.0, %v580
    %582 = vmatprep.mubr.bf16.mxu0 0
    %583 = vmatmul.mubr.bf16.gmra.mxu0 %v196
    %v584 = vpop.f32.mrf.mxu0
    %v585 = vadd.f32 0.0, %v584
    %v586 = vpop.f32.mrf.mxu0
    %v587 = vadd.f32 0.0, %v586
    %v588 = vpop.f32.mrf.mxu0
    %v589 = vadd.f32 0.0, %v588
    %v590 = vpop.f32.mrf.mxu0
    %v591 = vadd.f32 0.0, %v590
    %592 = vmatprep.mubr.bf16.mxu0 0
    %593 = vmatmul.mubr.bf16.gmra.mxu0 %v197
    %v594 = vpop.f32.mrf.mxu0
    %v595 = vadd.f32 0.0, %v594
    %v596 = vpop.f32.mrf.mxu0
    %v597 = vadd.f32 0.0, %v596
    %v598 = vpop.f32.mrf.mxu0
    %v599 = vadd.f32 0.0, %v598
    %v600 = vpop.f32.mrf.mxu0
    %v601 = vadd.f32 0.0, %v600
    %602 = vmatprep.mubr.bf16.mxu0 0
    %603 = vmatmul.mubr.bf16.gmra.mxu0 %v198
    %v604 = vpop.f32.mrf.mxu0
    %v605 = vadd.f32 0.0, %v604
    %v606 = vpop.f32.mrf.mxu0
    %v607 = vadd.f32 0.0, %v606
    %v608 = vpop.f32.mrf.mxu0
    %v609 = vadd.f32 0.0, %v608
    %v610 = vpop.f32.mrf.mxu0
    %v611 = vadd.f32 0.0, %v610
    %612 = vmatprep.mubr.bf16.mxu0 0
    %613 = vmatmul.mubr.bf16.gmra.mxu0 %v199
    %v614 = vpop.f32.mrf.mxu0
    %v615 = vadd.f32 0.0, %v614
    %v616 = vpop.f32.mrf.mxu0
    %v617 = vadd.f32 0.0, %v616
    %v618 = vpop.f32.mrf.mxu0
    %v619 = vadd.f32 0.0, %v618
    %v620 = vpop.f32.mrf.mxu0
    %v621 = vadd.f32 0.0, %v620
    %622 = vmatprep.mubr.bf16.mxu0 0
    %623 = vmatmul.mubr.bf16.gmra.mxu0 %v200
    %v624 = vpop.f32.mrf.mxu0
    %v625 = vadd.f32 0.0, %v624
    %v626 = vpop.f32.mrf.mxu0
    %v627 = vadd.f32 0.0, %v626
    %v628 = vpop.f32.mrf.mxu0
    %v629 = vadd.f32 0.0, %v628
    %v630 = vpop.f32.mrf.mxu0
    %v631 = vadd.f32 0.0, %v630
    %632 = vmatprep.mubr.bf16.mxu0 0
    %633 = vmatmul.mubr.bf16.gmra.mxu0 %v201
    %v634 = vpop.f32.mrf.mxu0
    %v635 = vadd.f32 0.0, %v634
    %v636 = vpop.f32.mrf.mxu0
    %v637 = vadd.f32 0.0, %v636
    %v638 = vpop.f32.mrf.mxu0
    %v639 = vadd.f32 0.0, %v638
    %v640 = vpop.f32.mrf.mxu0
    %v641 = vadd.f32 0.0, %v640
    %642 = vdwg.mxu0
    %643 = vmatprep.subr.bf16.mxu0 %v461
    %644 = vmatpush1.bf16.msra.mxu0 %v460
    %645 = vmatprep.subr.bf16.mxu0 %v453
    %646 = vmatpush1.bf16.msra.mxu0 %v452
    %647 = vmatprep.subr.bf16.mxu0 %v445
    %648 = vmatpush1.bf16.msra.mxu0 %v444
    %649 = vmatprep.subr.bf16.mxu0 %v437
    %650 = vmatpush1.bf16.msra.mxu0 %v436
    %651 = vmatprep.subr.bf16.mxu0 %v429
    %652 = vmatpush1.bf16.msra.mxu0 %v428
    %653 = vmatprep.subr.bf16.mxu0 %v421
    %654 = vmatpush1.bf16.msra.mxu0 %v420
    %655 = vmatprep.subr.bf16.mxu0 %v413
    %656 = vmatpush1.bf16.msra.mxu0 %v412
    %657 = vmatprep.subr.bf16.mxu0 %v405
    %658 = vmatpush1.bf16.msra.mxu0 %v404
    %659 = vmatprep.subr.bf16.mxu0 0
    %660 = vmatpush2.bf16.msra.mxu0 0
    %661 = vmatprep.subr.bf16.mxu0 0
    %662 = vmatpush2.bf16.msra.mxu0 0
    %663 = vmatprep.subr.bf16.mxu0 0
    %664 = vmatpush2.bf16.msra.mxu0 0
    %665 = vmatprep.subr.bf16.mxu0 0
    %666 = vmatpush2.bf16.msra.mxu0 0
    %667 = vmatprep.subr.bf16.mxu0 0
    %668 = vmatpush2.bf16.msra.mxu0 0
    %669 = vmatprep.subr.bf16.mxu0 0
    %670 = vmatpush2.bf16.msra.mxu0 0
    %671 = vmatprep.subr.bf16.mxu0 0
    %672 = vmatpush2.bf16.msra.mxu0 0
    %673 = vmatprep.subr.bf16.mxu0 0
    %674 = vmatpush2.bf16.msra.mxu0 0
    %675 = vmatprep.mubr.bf16.mxu0 0
    %676 = vmatmul.mubr.bf16.gmra.mxu0 %v194
    %v677 = vpop.f32.mrf.mxu0
    %v678 = vadd.f32 0.0, %v677
    %v679 = vpop.f32.mrf.mxu0
    %v680 = vadd.f32 0.0, %v679
    %v681 = vpop.f32.mrf.mxu0
    %v682 = vadd.f32 0.0, %v681
    %v683 = vpop.f32.mrf.mxu0
    %v684 = vadd.f32 0.0, %v683
    %685 = vmatprep.mubr.bf16.mxu0 0
    %686 = vmatmul.mubr.bf16.gmra.mxu0 %v195
    %v687 = vpop.f32.mrf.mxu0
    %v688 = vadd.f32 0.0, %v687
    %v689 = vpop.f32.mrf.mxu0
    %v690 = vadd.f32 0.0, %v689
    %v691 = vpop.f32.mrf.mxu0
    %v692 = vadd.f32 0.0, %v691
    %v693 = vpop.f32.mrf.mxu0
    %v694 = vadd.f32 0.0, %v693
    %695 = vmatprep.mubr.bf16.mxu0 0
    %696 = vmatmul.mubr.bf16.gmra.mxu0 %v196
    %v697 = vpop.f32.mrf.mxu0
    %v698 = vadd.f32 0.0, %v697
    %v699 = vpop.f32.mrf.mxu0
    %v700 = vadd.f32 0.0, %v699
    %v701 = vpop.f32.mrf.mxu0
    %v702 = vadd.f32 0.0, %v701
    %v703 = vpop.f32.mrf.mxu0
    %v704 = vadd.f32 0.0, %v703
    %705 = vmatprep.mubr.bf16.mxu0 0
    %706 = vmatmul.mubr.bf16.gmra.mxu0 %v197
    %v707 = vpop.f32.mrf.mxu0
    %v708 = vadd.f32 0.0, %v707
    %v709 = vpop.f32.mrf.mxu0
    %v710 = vadd.f32 0.0, %v709
    %v711 = vpop.f32.mrf.mxu0
    %v712 = vadd.f32 0.0, %v711
    %v713 = vpop.f32.mrf.mxu0
    %v714 = vadd.f32 0.0, %v713
    %715 = vmatprep.mubr.bf16.mxu0 0
    %716 = vmatmul.mubr.bf16.gmra.mxu0 %v198
    %v717 = vpop.f32.mrf.mxu0
    %v718 = vadd.f32 0.0, %v717
    %v719 = vpop.f32.mrf.mxu0
    %v720 = vadd.f32 0.0, %v719
    %v721 = vpop.f32.mrf.mxu0
    %v722 = vadd.f32 0.0, %v721
    %v723 = vpop.f32.mrf.mxu0
    %v724 = vadd.f32 0.0, %v723
    %725 = vmatprep.mubr.bf16.mxu0 0
    %726 = vmatmul.mubr.bf16.gmra.mxu0 %v199
    %v727 = vpop.f32.mrf.mxu0
    %v728 = vadd.f32 0.0, %v727
    %v729 = vpop.f32.mrf.mxu0
    %v730 = vadd.f32 0.0, %v729
    %v731 = vpop.f32.mrf.mxu0
    %v732 = vadd.f32 0.0, %v731
    %v733 = vpop.f32.mrf.mxu0
    %v734 = vadd.f32 0.0, %v733
    %735 = vmatprep.mubr.bf16.mxu0 0
    %736 = vmatmul.mubr.bf16.gmra.mxu0 %v200
    %v737 = vpop.f32.mrf.mxu0
    %v738 = vadd.f32 0.0, %v737
    %v739 = vpop.f32.mrf.mxu0
    %v740 = vadd.f32 0.0, %v739
    %v741 = vpop.f32.mrf.mxu0
    %v742 = vadd.f32 0.0, %v741
    %v743 = vpop.f32.mrf.mxu0
    %v744 = vadd.f32 0.0, %v743
    %745 = vmatprep.mubr.bf16.mxu0 0
    %746 = vmatmul.mubr.bf16.gmra.mxu0 %v201
    %v747 = vpop.f32.mrf.mxu0
    %v748 = vadd.f32 0.0, %v747
    %v749 = vpop.f32.mrf.mxu0
    %v750 = vadd.f32 0.0, %v749
    %v751 = vpop.f32.mrf.mxu0
    %v752 = vadd.f32 0.0, %v751
    %v753 = vpop.f32.mrf.mxu0
    %v754 = vadd.f32 0.0, %v753
    %755 = vdwg.mxu0
    %756 = vmatprep.subr.bf16.mxu0 %v463
    %757 = vmatpush1.bf16.msra.mxu0 %v462
    %758 = vmatprep.subr.bf16.mxu0 %v455
    %759 = vmatpush1.bf16.msra.mxu0 %v454
    %760 = vmatprep.subr.bf16.mxu0 %v447
    %761 = vmatpush1.bf16.msra.mxu0 %v446
    %762 = vmatprep.subr.bf16.mxu0 %v439
    %763 = vmatpush1.bf16.msra.mxu0 %v438
    %764 = vmatprep.subr.bf16.mxu0 %v431
    %765 = vmatpush1.bf16.msra.mxu0 %v430
    %766 = vmatprep.subr.bf16.mxu0 %v423
    %767 = vmatpush1.bf16.msra.mxu0 %v422
    %768 = vmatprep.subr.bf16.mxu0 %v415
    %769 = vmatpush1.bf16.msra.mxu0 %v414
    %770 = vmatprep.subr.bf16.mxu0 %v407
    %771 = vmatpush1.bf16.msra.mxu0 %v406
    %772 = vmatprep.subr.bf16.mxu0 0
    %773 = vmatpush2.bf16.msra.mxu0 0
    %774 = vmatprep.subr.bf16.mxu0 0
    %775 = vmatpush2.bf16.msra.mxu0 0
    %776 = vmatprep.subr.bf16.mxu0 0
    %777 = vmatpush2.bf16.msra.mxu0 0
    %778 = vmatprep.subr.bf16.mxu0 0
    %779 = vmatpush2.bf16.msra.mxu0 0
    %780 = vmatprep.subr.bf16.mxu0 0
    %781 = vmatpush2.bf16.msra.mxu0 0
    %782 = vmatprep.subr.bf16.mxu0 0
    %783 = vmatpush2.bf16.msra.mxu0 0
    %784 = vmatprep.subr.bf16.mxu0 0
    %785 = vmatpush2.bf16.msra.mxu0 0
    %786 = vmatprep.subr.bf16.mxu0 0
    %787 = vmatpush2.bf16.msra.mxu0 0
    %788 = vmatprep.mubr.bf16.mxu0 0
    %789 = vmatmul.mubr.bf16.gmra.mxu0 %v194
    %v790 = vpop.f32.mrf.mxu0
    %v791 = vadd.f32 0.0, %v790
    %v792 = vpop.f32.mrf.mxu0
    %v793 = vadd.f32 0.0, %v792
    %v794 = vpop.f32.mrf.mxu0
    %v795 = vadd.f32 0.0, %v794
    %v796 = vpop.f32.mrf.mxu0
    %v797 = vadd.f32 0.0, %v796
    %798 = vmatprep.mubr.bf16.mxu0 0
    %799 = vmatmul.mubr.bf16.gmra.mxu0 %v195
    %v800 = vpop.f32.mrf.mxu0
    %v801 = vadd.f32 0.0, %v800
    %v802 = vpop.f32.mrf.mxu0
    %v803 = vadd.f32 0.0, %v802
    %v804 = vpop.f32.mrf.mxu0
    %v805 = vadd.f32 0.0, %v804
    %v806 = vpop.f32.mrf.mxu0
    %v807 = vadd.f32 0.0, %v806
    %808 = vmatprep.mubr.bf16.mxu0 0
    %809 = vmatmul.mubr.bf16.gmra.mxu0 %v196
    %v810 = vpop.f32.mrf.mxu0
    %v811 = vadd.f32 0.0, %v810
    %v812 = vpop.f32.mrf.mxu0
    %v813 = vadd.f32 0.0, %v812
    %v814 = vpop.f32.mrf.mxu0
    %v815 = vadd.f32 0.0, %v814
    %v816 = vpop.f32.mrf.mxu0
    %v817 = vadd.f32 0.0, %v816
    %818 = vmatprep.mubr.bf16.mxu0 0
    %819 = vmatmul.mubr.bf16.gmra.mxu0 %v197
    %v820 = vpop.f32.mrf.mxu0
    %v821 = vadd.f32 0.0, %v820
    %v822 = vpop.f32.mrf.mxu0
    %v823 = vadd.f32 0.0, %v822
    %v824 = vpop.f32.mrf.mxu0
    %v825 = vadd.f32 0.0, %v824
    %v826 = vpop.f32.mrf.mxu0
    %v827 = vadd.f32 0.0, %v826
    %828 = vmatprep.mubr.bf16.mxu0 0
    %829 = vmatmul.mubr.bf16.gmra.mxu0 %v198
    %v830 = vpop.f32.mrf.mxu0
    %v831 = vadd.f32 0.0, %v830
    %v832 = vpop.f32.mrf.mxu0
    %v833 = vadd.f32 0.0, %v832
    %v834 = vpop.f32.mrf.mxu0
    %v835 = vadd.f32 0.0, %v834
    %v836 = vpop.f32.mrf.mxu0
    %v837 = vadd.f32 0.0, %v836
    %838 = vmatprep.mubr.bf16.mxu0 0
    %839 = vmatmul.mubr.bf16.gmra.mxu0 %v199
    %v840 = vpop.f32.mrf.mxu0
    %v841 = vadd.f32 0.0, %v840
    %v842 = vpop.f32.mrf.mxu0
    %v843 = vadd.f32 0.0, %v842
    %v844 = vpop.f32.mrf.mxu0
    %v845 = vadd.f32 0.0, %v844
    %v846 = vpop.f32.mrf.mxu0
    %v847 = vadd.f32 0.0, %v846
    %848 = vmatprep.mubr.bf16.mxu0 0
    %849 = vmatmul.mubr.bf16.gmra.mxu0 %v200
    %v850 = vpop.f32.mrf.mxu0
    %v851 = vadd.f32 0.0, %v850
    %v852 = vpop.f32.mrf.mxu0
    %v853 = vadd.f32 0.0, %v852
    %v854 = vpop.f32.mrf.mxu0
    %v855 = vadd.f32 0.0, %v854
    %v856 = vpop.f32.mrf.mxu0
    %v857 = vadd.f32 0.0, %v856
    %858 = vmatprep.mubr.bf16.mxu0 0
    %859 = vmatmul.mubr.bf16.gmra.mxu0 %v201
    %v860 = vpop.f32.mrf.mxu0
    %v861 = vadd.f32 0.0, %v860
    %v862 = vpop.f32.mrf.mxu0
    %v863 = vadd.f32 0.0, %v862
    %v864 = vpop.f32.mrf.mxu0
    %v865 = vadd.f32 0.0, %v864
    %v866 = vpop.f32.mrf.mxu0
    %v867 = vadd.f32 0.0, %v866
    %868 = vdwg.mxu0
    %869 = vmatprep.subr.bf16.mxu0 %v465
    %870 = vmatpush1.bf16.msra.mxu0 %v464
    %871 = vmatprep.subr.bf16.mxu0 %v457
    %872 = vmatpush1.bf16.msra.mxu0 %v456
    %873 = vmatprep.subr.bf16.mxu0 %v449
    %874 = vmatpush1.bf16.msra.mxu0 %v448
    %875 = vmatprep.subr.bf16.mxu0 %v441
    %876 = vmatpush1.bf16.msra.mxu0 %v440
    %877 = vmatprep.subr.bf16.mxu0 %v433
    %878 = vmatpush1.bf16.msra.mxu0 %v432
    %879 = vmatprep.subr.bf16.mxu0 %v425
    %880 = vmatpush1.bf16.msra.mxu0 %v424
    %881 = vmatprep.subr.bf16.mxu0 %v417
    %882 = vmatpush1.bf16.msra.mxu0 %v416
    %883 = vmatprep.subr.bf16.mxu0 %v409
    %884 = vmatpush1.bf16.msra.mxu0 %v408
    %885 = vmatprep.subr.bf16.mxu0 0
    %886 = vmatpush2.bf16.msra.mxu0 0
    %887 = vmatprep.subr.bf16.mxu0 0
    %888 = vmatpush2.bf16.msra.mxu0 0
    %889 = vmatprep.subr.bf16.mxu0 0
    %890 = vmatpush2.bf16.msra.mxu0 0
    %891 = vmatprep.subr.bf16.mxu0 0
    %892 = vmatpush2.bf16.msra.mxu0 0
    %893 = vmatprep.subr.bf16.mxu0 0
    %894 = vmatpush2.bf16.msra.mxu0 0
    %895 = vmatprep.subr.bf16.mxu0 0
    %896 = vmatpush2.bf16.msra.mxu0 0
    %897 = vmatprep.subr.bf16.mxu0 0
    %898 = vmatpush2.bf16.msra.mxu0 0
    %899 = vmatprep.subr.bf16.mxu0 0
    %900 = vmatpush2.bf16.msra.mxu0 0
    %901 = vmatprep.mubr.bf16.mxu0 0
    %902 = vmatmul.mubr.bf16.gmra.mxu0 %v194
    %v903 = vpop.f32.mrf.mxu0
    %v904 = vadd.f32 0.0, %v903
    %v905 = vpop.f32.mrf.mxu0
    %v906 = vadd.f32 0.0, %v905
    %v907 = vpop.f32.mrf.mxu0
    %v908 = vadd.f32 0.0, %v907
    %v909 = vpop.f32.mrf.mxu0
    %v910 = vadd.f32 0.0, %v909
    %911 = vmatprep.mubr.bf16.mxu0 0
    %912 = vmatmul.mubr.bf16.gmra.mxu0 %v195
    %v913 = vpop.f32.mrf.mxu0
    %v914 = vadd.f32 0.0, %v913
    %v915 = vpop.f32.mrf.mxu0
    %v916 = vadd.f32 0.0, %v915
    %v917 = vpop.f32.mrf.mxu0
    %v918 = vadd.f32 0.0, %v917
    %v919 = vpop.f32.mrf.mxu0
    %v920 = vadd.f32 0.0, %v919
    %921 = vmatprep.mubr.bf16.mxu0 0
    %922 = vmatmul.mubr.bf16.gmra.mxu0 %v196
    %v923 = vpop.f32.mrf.mxu0
    %v924 = vadd.f32 0.0, %v923
    %v925 = vpop.f32.mrf.mxu0
    %v926 = vadd.f32 0.0, %v925
    %v927 = vpop.f32.mrf.mxu0
    %v928 = vadd.f32 0.0, %v927
    %v929 = vpop.f32.mrf.mxu0
    %v930 = vadd.f32 0.0, %v929
    %931 = vmatprep.mubr.bf16.mxu0 0
    %932 = vmatmul.mubr.bf16.gmra.mxu0 %v197
    %v933 = vpop.f32.mrf.mxu0
    %v934 = vadd.f32 0.0, %v933
    %v935 = vpop.f32.mrf.mxu0
    %v936 = vadd.f32 0.0, %v935
    %v937 = vpop.f32.mrf.mxu0
    %v938 = vadd.f32 0.0, %v937
    %v939 = vpop.f32.mrf.mxu0
    %v940 = vadd.f32 0.0, %v939
    %941 = vmatprep.mubr.bf16.mxu0 0
    %942 = vmatmul.mubr.bf16.gmra.mxu0 %v198
    %v943 = vpop.f32.mrf.mxu0
    %v944 = vadd.f32 0.0, %v943
    %v945 = vpop.f32.mrf.mxu0
    %v946 = vadd.f32 0.0, %v945
    %v947 = vpop.f32.mrf.mxu0
    %v948 = vadd.f32 0.0, %v947
    %v949 = vpop.f32.mrf.mxu0
    %v950 = vadd.f32 0.0, %v949
    %951 = vmatprep.mubr.bf16.mxu0 0
    %952 = vmatmul.mubr.bf16.gmra.mxu0 %v199
    %v953 = vpop.f32.mrf.mxu0
    %v954 = vadd.f32 0.0, %v953
    %v955 = vpop.f32.mrf.mxu0
    %v956 = vadd.f32 0.0, %v955
    %v957 = vpop.f32.mrf.mxu0
    %v958 = vadd.f32 0.0, %v957
    %v959 = vpop.f32.mrf.mxu0
    %v960 = vadd.f32 0.0, %v959
    %961 = vmatprep.mubr.bf16.mxu0 0
    %962 = vmatmul.mubr.bf16.gmra.mxu0 %v200
    %v963 = vpop.f32.mrf.mxu0
    %v964 = vadd.f32 0.0, %v963
    %v965 = vpop.f32.mrf.mxu0
    %v966 = vadd.f32 0.0, %v965
    %v967 = vpop.f32.mrf.mxu0
    %v968 = vadd.f32 0.0, %v967
    %v969 = vpop.f32.mrf.mxu0
    %v970 = vadd.f32 0.0, %v969
    %971 = vmatprep.mubr.bf16.mxu0 0
    %972 = vmatmul.mubr.bf16.gmra.mxu0 %v201
    %v973 = vpop.f32.mrf.mxu0
    %v974 = vadd.f32 0.0, %v973
    %v975 = vpop.f32.mrf.mxu0
    %v976 = vadd.f32 0.0, %v975
    %v977 = vpop.f32.mrf.mxu0
    %v978 = vadd.f32 0.0, %v977
    %v979 = vpop.f32.mrf.mxu0
    %v980 = vadd.f32 0.0, %v979
    %981 = vdwg.mxu0
    %v982 = vpack.c.bf16 %v569, %v565
    %v983 = vpack.c.bf16 %v571, %v567
    %v984 = vpack.c.bf16 %v682, %v678
    %v985 = vpack.c.bf16 %v684, %v680
    %v986 = vpack.c.bf16 %v795, %v791
    %v987 = vpack.c.bf16 %v797, %v793
    %v988 = vpack.c.bf16 %v908, %v904
    %v989 = vpack.c.bf16 %v910, %v906
    %v990 = vpack.c.bf16 %v579, %v575
    %v991 = vpack.c.bf16 %v581, %v577
    %v992 = vpack.c.bf16 %v692, %v688
    %v993 = vpack.c.bf16 %v694, %v690
    %v994 = vpack.c.bf16 %v805, %v801
    %v995 = vpack.c.bf16 %v807, %v803
    %v996 = vpack.c.bf16 %v918, %v914
    %v997 = vpack.c.bf16 %v920, %v916
    %v998 = vpack.c.bf16 %v589, %v585
    %v999 = vpack.c.bf16 %v591, %v587
    %v1000 = vpack.c.bf16 %v702, %v698
    %v1001 = vpack.c.bf16 %v704, %v700
    %v1002 = vpack.c.bf16 %v815, %v811
    %v1003 = vpack.c.bf16 %v817, %v813
    %v1004 = vpack.c.bf16 %v928, %v924
    %v1005 = vpack.c.bf16 %v930, %v926
    %v1006 = vpack.c.bf16 %v599, %v595
    %v1007 = vpack.c.bf16 %v601, %v597
    %v1008 = vpack.c.bf16 %v712, %v708
    %v1009 = vpack.c.bf16 %v714, %v710
    %v1010 = vpack.c.bf16 %v825, %v821
    %v1011 = vpack.c.bf16 %v827, %v823
    %v1012 = vpack.c.bf16 %v938, %v934
    %v1013 = vpack.c.bf16 %v940, %v936
    %v1014 = vpack.c.bf16 %v609, %v605
    %v1015 = vpack.c.bf16 %v611, %v607
    %v1016 = vpack.c.bf16 %v722, %v718
    %v1017 = vpack.c.bf16 %v724, %v720
    %v1018 = vpack.c.bf16 %v835, %v831
    %v1019 = vpack.c.bf16 %v837, %v833
    %v1020 = vpack.c.bf16 %v948, %v944
    %v1021 = vpack.c.bf16 %v950, %v946
    %v1022 = vpack.c.bf16 %v619, %v615
    %v1023 = vpack.c.bf16 %v621, %v617
    %v1024 = vpack.c.bf16 %v732, %v728
    %v1025 = vpack.c.bf16 %v734, %v730
    %v1026 = vpack.c.bf16 %v845, %v841
    %v1027 = vpack.c.bf16 %v847, %v843
    %v1028 = vpack.c.bf16 %v958, %v954
    %v1029 = vpack.c.bf16 %v960, %v956
    %v1030 = vpack.c.bf16 %v629, %v625
    %v1031 = vpack.c.bf16 %v631, %v627
    %v1032 = vpack.c.bf16 %v742, %v738
    %v1033 = vpack.c.bf16 %v744, %v740
    %v1034 = vpack.c.bf16 %v855, %v851
    %v1035 = vpack.c.bf16 %v857, %v853
    %v1036 = vpack.c.bf16 %v968, %v964
    %v1037 = vpack.c.bf16 %v970, %v966
    %v1038 = vpack.c.bf16 %v639, %v635
    %v1039 = vpack.c.bf16 %v641, %v637
    %v1040 = vpack.c.bf16 %v752, %v748
    %v1041 = vpack.c.bf16 %v754, %v750
    %v1042 = vpack.c.bf16 %v865, %v861
    %v1043 = vpack.c.bf16 %v867, %v863
    %v1044 = vpack.c.bf16 %v978, %v974
    %v1045 = vpack.c.bf16 %v980, %v976
    %v1078 = vunpack.c.l.b16 %v982
    %v1079 = vunpack.c.l.b16 %v983
    %v1080 = vunpack.c.l.b16 %v984
    %v1081 = vunpack.c.l.b16 %v985
    %v1082 = vunpack.c.h.b16 %v982
    %v1083 = vunpack.c.h.b16 %v983
    %v1084 = vunpack.c.h.b16 %v984
    %v1085 = vunpack.c.h.b16 %v985
    %v1086 = vunpack.c.l.b16 %v990
    %v1087 = vunpack.c.l.b16 %v991
    %v1088 = vunpack.c.l.b16 %v992
    %v1089 = vunpack.c.l.b16 %v993
    %v1090 = vunpack.c.h.b16 %v990
    %v1091 = vunpack.c.h.b16 %v991
    %v1092 = vunpack.c.h.b16 %v992
    %v1093 = vunpack.c.h.b16 %v993
    %v1094 = vunpack.c.l.b16 %v998
    %v1095 = vunpack.c.l.b16 %v999
    %v1096 = vunpack.c.l.b16 %v1000
    %v1097 = vunpack.c.l.b16 %v1001
    %v1098 = vunpack.c.h.b16 %v998
    %v1099 = vunpack.c.h.b16 %v999
    %v1100 = vunpack.c.h.b16 %v1000
    %v1101 = vunpack.c.h.b16 %v1001
    %v1102 = vunpack.c.l.b16 %v1006
    %v1103 = vunpack.c.l.b16 %v1007
    %v1104 = vunpack.c.l.b16 %v1008
    %v1105 = vunpack.c.l.b16 %v1009
    %v1106 = vunpack.c.h.b16 %v1006
    %v1107 = vunpack.c.h.b16 %v1007
    %v1108 = vunpack.c.h.b16 %v1008
    %v1109 = vunpack.c.h.b16 %v1009
    %v1110 = vunpack.c.l.b16 %v1014
    %v1111 = vunpack.c.l.b16 %v1015
    %v1112 = vunpack.c.l.b16 %v1016
    %v1113 = vunpack.c.l.b16 %v1017
    %v1114 = vunpack.c.h.b16 %v1014
    %v1115 = vunpack.c.h.b16 %v1015
    %v1116 = vunpack.c.h.b16 %v1016
    %v1117 = vunpack.c.h.b16 %v1017
    %v1118 = vunpack.c.l.b16 %v1022
    %v1119 = vunpack.c.l.b16 %v1023
    %v1120 = vunpack.c.l.b16 %v1024
    %v1121 = vunpack.c.l.b16 %v1025
    %v1122 = vunpack.c.h.b16 %v1022
    %v1123 = vunpack.c.h.b16 %v1023
    %v1124 = vunpack.c.h.b16 %v1024
    %v1125 = vunpack.c.h.b16 %v1025
    %v1126 = vunpack.c.l.b16 %v1030
    %v1127 = vunpack.c.l.b16 %v1031
    %v1128 = vunpack.c.l.b16 %v1032
    %v1129 = vunpack.c.l.b16 %v1033
    %v1130 = vunpack.c.h.b16 %v1030
    %v1131 = vunpack.c.h.b16 %v1031
    %v1132 = vunpack.c.h.b16 %v1032
    %v1133 = vunpack.c.h.b16 %v1033
    %v1134 = vunpack.c.l.b16 %v1038
    %v1135 = vunpack.c.l.b16 %v1039
    %v1136 = vunpack.c.l.b16 %v1040
    %v1137 = vunpack.c.l.b16 %v1041
    %v1138 = vunpack.c.h.b16 %v1038
    %v1139 = vunpack.c.h.b16 %v1039
    %v1140 = vunpack.c.h.b16 %v1040
    %v1141 = vunpack.c.h.b16 %v1041
    %v1142 = vpack.c.b16 %v1079, %v1078
    %v1143 = vpack.c.b16 %v1081, %v1080
    %v1144 = vpack.c.b16 %v1083, %v1082
    %v1145 = vpack.c.b16 %v1085, %v1084
    %v1146 = vpack.c.b16 %v1087, %v1086
    %v1147 = vpack.c.b16 %v1089, %v1088
    %v1148 = vpack.c.b16 %v1091, %v1090
    %v1149 = vpack.c.b16 %v1093, %v1092
    %v1150 = vpack.c.b16 %v1095, %v1094
    %v1151 = vpack.c.b16 %v1097, %v1096
    %v1152 = vpack.c.b16 %v1099, %v1098
    %v1153 = vpack.c.b16 %v1101, %v1100
    %v1154 = vpack.c.b16 %v1103, %v1102
    %v1155 = vpack.c.b16 %v1105, %v1104
    %v1156 = vpack.c.b16 %v1107, %v1106
    %v1157 = vpack.c.b16 %v1109, %v1108
    %v1158 = vpack.c.b16 %v1111, %v1110
    %v1159 = vpack.c.b16 %v1113, %v1112
    %v1160 = vpack.c.b16 %v1115, %v1114
    %v1161 = vpack.c.b16 %v1117, %v1116
    %v1162 = vpack.c.b16 %v1119, %v1118
    %v1163 = vpack.c.b16 %v1121, %v1120
    %v1164 = vpack.c.b16 %v1123, %v1122
    %v1165 = vpack.c.b16 %v1125, %v1124
    %v1166 = vpack.c.b16 %v1127, %v1126
    %v1167 = vpack.c.b16 %v1129, %v1128
    %v1168 = vpack.c.b16 %v1131, %v1130
    %v1169 = vpack.c.b16 %v1133, %v1132
    %v1170 = vpack.c.b16 %v1135, %v1134
    %v1171 = vpack.c.b16 %v1137, %v1136
    %v1172 = vpack.c.b16 %v1139, %v1138
    %v1173 = vpack.c.b16 %v1141, %v1140
    %1206 = vst [vmem:[#allocation2] sm:$0xff] %v1142
    %1207 = vst [vmem:[#allocation2 + $0x8] sm:$0xff] %v1143
    %1208 = vst [vmem:[#allocation2 + $0x10] sm:$0xff] %v1144
    %1209 = vst [vmem:[#allocation2 + $0x18] sm:$0xff] %v1145
    %1210 = vst [vmem:[#allocation2 + $0x20] sm:$0xff] %v1146
    %1211 = vst [vmem:[#allocation2 + $0x28] sm:$0xff] %v1147
    %1212 = vst [vmem:[#allocation2 + $0x30] sm:$0xff] %v1148
    %1213 = vst [vmem:[#allocation2 + $0x38] sm:$0xff] %v1149
    %1214 = vst [vmem:[#allocation2 + $0x40] sm:$0xff] %v1150
    %1215 = vst [vmem:[#allocation2 + $0x48] sm:$0xff] %v1151
    %1216 = vst [vmem:[#allocation2 + $0x50] sm:$0xff] %v1152
    %1217 = vst [vmem:[#allocation2 + $0x58] sm:$0xff] %v1153
    %1218 = vst [vmem:[#allocation2 + $0x60] sm:$0xff] %v1154
    %1219 = vst [vmem:[#allocation2 + $0x68] sm:$0xff] %v1155
    %1220 = vst [vmem:[#allocation2 + $0x70] sm:$0xff] %v1156
    %1221 = vst [vmem:[#allocation2 + $0x78] sm:$0xff] %v1157
    %1222 = vst [vmem:[#allocation2 + $0x80] sm:$0xff] %v1158
    %1223 = vst [vmem:[#allocation2 + $0x88] sm:$0xff] %v1159
    %1224 = vst [vmem:[#allocation2 + $0x90] sm:$0xff] %v1160
    %1225 = vst [vmem:[#allocation2 + $0x98] sm:$0xff] %v1161
    %1226 = vst [vmem:[#allocation2 + $0xa0] sm:$0xff] %v1162
    %1227 = vst [vmem:[#allocation2 + $0xa8] sm:$0xff] %v1163
    %1228 = vst [vmem:[#allocation2 + $0xb0] sm:$0xff] %v1164
    %1229 = vst [vmem:[#allocation2 + $0xb8] sm:$0xff] %v1165
    %1230 = vst [vmem:[#allocation2 + $0xc0] sm:$0xff] %v1166
    %1231 = vst [vmem:[#allocation2 + $0xc8] sm:$0xff] %v1167
    %1232 = vst [vmem:[#allocation2 + $0xd0] sm:$0xff] %v1168
    %1233 = vst [vmem:[#allocation2 + $0xd8] sm:$0xff] %v1169
    %1234 = vst [vmem:[#allocation2 + $0xe0] sm:$0xff] %v1170
    %1235 = vst [vmem:[#allocation2 + $0xe8] sm:$0xff] %v1171
    %1236 = vst [vmem:[#allocation2 + $0xf0] sm:$0xff] %v1172
    %1237 = vst [vmem:[#allocation2 + $0xf8] sm:$0xff] %v1173
    %v1270 = vunpack.c.l.b16 %v986
    %v1271 = vunpack.c.l.b16 %v987
    %v1272 = vunpack.c.l.b16 %v988
    %v1273 = vunpack.c.l.b16 %v989
    %v1274 = vunpack.c.h.b16 %v986
    %v1275 = vunpack.c.h.b16 %v987
    %v1276 = vunpack.c.h.b16 %v988
    %v1277 = vunpack.c.h.b16 %v989
    %v1278 = vunpack.c.l.b16 %v994
    %v1279 = vunpack.c.l.b16 %v995
    %v1280 = vunpack.c.l.b16 %v996
    %v1281 = vunpack.c.l.b16 %v997
    %v1282 = vunpack.c.h.b16 %v994
    %v1283 = vunpack.c.h.b16 %v995
    %v1284 = vunpack.c.h.b16 %v996
    %v1285 = vunpack.c.h.b16 %v997
    %v1286 = vunpack.c.l.b16 %v1002
    %v1287 = vunpack.c.l.b16 %v1003
    %v1288 = vunpack.c.l.b16 %v1004
    %v1289 = vunpack.c.l.b16 %v1005
    %v1290 = vunpack.c.h.b16 %v1002
    %v1291 = vunpack.c.h.b16 %v1003
    %v1292 = vunpack.c.h.b16 %v1004
    %v1293 = vunpack.c.h.b16 %v1005
    %v1294 = vunpack.c.l.b16 %v1010
    %v1295 = vunpack.c.l.b16 %v1011
    %v1296 = vunpack.c.l.b16 %v1012
    %v1297 = vunpack.c.l.b16 %v1013
    %v1298 = vunpack.c.h.b16 %v1010
    %v1299 = vunpack.c.h.b16 %v1011
    %v1300 = vunpack.c.h.b16 %v1012
    %v1301 = vunpack.c.h.b16 %v1013
    %v1302 = vunpack.c.l.b16 %v1018
    %v1303 = vunpack.c.l.b16 %v1019
    %v1304 = vunpack.c.l.b16 %v1020
    %v1305 = vunpack.c.l.b16 %v1021
    %v1306 = vunpack.c.h.b16 %v1018
    %v1307 = vunpack.c.h.b16 %v1019
    %v1308 = vunpack.c.h.b16 %v1020
    %v1309 = vunpack.c.h.b16 %v1021
    %v1310 = vunpack.c.l.b16 %v1026
    %v1311 = vunpack.c.l.b16 %v1027
    %v1312 = vunpack.c.l.b16 %v1028
    %v1313 = vunpack.c.l.b16 %v1029
    %v1314 = vunpack.c.h.b16 %v1026
    %v1315 = vunpack.c.h.b16 %v1027
    %v1316 = vunpack.c.h.b16 %v1028
    %v1317 = vunpack.c.h.b16 %v1029
    %v1318 = vunpack.c.l.b16 %v1034
    %v1319 = vunpack.c.l.b16 %v1035
    %v1320 = vunpack.c.l.b16 %v1036
    %v1321 = vunpack.c.l.b16 %v1037
    %v1322 = vunpack.c.h.b16 %v1034
    %v1323 = vunpack.c.h.b16 %v1035
    %v1324 = vunpack.c.h.b16 %v1036
    %v1325 = vunpack.c.h.b16 %v1037
    %v1326 = vunpack.c.l.b16 %v1042
    %v1327 = vunpack.c.l.b16 %v1043
    %v1328 = vunpack.c.l.b16 %v1044
    %v1329 = vunpack.c.l.b16 %v1045
    %v1330 = vunpack.c.h.b16 %v1042
    %v1331 = vunpack.c.h.b16 %v1043
    %v1332 = vunpack.c.h.b16 %v1044
    %v1333 = vunpack.c.h.b16 %v1045
    %v1334 = vpack.c.b16 %v1271, %v1270
    %v1335 = vpack.c.b16 %v1273, %v1272
    %v1336 = vpack.c.b16 %v1275, %v1274
    %v1337 = vpack.c.b16 %v1277, %v1276
    %v1338 = vpack.c.b16 %v1279, %v1278
    %v1339 = vpack.c.b16 %v1281, %v1280
    %v1340 = vpack.c.b16 %v1283, %v1282
    %v1341 = vpack.c.b16 %v1285, %v1284
    %v1342 = vpack.c.b16 %v1287, %v1286
    %v1343 = vpack.c.b16 %v1289, %v1288
    %v1344 = vpack.c.b16 %v1291, %v1290
    %v1345 = vpack.c.b16 %v1293, %v1292
    %v1346 = vpack.c.b16 %v1295, %v1294
    %v1347 = vpack.c.b16 %v1297, %v1296
    %v1348 = vpack.c.b16 %v1299, %v1298
    %v1349 = vpack.c.b16 %v1301, %v1300
    %v1350 = vpack.c.b16 %v1303, %v1302
    %v1351 = vpack.c.b16 %v1305, %v1304
    %v1352 = vpack.c.b16 %v1307, %v1306
    %v1353 = vpack.c.b16 %v1309, %v1308
    %v1354 = vpack.c.b16 %v1311, %v1310
    %v1355 = vpack.c.b16 %v1313, %v1312
    %v1356 = vpack.c.b16 %v1315, %v1314
    %v1357 = vpack.c.b16 %v1317, %v1316
    %v1358 = vpack.c.b16 %v1319, %v1318
    %v1359 = vpack.c.b16 %v1321, %v1320
    %v1360 = vpack.c.b16 %v1323, %v1322
    %v1361 = vpack.c.b16 %v1325, %v1324
    %v1362 = vpack.c.b16 %v1327, %v1326
    %v1363 = vpack.c.b16 %v1329, %v1328
    %v1364 = vpack.c.b16 %v1331, %v1330
    %v1365 = vpack.c.b16 %v1333, %v1332
    %1398 = vst [vmem:[#allocation3] sm:$0xff] %v1334
    %1399 = vst [vmem:[#allocation3 + $0x8] sm:$0xff] %v1335
    %1400 = vst [vmem:[#allocation3 + $0x10] sm:$0xff] %v1336
    %1401 = vst [vmem:[#allocation3 + $0x18] sm:$0xff] %v1337
    %1402 = vst [vmem:[#allocation3 + $0x20] sm:$0xff] %v1338
    %1403 = vst [vmem:[#allocation3 + $0x28] sm:$0xff] %v1339
    %1404 = vst [vmem:[#allocation3 + $0x30] sm:$0xff] %v1340
    %1405 = vst [vmem:[#allocation3 + $0x38] sm:$0xff] %v1341
    %1406 = vst [vmem:[#allocation3 + $0x40] sm:$0xff] %v1342
    %1407 = vst [vmem:[#allocation3 + $0x48] sm:$0xff] %v1343
    %1408 = vst [vmem:[#allocation3 + $0x50] sm:$0xff] %v1344
    %1409 = vst [vmem:[#allocation3 + $0x58] sm:$0xff] %v1345
    %1410 = vst [vmem:[#allocation3 + $0x60] sm:$0xff] %v1346
    %1411 = vst [vmem:[#allocation3 + $0x68] sm:$0xff] %v1347
    %1412 = vst [vmem:[#allocation3 + $0x70] sm:$0xff] %v1348
    %1413 = vst [vmem:[#allocation3 + $0x78] sm:$0xff] %v1349
    %1414 = vst [vmem:[#allocation3 + $0x80] sm:$0xff] %v1350
    %1415 = vst [vmem:[#allocation3 + $0x88] sm:$0xff] %v1351
    %1416 = vst [vmem:[#allocation3 + $0x90] sm:$0xff] %v1352
    %1417 = vst [vmem:[#allocation3 + $0x98] sm:$0xff] %v1353
    %1418 = vst [vmem:[#allocation3 + $0xa0] sm:$0xff] %v1354
    %1419 = vst [vmem:[#allocation3 + $0xa8] sm:$0xff] %v1355
    %1420 = vst [vmem:[#allocation3 + $0xb0] sm:$0xff] %v1356
    %1421 = vst [vmem:[#allocation3 + $0xb8] sm:$0xff] %v1357
    %1422 = vst [vmem:[#allocation3 + $0xc0] sm:$0xff] %v1358
    %1423 = vst [vmem:[#allocation3 + $0xc8] sm:$0xff] %v1359
    %1424 = vst [vmem:[#allocation3 + $0xd0] sm:$0xff] %v1360
    %1425 = vst [vmem:[#allocation3 + $0xd8] sm:$0xff] %v1361
    %1426 = vst [vmem:[#allocation3 + $0xe0] sm:$0xff] %v1362
    %1427 = vst [vmem:[#allocation3 + $0xe8] sm:$0xff] %v1363
    %1428 = vst [vmem:[#allocation3 + $0xf0] sm:$0xff] %v1364
    %1429 = vst [vmem:[#allocation3 + $0xf8] sm:$0xff] %v1365
    %v1430 = vld [vmem:[#allocation9] sm:$0xff]
    %v1431 = vld [vmem:[#allocation9 + $0x8] sm:$0xff]
    %v1432 = vld [vmem:[#allocation9 + $0x10] sm:$0xff]
    %v1433 = vld [vmem:[#allocation9 + $0x18] sm:$0xff]
    %v1434 = vld [vmem:[#allocation9 + $0x20] sm:$0xff]
    %v1435 = vld [vmem:[#allocation9 + $0x28] sm:$0xff]
    %v1436 = vld [vmem:[#allocation9 + $0x30] sm:$0xff]
    %v1437 = vld [vmem:[#allocation9 + $0x38] sm:$0xff]
    %v1438 = vld [vmem:[#allocation9 + $0x40] sm:$0xff]
    %v1439 = vld [vmem:[#allocation9 + $0x48] sm:$0xff]
    %v1440 = vld [vmem:[#allocation9 + $0x50] sm:$0xff]
    %v1441 = vld [vmem:[#allocation9 + $0x58] sm:$0xff]
    %v1442 = vld [vmem:[#allocation9 + $0x60] sm:$0xff]
    %v1443 = vld [vmem:[#allocation9 + $0x68] sm:$0xff]
    %v1444 = vld [vmem:[#allocation9 + $0x70] sm:$0xff]
    %v1445 = vld [vmem:[#allocation9 + $0x78] sm:$0xff]
    %v1446 = vld [vmem:[#allocation9 + $0x80] sm:$0xff]
    %v1447 = vld [vmem:[#allocation9 + $0x88] sm:$0xff]
    %v1448 = vld [vmem:[#allocation9 + $0x90] sm:$0xff]
    %v1449 = vld [vmem:[#allocation9 + $0x98] sm:$0xff]
    %v1450 = vld [vmem:[#allocation9 + $0xa0] sm:$0xff]
    %v1451 = vld [vmem:[#allocation9 + $0xa8] sm:$0xff]
    %v1452 = vld [vmem:[#allocation9 + $0xb0] sm:$0xff]
    %v1453 = vld [vmem:[#allocation9 + $0xb8] sm:$0xff]
    %v1454 = vld [vmem:[#allocation9 + $0xc0] sm:$0xff]
    %v1455 = vld [vmem:[#allocation9 + $0xc8] sm:$0xff]
    %v1456 = vld [vmem:[#allocation9 + $0xd0] sm:$0xff]
    %v1457 = vld [vmem:[#allocation9 + $0xd8] sm:$0xff]
    %v1458 = vld [vmem:[#allocation9 + $0xe0] sm:$0xff]
    %v1459 = vld [vmem:[#allocation9 + $0xe8] sm:$0xff]
    %v1460 = vld [vmem:[#allocation9 + $0xf0] sm:$0xff]
    %v1461 = vld [vmem:[#allocation9 + $0xf8] sm:$0xff]
    %v1462 = vld [vmem:[#allocation10] sm:$0xff]
    %v1463 = vld [vmem:[#allocation10 + $0x8] sm:$0xff]
    %v1464 = vld [vmem:[#allocation10 + $0x10] sm:$0xff]
    %v1465 = vld [vmem:[#allocation10 + $0x18] sm:$0xff]
    %v1466 = vld [vmem:[#allocation10 + $0x20] sm:$0xff]
    %v1467 = vld [vmem:[#allocation10 + $0x28] sm:$0xff]
    %v1468 = vld [vmem:[#allocation10 + $0x30] sm:$0xff]
    %v1469 = vld [vmem:[#allocation10 + $0x38] sm:$0xff]
    %v1470 = vld [vmem:[#allocation10 + $0x40] sm:$0xff]
    %v1471 = vld [vmem:[#allocation10 + $0x48] sm:$0xff]
    %v1472 = vld [vmem:[#allocation10 + $0x50] sm:$0xff]
    %v1473 = vld [vmem:[#allocation10 + $0x58] sm:$0xff]
    %v1474 = vld [vmem:[#allocation10 + $0x60] sm:$0xff]
    %v1475 = vld [vmem:[#allocation10 + $0x68] sm:$0xff]
    %v1476 = vld [vmem:[#allocation10 + $0x70] sm:$0xff]
    %v1477 = vld [vmem:[#allocation10 + $0x78] sm:$0xff]
    %v1478 = vld [vmem:[#allocation10 + $0x80] sm:$0xff]
    %v1479 = vld [vmem:[#allocation10 + $0x88] sm:$0xff]
    %v1480 = vld [vmem:[#allocation10 + $0x90] sm:$0xff]
    %v1481 = vld [vmem:[#allocation10 + $0x98] sm:$0xff]
    %v1482 = vld [vmem:[#allocation10 + $0xa0] sm:$0xff]
    %v1483 = vld [vmem:[#allocation10 + $0xa8] sm:$0xff]
    %v1484 = vld [vmem:[#allocation10 + $0xb0] sm:$0xff]
    %v1485 = vld [vmem:[#allocation10 + $0xb8] sm:$0xff]
    %v1486 = vld [vmem:[#allocation10 + $0xc0] sm:$0xff]
    %v1487 = vld [vmem:[#allocation10 + $0xc8] sm:$0xff]
    %v1488 = vld [vmem:[#allocation10 + $0xd0] sm:$0xff]
    %v1489 = vld [vmem:[#allocation10 + $0xd8] sm:$0xff]
    %v1490 = vld [vmem:[#allocation10 + $0xe0] sm:$0xff]
    %v1491 = vld [vmem:[#allocation10 + $0xe8] sm:$0xff]
    %v1492 = vld [vmem:[#allocation10 + $0xf0] sm:$0xff]
    %v1493 = vld [vmem:[#allocation10 + $0xf8] sm:$0xff]
    %v1494 = vld [vmem:[%s5] sm:$0xf]
    %v1495 = vld [vmem:[%s5 + $0x4] sm:$0xf]
    %v1496 = vld [vmem:[#allocation2] sm:$0xff]
    %v1497 = vld [vmem:[#allocation2 + $0x8] sm:$0xff]
    %v1498 = vld [vmem:[#allocation2 + $0x10] sm:$0xff]
    %v1499 = vld [vmem:[#allocation2 + $0x18] sm:$0xff]
    %s1500 = scalar_lea.vmem [#allocation3], 224
    %v1501 = vld [vmem:[%s1500] sm:$0xff]
    %v1502 = vld [vmem:[%s1500 + $0x8] sm:$0xff]
    %v1503 = vld [vmem:[%s1500 + $0x10] sm:$0xff]
    %v1504 = vld [vmem:[%s1500 + $0x18] sm:$0xff]
    %vm1505 = vcmp.gt.s32.totalorder %v80, 0
    %vm1506 = vcmp.gt.s32.totalorder %v81, 0
    %vm1507 = vcmp.gt.s32.totalorder %v80, 7
    %vm1508 = vcmp.gt.s32.totalorder %v81, 7
    %v1509 = vunpack.c.l.bf16 %v1496
    %v1510 = vunpack.c.h.bf16 %v1496
    %v1511 = vunpack.c.l.bf16 %v1497
    %v1512 = vunpack.c.h.bf16 %v1497
    %v1513 = vunpack.c.l.bf16 %v1498
    %v1514 = vunpack.c.h.bf16 %v1498
    %v1515 = vunpack.c.l.bf16 %v1499
    %v1516 = vunpack.c.h.bf16 %v1499
    %v1518 = vlaneseq
    %v1519 = vshrl.u32 %v1518, 7
    %v1520 = vsub.s32 0, %v1519
    %v1521 = vrot.slane %v1494, %v1520
    %v1522 = vlaneseq
    %v1523 = vshrl.u32 %v1522, 7
    %v1524 = vsub.s32 1, %v1523
    %v1525 = vrot.slane %v1494, %v1524
    %v1526 = vlaneseq
    %v1527 = vshrl.u32 %v1526, 7
    %v1528 = vsub.s32 2, %v1527
    %v1529 = vrot.slane %v1494, %v1528
    %v1530 = vlaneseq
    %v1531 = vshrl.u32 %v1530, 7
    %v1532 = vsub.s32 3, %v1531
    %v1533 = vrot.slane %v1494, %v1532
    %v1538 = vadd.f32 %v1509, %v1521
    %v1539 = vadd.f32 %v1510, %v1525
    %v1540 = vadd.f32 %v1511, %v1529
    %v1541 = vadd.f32 %v1512, %v1533
    %v1542 = vadd.f32 %v1513, %v1521
    %v1543 = vadd.f32 %v1514, %v1525
    %v1544 = vadd.f32 %v1515, %v1529
    %v1545 = vadd.f32 %v1516, %v1533
    %v1578 = vunpack.c.l.b16 %v1430
    %v1579 = vunpack.c.h.b16 %v1430
    %v1580 = vunpack.c.l.b16 %v1431
    %v1581 = vunpack.c.h.b16 %v1431
    %v1582 = vunpack.c.l.b16 %v1432
    %v1583 = vunpack.c.h.b16 %v1432
    %v1584 = vunpack.c.l.b16 %v1433
    %v1585 = vunpack.c.h.b16 %v1433
    %v1586 = vunpack.c.l.b16 %v1434
    %v1587 = vunpack.c.h.b16 %v1434
    %v1588 = vunpack.c.l.b16 %v1435
    %v1589 = vunpack.c.h.b16 %v1435
    %v1590 = vunpack.c.l.b16 %v1436
    %v1591 = vunpack.c.h.b16 %v1436
    %v1592 = vunpack.c.l.b16 %v1437
    %v1593 = vunpack.c.h.b16 %v1437
    %v1594 = vunpack.c.l.b16 %v1438
    %v1595 = vunpack.c.h.b16 %v1438
    %v1596 = vunpack.c.l.b16 %v1439
    %v1597 = vunpack.c.h.b16 %v1439
    %v1598 = vunpack.c.l.b16 %v1440
    %v1599 = vunpack.c.h.b16 %v1440
    %v1600 = vunpack.c.l.b16 %v1441
    %v1601 = vunpack.c.h.b16 %v1441
    %v1602 = vunpack.c.l.b16 %v1442
    %v1603 = vunpack.c.h.b16 %v1442
    %v1604 = vunpack.c.l.b16 %v1443
    %v1605 = vunpack.c.h.b16 %v1443
    %v1606 = vunpack.c.l.b16 %v1444
    %v1607 = vunpack.c.h.b16 %v1444
    %v1608 = vunpack.c.l.b16 %v1445
    %v1609 = vunpack.c.h.b16 %v1445
    %v1610 = vunpack.c.l.b16 %v1446
    %v1611 = vunpack.c.h.b16 %v1446
    %v1612 = vunpack.c.l.b16 %v1447
    %v1613 = vunpack.c.h.b16 %v1447
    %v1614 = vunpack.c.l.b16 %v1448
    %v1615 = vunpack.c.h.b16 %v1448
    %v1616 = vunpack.c.l.b16 %v1449
    %v1617 = vunpack.c.h.b16 %v1449
    %v1618 = vunpack.c.l.b16 %v1450
    %v1619 = vunpack.c.h.b16 %v1450
    %v1620 = vunpack.c.l.b16 %v1451
    %v1621 = vunpack.c.h.b16 %v1451
    %v1622 = vunpack.c.l.b16 %v1452
    %v1623 = vunpack.c.h.b16 %v1452
    %v1624 = vunpack.c.l.b16 %v1453
    %v1625 = vunpack.c.h.b16 %v1453
    %v1626 = vunpack.c.l.b16 %v1454
    %v1627 = vunpack.c.h.b16 %v1454
    %v1628 = vunpack.c.l.b16 %v1455
    %v1629 = vunpack.c.h.b16 %v1455
    %v1630 = vunpack.c.l.b16 %v1456
    %v1631 = vunpack.c.h.b16 %v1456
    %v1632 = vunpack.c.l.b16 %v1457
    %v1633 = vunpack.c.h.b16 %v1457
    %v1634 = vunpack.c.l.b16 %v1458
    %v1635 = vunpack.c.h.b16 %v1458
    %v1636 = vunpack.c.l.b16 %v1459
    %v1637 = vunpack.c.h.b16 %v1459
    %v1638 = vunpack.c.l.b16 %v1460
    %v1639 = vunpack.c.h.b16 %v1460
    %v1640 = vunpack.c.l.b16 %v1461
    %v1641 = vunpack.c.h.b16 %v1461
    %v1642 = vpack.c.b16 %v1582, %v1578
    %v1643 = vpack.c.b16 %v1583, %v1579
    %v1644 = vpack.c.b16 %v1584, %v1580
    %v1645 = vpack.c.b16 %v1585, %v1581
    %v1646 = vpack.c.b16 %v1590, %v1586
    %v1647 = vpack.c.b16 %v1591, %v1587
    %v1648 = vpack.c.b16 %v1592, %v1588
    %v1649 = vpack.c.b16 %v1593, %v1589
    %v1650 = vpack.c.b16 %v1598, %v1594
    %v1651 = vpack.c.b16 %v1599, %v1595
    %v1652 = vpack.c.b16 %v1600, %v1596
    %v1653 = vpack.c.b16 %v1601, %v1597
    %v1654 = vpack.c.b16 %v1606, %v1602
    %v1655 = vpack.c.b16 %v1607, %v1603
    %v1656 = vpack.c.b16 %v1608, %v1604
    %v1657 = vpack.c.b16 %v1609, %v1605
    %v1658 = vpack.c.b16 %v1614, %v1610
    %v1659 = vpack.c.b16 %v1615, %v1611
    %v1660 = vpack.c.b16 %v1616, %v1612
    %v1661 = vpack.c.b16 %v1617, %v1613
    %v1662 = vpack.c.b16 %v1622, %v1618
    %v1663 = vpack.c.b16 %v1623, %v1619
    %v1664 = vpack.c.b16 %v1624, %v1620
    %v1665 = vpack.c.b16 %v1625, %v1621
    %v1666 = vpack.c.b16 %v1630, %v1626
    %v1667 = vpack.c.b16 %v1631, %v1627
    %v1668 = vpack.c.b16 %v1632, %v1628
    %v1669 = vpack.c.b16 %v1633, %v1629
    %v1670 = vpack.c.b16 %v1638, %v1634
    %v1671 = vpack.c.b16 %v1639, %v1635
    %v1672 = vpack.c.b16 %v1640, %v1636
    %v1673 = vpack.c.b16 %v1641, %v1637
    %1706 = vmatprep.subr.bf16.mxu0 %v1671
    %1707 = vmatpush1.bf16.msra.mxu0 %v1670
    %1708 = vmatprep.subr.bf16.mxu0 %v1667
    %1709 = vmatpush1.bf16.msra.mxu0 %v1666
    %1710 = vmatprep.subr.bf16.mxu0 %v1663
    %1711 = vmatpush1.bf16.msra.mxu0 %v1662
    %1712 = vmatprep.subr.bf16.mxu0 %v1659
    %1713 = vmatpush1.bf16.msra.mxu0 %v1658
    %1714 = vmatprep.subr.bf16.mxu0 %v1655
    %1715 = vmatpush1.bf16.msra.mxu0 %v1654
    %1716 = vmatprep.subr.bf16.mxu0 %v1651
    %1717 = vmatpush1.bf16.msra.mxu0 %v1650
    %1718 = vmatprep.subr.bf16.mxu0 %v1647
    %1719 = vmatpush1.bf16.msra.mxu0 %v1646
    %1720 = vmatprep.subr.bf16.mxu0 %v1643
    %1721 = vmatpush1.bf16.msra.mxu0 %v1642
    %1722 = vmatprep.subr.bf16.mxu0 0
    %1723 = vmatpush2.bf16.msra.mxu0 0
    %1724 = vmatprep.subr.bf16.mxu0 0
    %1725 = vmatpush2.bf16.msra.mxu0 0
    %1726 = vmatprep.subr.bf16.mxu0 0
    %1727 = vmatpush2.bf16.msra.mxu0 0
    %1728 = vmatprep.subr.bf16.mxu0 0
    %1729 = vmatpush2.bf16.msra.mxu0 0
    %1730 = vmatprep.subr.bf16.mxu0 0
    %1731 = vmatpush2.bf16.msra.mxu0 0
    %1732 = vmatprep.subr.bf16.mxu0 0
    %1733 = vmatpush2.bf16.msra.mxu0 0
    %1734 = vmatprep.subr.bf16.mxu0 0
    %1735 = vmatpush2.bf16.msra.mxu0 0
    %1736 = vmatprep.subr.bf16.mxu0 0
    %1737 = vmatpush2.bf16.msra.mxu0 0
    %1738 = vmatprep.mubr.bf16.mxu0 0
    %1739 = vmatmul.mubr.bf16.gmra.mxu0 0
    %v1740 = vpop.f32.mrf.mxu0
    %v1741 = vadd.f32 0.0, %v1740
    %v1742 = vpop.f32.mrf.mxu0
    %v1743 = vadd.f32 0.0, %v1742
    %v1744 = vpop.f32.mrf.mxu0
    %v1745 = vadd.f32 0.0, %v1744
    %v1746 = vpop.f32.mrf.mxu0
    %v1747 = vadd.f32 0.0, %v1746
    %1748 = vdwg.mxu0
    %1749 = vmatprep.subr.bf16.mxu0 %v1673
    %1750 = vmatpush1.bf16.msra.mxu0 %v1672
    %1751 = vmatprep.subr.bf16.mxu0 %v1669
    %1752 = vmatpush1.bf16.msra.mxu0 %v1668
    %1753 = vmatprep.subr.bf16.mxu0 %v1665
    %1754 = vmatpush1.bf16.msra.mxu0 %v1664
    %1755 = vmatprep.subr.bf16.mxu0 %v1661
    %1756 = vmatpush1.bf16.msra.mxu0 %v1660
    %1757 = vmatprep.subr.bf16.mxu0 %v1657
    %1758 = vmatpush1.bf16.msra.mxu0 %v1656
    %1759 = vmatprep.subr.bf16.mxu0 %v1653
    %1760 = vmatpush1.bf16.msra.mxu0 %v1652
    %1761 = vmatprep.subr.bf16.mxu0 %v1649
    %1762 = vmatpush1.bf16.msra.mxu0 %v1648
    %1763 = vmatprep.subr.bf16.mxu0 %v1645
    %1764 = vmatpush1.bf16.msra.mxu0 %v1644
    %1765 = vmatprep.subr.bf16.mxu0 0
    %1766 = vmatpush2.bf16.msra.mxu0 0
    %1767 = vmatprep.subr.bf16.mxu0 0
    %1768 = vmatpush2.bf16.msra.mxu0 0
    %1769 = vmatprep.subr.bf16.mxu0 0
    %1770 = vmatpush2.bf16.msra.mxu0 0
    %1771 = vmatprep.subr.bf16.mxu0 0
    %1772 = vmatpush2.bf16.msra.mxu0 0
    %1773 = vmatprep.subr.bf16.mxu0 0
    %1774 = vmatpush2.bf16.msra.mxu0 0
    %1775 = vmatprep.subr.bf16.mxu0 0
    %1776 = vmatpush2.bf16.msra.mxu0 0
    %1777 = vmatprep.subr.bf16.mxu0 0
    %1778 = vmatpush2.bf16.msra.mxu0 0
    %1779 = vmatprep.subr.bf16.mxu0 0
    %1780 = vmatpush2.bf16.msra.mxu0 0
    %1781 = vmatprep.mubr.bf16.mxu0 0
    %1782 = vmatmul.mubr.bf16.gmra.mxu0 0
    %v1783 = vpop.f32.mrf.mxu0
    %v1784 = vadd.f32 0.0, %v1783
    %v1785 = vpop.f32.mrf.mxu0
    %v1786 = vadd.f32 0.0, %v1785
    %v1787 = vpop.f32.mrf.mxu0
    %v1788 = vadd.f32 0.0, %v1787
    %v1789 = vpop.f32.mrf.mxu0
    %v1790 = vadd.f32 0.0, %v1789
    %1791 = vdwg.mxu0
    %v1792 = vadd.f32 %v1538, %v1741
    %v1793 = vadd.f32 %v1539, %v1743
    %v1794 = vadd.f32 %v1540, %v1784
    %v1795 = vadd.f32 %v1541, %v1786
    %v1796 = vadd.f32 %v1542, %v1745
    %v1797 = vadd.f32 %v1543, %v1747
    %v1798 = vadd.f32 %v1544, %v1788
    %v1799 = vadd.f32 %v1545, %v1790
    %v1800 = vxor.u32 %v1792, 2147483648
    %v1801 = vxor.u32 %v1796, 2147483648
    %v1802 = vmul.f32 %v1800, 1.442695
    %v1803 = vpow.pop %v1802
    %v1804 = vmul.f32 %v1801, 1.442695
    %v1805 = vpow.pop %v1804
    %v1806 = vadd.f32 %v1803, 1.0
    %v1807 = vadd.f32 %v1805, 1.0
    %v1808 = vrcp.pop %v1806
    %v1809 = vmul.f32 1.0, %v1808
    %v1810 = vrcp.pop %v1807
    %v1811 = vmul.f32 1.0, %v1810
    %v1812 = vxor.u32 %v1793, 2147483648
    %v1813 = vxor.u32 %v1797, 2147483648
    %v1814 = vmul.f32 %v1812, 1.442695
    %v1815 = vpow.pop %v1814
    %v1816 = vmul.f32 %v1813, 1.442695
    %v1817 = vpow.pop %v1816
    %v1818 = vadd.f32 %v1815, 1.0
    %v1819 = vadd.f32 %v1817, 1.0
    %v1820 = vrcp.pop %v1818
    %v1821 = vmul.f32 1.0, %v1820
    %v1822 = vrcp.pop %v1819
    %v1823 = vmul.f32 1.0, %v1822
    %v1824 = vtanh.pop %v1794
    %v1825 = vtanh.pop %v1798
    %v1826 = vxor.u32 %v1795, 2147483648
    %v1827 = vxor.u32 %v1799, 2147483648
    %v1828 = vmul.f32 %v1826, 1.442695
    %v1829 = vpow.pop %v1828
    %v1830 = vmul.f32 %v1827, 1.442695
    %v1831 = vpow.pop %v1830
    %v1832 = vadd.f32 %v1829, 1.0
    %v1833 = vadd.f32 %v1831, 1.0
    %v1834 = vrcp.pop %v1832
    %v1835 = vmul.f32 1.0, %v1834
    %v1836 = vrcp.pop %v1833
    %v1837 = vmul.f32 1.0, %v1836
    %v1838 = vmul.f32 %v1821, 0.0
    %v1839 = vmul.f32 %v1823, 0.0
    %v1840 = vmul.f32 %v1809, %v1824
    %v1841 = vmul.f32 %v1811, %v1825
    %v1842 = vadd.f32 %v1838, %v1840
    %v1843 = vadd.f32 %v1839, %v1841
    %v1844 = vtanh.pop %v1842
    %v1845 = vtanh.pop %v1843
    %v1846 = vmul.f32 %v1835, %v1844
    %v1847 = vmul.f32 %v1837, %v1845
    %v1848 = vunpack.c.l.bf16 %v1501
    %v1849 = vunpack.c.h.bf16 %v1501
    %v1850 = vunpack.c.l.bf16 %v1502
    %v1851 = vunpack.c.h.bf16 %v1502
    %v1852 = vunpack.c.l.bf16 %v1503
    %v1853 = vunpack.c.h.bf16 %v1503
    %v1854 = vunpack.c.l.bf16 %v1504
    %v1855 = vunpack.c.h.bf16 %v1504
    %v1857 = vlaneseq
    %v1858 = vshrl.u32 %v1857, 7
    %v1859 = vsub.s32 0, %v1858
    %v1860 = vrot.slane %v1495, %v1859
    %v1861 = vlaneseq
    %v1862 = vshrl.u32 %v1861, 7
    %v1863 = vsub.s32 1, %v1862
    %v1864 = vrot.slane %v1495, %v1863
    %v1865 = vlaneseq
    %v1866 = vshrl.u32 %v1865, 7
    %v1867 = vsub.s32 2, %v1866
    %v1868 = vrot.slane %v1495, %v1867
    %v1869 = vlaneseq
    %v1870 = vshrl.u32 %v1869, 7
    %v1871 = vsub.s32 3, %v1870
    %v1872 = vrot.slane %v1495, %v1871
    %v1877 = vadd.f32 %v1848, %v1860
    %v1878 = vadd.f32 %v1849, %v1864
    %v1879 = vadd.f32 %v1850, %v1868
    %v1880 = vadd.f32 %v1851, %v1872
    %v1881 = vadd.f32 %v1852, %v1860
    %v1882 = vadd.f32 %v1853, %v1864
    %v1883 = vadd.f32 %v1854, %v1868
    %v1884 = vadd.f32 %v1855, %v1872
    %v1917 = vunpack.c.l.b16 %v1462
    %v1918 = vunpack.c.h.b16 %v1462
    %v1919 = vunpack.c.l.b16 %v1463
    %v1920 = vunpack.c.h.b16 %v1463
    %v1921 = vunpack.c.l.b16 %v1464
    %v1922 = vunpack.c.h.b16 %v1464
    %v1923 = vunpack.c.l.b16 %v1465
    %v1924 = vunpack.c.h.b16 %v1465
    %v1925 = vunpack.c.l.b16 %v1466
    %v1926 = vunpack.c.h.b16 %v1466
    %v1927 = vunpack.c.l.b16 %v1467
    %v1928 = vunpack.c.h.b16 %v1467
    %v1929 = vunpack.c.l.b16 %v1468
    %v1930 = vunpack.c.h.b16 %v1468
    %v1931 = vunpack.c.l.b16 %v1469
    %v1932 = vunpack.c.h.b16 %v1469
    %v1933 = vunpack.c.l.b16 %v1470
    %v1934 = vunpack.c.h.b16 %v1470
    %v1935 = vunpack.c.l.b16 %v1471
    %v1936 = vunpack.c.h.b16 %v1471
    %v1937 = vunpack.c.l.b16 %v1472
    %v1938 = vunpack.c.h.b16 %v1472
    %v1939 = vunpack.c.l.b16 %v1473
    %v1940 = vunpack.c.h.b16 %v1473
    %v1941 = vunpack.c.l.b16 %v1474
    %v1942 = vunpack.c.h.b16 %v1474
    %v1943 = vunpack.c.l.b16 %v1475
    %v1944 = vunpack.c.h.b16 %v1475
    %v1945 = vunpack.c.l.b16 %v1476
    %v1946 = vunpack.c.h.b16 %v1476
    %v1947 = vunpack.c.l.b16 %v1477
    %v1948 = vunpack.c.h.b16 %v1477
    %v1949 = vunpack.c.l.b16 %v1478
    %v1950 = vunpack.c.h.b16 %v1478
    %v1951 = vunpack.c.l.b16 %v1479
    %v1952 = vunpack.c.h.b16 %v1479
    %v1953 = vunpack.c.l.b16 %v1480
    %v1954 = vunpack.c.h.b16 %v1480
    %v1955 = vunpack.c.l.b16 %v1481
    %v1956 = vunpack.c.h.b16 %v1481
    %v1957 = vunpack.c.l.b16 %v1482
    %v1958 = vunpack.c.h.b16 %v1482
    %v1959 = vunpack.c.l.b16 %v1483
    %v1960 = vunpack.c.h.b16 %v1483
    %v1961 = vunpack.c.l.b16 %v1484
    %v1962 = vunpack.c.h.b16 %v1484
    %v1963 = vunpack.c.l.b16 %v1485
    %v1964 = vunpack.c.h.b16 %v1485
    %v1965 = vunpack.c.l.b16 %v1486
    %v1966 = vunpack.c.h.b16 %v1486
    %v1967 = vunpack.c.l.b16 %v1487
    %v1968 = vunpack.c.h.b16 %v1487
    %v1969 = vunpack.c.l.b16 %v1488
    %v1970 = vunpack.c.h.b16 %v1488
    %v1971 = vunpack.c.l.b16 %v1489
    %v1972 = vunpack.c.h.b16 %v1489
    %v1973 = vunpack.c.l.b16 %v1490
    %v1974 = vunpack.c.h.b16 %v1490
    %v1975 = vunpack.c.l.b16 %v1491
    %v1976 = vunpack.c.h.b16 %v1491
    %v1977 = vunpack.c.l.b16 %v1492
    %v1978 = vunpack.c.h.b16 %v1492
    %v1979 = vunpack.c.l.b16 %v1493
    %v1980 = vunpack.c.h.b16 %v1493
    %v1981 = vpack.c.b16 %v1921, %v1917
    %v1982 = vpack.c.b16 %v1922, %v1918
    %v1983 = vpack.c.b16 %v1923, %v1919
    %v1984 = vpack.c.b16 %v1924, %v1920
    %v1985 = vpack.c.b16 %v1929, %v1925
    %v1986 = vpack.c.b16 %v1930, %v1926
    %v1987 = vpack.c.b16 %v1931, %v1927
    %v1988 = vpack.c.b16 %v1932, %v1928
    %v1989 = vpack.c.b16 %v1937, %v1933
    %v1990 = vpack.c.b16 %v1938, %v1934
    %v1991 = vpack.c.b16 %v1939, %v1935
    %v1992 = vpack.c.b16 %v1940, %v1936
    %v1993 = vpack.c.b16 %v1945, %v1941
    %v1994 = vpack.c.b16 %v1946, %v1942
    %v1995 = vpack.c.b16 %v1947, %v1943
    %v1996 = vpack.c.b16 %v1948, %v1944
    %v1997 = vpack.c.b16 %v1953, %v1949
    %v1998 = vpack.c.b16 %v1954, %v1950
    %v1999 = vpack.c.b16 %v1955, %v1951
    %v2000 = vpack.c.b16 %v1956, %v1952
    %v2001 = vpack.c.b16 %v1961, %v1957
    %v2002 = vpack.c.b16 %v1962, %v1958
    %v2003 = vpack.c.b16 %v1963, %v1959
    %v2004 = vpack.c.b16 %v1964, %v1960
    %v2005 = vpack.c.b16 %v1969, %v1965
    %v2006 = vpack.c.b16 %v1970, %v1966
    %v2007 = vpack.c.b16 %v1971, %v1967
    %v2008 = vpack.c.b16 %v1972, %v1968
    %v2009 = vpack.c.b16 %v1977, %v1973
    %v2010 = vpack.c.b16 %v1978, %v1974
    %v2011 = vpack.c.b16 %v1979, %v1975
    %v2012 = vpack.c.b16 %v1980, %v1976
    %2045 = vmatprep.subr.bf16.mxu0 %v2010
    %2046 = vmatpush1.bf16.msra.mxu0 %v2009
    %2047 = vmatprep.subr.bf16.mxu0 %v2006
    %2048 = vmatpush1.bf16.msra.mxu0 %v2005
    %2049 = vmatprep.subr.bf16.mxu0 %v2002
    %2050 = vmatpush1.bf16.msra.mxu0 %v2001
    %2051 = vmatprep.subr.bf16.mxu0 %v1998
    %2052 = vmatpush1.bf16.msra.mxu0 %v1997
    %2053 = vmatprep.subr.bf16.mxu0 %v1994
    %2054 = vmatpush1.bf16.msra.mxu0 %v1993
    %2055 = vmatprep.subr.bf16.mxu0 %v1990
    %2056 = vmatpush1.bf16.msra.mxu0 %v1989
    %2057 = vmatprep.subr.bf16.mxu0 %v1986
    %2058 = vmatpush1.bf16.msra.mxu0 %v1985
    %2059 = vmatprep.subr.bf16.mxu0 %v1982
    %2060 = vmatpush1.bf16.msra.mxu0 %v1981
    %2061 = vmatprep.subr.bf16.mxu0 0
    %2062 = vmatpush2.bf16.msra.mxu0 0
    %2063 = vmatprep.subr.bf16.mxu0 0
    %2064 = vmatpush2.bf16.msra.mxu0 0
    %2065 = vmatprep.subr.bf16.mxu0 0
    %2066 = vmatpush2.bf16.msra.mxu0 0
    %2067 = vmatprep.subr.bf16.mxu0 0
    %2068 = vmatpush2.bf16.msra.mxu0 0
    %2069 = vmatprep.subr.bf16.mxu0 0
    %2070 = vmatpush2.bf16.msra.mxu0 0
    %2071 = vmatprep.subr.bf16.mxu0 0
    %2072 = vmatpush2.bf16.msra.mxu0 0
    %2073 = vmatprep.subr.bf16.mxu0 0
    %2074 = vmatpush2.bf16.msra.mxu0 0
    %2075 = vmatprep.subr.bf16.mxu0 0
    %2076 = vmatpush2.bf16.msra.mxu0 0
    %2077 = vmatprep.mubr.bf16.mxu0 0
    %2078 = vmatmul.mubr.bf16.gmra.mxu0 0
    %v2079 = vpop.f32.mrf.mxu0
    %v2080 = vadd.f32 0.0, %v2079
    %v2081 = vpop.f32.mrf.mxu0
    %v2082 = vadd.f32 0.0, %v2081
    %v2083 = vpop.f32.mrf.mxu0
    %v2084 = vadd.f32 0.0, %v2083
    %v2085 = vpop.f32.mrf.mxu0
    %v2086 = vadd.f32 0.0, %v2085
    %2087 = vdwg.mxu0
    %2088 = vmatprep.subr.bf16.mxu0 %v2012
    %2089 = vmatpush1.bf16.msra.mxu0 %v2011
    %2090 = vmatprep.subr.bf16.mxu0 %v2008
    %2091 = vmatpush1.bf16.msra.mxu0 %v2007
    %2092 = vmatprep.subr.bf16.mxu0 %v2004
    %2093 = vmatpush1.bf16.msra.mxu0 %v2003
    %2094 = vmatprep.subr.bf16.mxu0 %v2000
    %2095 = vmatpush1.bf16.msra.mxu0 %v1999
    %2096 = vmatprep.subr.bf16.mxu0 %v1996
    %2097 = vmatpush1.bf16.msra.mxu0 %v1995
    %2098 = vmatprep.subr.bf16.mxu0 %v1992
    %2099 = vmatpush1.bf16.msra.mxu0 %v1991
    %2100 = vmatprep.subr.bf16.mxu0 %v1988
    %2101 = vmatpush1.bf16.msra.mxu0 %v1987
    %2102 = vmatprep.subr.bf16.mxu0 %v1984
    %2103 = vmatpush1.bf16.msra.mxu0 %v1983
    %2104 = vmatprep.subr.bf16.mxu0 0
    %2105 = vmatpush2.bf16.msra.mxu0 0
    %2106 = vmatprep.subr.bf16.mxu0 0
    %2107 = vmatpush2.bf16.msra.mxu0 0
    %2108 = vmatprep.subr.bf16.mxu0 0
    %2109 = vmatpush2.bf16.msra.mxu0 0
    %2110 = vmatprep.subr.bf16.mxu0 0
    %2111 = vmatpush2.bf16.msra.mxu0 0
    %2112 = vmatprep.subr.bf16.mxu0 0
    %2113 = vmatpush2.bf16.msra.mxu0 0
    %2114 = vmatprep.subr.bf16.mxu0 0
    %2115 = vmatpush2.bf16.msra.mxu0 0
    %2116 = vmatprep.subr.bf16.mxu0 0
    %2117 = vmatpush2.bf16.msra.mxu0 0
    %2118 = vmatprep.subr.bf16.mxu0 0
    %2119 = vmatpush2.bf16.msra.mxu0 0
    %2120 = vmatprep.mubr.bf16.mxu0 0
    %2121 = vmatmul.mubr.bf16.gmra.mxu0 0
    %v2122 = vpop.f32.mrf.mxu0
    %v2123 = vadd.f32 0.0, %v2122
    %v2124 = vpop.f32.mrf.mxu0
    %v2125 = vadd.f32 0.0, %v2124
    %v2126 = vpop.f32.mrf.mxu0
    %v2127 = vadd.f32 0.0, %v2126
    %v2128 = vpop.f32.mrf.mxu0
    %v2129 = vadd.f32 0.0, %v2128
    %2130 = vdwg.mxu0
    %v2131 = vadd.f32 %v1877, %v2080
    %v2132 = vadd.f32 %v1878, %v2082
    %v2133 = vadd.f32 %v1879, %v2123
    %v2134 = vadd.f32 %v1880, %v2125
    %v2135 = vadd.f32 %v1881, %v2084
    %v2136 = vadd.f32 %v1882, %v2086
    %v2137 = vadd.f32 %v1883, %v2127
    %v2138 = vadd.f32 %v1884, %v2129
    %v2139 = vxor.u32 %v2131, 2147483648
    %v2140 = vxor.u32 %v2135, 2147483648
    %v2141 = vmul.f32 %v2139, 1.442695
    %v2142 = vpow.pop %v2141
    %v2143 = vmul.f32 %v2140, 1.442695
    %v2144 = vpow.pop %v2143
    %v2145 = vadd.f32 %v2142, 1.0
    %v2146 = vadd.f32 %v2144, 1.0
    %v2147 = vrcp.pop %v2145
    %v2148 = vmul.f32 1.0, %v2147
    %v2149 = vrcp.pop %v2146
    %v2150 = vmul.f32 1.0, %v2149
    %v2151 = vxor.u32 %v2132, 2147483648
    %v2152 = vxor.u32 %v2136, 2147483648
    %v2153 = vmul.f32 %v2151, 1.442695
    %v2154 = vpow.pop %v2153
    %v2155 = vmul.f32 %v2152, 1.442695
    %v2156 = vpow.pop %v2155
    %v2157 = vadd.f32 %v2154, 1.0
    %v2158 = vadd.f32 %v2156, 1.0
    %v2159 = vrcp.pop %v2157
    %v2160 = vmul.f32 1.0, %v2159
    %v2161 = vrcp.pop %v2158
    %v2162 = vmul.f32 1.0, %v2161
    %v2163 = vtanh.pop %v2133
    %v2164 = vtanh.pop %v2137
    %v2165 = vxor.u32 %v2134, 2147483648
    %v2166 = vxor.u32 %v2138, 2147483648
    %v2167 = vmul.f32 %v2165, 1.442695
    %v2168 = vpow.pop %v2167
    %v2169 = vmul.f32 %v2166, 1.442695
    %v2170 = vpow.pop %v2169
    %v2171 = vadd.f32 %v2168, 1.0
    %v2172 = vadd.f32 %v2170, 1.0
    %v2173 = vrcp.pop %v2171
    %v2174 = vmul.f32 1.0, %v2173
    %v2175 = vrcp.pop %v2172
    %v2176 = vmul.f32 1.0, %v2175
    %v2177 = vmul.f32 %v2160, 0.0
    %v2178 = vmul.f32 %v2162, 0.0
    %v2179 = vmul.f32 %v2148, %v2163
    %v2180 = vmul.f32 %v2150, %v2164
    %v2181 = vadd.f32 %v2177, %v2179
    %v2182 = vadd.f32 %v2178, %v2180
    %v2183 = vtanh.pop %v2181
    %v2184 = vtanh.pop %v2182
    %v2185 = vmul.f32 %v2174, %v2183
    %v2186 = vmul.f32 %v2176, %v2184
    %v2187 = vsel %vm1505, 1, 0
    %v2188 = vsel %vm1506, 1, 0
    %2189 = vset.pattern.permute.xlu0 0
    %2190 = vperm.xlu0 %2189, %v2187
    %v2191 = vpop.permute.xlu0 %2190
    %2192 = vset.pattern.permute.xlu0 0
    %2193 = vperm.xlu0 %2192, %v2188
    %v2194 = vpop.permute.xlu0 %2193
    %vm2195 = vcmp.eq.s32.totalorder %v2191, 1
    %vm2196 = vcmp.eq.s32.totalorder %v2194, 1
    %v2197 = vsel %vm2195, %v1846, 0.0
    %v2198 = vsel %vm2196, %v1847, 0.0
    %v2199 = vsel %vm2195, %v1842, 0.0
    %v2200 = vsel %vm2196, %v1843, 0.0
    %v2201 = vmax.f32 %v1846, -1e+09
    %v2202 = vmax.f32 %v1847, -1e+09
    %v2203 = vsel %vm2195, %v2201, -1e+09
    %v2204 = vsel %vm2196, %v2202, -1e+09
    %v2205 = vsel %vm1507, 1, 0
    %v2206 = vsel %vm1508, 1, 0
    %2207 = vset.pattern.permute.xlu0 0
    %2208 = vperm.xlu0 %2207, %v2205
    %v2209 = vpop.permute.xlu0 %2208
    %2210 = vset.pattern.permute.xlu0 0
    %2211 = vperm.xlu0 %2210, %v2206
    %v2212 = vpop.permute.xlu0 %2211
    %vm2213 = vcmp.eq.s32.totalorder %v2209, 1
    %vm2214 = vcmp.eq.s32.totalorder %v2212, 1
    %v2215 = vsel %vm2213, %v2185, 0.0
    %v2216 = vsel %vm2214, %v2186, 0.0
    %v2217 = vsel %vm2213, %v2181, 0.0
    %v2218 = vsel %vm2214, %v2182, 0.0
    %v2219 = vmax.f32 %v2185, -1e+09
    %v2220 = vmax.f32 %v2186, -1e+09
    %v2221 = vsel %vm2213, %v2219, -1e+09
    %v2222 = vsel %vm2214, %v2220, -1e+09
    %s2223 = scalar_lea.vmem [#allocation2], 32
    %v2224 = vld [vmem:[%s2223] sm:$0xff]
    %v2225 = vld [vmem:[%s2223 + $0x8] sm:$0xff]
    %v2226 = vld [vmem:[%s2223 + $0x10] sm:$0xff]
    %v2227 = vld [vmem:[%s2223 + $0x18] sm:$0xff]
    %s2228 = scalar_lea.vmem [#allocation3], 192
    %v2229 = vld [vmem:[%s2228] sm:$0xff]
    %v2230 = vld [vmem:[%s2228 + $0x8] sm:$0xff]
    %v2231 = vld [vmem:[%s2228 + $0x10] sm:$0xff]
    %v2232 = vld [vmem:[%s2228 + $0x18] sm:$0xff]
    %vm2233 = vcmp.gt.s32.totalorder %v80, 1
    %vm2234 = vcmp.gt.s32.totalorder %v81, 1
    %vm2235 = vcmp.gt.s32.totalorder %v80, 6
    %vm2236 = vcmp.gt.s32.totalorder %v81, 6
    %v2237 = vunpack.c.l.bf16 %v2224
    %v2238 = vunpack.c.h.bf16 %v2224
    %v2239 = vunpack.c.l.bf16 %v2225
    %v2240 = vunpack.c.h.bf16 %v2225
    %v2241 = vunpack.c.l.bf16 %v2226
    %v2242 = vunpack.c.h.bf16 %v2226
    %v2243 = vunpack.c.l.bf16 %v2227
    %v2244 = vunpack.c.h.bf16 %v2227
    %v2245 = vadd.f32 %v2237, %v1521
    %v2246 = vadd.f32 %v2238, %v1525
    %v2247 = vadd.f32 %v2239, %v1529
    %v2248 = vadd.f32 %v2240, %v1533
    %v2249 = vadd.f32 %v2241, %v1521
    %v2250 = vadd.f32 %v2242, %v1525
    %v2251 = vadd.f32 %v2243, %v1529
    %v2252 = vadd.f32 %v2244, %v1533
    %v2253 = vpack.c.bf16 %v2198, %v2197
    %2254 = vmatprep.subr.bf16.mxu0 %v1671
    %2255 = vmatpush1.bf16.msra.mxu0 %v1670
    %2256 = vmatprep.subr.bf16.mxu0 %v1667
    %2257 = vmatpush1.bf16.msra.mxu0 %v1666
    %2258 = vmatprep.subr.bf16.mxu0 %v1663
    %2259 = vmatpush1.bf16.msra.mxu0 %v1662
    %2260 = vmatprep.subr.bf16.mxu0 %v1659
    %2261 = vmatpush1.bf16.msra.mxu0 %v1658
    %2262 = vmatprep.subr.bf16.mxu0 %v1655
    %2263 = vmatpush1.bf16.msra.mxu0 %v1654
    %2264 = vmatprep.subr.bf16.mxu0 %v1651
    %2265 = vmatpush1.bf16.msra.mxu0 %v1650
    %2266 = vmatprep.subr.bf16.mxu0 %v1647
    %2267 = vmatpush1.bf16.msra.mxu0 %v1646
    %2268 = vmatprep.subr.bf16.mxu0 %v1643
    %2269 = vmatpush1.bf16.msra.mxu0 %v1642
    %2270 = vmatprep.subr.bf16.mxu0 0
    %2271 = vmatpush2.bf16.msra.mxu0 0
    %2272 = vmatprep.subr.bf16.mxu0 0
    %2273 = vmatpush2.bf16.msra.mxu0 0
    %2274 = vmatprep.subr.bf16.mxu0 0
    %2275 = vmatpush2.bf16.msra.mxu0 0
    %2276 = vmatprep.subr.bf16.mxu0 0
    %2277 = vmatpush2.bf16.msra.mxu0 0
    %2278 = vmatprep.subr.bf16.mxu0 0
    %2279 = vmatpush2.bf16.msra.mxu0 0
    %2280 = vmatprep.subr.bf16.mxu0 0
    %2281 = vmatpush2.bf16.msra.mxu0 0
    %2282 = vmatprep.subr.bf16.mxu0 0
    %2283 = vmatpush2.bf16.msra.mxu0 0
    %2284 = vmatprep.subr.bf16.mxu0 0
    %2285 = vmatpush2.bf16.msra.mxu0 0
    %2286 = vmatprep.mubr.bf16.mxu0 0
    %2287 = vmatmul.mubr.bf16.gmra.mxu0 %v2253
    %v2288 = vpop.f32.mrf.mxu0
    %v2289 = vadd.f32 0.0, %v2288
    %v2290 = vpop.f32.mrf.mxu0
    %v2291 = vadd.f32 0.0, %v2290
    %v2292 = vpop.f32.mrf.mxu0
    %v2293 = vadd.f32 0.0, %v2292
    %v2294 = vpop.f32.mrf.mxu0
    %v2295 = vadd.f32 0.0, %v2294
    %2296 = vdwg.mxu0
    %2297 = vmatprep.subr.bf16.mxu0 %v1673
    %2298 = vmatpush1.bf16.msra.mxu0 %v1672
    %2299 = vmatprep.subr.bf16.mxu0 %v1669
    %2300 = vmatpush1.bf16.msra.mxu0 %v1668
    %2301 = vmatprep.subr.bf16.mxu0 %v1665
    %2302 = vmatpush1.bf16.msra.mxu0 %v1664
    %2303 = vmatprep.subr.bf16.mxu0 %v1661
    %2304 = vmatpush1.bf16.msra.mxu0 %v1660
    %2305 = vmatprep.subr.bf16.mxu0 %v1657
    %2306 = vmatpush1.bf16.msra.mxu0 %v1656
    %2307 = vmatprep.subr.bf16.mxu0 %v1653
    %2308 = vmatpush1.bf16.msra.mxu0 %v1652
    %2309 = vmatprep.subr.bf16.mxu0 %v1649
    %2310 = vmatpush1.bf16.msra.mxu0 %v1648
    %2311 = vmatprep.subr.bf16.mxu0 %v1645
    %2312 = vmatpush1.bf16.msra.mxu0 %v1644
    %2313 = vmatprep.subr.bf16.mxu0 0
    %2314 = vmatpush2.bf16.msra.mxu0 0
    %2315 = vmatprep.subr.bf16.mxu0 0
    %2316 = vmatpush2.bf16.msra.mxu0 0
    %2317 = vmatprep.subr.bf16.mxu0 0
    %2318 = vmatpush2.bf16.msra.mxu0 0
    %2319 = vmatprep.subr.bf16.mxu0 0
    %2320 = vmatpush2.bf16.msra.mxu0 0
    %2321 = vmatprep.subr.bf16.mxu0 0
    %2322 = vmatpush2.bf16.msra.mxu0 0
    %2323 = vmatprep.subr.bf16.mxu0 0
    %2324 = vmatpush2.bf16.msra.mxu0 0
    %2325 = vmatprep.subr.bf16.mxu0 0
    %2326 = vmatpush2.bf16.msra.mxu0 0
    %2327 = vmatprep.subr.bf16.mxu0 0
    %2328 = vmatpush2.bf16.msra.mxu0 0
    %2329 = vmatprep.mubr.bf16.mxu0 0
    %2330 = vmatmul.mubr.bf16.gmra.mxu0 %v2253
    %v2331 = vpop.f32.mrf.mxu0
    %v2332 = vadd.f32 0.0, %v2331
    %v2333 = vpop.f32.mrf.mxu0
    %v2334 = vadd.f32 0.0, %v2333
    %v2335 = vpop.f32.mrf.mxu0
    %v2336 = vadd.f32 0.0, %v2335
    %v2337 = vpop.f32.mrf.mxu0
    %v2338 = vadd.f32 0.0, %v2337
    %2339 = vdwg.mxu0
    %v2340 = vadd.f32 %v2245, %v2289
    %v2341 = vadd.f32 %v2246, %v2291
    %v2342 = vadd.f32 %v2247, %v2332
    %v2343 = vadd.f32 %v2248, %v2334
    %v2344 = vadd.f32 %v2249, %v2293
    %v2345 = vadd.f32 %v2250, %v2295
    %v2346 = vadd.f32 %v2251, %v2336
    %v2347 = vadd.f32 %v2252, %v2338
    %v2348 = vxor.u32 %v2340, 2147483648
    %v2349 = vxor.u32 %v2344, 2147483648
    %v2350 = vmul.f32 %v2348, 1.442695
    %v2351 = vpow.pop %v2350
    %v2352 = vmul.f32 %v2349, 1.442695
    %v2353 = vpow.pop %v2352
    %v2354 = vadd.f32 %v2351, 1.0
    %v2355 = vadd.f32 %v2353, 1.0
    %v2356 = vrcp.pop %v2354
    %v2357 = vmul.f32 1.0, %v2356
    %v2358 = vrcp.pop %v2355
    %v2359 = vmul.f32 1.0, %v2358
    %v2360 = vxor.u32 %v2341, 2147483648
    %v2361 = vxor.u32 %v2345, 2147483648
    %v2362 = vmul.f32 %v2360, 1.442695
    %v2363 = vpow.pop %v2362
    %v2364 = vmul.f32 %v2361, 1.442695
    %v2365 = vpow.pop %v2364
    %v2366 = vadd.f32 %v2363, 1.0
    %v2367 = vadd.f32 %v2365, 1.0
    %v2368 = vrcp.pop %v2366
    %v2369 = vmul.f32 1.0, %v2368
    %v2370 = vrcp.pop %v2367
    %v2371 = vmul.f32 1.0, %v2370
    %v2372 = vtanh.pop %v2342
    %v2373 = vtanh.pop %v2346
    %v2374 = vxor.u32 %v2343, 2147483648
    %v2375 = vxor.u32 %v2347, 2147483648
    %v2376 = vmul.f32 %v2374, 1.442695
    %v2377 = vpow.pop %v2376
    %v2378 = vmul.f32 %v2375, 1.442695
    %v2379 = vpow.pop %v2378
    %v2380 = vadd.f32 %v2377, 1.0
    %v2381 = vadd.f32 %v2379, 1.0
    %v2382 = vrcp.pop %v2380
    %v2383 = vmul.f32 1.0, %v2382
    %v2384 = vrcp.pop %v2381
    %v2385 = vmul.f32 1.0, %v2384
    %v2386 = vmul.f32 %v2369, %v2199
    %v2387 = vmul.f32 %v2371, %v2200
    %v2388 = vmul.f32 %v2357, %v2372
    %v2389 = vmul.f32 %v2359, %v2373
    %v2390 = vadd.f32 %v2386, %v2388
    %v2391 = vadd.f32 %v2387, %v2389
    %v2392 = vtanh.pop %v2390
    %v2393 = vtanh.pop %v2391
    %v2394 = vmul.f32 %v2383, %v2392
    %v2395 = vmul.f32 %v2385, %v2393
    %v2396 = vunpack.c.l.bf16 %v2229
    %v2397 = vunpack.c.h.bf16 %v2229
    %v2398 = vunpack.c.l.bf16 %v2230
    %v2399 = vunpack.c.h.bf16 %v2230
    %v2400 = vunpack.c.l.bf16 %v2231
    %v2401 = vunpack.c.h.bf16 %v2231
    %v2402 = vunpack.c.l.bf16 %v2232
    %v2403 = vunpack.c.h.bf16 %v2232
    %v2404 = vadd.f32 %v2396, %v1860
    %v2405 = vadd.f32 %v2397, %v1864
    %v2406 = vadd.f32 %v2398, %v1868
    %v2407 = vadd.f32 %v2399, %v1872
    %v2408 = vadd.f32 %v2400, %v1860
    %v2409 = vadd.f32 %v2401, %v1864
    %v2410 = vadd.f32 %v2402, %v1868
    %v2411 = vadd.f32 %v2403, %v1872
    %v2412 = vpack.c.bf16 %v2216, %v2215
    %2413 = vmatprep.subr.bf16.mxu0 %v2010
    %2414 = vmatpush1.bf16.msra.mxu0 %v2009
    %2415 = vmatprep.subr.bf16.mxu0 %v2006
    %2416 = vmatpush1.bf16.msra.mxu0 %v2005
    %2417 = vmatprep.subr.bf16.mxu0 %v2002
    %2418 = vmatpush1.bf16.msra.mxu0 %v2001
    %2419 = vmatprep.subr.bf16.mxu0 %v1998
    %2420 = vmatpush1.bf16.msra.mxu0 %v1997
    %2421 = vmatprep.subr.bf16.mxu0 %v1994
    %2422 = vmatpush1.bf16.msra.mxu0 %v1993
    %2423 = vmatprep.subr.bf16.mxu0 %v1990
    %2424 = vmatpush1.bf16.msra.mxu0 %v1989
    %2425 = vmatprep.subr.bf16.mxu0 %v1986
    %2426 = vmatpush1.bf16.msra.mxu0 %v1985
    %2427 = vmatprep.subr.bf16.mxu0 %v1982
    %2428 = vmatpush1.bf16.msra.mxu0 %v1981
    %2429 = vmatprep.subr.bf16.mxu0 0
    %2430 = vmatpush2.bf16.msra.mxu0 0
    %2431 = vmatprep.subr.bf16.mxu0 0
    %2432 = vmatpush2.bf16.msra.mxu0 0
    %2433 = vmatprep.subr.bf16.mxu0 0
    %2434 = vmatpush2.bf16.msra.mxu0 0
    %2435 = vmatprep.subr.bf16.mxu0 0
    %2436 = vmatpush2.bf16.msra.mxu0 0
    %2437 = vmatprep.subr.bf16.mxu0 0
    %2438 = vmatpush2.bf16.msra.mxu0 0
    %2439 = vmatprep.subr.bf16.mxu0 0
    %2440 = vmatpush2.bf16.msra.mxu0 0
    %2441 = vmatprep.subr.bf16.mxu0 0
    %2442 = vmatpush2.bf16.msra.mxu0 0
    %2443 = vmatprep.subr.bf16.mxu0 0
    %2444 = vmatpush2.bf16.msra.mxu0 0
    %2445 = vmatprep.mubr.bf16.mxu0 0
    %2446 = vmatmul.mubr.bf16.gmra.mxu0 %v2412
    %v2447 = vpop.f32.mrf.mxu0
    %v2448 = vadd.f32 0.0, %v2447
    %v2449 = vpop.f32.mrf.mxu0
    %v2450 = vadd.f32 0.0, %v2449
    %v2451 = vpop.f32.mrf.mxu0
    %v2452 = vadd.f32 0.0, %v2451
    %v2453 = vpop.f32.mrf.mxu0
    %v2454 = vadd.f32 0.0, %v2453
    %2455 = vdwg.mxu0
    %2456 = vmatprep.subr.bf16.mxu0 %v2012
    %2457 = vmatpush1.bf16.msra.mxu0 %v2011
    %2458 = vmatprep.subr.bf16.mxu0 %v2008
    %2459 = vmatpush1.bf16.msra.mxu0 %v2007
    %2460 = vmatprep.subr.bf16.mxu0 %v2004
    %2461 = vmatpush1.bf16.msra.mxu0 %v2003
    %2462 = vmatprep.subr.bf16.mxu0 %v2000
    %2463 = vmatpush1.bf16.msra.mxu0 %v1999
    %2464 = vmatprep.subr.bf16.mxu0 %v1996
    %2465 = vmatpush1.bf16.msra.mxu0 %v1995
    %2466 = vmatprep.subr.bf16.mxu0 %v1992
    %2467 = vmatpush1.bf16.msra.mxu0 %v1991
    %2468 = vmatprep.subr.bf16.mxu0 %v1988
    %2469 = vmatpush1.bf16.msra.mxu0 %v1987
    %2470 = vmatprep.subr.bf16.mxu0 %v1984
    %2471 = vmatpush1.bf16.msra.mxu0 %v1983
    %2472 = vmatprep.subr.bf16.mxu0 0
    %2473 = vmatpush2.bf16.msra.mxu0 0
    %2474 = vmatprep.subr.bf16.mxu0 0
    %2475 = vmatpush2.bf16.msra.mxu0 0
    %2476 = vmatprep.subr.bf16.mxu0 0
    %2477 = vmatpush2.bf16.msra.mxu0 0
    %2478 = vmatprep.subr.bf16.mxu0 0
    %2479 = vmatpush2.bf16.msra.mxu0 0
    %2480 = vmatprep.subr.bf16.mxu0 0
    %2481 = vmatpush2.bf16.msra.mxu0 0
    %2482 = vmatprep.subr.bf16.mxu0 0
    %2483 = vmatpush2.bf16.msra.mxu0 0
    %2484 = vmatprep.subr.bf16.mxu0 0
    %2485 = vmatpush2.bf16.msra.mxu0 0
    %2486 = vmatprep.subr.bf16.mxu0 0
    %2487 = vmatpush2.bf16.msra.mxu0 0
    %2488 = vmatprep.mubr.bf16.mxu0 0
    %2489 = vmatmul.mubr.bf16.gmra.mxu0 %v2412
    %v2490 = vpop.f32.mrf.mxu0
    %v2491 = vadd.f32 0.0, %v2490
    %v2492 = vpop.f32.mrf.mxu0
    %v2493 = vadd.f32 0.0, %v2492
    %v2494 = vpop.f32.mrf.mxu0
    %v2495 = vadd.f32 0.0, %v2494
    %v2496 = vpop.f32.mrf.mxu0
    %v2497 = vadd.f32 0.0, %v2496
    %2498 = vdwg.mxu0
    %v2499 = vadd.f32 %v2404, %v2448
    %v2500 = vadd.f32 %v2405, %v2450
    %v2501 = vadd.f32 %v2406, %v2491
    %v2502 = vadd.f32 %v2407, %v2493
    %v2503 = vadd.f32 %v2408, %v2452
    %v2504 = vadd.f32 %v2409, %v2454
    %v2505 = vadd.f32 %v2410, %v2495
    %v2506 = vadd.f32 %v2411, %v2497
    %v2507 = vxor.u32 %v2499, 2147483648
    %v2508 = vxor.u32 %v2503, 2147483648
    %v2509 = vmul.f32 %v2507, 1.442695
    %v2510 = vpow.pop %v2509
    %v2511 = vmul.f32 %v2508, 1.442695
    %v2512 = vpow.pop %v2511
    %v2513 = vadd.f32 %v2510, 1.0
    %v2514 = vadd.f32 %v2512, 1.0
    %v2515 = vrcp.pop %v2513
    %v2516 = vmul.f32 1.0, %v2515
    %v2517 = vrcp.pop %v2514
    %v2518 = vmul.f32 1.0, %v2517
    %v2519 = vxor.u32 %v2500, 2147483648
    %v2520 = vxor.u32 %v2504, 2147483648
    %v2521 = vmul.f32 %v2519, 1.442695
    %v2522 = vpow.pop %v2521
    %v2523 = vmul.f32 %v2520, 1.442695
    %v2524 = vpow.pop %v2523
    %v2525 = vadd.f32 %v2522, 1.0
    %v2526 = vadd.f32 %v2524, 1.0
    %v2527 = vrcp.pop %v2525
    %v2528 = vmul.f32 1.0, %v2527
    %v2529 = vrcp.pop %v2526
    %v2530 = vmul.f32 1.0, %v2529
    %v2531 = vtanh.pop %v2501
    %v2532 = vtanh.pop %v2505
    %v2533 = vxor.u32 %v2502, 2147483648
    %v2534 = vxor.u32 %v2506, 2147483648
    %v2535 = vmul.f32 %v2533, 1.442695
    %v2536 = vpow.pop %v2535
    %v2537 = vmul.f32 %v2534, 1.442695
    %v2538 = vpow.pop %v2537
    %v2539 = vadd.f32 %v2536, 1.0
    %v2540 = vadd.f32 %v2538, 1.0
    %v2541 = vrcp.pop %v2539
    %v2542 = vmul.f32 1.0, %v2541
    %v2543 = vrcp.pop %v2540
    %v2544 = vmul.f32 1.0, %v2543
    %v2545 = vmul.f32 %v2528, %v2217
    %v2546 = vmul.f32 %v2530, %v2218
    %v2547 = vmul.f32 %v2516, %v2531
    %v2548 = vmul.f32 %v2518, %v2532
    %v2549 = vadd.f32 %v2545, %v2547
    %v2550 = vadd.f32 %v2546, %v2548
    %v2551 = vtanh.pop %v2549
    %v2552 = vtanh.pop %v2550
    %v2553 = vmul.f32 %v2542, %v2551
    %v2554 = vmul.f32 %v2544, %v2552
    %v2555 = vsel %vm2233, 1, 0
    %v2556 = vsel %vm2234, 1, 0
    %2557 = vset.pattern.permute.xlu0 0
    %2558 = vperm.xlu0 %2557, %v2555
    %v2559 = vpop.permute.xlu0 %2558
    %2560 = vset.pattern.permute.xlu0 0
    %2561 = vperm.xlu0 %2560, %v2556
    %v2562 = vpop.permute.xlu0 %2561
    %vm2563 = vcmp.eq.s32.totalorder %v2559, 1
    %vm2564 = vcmp.eq.s32.totalorder %v2562, 1
    %v2565 = vsel %vm2563, %v2394, %v2197
    %v2566 = vsel %vm2564, %v2395, %v2198
    %v2567 = vsel %vm2563, %v2390, %v2199
    %v2568 = vsel %vm2564, %v2391, %v2200
    %v2569 = vmax.f32 %v2203, %v2394
    %v2570 = vmax.f32 %v2204, %v2395
    %v2571 = vsel %vm2563, %v2569, %v2203
    %v2572 = vsel %vm2564, %v2570, %v2204
    %v2573 = vsel %vm2235, 1, 0
    %v2574 = vsel %vm2236, 1, 0
    %2575 = vset.pattern.permute.xlu0 0
    %2576 = vperm.xlu0 %2575, %v2573
    %v2577 = vpop.permute.xlu0 %2576
    %2578 = vset.pattern.permute.xlu0 0
    %2579 = vperm.xlu0 %2578, %v2574
    %v2580 = vpop.permute.xlu0 %2579
    %vm2581 = vcmp.eq.s32.totalorder %v2577, 1
    %vm2582 = vcmp.eq.s32.totalorder %v2580, 1
    %v2583 = vsel %vm2581, %v2553, %v2215
    %v2584 = vsel %vm2582, %v2554, %v2216
    %v2585 = vsel %vm2581, %v2549, %v2217
    %v2586 = vsel %vm2582, %v2550, %v2218
    %v2587 = vmax.f32 %v2221, %v2553
    %v2588 = vmax.f32 %v2222, %v2554
    %v2589 = vsel %vm2581, %v2587, %v2221
    %v2590 = vsel %vm2582, %v2588, %v2222
    %s2591 = scalar_lea.vmem [#allocation2], 64
    %v2592 = vld [vmem:[%s2591] sm:$0xff]
    %v2593 = vld [vmem:[%s2591 + $0x8] sm:$0xff]
    %v2594 = vld [vmem:[%s2591 + $0x10] sm:$0xff]
    %v2595 = vld [vmem:[%s2591 + $0x18] sm:$0xff]
    %s2596 = scalar_lea.vmem [#allocation3], 160
    %v2597 = vld [vmem:[%s2596] sm:$0xff]
    %v2598 = vld [vmem:[%s2596 + $0x8] sm:$0xff]
    %v2599 = vld [vmem:[%s2596 + $0x10] sm:$0xff]
    %v2600 = vld [vmem:[%s2596 + $0x18] sm:$0xff]
    %vm2601 = vcmp.gt.s32.totalorder %v80, 2
    %vm2602 = vcmp.gt.s32.totalorder %v81, 2
    %vm2603 = vcmp.gt.s32.totalorder %v80, 5
    %vm2604 = vcmp.gt.s32.totalorder %v81, 5
    %v2605 = vunpack.c.l.bf16 %v2592
    %v2606 = vunpack.c.h.bf16 %v2592
    %v2607 = vunpack.c.l.bf16 %v2593
    %v2608 = vunpack.c.h.bf16 %v2593
    %v2609 = vunpack.c.l.bf16 %v2594
    %v2610 = vunpack.c.h.bf16 %v2594
    %v2611 = vunpack.c.l.bf16 %v2595
    %v2612 = vunpack.c.h.bf16 %v2595
    %v2613 = vadd.f32 %v2605, %v1521
    %v2614 = vadd.f32 %v2606, %v1525
    %v2615 = vadd.f32 %v2607, %v1529
    %v2616 = vadd.f32 %v2608, %v1533
    %v2617 = vadd.f32 %v2609, %v1521
    %v2618 = vadd.f32 %v2610, %v1525
    %v2619 = vadd.f32 %v2611, %v1529
    %v2620 = vadd.f32 %v2612, %v1533
    %v2621 = vpack.c.bf16 %v2566, %v2565
    %2622 = vmatprep.subr.bf16.mxu0 %v1671
    %2623 = vmatpush1.bf16.msra.mxu0 %v1670
    %2624 = vmatprep.subr.bf16.mxu0 %v1667
    %2625 = vmatpush1.bf16.msra.mxu0 %v1666
    %2626 = vmatprep.subr.bf16.mxu0 %v1663
    %2627 = vmatpush1.bf16.msra.mxu0 %v1662
    %2628 = vmatprep.subr.bf16.mxu0 %v1659
    %2629 = vmatpush1.bf16.msra.mxu0 %v1658
    %2630 = vmatprep.subr.bf16.mxu0 %v1655
    %2631 = vmatpush1.bf16.msra.mxu0 %v1654
    %2632 = vmatprep.subr.bf16.mxu0 %v1651
    %2633 = vmatpush1.bf16.msra.mxu0 %v1650
    %2634 = vmatprep.subr.bf16.mxu0 %v1647
    %2635 = vmatpush1.bf16.msra.mxu0 %v1646
    %2636 = vmatprep.subr.bf16.mxu0 %v1643
    %2637 = vmatpush1.bf16.msra.mxu0 %v1642
    %2638 = vmatprep.subr.bf16.mxu0 0
    %2639 = vmatpush2.bf16.msra.mxu0 0
    %2640 = vmatprep.subr.bf16.mxu0 0
    %2641 = vmatpush2.bf16.msra.mxu0 0
    %2642 = vmatprep.subr.bf16.mxu0 0
    %2643 = vmatpush2.bf16.msra.mxu0 0
    %2644 = vmatprep.subr.bf16.mxu0 0
    %2645 = vmatpush2.bf16.msra.mxu0 0
    %2646 = vmatprep.subr.bf16.mxu0 0
    %2647 = vmatpush2.bf16.msra.mxu0 0
    %2648 = vmatprep.subr.bf16.mxu0 0
    %2649 = vmatpush2.bf16.msra.mxu0 0
    %2650 = vmatprep.subr.bf16.mxu0 0
    %2651 = vmatpush2.bf16.msra.mxu0 0
    %2652 = vmatprep.subr.bf16.mxu0 0
    %2653 = vmatpush2.bf16.msra.mxu0 0
    %2654 = vmatprep.mubr.bf16.mxu0 0
    %2655 = vmatmul.mubr.bf16.gmra.mxu0 %v2621
    %v2656 = vpop.f32.mrf.mxu0
    %v2657 = vadd.f32 0.0, %v2656
    %v2658 = vpop.f32.mrf.mxu0
    %v2659 = vadd.f32 0.0, %v2658
    %v2660 = vpop.f32.mrf.mxu0
    %v2661 = vadd.f32 0.0, %v2660
    %v2662 = vpop.f32.mrf.mxu0
    %v2663 = vadd.f32 0.0, %v2662
    %2664 = vdwg.mxu0
    %2665 = vmatprep.subr.bf16.mxu0 %v1673
    %2666 = vmatpush1.bf16.msra.mxu0 %v1672
    %2667 = vmatprep.subr.bf16.mxu0 %v1669
    %2668 = vmatpush1.bf16.msra.mxu0 %v1668
    %2669 = vmatprep.subr.bf16.mxu0 %v1665
    %2670 = vmatpush1.bf16.msra.mxu0 %v1664
    %2671 = vmatprep.subr.bf16.mxu0 %v1661
    %2672 = vmatpush1.bf16.msra.mxu0 %v1660
    %2673 = vmatprep.subr.bf16.mxu0 %v1657
    %2674 = vmatpush1.bf16.msra.mxu0 %v1656
    %2675 = vmatprep.subr.bf16.mxu0 %v1653
    %2676 = vmatpush1.bf16.msra.mxu0 %v1652
    %2677 = vmatprep.subr.bf16.mxu0 %v1649
    %2678 = vmatpush1.bf16.msra.mxu0 %v1648
    %2679 = vmatprep.subr.bf16.mxu0 %v1645
    %2680 = vmatpush1.bf16.msra.mxu0 %v1644
    %2681 = vmatprep.subr.bf16.mxu0 0
    %2682 = vmatpush2.bf16.msra.mxu0 0
    %2683 = vmatprep.subr.bf16.mxu0 0
    %2684 = vmatpush2.bf16.msra.mxu0 0
    %2685 = vmatprep.subr.bf16.mxu0 0
    %2686 = vmatpush2.bf16.msra.mxu0 0
    %2687 = vmatprep.subr.bf16.mxu0 0
    %2688 = vmatpush2.bf16.msra.mxu0 0
    %2689 = vmatprep.subr.bf16.mxu0 0
    %2690 = vmatpush2.bf16.msra.mxu0 0
    %2691 = vmatprep.subr.bf16.mxu0 0
    %2692 = vmatpush2.bf16.msra.mxu0 0
    %2693 = vmatprep.subr.bf16.mxu0 0
    %2694 = vmatpush2.bf16.msra.mxu0 0
    %2695 = vmatprep.subr.bf16.mxu0 0
    %2696 = vmatpush2.bf16.msra.mxu0 0
    %2697 = vmatprep.mubr.bf16.mxu0 0
    %2698 = vmatmul.mubr.bf16.gmra.mxu0 %v2621
    %v2699 = vpop.f32.mrf.mxu0
    %v2700 = vadd.f32 0.0, %v2699
    %v2701 = vpop.f32.mrf.mxu0
    %v2702 = vadd.f32 0.0, %v2701
    %v2703 = vpop.f32.mrf.mxu0
    %v2704 = vadd.f32 0.0, %v2703
    %v2705 = vpop.f32.mrf.mxu0
    %v2706 = vadd.f32 0.0, %v2705
    %2707 = vdwg.mxu0
    %v2708 = vadd.f32 %v2613, %v2657
    %v2709 = vadd.f32 %v2614, %v2659
    %v2710 = vadd.f32 %v2615, %v2700
    %v2711 = vadd.f32 %v2616, %v2702
    %v2712 = vadd.f32 %v2617, %v2661
    %v2713 = vadd.f32 %v2618, %v2663
    %v2714 = vadd.f32 %v2619, %v2704
    %v2715 = vadd.f32 %v2620, %v2706
    %v2716 = vxor.u32 %v2708, 2147483648
    %v2717 = vxor.u32 %v2712, 2147483648
    %v2718 = vmul.f32 %v2716, 1.442695
    %v2719 = vpow.pop %v2718
    %v2720 = vmul.f32 %v2717, 1.442695
    %v2721 = vpow.pop %v2720
    %v2722 = vadd.f32 %v2719, 1.0
    %v2723 = vadd.f32 %v2721, 1.0
    %v2724 = vrcp.pop %v2722
    %v2725 = vmul.f32 1.0, %v2724
    %v2726 = vrcp.pop %v2723
    %v2727 = vmul.f32 1.0, %v2726
    %v2728 = vxor.u32 %v2709, 2147483648
    %v2729 = vxor.u32 %v2713, 2147483648
    %v2730 = vmul.f32 %v2728, 1.442695
    %v2731 = vpow.pop %v2730
    %v2732 = vmul.f32 %v2729, 1.442695
    %v2733 = vpow.pop %v2732
    %v2734 = vadd.f32 %v2731, 1.0
    %v2735 = vadd.f32 %v2733, 1.0
    %v2736 = vrcp.pop %v2734
    %v2737 = vmul.f32 1.0, %v2736
    %v2738 = vrcp.pop %v2735
    %v2739 = vmul.f32 1.0, %v2738
    %v2740 = vtanh.pop %v2710
    %v2741 = vtanh.pop %v2714
    %v2742 = vxor.u32 %v2711, 2147483648
    %v2743 = vxor.u32 %v2715, 2147483648
    %v2744 = vmul.f32 %v2742, 1.442695
    %v2745 = vpow.pop %v2744
    %v2746 = vmul.f32 %v2743, 1.442695
    %v2747 = vpow.pop %v2746
    %v2748 = vadd.f32 %v2745, 1.0
    %v2749 = vadd.f32 %v2747, 1.0
    %v2750 = vrcp.pop %v2748
    %v2751 = vmul.f32 1.0, %v2750
    %v2752 = vrcp.pop %v2749
    %v2753 = vmul.f32 1.0, %v2752
    %v2754 = vmul.f32 %v2737, %v2567
    %v2755 = vmul.f32 %v2739, %v2568
    %v2756 = vmul.f32 %v2725, %v2740
    %v2757 = vmul.f32 %v2727, %v2741
    %v2758 = vadd.f32 %v2754, %v2756
    %v2759 = vadd.f32 %v2755, %v2757
    %v2760 = vtanh.pop %v2758
    %v2761 = vtanh.pop %v2759
    %v2762 = vmul.f32 %v2751, %v2760
    %v2763 = vmul.f32 %v2753, %v2761
    %v2764 = vunpack.c.l.bf16 %v2597
    %v2765 = vunpack.c.h.bf16 %v2597
    %v2766 = vunpack.c.l.bf16 %v2598
    %v2767 = vunpack.c.h.bf16 %v2598
    %v2768 = vunpack.c.l.bf16 %v2599
    %v2769 = vunpack.c.h.bf16 %v2599
    %v2770 = vunpack.c.l.bf16 %v2600
    %v2771 = vunpack.c.h.bf16 %v2600
    %v2772 = vadd.f32 %v2764, %v1860
    %v2773 = vadd.f32 %v2765, %v1864
    %v2774 = vadd.f32 %v2766, %v1868
    %v2775 = vadd.f32 %v2767, %v1872
    %v2776 = vadd.f32 %v2768, %v1860
    %v2777 = vadd.f32 %v2769, %v1864
    %v2778 = vadd.f32 %v2770, %v1868
    %v2779 = vadd.f32 %v2771, %v1872
    %v2780 = vpack.c.bf16 %v2584, %v2583
    %2781 = vmatprep.subr.bf16.mxu0 %v2010
    %2782 = vmatpush1.bf16.msra.mxu0 %v2009
    %2783 = vmatprep.subr.bf16.mxu0 %v2006
    %2784 = vmatpush1.bf16.msra.mxu0 %v2005
    %2785 = vmatprep.subr.bf16.mxu0 %v2002
    %2786 = vmatpush1.bf16.msra.mxu0 %v2001
    %2787 = vmatprep.subr.bf16.mxu0 %v1998
    %2788 = vmatpush1.bf16.msra.mxu0 %v1997
    %2789 = vmatprep.subr.bf16.mxu0 %v1994
    %2790 = vmatpush1.bf16.msra.mxu0 %v1993
    %2791 = vmatprep.subr.bf16.mxu0 %v1990
    %2792 = vmatpush1.bf16.msra.mxu0 %v1989
    %2793 = vmatprep.subr.bf16.mxu0 %v1986
    %2794 = vmatpush1.bf16.msra.mxu0 %v1985
    %2795 = vmatprep.subr.bf16.mxu0 %v1982
    %2796 = vmatpush1.bf16.msra.mxu0 %v1981
    %2797 = vmatprep.subr.bf16.mxu0 0
    %2798 = vmatpush2.bf16.msra.mxu0 0
    %2799 = vmatprep.subr.bf16.mxu0 0
    %2800 = vmatpush2.bf16.msra.mxu0 0
    %2801 = vmatprep.subr.bf16.mxu0 0
    %2802 = vmatpush2.bf16.msra.mxu0 0
    %2803 = vmatprep.subr.bf16.mxu0 0
    %2804 = vmatpush2.bf16.msra.mxu0 0
    %2805 = vmatprep.subr.bf16.mxu0 0
    %2806 = vmatpush2.bf16.msra.mxu0 0
    %2807 = vmatprep.subr.bf16.mxu0 0
    %2808 = vmatpush2.bf16.msra.mxu0 0
    %2809 = vmatprep.subr.bf16.mxu0 0
    %2810 = vmatpush2.bf16.msra.mxu0 0
    %2811 = vmatprep.subr.bf16.mxu0 0
    %2812 = vmatpush2.bf16.msra.mxu0 0
    %2813 = vmatprep.mubr.bf16.mxu0 0
    %2814 = vmatmul.mubr.bf16.gmra.mxu0 %v2780
    %v2815 = vpop.f32.mrf.mxu0
    %v2816 = vadd.f32 0.0, %v2815
    %v2817 = vpop.f32.mrf.mxu0
    %v2818 = vadd.f32 0.0, %v2817
    %v2819 = vpop.f32.mrf.mxu0
    %v2820 = vadd.f32 0.0, %v2819
    %v2821 = vpop.f32.mrf.mxu0
    %v2822 = vadd.f32 0.0, %v2821
    %2823 = vdwg.mxu0
    %2824 = vmatprep.subr.bf16.mxu0 %v2012
    %2825 = vmatpush1.bf16.msra.mxu0 %v2011
    %2826 = vmatprep.subr.bf16.mxu0 %v2008
    %2827 = vmatpush1.bf16.msra.mxu0 %v2007
    %2828 = vmatprep.subr.bf16.mxu0 %v2004
    %2829 = vmatpush1.bf16.msra.mxu0 %v2003
    %2830 = vmatprep.subr.bf16.mxu0 %v2000
    %2831 = vmatpush1.bf16.msra.mxu0 %v1999
    %2832 = vmatprep.subr.bf16.mxu0 %v1996
    %2833 = vmatpush1.bf16.msra.mxu0 %v1995
    %2834 = vmatprep.subr.bf16.mxu0 %v1992
    %2835 = vmatpush1.bf16.msra.mxu0 %v1991
    %2836 = vmatprep.subr.bf16.mxu0 %v1988
    %2837 = vmatpush1.bf16.msra.mxu0 %v1987
    %2838 = vmatprep.subr.bf16.mxu0 %v1984
    %2839 = vmatpush1.bf16.msra.mxu0 %v1983
    %2840 = vmatprep.subr.bf16.mxu0 0
    %2841 = vmatpush2.bf16.msra.mxu0 0
    %2842 = vmatprep.subr.bf16.mxu0 0
    %2843 = vmatpush2.bf16.msra.mxu0 0
    %2844 = vmatprep.subr.bf16.mxu0 0
    %2845 = vmatpush2.bf16.msra.mxu0 0
    %2846 = vmatprep.subr.bf16.mxu0 0
    %2847 = vmatpush2.bf16.msra.mxu0 0
    %2848 = vmatprep.subr.bf16.mxu0 0
    %2849 = vmatpush2.bf16.msra.mxu0 0
    %2850 = vmatprep.subr.bf16.mxu0 0
    %2851 = vmatpush2.bf16.msra.mxu0 0
    %2852 = vmatprep.subr.bf16.mxu0 0
    %2853 = vmatpush2.bf16.msra.mxu0 0
    %2854 = vmatprep.subr.bf16.mxu0 0
    %2855 = vmatpush2.bf16.msra.mxu0 0
    %2856 = vmatprep.mubr.bf16.mxu0 0
    %2857 = vmatmul.mubr.bf16.gmra.mxu0 %v2780
    %v2858 = vpop.f32.mrf.mxu0
    %v2859 = vadd.f32 0.0, %v2858
    %v2860 = vpop.f32.mrf.mxu0
    %v2861 = vadd.f32 0.0, %v2860
    %v2862 = vpop.f32.mrf.mxu0
    %v2863 = vadd.f32 0.0, %v2862
    %v2864 = vpop.f32.mrf.mxu0
    %v2865 = vadd.f32 0.0, %v2864
    %2866 = vdwg.mxu0
    %v2867 = vadd.f32 %v2772, %v2816
    %v2868 = vadd.f32 %v2773, %v2818
    %v2869 = vadd.f32 %v2774, %v2859
    %v2870 = vadd.f32 %v2775, %v2861
    %v2871 = vadd.f32 %v2776, %v2820
    %v2872 = vadd.f32 %v2777, %v2822
    %v2873 = vadd.f32 %v2778, %v2863
    %v2874 = vadd.f32 %v2779, %v2865
    %v2875 = vxor.u32 %v2867, 2147483648
    %v2876 = vxor.u32 %v2871, 2147483648
    %v2877 = vmul.f32 %v2875, 1.442695
    %v2878 = vpow.pop %v2877
    %v2879 = vmul.f32 %v2876, 1.442695
    %v2880 = vpow.pop %v2879
    %v2881 = vadd.f32 %v2878, 1.0
    %v2882 = vadd.f32 %v2880, 1.0
    %v2883 = vrcp.pop %v2881
    %v2884 = vmul.f32 1.0, %v2883
    %v2885 = vrcp.pop %v2882
    %v2886 = vmul.f32 1.0, %v2885
    %v2887 = vxor.u32 %v2868, 2147483648
    %v2888 = vxor.u32 %v2872, 2147483648
    %v2889 = vmul.f32 %v2887, 1.442695
    %v2890 = vpow.pop %v2889
    %v2891 = vmul.f32 %v2888, 1.442695
    %v2892 = vpow.pop %v2891
    %v2893 = vadd.f32 %v2890, 1.0
    %v2894 = vadd.f32 %v2892, 1.0
    %v2895 = vrcp.pop %v2893
    %v2896 = vmul.f32 1.0, %v2895
    %v2897 = vrcp.pop %v2894
    %v2898 = vmul.f32 1.0, %v2897
    %v2899 = vtanh.pop %v2869
    %v2900 = vtanh.pop %v2873
    %v2901 = vxor.u32 %v2870, 2147483648
    %v2902 = vxor.u32 %v2874, 2147483648
    %v2903 = vmul.f32 %v2901, 1.442695
    %v2904 = vpow.pop %v2903
    %v2905 = vmul.f32 %v2902, 1.442695
    %v2906 = vpow.pop %v2905
    %v2907 = vadd.f32 %v2904, 1.0
    %v2908 = vadd.f32 %v2906, 1.0
    %v2909 = vrcp.pop %v2907
    %v2910 = vmul.f32 1.0, %v2909
    %v2911 = vrcp.pop %v2908
    %v2912 = vmul.f32 1.0, %v2911
    %v2913 = vmul.f32 %v2896, %v2585
    %v2914 = vmul.f32 %v2898, %v2586
    %v2915 = vmul.f32 %v2884, %v2899
    %v2916 = vmul.f32 %v2886, %v2900
    %v2917 = vadd.f32 %v2913, %v2915
    %v2918 = vadd.f32 %v2914, %v2916
    %v2919 = vtanh.pop %v2917
    %v2920 = vtanh.pop %v2918
    %v2921 = vmul.f32 %v2910, %v2919
    %v2922 = vmul.f32 %v2912, %v2920
    %v2923 = vsel %vm2601, 1, 0
    %v2924 = vsel %vm2602, 1, 0
    %2925 = vset.pattern.permute.xlu0 0
    %2926 = vperm.xlu0 %2925, %v2923
    %v2927 = vpop.permute.xlu0 %2926
    %2928 = vset.pattern.permute.xlu0 0
    %2929 = vperm.xlu0 %2928, %v2924
    %v2930 = vpop.permute.xlu0 %2929
    %vm2931 = vcmp.eq.s32.totalorder %v2927, 1
    %vm2932 = vcmp.eq.s32.totalorder %v2930, 1
    %v2933 = vsel %vm2931, %v2762, %v2565
    %v2934 = vsel %vm2932, %v2763, %v2566
    %v2935 = vsel %vm2931, %v2758, %v2567
    %v2936 = vsel %vm2932, %v2759, %v2568
    %v2937 = vmax.f32 %v2571, %v2762
    %v2938 = vmax.f32 %v2572, %v2763
    %v2939 = vsel %vm2931, %v2937, %v2571
    %v2940 = vsel %vm2932, %v2938, %v2572
    %v2941 = vsel %vm2603, 1, 0
    %v2942 = vsel %vm2604, 1, 0
    %2943 = vset.pattern.permute.xlu0 0
    %2944 = vperm.xlu0 %2943, %v2941
    %v2945 = vpop.permute.xlu0 %2944
    %2946 = vset.pattern.permute.xlu0 0
    %2947 = vperm.xlu0 %2946, %v2942
    %v2948 = vpop.permute.xlu0 %2947
    %vm2949 = vcmp.eq.s32.totalorder %v2945, 1
    %vm2950 = vcmp.eq.s32.totalorder %v2948, 1
    %v2951 = vsel %vm2949, %v2921, %v2583
    %v2952 = vsel %vm2950, %v2922, %v2584
    %v2953 = vsel %vm2949, %v2917, %v2585
    %v2954 = vsel %vm2950, %v2918, %v2586
    %v2955 = vmax.f32 %v2589, %v2921
    %v2956 = vmax.f32 %v2590, %v2922
    %v2957 = vsel %vm2949, %v2955, %v2589
    %v2958 = vsel %vm2950, %v2956, %v2590
    %s2959 = scalar_lea.vmem [#allocation2], 96
    %v2960 = vld [vmem:[%s2959] sm:$0xff]
    %v2961 = vld [vmem:[%s2959 + $0x8] sm:$0xff]
    %v2962 = vld [vmem:[%s2959 + $0x10] sm:$0xff]
    %v2963 = vld [vmem:[%s2959 + $0x18] sm:$0xff]
    %s2964 = scalar_lea.vmem [#allocation3], 128
    %v2965 = vld [vmem:[%s2964] sm:$0xff]
    %v2966 = vld [vmem:[%s2964 + $0x8] sm:$0xff]
    %v2967 = vld [vmem:[%s2964 + $0x10] sm:$0xff]
    %v2968 = vld [vmem:[%s2964 + $0x18] sm:$0xff]
    %vm2969 = vcmp.gt.s32.totalorder %v80, 3
    %vm2970 = vcmp.gt.s32.totalorder %v81, 3
    %vm2971 = vcmp.gt.s32.totalorder %v80, 4
    %vm2972 = vcmp.gt.s32.totalorder %v81, 4
    %v2973 = vunpack.c.l.bf16 %v2960
    %v2974 = vunpack.c.h.bf16 %v2960
    %v2975 = vunpack.c.l.bf16 %v2961
    %v2976 = vunpack.c.h.bf16 %v2961
    %v2977 = vunpack.c.l.bf16 %v2962
    %v2978 = vunpack.c.h.bf16 %v2962
    %v2979 = vunpack.c.l.bf16 %v2963
    %v2980 = vunpack.c.h.bf16 %v2963
    %v2981 = vadd.f32 %v2973, %v1521
    %v2982 = vadd.f32 %v2974, %v1525
    %v2983 = vadd.f32 %v2975, %v1529
    %v2984 = vadd.f32 %v2976, %v1533
    %v2985 = vadd.f32 %v2977, %v1521
    %v2986 = vadd.f32 %v2978, %v1525
    %v2987 = vadd.f32 %v2979, %v1529
    %v2988 = vadd.f32 %v2980, %v1533
    %v2989 = vpack.c.bf16 %v2934, %v2933
    %2990 = vmatprep.subr.bf16.mxu0 %v1671
    %2991 = vmatpush1.bf16.msra.mxu0 %v1670
    %2992 = vmatprep.subr.bf16.mxu0 %v1667
    %2993 = vmatpush1.bf16.msra.mxu0 %v1666
    %2994 = vmatprep.subr.bf16.mxu0 %v1663
    %2995 = vmatpush1.bf16.msra.mxu0 %v1662
    %2996 = vmatprep.subr.bf16.mxu0 %v1659
    %2997 = vmatpush1.bf16.msra.mxu0 %v1658
    %2998 = vmatprep.subr.bf16.mxu0 %v1655
    %2999 = vmatpush1.bf16.msra.mxu0 %v1654
    %3000 = vmatprep.subr.bf16.mxu0 %v1651
    %3001 = vmatpush1.bf16.msra.mxu0 %v1650
    %3002 = vmatprep.subr.bf16.mxu0 %v1647
    %3003 = vmatpush1.bf16.msra.mxu0 %v1646
    %3004 = vmatprep.subr.bf16.mxu0 %v1643
    %3005 = vmatpush1.bf16.msra.mxu0 %v1642
    %3006 = vmatprep.subr.bf16.mxu0 0
    %3007 = vmatpush2.bf16.msra.mxu0 0
    %3008 = vmatprep.subr.bf16.mxu0 0
    %3009 = vmatpush2.bf16.msra.mxu0 0
    %3010 = vmatprep.subr.bf16.mxu0 0
    %3011 = vmatpush2.bf16.msra.mxu0 0
    %3012 = vmatprep.subr.bf16.mxu0 0
    %3013 = vmatpush2.bf16.msra.mxu0 0
    %3014 = vmatprep.subr.bf16.mxu0 0
    %3015 = vmatpush2.bf16.msra.mxu0 0
    %3016 = vmatprep.subr.bf16.mxu0 0
    %3017 = vmatpush2.bf16.msra.mxu0 0
    %3018 = vmatprep.subr.bf16.mxu0 0
    %3019 = vmatpush2.bf16.msra.mxu0 0
    %3020 = vmatprep.subr.bf16.mxu0 0
    %3021 = vmatpush2.bf16.msra.mxu0 0
    %3022 = vmatprep.mubr.bf16.mxu0 0
    %3023 = vmatmul.mubr.bf16.gmra.mxu0 %v2989
    %v3024 = vpop.f32.mrf.mxu0
    %v3025 = vadd.f32 0.0, %v3024
    %v3026 = vpop.f32.mrf.mxu0
    %v3027 = vadd.f32 0.0, %v3026
    %v3028 = vpop.f32.mrf.mxu0
    %v3029 = vadd.f32 0.0, %v3028
    %v3030 = vpop.f32.mrf.mxu0
    %v3031 = vadd.f32 0.0, %v3030
    %3032 = vdwg.mxu0
    %3033 = vmatprep.subr.bf16.mxu0 %v1673
    %3034 = vmatpush1.bf16.msra.mxu0 %v1672
    %3035 = vmatprep.subr.bf16.mxu0 %v1669
    %3036 = vmatpush1.bf16.msra.mxu0 %v1668
    %3037 = vmatprep.subr.bf16.mxu0 %v1665
    %3038 = vmatpush1.bf16.msra.mxu0 %v1664
    %3039 = vmatprep.subr.bf16.mxu0 %v1661
    %3040 = vmatpush1.bf16.msra.mxu0 %v1660
    %3041 = vmatprep.subr.bf16.mxu0 %v1657
    %3042 = vmatpush1.bf16.msra.mxu0 %v1656
    %3043 = vmatprep.subr.bf16.mxu0 %v1653
    %3044 = vmatpush1.bf16.msra.mxu0 %v1652
    %3045 = vmatprep.subr.bf16.mxu0 %v1649
    %3046 = vmatpush1.bf16.msra.mxu0 %v1648
    %3047 = vmatprep.subr.bf16.mxu0 %v1645
    %3048 = vmatpush1.bf16.msra.mxu0 %v1644
    %3049 = vmatprep.subr.bf16.mxu0 0
    %3050 = vmatpush2.bf16.msra.mxu0 0
    %3051 = vmatprep.subr.bf16.mxu0 0
    %3052 = vmatpush2.bf16.msra.mxu0 0
    %3053 = vmatprep.subr.bf16.mxu0 0
    %3054 = vmatpush2.bf16.msra.mxu0 0
    %3055 = vmatprep.subr.bf16.mxu0 0
    %3056 = vmatpush2.bf16.msra.mxu0 0
    %3057 = vmatprep.subr.bf16.mxu0 0
    %3058 = vmatpush2.bf16.msra.mxu0 0
    %3059 = vmatprep.subr.bf16.mxu0 0
    %3060 = vmatpush2.bf16.msra.mxu0 0
    %3061 = vmatprep.subr.bf16.mxu0 0
    %3062 = vmatpush2.bf16.msra.mxu0 0
    %3063 = vmatprep.subr.bf16.mxu0 0
    %3064 = vmatpush2.bf16.msra.mxu0 0
    %3065 = vmatprep.mubr.bf16.mxu0 0
    %3066 = vmatmul.mubr.bf16.gmra.mxu0 %v2989
    %v3067 = vpop.f32.mrf.mxu0
    %v3068 = vadd.f32 0.0, %v3067
    %v3069 = vpop.f32.mrf.mxu0
    %v3070 = vadd.f32 0.0, %v3069
    %v3071 = vpop.f32.mrf.mxu0
    %v3072 = vadd.f32 0.0, %v3071
    %v3073 = vpop.f32.mrf.mxu0
    %v3074 = vadd.f32 0.0, %v3073
    %3075 = vdwg.mxu0
    %v3076 = vadd.f32 %v2981, %v3025
    %v3077 = vadd.f32 %v2982, %v3027
    %v3078 = vadd.f32 %v2983, %v3068
    %v3079 = vadd.f32 %v2984, %v3070
    %v3080 = vadd.f32 %v2985, %v3029
    %v3081 = vadd.f32 %v2986, %v3031
    %v3082 = vadd.f32 %v2987, %v3072
    %v3083 = vadd.f32 %v2988, %v3074
    %v3084 = vxor.u32 %v3076, 2147483648
    %v3085 = vxor.u32 %v3080, 2147483648
    %v3086 = vmul.f32 %v3084, 1.442695
    %v3087 = vpow.pop %v3086
    %v3088 = vmul.f32 %v3085, 1.442695
    %v3089 = vpow.pop %v3088
    %v3090 = vadd.f32 %v3087, 1.0
    %v3091 = vadd.f32 %v3089, 1.0
    %v3092 = vrcp.pop %v3090
    %v3093 = vmul.f32 1.0, %v3092
    %v3094 = vrcp.pop %v3091
    %v3095 = vmul.f32 1.0, %v3094
    %v3096 = vxor.u32 %v3077, 2147483648
    %v3097 = vxor.u32 %v3081, 2147483648
    %v3098 = vmul.f32 %v3096, 1.442695
    %v3099 = vpow.pop %v3098
    %v3100 = vmul.f32 %v3097, 1.442695
    %v3101 = vpow.pop %v3100
    %v3102 = vadd.f32 %v3099, 1.0
    %v3103 = vadd.f32 %v3101, 1.0
    %v3104 = vrcp.pop %v3102
    %v3105 = vmul.f32 1.0, %v3104
    %v3106 = vrcp.pop %v3103
    %v3107 = vmul.f32 1.0, %v3106
    %v3108 = vtanh.pop %v3078
    %v3109 = vtanh.pop %v3082
    %v3110 = vxor.u32 %v3079, 2147483648
    %v3111 = vxor.u32 %v3083, 2147483648
    %v3112 = vmul.f32 %v3110, 1.442695
    %v3113 = vpow.pop %v3112
    %v3114 = vmul.f32 %v3111, 1.442695
    %v3115 = vpow.pop %v3114
    %v3116 = vadd.f32 %v3113, 1.0
    %v3117 = vadd.f32 %v3115, 1.0
    %v3118 = vrcp.pop %v3116
    %v3119 = vmul.f32 1.0, %v3118
    %v3120 = vrcp.pop %v3117
    %v3121 = vmul.f32 1.0, %v3120
    %v3122 = vmul.f32 %v3105, %v2935
    %v3123 = vmul.f32 %v3107, %v2936
    %v3124 = vmul.f32 %v3093, %v3108
    %v3125 = vmul.f32 %v3095, %v3109
    %v3126 = vadd.f32 %v3122, %v3124
    %v3127 = vadd.f32 %v3123, %v3125
    %v3128 = vtanh.pop %v3126
    %v3129 = vtanh.pop %v3127
    %v3130 = vmul.f32 %v3119, %v3128
    %v3131 = vmul.f32 %v3121, %v3129
    %v3132 = vunpack.c.l.bf16 %v2965
    %v3133 = vunpack.c.h.bf16 %v2965
    %v3134 = vunpack.c.l.bf16 %v2966
    %v3135 = vunpack.c.h.bf16 %v2966
    %v3136 = vunpack.c.l.bf16 %v2967
    %v3137 = vunpack.c.h.bf16 %v2967
    %v3138 = vunpack.c.l.bf16 %v2968
    %v3139 = vunpack.c.h.bf16 %v2968
    %v3140 = vadd.f32 %v3132, %v1860
    %v3141 = vadd.f32 %v3133, %v1864
    %v3142 = vadd.f32 %v3134, %v1868
    %v3143 = vadd.f32 %v3135, %v1872
    %v3144 = vadd.f32 %v3136, %v1860
    %v3145 = vadd.f32 %v3137, %v1864
    %v3146 = vadd.f32 %v3138, %v1868
    %v3147 = vadd.f32 %v3139, %v1872
    %v3148 = vpack.c.bf16 %v2952, %v2951
    %3149 = vmatprep.subr.bf16.mxu0 %v2010
    %3150 = vmatpush1.bf16.msra.mxu0 %v2009
    %3151 = vmatprep.subr.bf16.mxu0 %v2006
    %3152 = vmatpush1.bf16.msra.mxu0 %v2005
    %3153 = vmatprep.subr.bf16.mxu0 %v2002
    %3154 = vmatpush1.bf16.msra.mxu0 %v2001
    %3155 = vmatprep.subr.bf16.mxu0 %v1998
    %3156 = vmatpush1.bf16.msra.mxu0 %v1997
    %3157 = vmatprep.subr.bf16.mxu0 %v1994
    %3158 = vmatpush1.bf16.msra.mxu0 %v1993
    %3159 = vmatprep.subr.bf16.mxu0 %v1990
    %3160 = vmatpush1.bf16.msra.mxu0 %v1989
    %3161 = vmatprep.subr.bf16.mxu0 %v1986
    %3162 = vmatpush1.bf16.msra.mxu0 %v1985
    %3163 = vmatprep.subr.bf16.mxu0 %v1982
    %3164 = vmatpush1.bf16.msra.mxu0 %v1981
    %3165 = vmatprep.subr.bf16.mxu0 0
    %3166 = vmatpush2.bf16.msra.mxu0 0
    %3167 = vmatprep.subr.bf16.mxu0 0
    %3168 = vmatpush2.bf16.msra.mxu0 0
    %3169 = vmatprep.subr.bf16.mxu0 0
    %3170 = vmatpush2.bf16.msra.mxu0 0
    %3171 = vmatprep.subr.bf16.mxu0 0
    %3172 = vmatpush2.bf16.msra.mxu0 0
    %3173 = vmatprep.subr.bf16.mxu0 0
    %3174 = vmatpush2.bf16.msra.mxu0 0
    %3175 = vmatprep.subr.bf16.mxu0 0
    %3176 = vmatpush2.bf16.msra.mxu0 0
    %3177 = vmatprep.subr.bf16.mxu0 0
    %3178 = vmatpush2.bf16.msra.mxu0 0
    %3179 = vmatprep.subr.bf16.mxu0 0
    %3180 = vmatpush2.bf16.msra.mxu0 0
    %3181 = vmatprep.mubr.bf16.mxu0 0
    %3182 = vmatmul.mubr.bf16.gmra.mxu0 %v3148
    %v3183 = vpop.f32.mrf.mxu0
    %v3184 = vadd.f32 0.0, %v3183
    %v3185 = vpop.f32.mrf.mxu0
    %v3186 = vadd.f32 0.0, %v3185
    %v3187 = vpop.f32.mrf.mxu0
    %v3188 = vadd.f32 0.0, %v3187
    %v3189 = vpop.f32.mrf.mxu0
    %v3190 = vadd.f32 0.0, %v3189
    %3191 = vdwg.mxu0
    %3192 = vmatprep.subr.bf16.mxu0 %v2012
    %3193 = vmatpush1.bf16.msra.mxu0 %v2011
    %3194 = vmatprep.subr.bf16.mxu0 %v2008
    %3195 = vmatpush1.bf16.msra.mxu0 %v2007
    %3196 = vmatprep.subr.bf16.mxu0 %v2004
    %3197 = vmatpush1.bf16.msra.mxu0 %v2003
    %3198 = vmatprep.subr.bf16.mxu0 %v2000
    %3199 = vmatpush1.bf16.msra.mxu0 %v1999
    %3200 = vmatprep.subr.bf16.mxu0 %v1996
    %3201 = vmatpush1.bf16.msra.mxu0 %v1995
    %3202 = vmatprep.subr.bf16.mxu0 %v1992
    %3203 = vmatpush1.bf16.msra.mxu0 %v1991
    %3204 = vmatprep.subr.bf16.mxu0 %v1988
    %3205 = vmatpush1.bf16.msra.mxu0 %v1987
    %3206 = vmatprep.subr.bf16.mxu0 %v1984
    %3207 = vmatpush1.bf16.msra.mxu0 %v1983
    %3208 = vmatprep.subr.bf16.mxu0 0
    %3209 = vmatpush2.bf16.msra.mxu0 0
    %3210 = vmatprep.subr.bf16.mxu0 0
    %3211 = vmatpush2.bf16.msra.mxu0 0
    %3212 = vmatprep.subr.bf16.mxu0 0
    %3213 = vmatpush2.bf16.msra.mxu0 0
    %3214 = vmatprep.subr.bf16.mxu0 0
    %3215 = vmatpush2.bf16.msra.mxu0 0
    %3216 = vmatprep.subr.bf16.mxu0 0
    %3217 = vmatpush2.bf16.msra.mxu0 0
    %3218 = vmatprep.subr.bf16.mxu0 0
    %3219 = vmatpush2.bf16.msra.mxu0 0
    %3220 = vmatprep.subr.bf16.mxu0 0
    %3221 = vmatpush2.bf16.msra.mxu0 0
    %3222 = vmatprep.subr.bf16.mxu0 0
    %3223 = vmatpush2.bf16.msra.mxu0 0
    %3224 = vmatprep.mubr.bf16.mxu0 0
    %3225 = vmatmul.mubr.bf16.gmra.mxu0 %v3148
    %v3226 = vpop.f32.mrf.mxu0
    %v3227 = vadd.f32 0.0, %v3226
    %v3228 = vpop.f32.mrf.mxu0
    %v3229 = vadd.f32 0.0, %v3228
    %v3230 = vpop.f32.mrf.mxu0
    %v3231 = vadd.f32 0.0, %v3230
    %v3232 = vpop.f32.mrf.mxu0
    %v3233 = vadd.f32 0.0, %v3232
    %3234 = vdwg.mxu0
    %v3235 = vadd.f32 %v3140, %v3184
    %v3236 = vadd.f32 %v3141, %v3186
    %v3237 = vadd.f32 %v3142, %v3227
    %v3238 = vadd.f32 %v3143, %v3229
    %v3239 = vadd.f32 %v3144, %v3188
    %v3240 = vadd.f32 %v3145, %v3190
    %v3241 = vadd.f32 %v3146, %v3231
    %v3242 = vadd.f32 %v3147, %v3233
    %v3243 = vxor.u32 %v3235, 2147483648
    %v3244 = vxor.u32 %v3239, 2147483648
    %v3245 = vmul.f32 %v3243, 1.442695
    %v3246 = vpow.pop %v3245
    %v3247 = vmul.f32 %v3244, 1.442695
    %v3248 = vpow.pop %v3247
    %v3249 = vadd.f32 %v3246, 1.0
    %v3250 = vadd.f32 %v3248, 1.0
    %v3251 = vrcp.pop %v3249
    %v3252 = vmul.f32 1.0, %v3251
    %v3253 = vrcp.pop %v3250
    %v3254 = vmul.f32 1.0, %v3253
    %v3255 = vxor.u32 %v3236, 2147483648
    %v3256 = vxor.u32 %v3240, 2147483648
    %v3257 = vmul.f32 %v3255, 1.442695
    %v3258 = vpow.pop %v3257
    %v3259 = vmul.f32 %v3256, 1.442695
    %v3260 = vpow.pop %v3259
    %v3261 = vadd.f32 %v3258, 1.0
    %v3262 = vadd.f32 %v3260, 1.0
    %v3263 = vrcp.pop %v3261
    %v3264 = vmul.f32 1.0, %v3263
    %v3265 = vrcp.pop %v3262
    %v3266 = vmul.f32 1.0, %v3265
    %v3267 = vtanh.pop %v3237
    %v3268 = vtanh.pop %v3241
    %v3269 = vxor.u32 %v3238, 2147483648
    %v3270 = vxor.u32 %v3242, 2147483648
    %v3271 = vmul.f32 %v3269, 1.442695
    %v3272 = vpow.pop %v3271
    %v3273 = vmul.f32 %v3270, 1.442695
    %v3274 = vpow.pop %v3273
    %v3275 = vadd.f32 %v3272, 1.0
    %v3276 = vadd.f32 %v3274, 1.0
    %v3277 = vrcp.pop %v3275
    %v3278 = vmul.f32 1.0, %v3277
    %v3279 = vrcp.pop %v3276
    %v3280 = vmul.f32 1.0, %v3279
    %v3281 = vmul.f32 %v3264, %v2953
    %v3282 = vmul.f32 %v3266, %v2954
    %v3283 = vmul.f32 %v3252, %v3267
    %v3284 = vmul.f32 %v3254, %v3268
    %v3285 = vadd.f32 %v3281, %v3283
    %v3286 = vadd.f32 %v3282, %v3284
    %v3287 = vtanh.pop %v3285
    %v3288 = vtanh.pop %v3286
    %v3289 = vmul.f32 %v3278, %v3287
    %v3290 = vmul.f32 %v3280, %v3288
    %v3291 = vsel %vm2969, 1, 0
    %v3292 = vsel %vm2970, 1, 0
    %3293 = vset.pattern.permute.xlu0 0
    %3294 = vperm.xlu0 %3293, %v3291
    %v3295 = vpop.permute.xlu0 %3294
    %3296 = vset.pattern.permute.xlu0 0
    %3297 = vperm.xlu0 %3296, %v3292
    %v3298 = vpop.permute.xlu0 %3297
    %vm3299 = vcmp.eq.s32.totalorder %v3295, 1
    %vm3300 = vcmp.eq.s32.totalorder %v3298, 1
    %v3301 = vsel %vm3299, %v3130, %v2933
    %v3302 = vsel %vm3300, %v3131, %v2934
    %v3303 = vsel %vm3299, %v3126, %v2935
    %v3304 = vsel %vm3300, %v3127, %v2936
    %v3305 = vmax.f32 %v2939, %v3130
    %v3306 = vmax.f32 %v2940, %v3131
    %v3307 = vsel %vm3299, %v3305, %v2939
    %v3308 = vsel %vm3300, %v3306, %v2940
    %v3309 = vsel %vm2971, 1, 0
    %v3310 = vsel %vm2972, 1, 0
    %3311 = vset.pattern.permute.xlu0 0
    %3312 = vperm.xlu0 %3311, %v3309
    %v3313 = vpop.permute.xlu0 %3312
    %3314 = vset.pattern.permute.xlu0 0
    %3315 = vperm.xlu0 %3314, %v3310
    %v3316 = vpop.permute.xlu0 %3315
    %vm3317 = vcmp.eq.s32.totalorder %v3313, 1
    %vm3318 = vcmp.eq.s32.totalorder %v3316, 1
    %v3319 = vsel %vm3317, %v3289, %v2951
    %v3320 = vsel %vm3318, %v3290, %v2952
    %v3321 = vsel %vm3317, %v3285, %v2953
    %v3322 = vsel %vm3318, %v3286, %v2954
    %v3323 = vmax.f32 %v2957, %v3289
    %v3324 = vmax.f32 %v2958, %v3290
    %v3325 = vsel %vm3317, %v3323, %v2957
    %v3326 = vsel %vm3318, %v3324, %v2958
    %s3327 = scalar_lea.vmem [#allocation2], 128
    %v3328 = vld [vmem:[%s3327] sm:$0xff]
    %v3329 = vld [vmem:[%s3327 + $0x8] sm:$0xff]
    %v3330 = vld [vmem:[%s3327 + $0x10] sm:$0xff]
    %v3331 = vld [vmem:[%s3327 + $0x18] sm:$0xff]
    %s3332 = scalar_lea.vmem [#allocation3], 96
    %v3333 = vld [vmem:[%s3332] sm:$0xff]
    %v3334 = vld [vmem:[%s3332 + $0x8] sm:$0xff]
    %v3335 = vld [vmem:[%s3332 + $0x10] sm:$0xff]
    %v3336 = vld [vmem:[%s3332 + $0x18] sm:$0xff]
    %v3337 = vunpack.c.l.bf16 %v3328
    %v3338 = vunpack.c.h.bf16 %v3328
    %v3339 = vunpack.c.l.bf16 %v3329
    %v3340 = vunpack.c.h.bf16 %v3329
    %v3341 = vunpack.c.l.bf16 %v3330
    %v3342 = vunpack.c.h.bf16 %v3330
    %v3343 = vunpack.c.l.bf16 %v3331
    %v3344 = vunpack.c.h.bf16 %v3331
    %v3345 = vadd.f32 %v3337, %v1521
    %v3346 = vadd.f32 %v3338, %v1525
    %v3347 = vadd.f32 %v3339, %v1529
    %v3348 = vadd.f32 %v3340, %v1533
    %v3349 = vadd.f32 %v3341, %v1521
    %v3350 = vadd.f32 %v3342, %v1525
    %v3351 = vadd.f32 %v3343, %v1529
    %v3352 = vadd.f32 %v3344, %v1533
    %v3353 = vpack.c.bf16 %v3302, %v3301
    %3354 = vmatprep.subr.bf16.mxu0 %v1671
    %3355 = vmatpush1.bf16.msra.mxu0 %v1670
    %3356 = vmatprep.subr.bf16.mxu0 %v1667
    %3357 = vmatpush1.bf16.msra.mxu0 %v1666
    %3358 = vmatprep.subr.bf16.mxu0 %v1663
    %3359 = vmatpush1.bf16.msra.mxu0 %v1662
    %3360 = vmatprep.subr.bf16.mxu0 %v1659
    %3361 = vmatpush1.bf16.msra.mxu0 %v1658
    %3362 = vmatprep.subr.bf16.mxu0 %v1655
    %3363 = vmatpush1.bf16.msra.mxu0 %v1654
    %3364 = vmatprep.subr.bf16.mxu0 %v1651
    %3365 = vmatpush1.bf16.msra.mxu0 %v1650
    %3366 = vmatprep.subr.bf16.mxu0 %v1647
    %3367 = vmatpush1.bf16.msra.mxu0 %v1646
    %3368 = vmatprep.subr.bf16.mxu0 %v1643
    %3369 = vmatpush1.bf16.msra.mxu0 %v1642
    %3370 = vmatprep.subr.bf16.mxu0 0
    %3371 = vmatpush2.bf16.msra.mxu0 0
    %3372 = vmatprep.subr.bf16.mxu0 0
    %3373 = vmatpush2.bf16.msra.mxu0 0
    %3374 = vmatprep.subr.bf16.mxu0 0
    %3375 = vmatpush2.bf16.msra.mxu0 0
    %3376 = vmatprep.subr.bf16.mxu0 0
    %3377 = vmatpush2.bf16.msra.mxu0 0
    %3378 = vmatprep.subr.bf16.mxu0 0
    %3379 = vmatpush2.bf16.msra.mxu0 0
    %3380 = vmatprep.subr.bf16.mxu0 0
    %3381 = vmatpush2.bf16.msra.mxu0 0
    %3382 = vmatprep.subr.bf16.mxu0 0
    %3383 = vmatpush2.bf16.msra.mxu0 0
    %3384 = vmatprep.subr.bf16.mxu0 0
    %3385 = vmatpush2.bf16.msra.mxu0 0
    %3386 = vmatprep.mubr.bf16.mxu0 0
    %3387 = vmatmul.mubr.bf16.gmra.mxu0 %v3353
    %v3388 = vpop.f32.mrf.mxu0
    %v3389 = vadd.f32 0.0, %v3388
    %v3390 = vpop.f32.mrf.mxu0
    %v3391 = vadd.f32 0.0, %v3390
    %v3392 = vpop.f32.mrf.mxu0
    %v3393 = vadd.f32 0.0, %v3392
    %v3394 = vpop.f32.mrf.mxu0
    %v3395 = vadd.f32 0.0, %v3394
    %3396 = vdwg.mxu0
    %3397 = vmatprep.subr.bf16.mxu0 %v1673
    %3398 = vmatpush1.bf16.msra.mxu0 %v1672
    %3399 = vmatprep.subr.bf16.mxu0 %v1669
    %3400 = vmatpush1.bf16.msra.mxu0 %v1668
    %3401 = vmatprep.subr.bf16.mxu0 %v1665
    %3402 = vmatpush1.bf16.msra.mxu0 %v1664
    %3403 = vmatprep.subr.bf16.mxu0 %v1661
    %3404 = vmatpush1.bf16.msra.mxu0 %v1660
    %3405 = vmatprep.subr.bf16.mxu0 %v1657
    %3406 = vmatpush1.bf16.msra.mxu0 %v1656
    %3407 = vmatprep.subr.bf16.mxu0 %v1653
    %3408 = vmatpush1.bf16.msra.mxu0 %v1652
    %3409 = vmatprep.subr.bf16.mxu0 %v1649
    %3410 = vmatpush1.bf16.msra.mxu0 %v1648
    %3411 = vmatprep.subr.bf16.mxu0 %v1645
    %3412 = vmatpush1.bf16.msra.mxu0 %v1644
    %3413 = vmatprep.subr.bf16.mxu0 0
    %3414 = vmatpush2.bf16.msra.mxu0 0
    %3415 = vmatprep.subr.bf16.mxu0 0
    %3416 = vmatpush2.bf16.msra.mxu0 0
    %3417 = vmatprep.subr.bf16.mxu0 0
    %3418 = vmatpush2.bf16.msra.mxu0 0
    %3419 = vmatprep.subr.bf16.mxu0 0
    %3420 = vmatpush2.bf16.msra.mxu0 0
    %3421 = vmatprep.subr.bf16.mxu0 0
    %3422 = vmatpush2.bf16.msra.mxu0 0
    %3423 = vmatprep.subr.bf16.mxu0 0
    %3424 = vmatpush2.bf16.msra.mxu0 0
    %3425 = vmatprep.subr.bf16.mxu0 0
    %3426 = vmatpush2.bf16.msra.mxu0 0
    %3427 = vmatprep.subr.bf16.mxu0 0
    %3428 = vmatpush2.bf16.msra.mxu0 0
    %3429 = vmatprep.mubr.bf16.mxu0 0
    %3430 = vmatmul.mubr.bf16.gmra.mxu0 %v3353
    %v3431 = vpop.f32.mrf.mxu0
    %v3432 = vadd.f32 0.0, %v3431
    %v3433 = vpop.f32.mrf.mxu0
    %v3434 = vadd.f32 0.0, %v3433
    %v3435 = vpop.f32.mrf.mxu0
    %v3436 = vadd.f32 0.0, %v3435
    %v3437 = vpop.f32.mrf.mxu0
    %v3438 = vadd.f32 0.0, %v3437
    %3439 = vdwg.mxu0
    %v3440 = vadd.f32 %v3345, %v3389
    %v3441 = vadd.f32 %v3346, %v3391
    %v3442 = vadd.f32 %v3347, %v3432
    %v3443 = vadd.f32 %v3348, %v3434
    %v3444 = vadd.f32 %v3349, %v3393
    %v3445 = vadd.f32 %v3350, %v3395
    %v3446 = vadd.f32 %v3351, %v3436
    %v3447 = vadd.f32 %v3352, %v3438
    %v3448 = vxor.u32 %v3440, 2147483648
    %v3449 = vxor.u32 %v3444, 2147483648
    %v3450 = vmul.f32 %v3448, 1.442695
    %v3451 = vpow.pop %v3450
    %v3452 = vmul.f32 %v3449, 1.442695
    %v3453 = vpow.pop %v3452
    %v3454 = vadd.f32 %v3451, 1.0
    %v3455 = vadd.f32 %v3453, 1.0
    %v3456 = vrcp.pop %v3454
    %v3457 = vmul.f32 1.0, %v3456
    %v3458 = vrcp.pop %v3455
    %v3459 = vmul.f32 1.0, %v3458
    %v3460 = vxor.u32 %v3441, 2147483648
    %v3461 = vxor.u32 %v3445, 2147483648
    %v3462 = vmul.f32 %v3460, 1.442695
    %v3463 = vpow.pop %v3462
    %v3464 = vmul.f32 %v3461, 1.442695
    %v3465 = vpow.pop %v3464
    %v3466 = vadd.f32 %v3463, 1.0
    %v3467 = vadd.f32 %v3465, 1.0
    %v3468 = vrcp.pop %v3466
    %v3469 = vmul.f32 1.0, %v3468
    %v3470 = vrcp.pop %v3467
    %v3471 = vmul.f32 1.0, %v3470
    %v3472 = vtanh.pop %v3442
    %v3473 = vtanh.pop %v3446
    %v3474 = vxor.u32 %v3443, 2147483648
    %v3475 = vxor.u32 %v3447, 2147483648
    %v3476 = vmul.f32 %v3474, 1.442695
    %v3477 = vpow.pop %v3476
    %v3478 = vmul.f32 %v3475, 1.442695
    %v3479 = vpow.pop %v3478
    %v3480 = vadd.f32 %v3477, 1.0
    %v3481 = vadd.f32 %v3479, 1.0
    %v3482 = vrcp.pop %v3480
    %v3483 = vmul.f32 1.0, %v3482
    %v3484 = vrcp.pop %v3481
    %v3485 = vmul.f32 1.0, %v3484
    %v3486 = vmul.f32 %v3469, %v3303
    %v3487 = vmul.f32 %v3471, %v3304
    %v3488 = vmul.f32 %v3457, %v3472
    %v3489 = vmul.f32 %v3459, %v3473
    %v3490 = vadd.f32 %v3486, %v3488
    %v3491 = vadd.f32 %v3487, %v3489
    %v3492 = vtanh.pop %v3490
    %v3493 = vtanh.pop %v3491
    %v3494 = vmul.f32 %v3483, %v3492
    %v3495 = vmul.f32 %v3485, %v3493
    %v3496 = vunpack.c.l.bf16 %v3333
    %v3497 = vunpack.c.h.bf16 %v3333
    %v3498 = vunpack.c.l.bf16 %v3334
    %v3499 = vunpack.c.h.bf16 %v3334
    %v3500 = vunpack.c.l.bf16 %v3335
    %v3501 = vunpack.c.h.bf16 %v3335
    %v3502 = vunpack.c.l.bf16 %v3336
    %v3503 = vunpack.c.h.bf16 %v3336
    %v3504 = vadd.f32 %v3496, %v1860
    %v3505 = vadd.f32 %v3497, %v1864
    %v3506 = vadd.f32 %v3498, %v1868
    %v3507 = vadd.f32 %v3499, %v1872
    %v3508 = vadd.f32 %v3500, %v1860
    %v3509 = vadd.f32 %v3501, %v1864
    %v3510 = vadd.f32 %v3502, %v1868
    %v3511 = vadd.f32 %v3503, %v1872
    %v3512 = vpack.c.bf16 %v3320, %v3319
    %3513 = vmatprep.subr.bf16.mxu0 %v2010
    %3514 = vmatpush1.bf16.msra.mxu0 %v2009
    %3515 = vmatprep.subr.bf16.mxu0 %v2006
    %3516 = vmatpush1.bf16.msra.mxu0 %v2005
    %3517 = vmatprep.subr.bf16.mxu0 %v2002
    %3518 = vmatpush1.bf16.msra.mxu0 %v2001
    %3519 = vmatprep.subr.bf16.mxu0 %v1998
    %3520 = vmatpush1.bf16.msra.mxu0 %v1997
    %3521 = vmatprep.subr.bf16.mxu0 %v1994
    %3522 = vmatpush1.bf16.msra.mxu0 %v1993
    %3523 = vmatprep.subr.bf16.mxu0 %v1990
    %3524 = vmatpush1.bf16.msra.mxu0 %v1989
    %3525 = vmatprep.subr.bf16.mxu0 %v1986
    %3526 = vmatpush1.bf16.msra.mxu0 %v1985
    %3527 = vmatprep.subr.bf16.mxu0 %v1982
    %3528 = vmatpush1.bf16.msra.mxu0 %v1981
    %3529 = vmatprep.subr.bf16.mxu0 0
    %3530 = vmatpush2.bf16.msra.mxu0 0
    %3531 = vmatprep.subr.bf16.mxu0 0
    %3532 = vmatpush2.bf16.msra.mxu0 0
    %3533 = vmatprep.subr.bf16.mxu0 0
    %3534 = vmatpush2.bf16.msra.mxu0 0
    %3535 = vmatprep.subr.bf16.mxu0 0
    %3536 = vmatpush2.bf16.msra.mxu0 0
    %3537 = vmatprep.subr.bf16.mxu0 0
    %3538 = vmatpush2.bf16.msra.mxu0 0
    %3539 = vmatprep.subr.bf16.mxu0 0
    %3540 = vmatpush2.bf16.msra.mxu0 0
    %3541 = vmatprep.subr.bf16.mxu0 0
    %3542 = vmatpush2.bf16.msra.mxu0 0
    %3543 = vmatprep.subr.bf16.mxu0 0
    %3544 = vmatpush2.bf16.msra.mxu0 0
    %3545 = vmatprep.mubr.bf16.mxu0 0
    %3546 = vmatmul.mubr.bf16.gmra.mxu0 %v3512
    %v3547 = vpop.f32.mrf.mxu0
    %v3548 = vadd.f32 0.0, %v3547
    %v3549 = vpop.f32.mrf.mxu0
    %v3550 = vadd.f32 0.0, %v3549
    %v3551 = vpop.f32.mrf.mxu0
    %v3552 = vadd.f32 0.0, %v3551
    %v3553 = vpop.f32.mrf.mxu0
    %v3554 = vadd.f32 0.0, %v3553
    %3555 = vdwg.mxu0
    %3556 = vmatprep.subr.bf16.mxu0 %v2012
    %3557 = vmatpush1.bf16.msra.mxu0 %v2011
    %3558 = vmatprep.subr.bf16.mxu0 %v2008
    %3559 = vmatpush1.bf16.msra.mxu0 %v2007
    %3560 = vmatprep.subr.bf16.mxu0 %v2004
    %3561 = vmatpush1.bf16.msra.mxu0 %v2003
    %3562 = vmatprep.subr.bf16.mxu0 %v2000
    %3563 = vmatpush1.bf16.msra.mxu0 %v1999
    %3564 = vmatprep.subr.bf16.mxu0 %v1996
    %3565 = vmatpush1.bf16.msra.mxu0 %v1995
    %3566 = vmatprep.subr.bf16.mxu0 %v1992
    %3567 = vmatpush1.bf16.msra.mxu0 %v1991
    %3568 = vmatprep.subr.bf16.mxu0 %v1988
    %3569 = vmatpush1.bf16.msra.mxu0 %v1987
    %3570 = vmatprep.subr.bf16.mxu0 %v1984
    %3571 = vmatpush1.bf16.msra.mxu0 %v1983
    %3572 = vmatprep.subr.bf16.mxu0 0
    %3573 = vmatpush2.bf16.msra.mxu0 0
    %3574 = vmatprep.subr.bf16.mxu0 0
    %3575 = vmatpush2.bf16.msra.mxu0 0
    %3576 = vmatprep.subr.bf16.mxu0 0
    %3577 = vmatpush2.bf16.msra.mxu0 0
    %3578 = vmatprep.subr.bf16.mxu0 0
    %3579 = vmatpush2.bf16.msra.mxu0 0
    %3580 = vmatprep.subr.bf16.mxu0 0
    %3581 = vmatpush2.bf16.msra.mxu0 0
    %3582 = vmatprep.subr.bf16.mxu0 0
    %3583 = vmatpush2.bf16.msra.mxu0 0
    %3584 = vmatprep.subr.bf16.mxu0 0
    %3585 = vmatpush2.bf16.msra.mxu0 0
    %3586 = vmatprep.subr.bf16.mxu0 0
    %3587 = vmatpush2.bf16.msra.mxu0 0
    %3588 = vmatprep.mubr.bf16.mxu0 0
    %3589 = vmatmul.mubr.bf16.gmra.mxu0 %v3512
    %v3590 = vpop.f32.mrf.mxu0
    %v3591 = vadd.f32 0.0, %v3590
    %v3592 = vpop.f32.mrf.mxu0
    %v3593 = vadd.f32 0.0, %v3592
    %v3594 = vpop.f32.mrf.mxu0
    %v3595 = vadd.f32 0.0, %v3594
    %v3596 = vpop.f32.mrf.mxu0
    %v3597 = vadd.f32 0.0, %v3596
    %3598 = vdwg.mxu0
    %v3599 = vadd.f32 %v3504, %v3548
    %v3600 = vadd.f32 %v3505, %v3550
    %v3601 = vadd.f32 %v3506, %v3591
    %v3602 = vadd.f32 %v3507, %v3593
    %v3603 = vadd.f32 %v3508, %v3552
    %v3604 = vadd.f32 %v3509, %v3554
    %v3605 = vadd.f32 %v3510, %v3595
    %v3606 = vadd.f32 %v3511, %v3597
    %v3607 = vxor.u32 %v3599, 2147483648
    %v3608 = vxor.u32 %v3603, 2147483648
    %v3609 = vmul.f32 %v3607, 1.442695
    %v3610 = vpow.pop %v3609
    %v3611 = vmul.f32 %v3608, 1.442695
    %v3612 = vpow.pop %v3611
    %v3613 = vadd.f32 %v3610, 1.0
    %v3614 = vadd.f32 %v3612, 1.0
    %v3615 = vrcp.pop %v3613
    %v3616 = vmul.f32 1.0, %v3615
    %v3617 = vrcp.pop %v3614
    %v3618 = vmul.f32 1.0, %v3617
    %v3619 = vxor.u32 %v3600, 2147483648
    %v3620 = vxor.u32 %v3604, 2147483648
    %v3621 = vmul.f32 %v3619, 1.442695
    %v3622 = vpow.pop %v3621
    %v3623 = vmul.f32 %v3620, 1.442695
    %v3624 = vpow.pop %v3623
    %v3625 = vadd.f32 %v3622, 1.0
    %v3626 = vadd.f32 %v3624, 1.0
    %v3627 = vrcp.pop %v3625
    %v3628 = vmul.f32 1.0, %v3627
    %v3629 = vrcp.pop %v3626
    %v3630 = vmul.f32 1.0, %v3629
    %v3631 = vtanh.pop %v3601
    %v3632 = vtanh.pop %v3605
    %v3633 = vxor.u32 %v3602, 2147483648
    %v3634 = vxor.u32 %v3606, 2147483648
    %v3635 = vmul.f32 %v3633, 1.442695
    %v3636 = vpow.pop %v3635
    %v3637 = vmul.f32 %v3634, 1.442695
    %v3638 = vpow.pop %v3637
    %v3639 = vadd.f32 %v3636, 1.0
    %v3640 = vadd.f32 %v3638, 1.0
    %v3641 = vrcp.pop %v3639
    %v3642 = vmul.f32 1.0, %v3641
    %v3643 = vrcp.pop %v3640
    %v3644 = vmul.f32 1.0, %v3643
    %v3645 = vmul.f32 %v3628, %v3321
    %v3646 = vmul.f32 %v3630, %v3322
    %v3647 = vmul.f32 %v3616, %v3631
    %v3648 = vmul.f32 %v3618, %v3632
    %v3649 = vadd.f32 %v3645, %v3647
    %v3650 = vadd.f32 %v3646, %v3648
    %v3651 = vtanh.pop %v3649
    %v3652 = vtanh.pop %v3650
    %v3653 = vmul.f32 %v3642, %v3651
    %v3654 = vmul.f32 %v3644, %v3652
    %v3655 = vsel %vm3317, %v3494, %v3301
    %v3656 = vsel %vm3318, %v3495, %v3302
    %v3657 = vsel %vm3317, %v3490, %v3303
    %v3658 = vsel %vm3318, %v3491, %v3304
    %v3659 = vmax.f32 %v3307, %v3494
    %v3660 = vmax.f32 %v3308, %v3495
    %v3661 = vsel %vm3317, %v3659, %v3307
    %v3662 = vsel %vm3318, %v3660, %v3308
    %v3663 = vsel %vm3299, %v3653, %v3319
    %v3664 = vsel %vm3300, %v3654, %v3320
    %v3665 = vsel %vm3299, %v3649, %v3321
    %v3666 = vsel %vm3300, %v3650, %v3322
    %v3667 = vmax.f32 %v3325, %v3653
    %v3668 = vmax.f32 %v3326, %v3654
    %v3669 = vsel %vm3299, %v3667, %v3325
    %v3670 = vsel %vm3300, %v3668, %v3326
    %s3671 = scalar_lea.vmem [#allocation2], 160
    %v3672 = vld [vmem:[%s3671] sm:$0xff]
    %v3673 = vld [vmem:[%s3671 + $0x8] sm:$0xff]
    %v3674 = vld [vmem:[%s3671 + $0x10] sm:$0xff]
    %v3675 = vld [vmem:[%s3671 + $0x18] sm:$0xff]
    %s3676 = scalar_lea.vmem [#allocation3], 64
    %v3677 = vld [vmem:[%s3676] sm:$0xff]
    %v3678 = vld [vmem:[%s3676 + $0x8] sm:$0xff]
    %v3679 = vld [vmem:[%s3676 + $0x10] sm:$0xff]
    %v3680 = vld [vmem:[%s3676 + $0x18] sm:$0xff]
    %v3681 = vunpack.c.l.bf16 %v3672
    %v3682 = vunpack.c.h.bf16 %v3672
    %v3683 = vunpack.c.l.bf16 %v3673
    %v3684 = vunpack.c.h.bf16 %v3673
    %v3685 = vunpack.c.l.bf16 %v3674
    %v3686 = vunpack.c.h.bf16 %v3674
    %v3687 = vunpack.c.l.bf16 %v3675
    %v3688 = vunpack.c.h.bf16 %v3675
    %v3689 = vadd.f32 %v3681, %v1521
    %v3690 = vadd.f32 %v3682, %v1525
    %v3691 = vadd.f32 %v3683, %v1529
    %v3692 = vadd.f32 %v3684, %v1533
    %v3693 = vadd.f32 %v3685, %v1521
    %v3694 = vadd.f32 %v3686, %v1525
    %v3695 = vadd.f32 %v3687, %v1529
    %v3696 = vadd.f32 %v3688, %v1533
    %v3697 = vpack.c.bf16 %v3656, %v3655
    %3698 = vmatprep.subr.bf16.mxu0 %v1671
    %3699 = vmatpush1.bf16.msra.mxu0 %v1670
    %3700 = vmatprep.subr.bf16.mxu0 %v1667
    %3701 = vmatpush1.bf16.msra.mxu0 %v1666
    %3702 = vmatprep.subr.bf16.mxu0 %v1663
    %3703 = vmatpush1.bf16.msra.mxu0 %v1662
    %3704 = vmatprep.subr.bf16.mxu0 %v1659
    %3705 = vmatpush1.bf16.msra.mxu0 %v1658
    %3706 = vmatprep.subr.bf16.mxu0 %v1655
    %3707 = vmatpush1.bf16.msra.mxu0 %v1654
    %3708 = vmatprep.subr.bf16.mxu0 %v1651
    %3709 = vmatpush1.bf16.msra.mxu0 %v1650
    %3710 = vmatprep.subr.bf16.mxu0 %v1647
    %3711 = vmatpush1.bf16.msra.mxu0 %v1646
    %3712 = vmatprep.subr.bf16.mxu0 %v1643
    %3713 = vmatpush1.bf16.msra.mxu0 %v1642
    %3714 = vmatprep.subr.bf16.mxu0 0
    %3715 = vmatpush2.bf16.msra.mxu0 0
    %3716 = vmatprep.subr.bf16.mxu0 0
    %3717 = vmatpush2.bf16.msra.mxu0 0
    %3718 = vmatprep.subr.bf16.mxu0 0
    %3719 = vmatpush2.bf16.msra.mxu0 0
    %3720 = vmatprep.subr.bf16.mxu0 0
    %3721 = vmatpush2.bf16.msra.mxu0 0
    %3722 = vmatprep.subr.bf16.mxu0 0
    %3723 = vmatpush2.bf16.msra.mxu0 0
    %3724 = vmatprep.subr.bf16.mxu0 0
    %3725 = vmatpush2.bf16.msra.mxu0 0
    %3726 = vmatprep.subr.bf16.mxu0 0
    %3727 = vmatpush2.bf16.msra.mxu0 0
    %3728 = vmatprep.subr.bf16.mxu0 0
    %3729 = vmatpush2.bf16.msra.mxu0 0
    %3730 = vmatprep.mubr.bf16.mxu0 0
    %3731 = vmatmul.mubr.bf16.gmra.mxu0 %v3697
    %v3732 = vpop.f32.mrf.mxu0
    %v3733 = vadd.f32 0.0, %v3732
    %v3734 = vpop.f32.mrf.mxu0
    %v3735 = vadd.f32 0.0, %v3734
    %v3736 = vpop.f32.mrf.mxu0
    %v3737 = vadd.f32 0.0, %v3736
    %v3738 = vpop.f32.mrf.mxu0
    %v3739 = vadd.f32 0.0, %v3738
    %3740 = vdwg.mxu0
    %3741 = vmatprep.subr.bf16.mxu0 %v1673
    %3742 = vmatpush1.bf16.msra.mxu0 %v1672
    %3743 = vmatprep.subr.bf16.mxu0 %v1669
    %3744 = vmatpush1.bf16.msra.mxu0 %v1668
    %3745 = vmatprep.subr.bf16.mxu0 %v1665
    %3746 = vmatpush1.bf16.msra.mxu0 %v1664
    %3747 = vmatprep.subr.bf16.mxu0 %v1661
    %3748 = vmatpush1.bf16.msra.mxu0 %v1660
    %3749 = vmatprep.subr.bf16.mxu0 %v1657
    %3750 = vmatpush1.bf16.msra.mxu0 %v1656
    %3751 = vmatprep.subr.bf16.mxu0 %v1653
    %3752 = vmatpush1.bf16.msra.mxu0 %v1652
    %3753 = vmatprep.subr.bf16.mxu0 %v1649
    %3754 = vmatpush1.bf16.msra.mxu0 %v1648
    %3755 = vmatprep.subr.bf16.mxu0 %v1645
    %3756 = vmatpush1.bf16.msra.mxu0 %v1644
    %3757 = vmatprep.subr.bf16.mxu0 0
    %3758 = vmatpush2.bf16.msra.mxu0 0
    %3759 = vmatprep.subr.bf16.mxu0 0
    %3760 = vmatpush2.bf16.msra.mxu0 0
    %3761 = vmatprep.subr.bf16.mxu0 0
    %3762 = vmatpush2.bf16.msra.mxu0 0
    %3763 = vmatprep.subr.bf16.mxu0 0
    %3764 = vmatpush2.bf16.msra.mxu0 0
    %3765 = vmatprep.subr.bf16.mxu0 0
    %3766 = vmatpush2.bf16.msra.mxu0 0
    %3767 = vmatprep.subr.bf16.mxu0 0
    %3768 = vmatpush2.bf16.msra.mxu0 0
    %3769 = vmatprep.subr.bf16.mxu0 0
    %3770 = vmatpush2.bf16.msra.mxu0 0
    %3771 = vmatprep.subr.bf16.mxu0 0
    %3772 = vmatpush2.bf16.msra.mxu0 0
    %3773 = vmatprep.mubr.bf16.mxu0 0
    %3774 = vmatmul.mubr.bf16.gmra.mxu0 %v3697
    %v3775 = vpop.f32.mrf.mxu0
    %v3776 = vadd.f32 0.0, %v3775
    %v3777 = vpop.f32.mrf.mxu0
    %v3778 = vadd.f32 0.0, %v3777
    %v3779 = vpop.f32.mrf.mxu0
    %v3780 = vadd.f32 0.0, %v3779
    %v3781 = vpop.f32.mrf.mxu0
    %v3782 = vadd.f32 0.0, %v3781
    %3783 = vdwg.mxu0
    %v3784 = vadd.f32 %v3689, %v3733
    %v3785 = vadd.f32 %v3690, %v3735
    %v3786 = vadd.f32 %v3691, %v3776
    %v3787 = vadd.f32 %v3692, %v3778
    %v3788 = vadd.f32 %v3693, %v3737
    %v3789 = vadd.f32 %v3694, %v3739
    %v3790 = vadd.f32 %v3695, %v3780
    %v3791 = vadd.f32 %v3696, %v3782
    %v3792 = vxor.u32 %v3784, 2147483648
    %v3793 = vxor.u32 %v3788, 2147483648
    %v3794 = vmul.f32 %v3792, 1.442695
    %v3795 = vpow.pop %v3794
    %v3796 = vmul.f32 %v3793, 1.442695
    %v3797 = vpow.pop %v3796
    %v3798 = vadd.f32 %v3795, 1.0
    %v3799 = vadd.f32 %v3797, 1.0
    %v3800 = vrcp.pop %v3798
    %v3801 = vmul.f32 1.0, %v3800
    %v3802 = vrcp.pop %v3799
    %v3803 = vmul.f32 1.0, %v3802
    %v3804 = vxor.u32 %v3785, 2147483648
    %v3805 = vxor.u32 %v3789, 2147483648
    %v3806 = vmul.f32 %v3804, 1.442695
    %v3807 = vpow.pop %v3806
    %v3808 = vmul.f32 %v3805, 1.442695
    %v3809 = vpow.pop %v3808
    %v3810 = vadd.f32 %v3807, 1.0
    %v3811 = vadd.f32 %v3809, 1.0
    %v3812 = vrcp.pop %v3810
    %v3813 = vmul.f32 1.0, %v3812
    %v3814 = vrcp.pop %v3811
    %v3815 = vmul.f32 1.0, %v3814
    %v3816 = vtanh.pop %v3786
    %v3817 = vtanh.pop %v3790
    %v3818 = vxor.u32 %v3787, 2147483648
    %v3819 = vxor.u32 %v3791, 2147483648
    %v3820 = vmul.f32 %v3818, 1.442695
    %v3821 = vpow.pop %v3820
    %v3822 = vmul.f32 %v3819, 1.442695
    %v3823 = vpow.pop %v3822
    %v3824 = vadd.f32 %v3821, 1.0
    %v3825 = vadd.f32 %v3823, 1.0
    %v3826 = vrcp.pop %v3824
    %v3827 = vmul.f32 1.0, %v3826
    %v3828 = vrcp.pop %v3825
    %v3829 = vmul.f32 1.0, %v3828
    %v3830 = vmul.f32 %v3813, %v3657
    %v3831 = vmul.f32 %v3815, %v3658
    %v3832 = vmul.f32 %v3801, %v3816
    %v3833 = vmul.f32 %v3803, %v3817
    %v3834 = vadd.f32 %v3830, %v3832
    %v3835 = vadd.f32 %v3831, %v3833
    %v3836 = vtanh.pop %v3834
    %v3837 = vtanh.pop %v3835
    %v3838 = vmul.f32 %v3827, %v3836
    %v3839 = vmul.f32 %v3829, %v3837
    %v3840 = vunpack.c.l.bf16 %v3677
    %v3841 = vunpack.c.h.bf16 %v3677
    %v3842 = vunpack.c.l.bf16 %v3678
    %v3843 = vunpack.c.h.bf16 %v3678
    %v3844 = vunpack.c.l.bf16 %v3679
    %v3845 = vunpack.c.h.bf16 %v3679
    %v3846 = vunpack.c.l.bf16 %v3680
    %v3847 = vunpack.c.h.bf16 %v3680
    %v3848 = vadd.f32 %v3840, %v1860
    %v3849 = vadd.f32 %v3841, %v1864
    %v3850 = vadd.f32 %v3842, %v1868
    %v3851 = vadd.f32 %v3843, %v1872
    %v3852 = vadd.f32 %v3844, %v1860
    %v3853 = vadd.f32 %v3845, %v1864
    %v3854 = vadd.f32 %v3846, %v1868
    %v3855 = vadd.f32 %v3847, %v1872
    %v3856 = vpack.c.bf16 %v3664, %v3663
    %3857 = vmatprep.subr.bf16.mxu0 %v2010
    %3858 = vmatpush1.bf16.msra.mxu0 %v2009
    %3859 = vmatprep.subr.bf16.mxu0 %v2006
    %3860 = vmatpush1.bf16.msra.mxu0 %v2005
    %3861 = vmatprep.subr.bf16.mxu0 %v2002
    %3862 = vmatpush1.bf16.msra.mxu0 %v2001
    %3863 = vmatprep.subr.bf16.mxu0 %v1998
    %3864 = vmatpush1.bf16.msra.mxu0 %v1997
    %3865 = vmatprep.subr.bf16.mxu0 %v1994
    %3866 = vmatpush1.bf16.msra.mxu0 %v1993
    %3867 = vmatprep.subr.bf16.mxu0 %v1990
    %3868 = vmatpush1.bf16.msra.mxu0 %v1989
    %3869 = vmatprep.subr.bf16.mxu0 %v1986
    %3870 = vmatpush1.bf16.msra.mxu0 %v1985
    %3871 = vmatprep.subr.bf16.mxu0 %v1982
    %3872 = vmatpush1.bf16.msra.mxu0 %v1981
    %3873 = vmatprep.subr.bf16.mxu0 0
    %3874 = vmatpush2.bf16.msra.mxu0 0
    %3875 = vmatprep.subr.bf16.mxu0 0
    %3876 = vmatpush2.bf16.msra.mxu0 0
    %3877 = vmatprep.subr.bf16.mxu0 0
    %3878 = vmatpush2.bf16.msra.mxu0 0
    %3879 = vmatprep.subr.bf16.mxu0 0
    %3880 = vmatpush2.bf16.msra.mxu0 0
    %3881 = vmatprep.subr.bf16.mxu0 0
    %3882 = vmatpush2.bf16.msra.mxu0 0
    %3883 = vmatprep.subr.bf16.mxu0 0
    %3884 = vmatpush2.bf16.msra.mxu0 0
    %3885 = vmatprep.subr.bf16.mxu0 0
    %3886 = vmatpush2.bf16.msra.mxu0 0
    %3887 = vmatprep.subr.bf16.mxu0 0
    %3888 = vmatpush2.bf16.msra.mxu0 0
    %3889 = vmatprep.mubr.bf16.mxu0 0
    %3890 = vmatmul.mubr.bf16.gmra.mxu0 %v3856
    %v3891 = vpop.f32.mrf.mxu0
    %v3892 = vadd.f32 0.0, %v3891
    %v3893 = vpop.f32.mrf.mxu0
    %v3894 = vadd.f32 0.0, %v3893
    %v3895 = vpop.f32.mrf.mxu0
    %v3896 = vadd.f32 0.0, %v3895
    %v3897 = vpop.f32.mrf.mxu0
    %v3898 = vadd.f32 0.0, %v3897
    %3899 = vdwg.mxu0
    %3900 = vmatprep.subr.bf16.mxu0 %v2012
    %3901 = vmatpush1.bf16.msra.mxu0 %v2011
    %3902 = vmatprep.subr.bf16.mxu0 %v2008
    %3903 = vmatpush1.bf16.msra.mxu0 %v2007
    %3904 = vmatprep.subr.bf16.mxu0 %v2004
    %3905 = vmatpush1.bf16.msra.mxu0 %v2003
    %3906 = vmatprep.subr.bf16.mxu0 %v2000
    %3907 = vmatpush1.bf16.msra.mxu0 %v1999
    %3908 = vmatprep.subr.bf16.mxu0 %v1996
    %3909 = vmatpush1.bf16.msra.mxu0 %v1995
    %3910 = vmatprep.subr.bf16.mxu0 %v1992
    %3911 = vmatpush1.bf16.msra.mxu0 %v1991
    %3912 = vmatprep.subr.bf16.mxu0 %v1988
    %3913 = vmatpush1.bf16.msra.mxu0 %v1987
    %3914 = vmatprep.subr.bf16.mxu0 %v1984
    %3915 = vmatpush1.bf16.msra.mxu0 %v1983
    %3916 = vmatprep.subr.bf16.mxu0 0
    %3917 = vmatpush2.bf16.msra.mxu0 0
    %3918 = vmatprep.subr.bf16.mxu0 0
    %3919 = vmatpush2.bf16.msra.mxu0 0
    %3920 = vmatprep.subr.bf16.mxu0 0
    %3921 = vmatpush2.bf16.msra.mxu0 0
    %3922 = vmatprep.subr.bf16.mxu0 0
    %3923 = vmatpush2.bf16.msra.mxu0 0
    %3924 = vmatprep.subr.bf16.mxu0 0
    %3925 = vmatpush2.bf16.msra.mxu0 0
    %3926 = vmatprep.subr.bf16.mxu0 0
    %3927 = vmatpush2.bf16.msra.mxu0 0
    %3928 = vmatprep.subr.bf16.mxu0 0
    %3929 = vmatpush2.bf16.msra.mxu0 0
    %3930 = vmatprep.subr.bf16.mxu0 0
    %3931 = vmatpush2.bf16.msra.mxu0 0
    %3932 = vmatprep.mubr.bf16.mxu0 0
    %3933 = vmatmul.mubr.bf16.gmra.mxu0 %v3856
    %v3934 = vpop.f32.mrf.mxu0
    %v3935 = vadd.f32 0.0, %v3934
    %v3936 = vpop.f32.mrf.mxu0
    %v3937 = vadd.f32 0.0, %v3936
    %v3938 = vpop.f32.mrf.mxu0
    %v3939 = vadd.f32 0.0, %v3938
    %v3940 = vpop.f32.mrf.mxu0
    %v3941 = vadd.f32 0.0, %v3940
    %3942 = vdwg.mxu0
    %v3943 = vadd.f32 %v3848, %v3892
    %v3944 = vadd.f32 %v3849, %v3894
    %v3945 = vadd.f32 %v3850, %v3935
    %v3946 = vadd.f32 %v3851, %v3937
    %v3947 = vadd.f32 %v3852, %v3896
    %v3948 = vadd.f32 %v3853, %v3898
    %v3949 = vadd.f32 %v3854, %v3939
    %v3950 = vadd.f32 %v3855, %v3941
    %v3951 = vxor.u32 %v3943, 2147483648
    %v3952 = vxor.u32 %v3947, 2147483648
    %v3953 = vmul.f32 %v3951, 1.442695
    %v3954 = vpow.pop %v3953
    %v3955 = vmul.f32 %v3952, 1.442695
    %v3956 = vpow.pop %v3955
    %v3957 = vadd.f32 %v3954, 1.0
    %v3958 = vadd.f32 %v3956, 1.0
    %v3959 = vrcp.pop %v3957
    %v3960 = vmul.f32 1.0, %v3959
    %v3961 = vrcp.pop %v3958
    %v3962 = vmul.f32 1.0, %v3961
    %v3963 = vxor.u32 %v3944, 2147483648
    %v3964 = vxor.u32 %v3948, 2147483648
    %v3965 = vmul.f32 %v3963, 1.442695
    %v3966 = vpow.pop %v3965
    %v3967 = vmul.f32 %v3964, 1.442695
    %v3968 = vpow.pop %v3967
    %v3969 = vadd.f32 %v3966, 1.0
    %v3970 = vadd.f32 %v3968, 1.0
    %v3971 = vrcp.pop %v3969
    %v3972 = vmul.f32 1.0, %v3971
    %v3973 = vrcp.pop %v3970
    %v3974 = vmul.f32 1.0, %v3973
    %v3975 = vtanh.pop %v3945
    %v3976 = vtanh.pop %v3949
    %v3977 = vxor.u32 %v3946, 2147483648
    %v3978 = vxor.u32 %v3950, 2147483648
    %v3979 = vmul.f32 %v3977, 1.442695
    %v3980 = vpow.pop %v3979
    %v3981 = vmul.f32 %v3978, 1.442695
    %v3982 = vpow.pop %v3981
    %v3983 = vadd.f32 %v3980, 1.0
    %v3984 = vadd.f32 %v3982, 1.0
    %v3985 = vrcp.pop %v3983
    %v3986 = vmul.f32 1.0, %v3985
    %v3987 = vrcp.pop %v3984
    %v3988 = vmul.f32 1.0, %v3987
    %v3989 = vmul.f32 %v3972, %v3665
    %v3990 = vmul.f32 %v3974, %v3666
    %v3991 = vmul.f32 %v3960, %v3975
    %v3992 = vmul.f32 %v3962, %v3976
    %v3993 = vadd.f32 %v3989, %v3991
    %v3994 = vadd.f32 %v3990, %v3992
    %v3995 = vtanh.pop %v3993
    %v3996 = vtanh.pop %v3994
    %v3997 = vmul.f32 %v3986, %v3995
    %v3998 = vmul.f32 %v3988, %v3996
    %v3999 = vsel %vm2949, %v3838, %v3655
    %v4000 = vsel %vm2950, %v3839, %v3656
    %v4001 = vsel %vm2949, %v3834, %v3657
    %v4002 = vsel %vm2950, %v3835, %v3658
    %v4003 = vmax.f32 %v3661, %v3838
    %v4004 = vmax.f32 %v3662, %v3839
    %v4005 = vsel %vm2949, %v4003, %v3661
    %v4006 = vsel %vm2950, %v4004, %v3662
    %v4007 = vsel %vm2931, %v3997, %v3663
    %v4008 = vsel %vm2932, %v3998, %v3664
    %v4009 = vsel %vm2931, %v3993, %v3665
    %v4010 = vsel %vm2932, %v3994, %v3666
    %v4011 = vmax.f32 %v3669, %v3997
    %v4012 = vmax.f32 %v3670, %v3998
    %v4013 = vsel %vm2931, %v4011, %v3669
    %v4014 = vsel %vm2932, %v4012, %v3670
    %s4015 = scalar_lea.vmem [#allocation2], 192
    %v4016 = vld [vmem:[%s4015] sm:$0xff]
    %v4017 = vld [vmem:[%s4015 + $0x8] sm:$0xff]
    %v4018 = vld [vmem:[%s4015 + $0x10] sm:$0xff]
    %v4019 = vld [vmem:[%s4015 + $0x18] sm:$0xff]
    %s4020 = scalar_lea.vmem [#allocation3], 32
    %v4021 = vld [vmem:[%s4020] sm:$0xff]
    %v4022 = vld [vmem:[%s4020 + $0x8] sm:$0xff]
    %v4023 = vld [vmem:[%s4020 + $0x10] sm:$0xff]
    %v4024 = vld [vmem:[%s4020 + $0x18] sm:$0xff]
    %v4025 = vunpack.c.l.bf16 %v4016
    %v4026 = vunpack.c.h.bf16 %v4016
    %v4027 = vunpack.c.l.bf16 %v4017
    %v4028 = vunpack.c.h.bf16 %v4017
    %v4029 = vunpack.c.l.bf16 %v4018
    %v4030 = vunpack.c.h.bf16 %v4018
    %v4031 = vunpack.c.l.bf16 %v4019
    %v4032 = vunpack.c.h.bf16 %v4019
    %v4033 = vadd.f32 %v4025, %v1521
    %v4034 = vadd.f32 %v4026, %v1525
    %v4035 = vadd.f32 %v4027, %v1529
    %v4036 = vadd.f32 %v4028, %v1533
    %v4037 = vadd.f32 %v4029, %v1521
    %v4038 = vadd.f32 %v4030, %v1525
    %v4039 = vadd.f32 %v4031, %v1529
    %v4040 = vadd.f32 %v4032, %v1533
    %v4041 = vpack.c.bf16 %v4000, %v3999
    %4042 = vmatprep.subr.bf16.mxu0 %v1671
    %4043 = vmatpush1.bf16.msra.mxu0 %v1670
    %4044 = vmatprep.subr.bf16.mxu0 %v1667
    %4045 = vmatpush1.bf16.msra.mxu0 %v1666
    %4046 = vmatprep.subr.bf16.mxu0 %v1663
    %4047 = vmatpush1.bf16.msra.mxu0 %v1662
    %4048 = vmatprep.subr.bf16.mxu0 %v1659
    %4049 = vmatpush1.bf16.msra.mxu0 %v1658
    %4050 = vmatprep.subr.bf16.mxu0 %v1655
    %4051 = vmatpush1.bf16.msra.mxu0 %v1654
    %4052 = vmatprep.subr.bf16.mxu0 %v1651
    %4053 = vmatpush1.bf16.msra.mxu0 %v1650
    %4054 = vmatprep.subr.bf16.mxu0 %v1647
    %4055 = vmatpush1.bf16.msra.mxu0 %v1646
    %4056 = vmatprep.subr.bf16.mxu0 %v1643
    %4057 = vmatpush1.bf16.msra.mxu0 %v1642
    %4058 = vmatprep.subr.bf16.mxu0 0
    %4059 = vmatpush2.bf16.msra.mxu0 0
    %4060 = vmatprep.subr.bf16.mxu0 0
    %4061 = vmatpush2.bf16.msra.mxu0 0
    %4062 = vmatprep.subr.bf16.mxu0 0
    %4063 = vmatpush2.bf16.msra.mxu0 0
    %4064 = vmatprep.subr.bf16.mxu0 0
    %4065 = vmatpush2.bf16.msra.mxu0 0
    %4066 = vmatprep.subr.bf16.mxu0 0
    %4067 = vmatpush2.bf16.msra.mxu0 0
    %4068 = vmatprep.subr.bf16.mxu0 0
    %4069 = vmatpush2.bf16.msra.mxu0 0
    %4070 = vmatprep.subr.bf16.mxu0 0
    %4071 = vmatpush2.bf16.msra.mxu0 0
    %4072 = vmatprep.subr.bf16.mxu0 0
    %4073 = vmatpush2.bf16.msra.mxu0 0
    %4074 = vmatprep.mubr.bf16.mxu0 0
    %4075 = vmatmul.mubr.bf16.gmra.mxu0 %v4041
    %v4076 = vpop.f32.mrf.mxu0
    %v4077 = vadd.f32 0.0, %v4076
    %v4078 = vpop.f32.mrf.mxu0
    %v4079 = vadd.f32 0.0, %v4078
    %v4080 = vpop.f32.mrf.mxu0
    %v4081 = vadd.f32 0.0, %v4080
    %v4082 = vpop.f32.mrf.mxu0
    %v4083 = vadd.f32 0.0, %v4082
    %4084 = vdwg.mxu0
    %4085 = vmatprep.subr.bf16.mxu0 %v1673
    %4086 = vmatpush1.bf16.msra.mxu0 %v1672
    %4087 = vmatprep.subr.bf16.mxu0 %v1669
    %4088 = vmatpush1.bf16.msra.mxu0 %v1668
    %4089 = vmatprep.subr.bf16.mxu0 %v1665
    %4090 = vmatpush1.bf16.msra.mxu0 %v1664
    %4091 = vmatprep.subr.bf16.mxu0 %v1661
    %4092 = vmatpush1.bf16.msra.mxu0 %v1660
    %4093 = vmatprep.subr.bf16.mxu0 %v1657
    %4094 = vmatpush1.bf16.msra.mxu0 %v1656
    %4095 = vmatprep.subr.bf16.mxu0 %v1653
    %4096 = vmatpush1.bf16.msra.mxu0 %v1652
    %4097 = vmatprep.subr.bf16.mxu0 %v1649
    %4098 = vmatpush1.bf16.msra.mxu0 %v1648
    %4099 = vmatprep.subr.bf16.mxu0 %v1645
    %4100 = vmatpush1.bf16.msra.mxu0 %v1644
    %4101 = vmatprep.subr.bf16.mxu0 0
    %4102 = vmatpush2.bf16.msra.mxu0 0
    %4103 = vmatprep.subr.bf16.mxu0 0
    %4104 = vmatpush2.bf16.msra.mxu0 0
    %4105 = vmatprep.subr.bf16.mxu0 0
    %4106 = vmatpush2.bf16.msra.mxu0 0
    %4107 = vmatprep.subr.bf16.mxu0 0
    %4108 = vmatpush2.bf16.msra.mxu0 0
    %4109 = vmatprep.subr.bf16.mxu0 0
    %4110 = vmatpush2.bf16.msra.mxu0 0
    %4111 = vmatprep.subr.bf16.mxu0 0
    %4112 = vmatpush2.bf16.msra.mxu0 0
    %4113 = vmatprep.subr.bf16.mxu0 0
    %4114 = vmatpush2.bf16.msra.mxu0 0
    %4115 = vmatprep.subr.bf16.mxu0 0
    %4116 = vmatpush2.bf16.msra.mxu0 0
    %4117 = vmatprep.mubr.bf16.mxu0 0
    %4118 = vmatmul.mubr.bf16.gmra.mxu0 %v4041
    %v4119 = vpop.f32.mrf.mxu0
    %v4120 = vadd.f32 0.0, %v4119
    %v4121 = vpop.f32.mrf.mxu0
    %v4122 = vadd.f32 0.0, %v4121
    %v4123 = vpop.f32.mrf.mxu0
    %v4124 = vadd.f32 0.0, %v4123
    %v4125 = vpop.f32.mrf.mxu0
    %v4126 = vadd.f32 0.0, %v4125
    %4127 = vdwg.mxu0
    %v4128 = vadd.f32 %v4033, %v4077
    %v4129 = vadd.f32 %v4034, %v4079
    %v4130 = vadd.f32 %v4035, %v4120
    %v4131 = vadd.f32 %v4036, %v4122
    %v4132 = vadd.f32 %v4037, %v4081
    %v4133 = vadd.f32 %v4038, %v4083
    %v4134 = vadd.f32 %v4039, %v4124
    %v4135 = vadd.f32 %v4040, %v4126
    %v4136 = vxor.u32 %v4128, 2147483648
    %v4137 = vxor.u32 %v4132, 2147483648
    %v4138 = vmul.f32 %v4136, 1.442695
    %v4139 = vpow.pop %v4138
    %v4140 = vmul.f32 %v4137, 1.442695
    %v4141 = vpow.pop %v4140
    %v4142 = vadd.f32 %v4139, 1.0
    %v4143 = vadd.f32 %v4141, 1.0
    %v4144 = vrcp.pop %v4142
    %v4145 = vmul.f32 1.0, %v4144
    %v4146 = vrcp.pop %v4143
    %v4147 = vmul.f32 1.0, %v4146
    %v4148 = vxor.u32 %v4129, 2147483648
    %v4149 = vxor.u32 %v4133, 2147483648
    %v4150 = vmul.f32 %v4148, 1.442695
    %v4151 = vpow.pop %v4150
    %v4152 = vmul.f32 %v4149, 1.442695
    %v4153 = vpow.pop %v4152
    %v4154 = vadd.f32 %v4151, 1.0
    %v4155 = vadd.f32 %v4153, 1.0
    %v4156 = vrcp.pop %v4154
    %v4157 = vmul.f32 1.0, %v4156
    %v4158 = vrcp.pop %v4155
    %v4159 = vmul.f32 1.0, %v4158
    %v4160 = vtanh.pop %v4130
    %v4161 = vtanh.pop %v4134
    %v4162 = vxor.u32 %v4131, 2147483648
    %v4163 = vxor.u32 %v4135, 2147483648
    %v4164 = vmul.f32 %v4162, 1.442695
    %v4165 = vpow.pop %v4164
    %v4166 = vmul.f32 %v4163, 1.442695
    %v4167 = vpow.pop %v4166
    %v4168 = vadd.f32 %v4165, 1.0
    %v4169 = vadd.f32 %v4167, 1.0
    %v4170 = vrcp.pop %v4168
    %v4171 = vmul.f32 1.0, %v4170
    %v4172 = vrcp.pop %v4169
    %v4173 = vmul.f32 1.0, %v4172
    %v4174 = vmul.f32 %v4157, %v4001
    %v4175 = vmul.f32 %v4159, %v4002
    %v4176 = vmul.f32 %v4145, %v4160
    %v4177 = vmul.f32 %v4147, %v4161
    %v4178 = vadd.f32 %v4174, %v4176
    %v4179 = vadd.f32 %v4175, %v4177
    %v4180 = vtanh.pop %v4178
    %v4181 = vtanh.pop %v4179
    %v4182 = vmul.f32 %v4171, %v4180
    %v4183 = vmul.f32 %v4173, %v4181
    %v4184 = vunpack.c.l.bf16 %v4021
    %v4185 = vunpack.c.h.bf16 %v4021
    %v4186 = vunpack.c.l.bf16 %v4022
    %v4187 = vunpack.c.h.bf16 %v4022
    %v4188 = vunpack.c.l.bf16 %v4023
    %v4189 = vunpack.c.h.bf16 %v4023
    %v4190 = vunpack.c.l.bf16 %v4024
    %v4191 = vunpack.c.h.bf16 %v4024
    %v4192 = vadd.f32 %v4184, %v1860
    %v4193 = vadd.f32 %v4185, %v1864
    %v4194 = vadd.f32 %v4186, %v1868
    %v4195 = vadd.f32 %v4187, %v1872
    %v4196 = vadd.f32 %v4188, %v1860
    %v4197 = vadd.f32 %v4189, %v1864
    %v4198 = vadd.f32 %v4190, %v1868
    %v4199 = vadd.f32 %v4191, %v1872
    %v4200 = vpack.c.bf16 %v4008, %v4007
    %4201 = vmatprep.subr.bf16.mxu0 %v2010
    %4202 = vmatpush1.bf16.msra.mxu0 %v2009
    %4203 = vmatprep.subr.bf16.mxu0 %v2006
    %4204 = vmatpush1.bf16.msra.mxu0 %v2005
    %4205 = vmatprep.subr.bf16.mxu0 %v2002
    %4206 = vmatpush1.bf16.msra.mxu0 %v2001
    %4207 = vmatprep.subr.bf16.mxu0 %v1998
    %4208 = vmatpush1.bf16.msra.mxu0 %v1997
    %4209 = vmatprep.subr.bf16.mxu0 %v1994
    %4210 = vmatpush1.bf16.msra.mxu0 %v1993
    %4211 = vmatprep.subr.bf16.mxu0 %v1990
    %4212 = vmatpush1.bf16.msra.mxu0 %v1989
    %4213 = vmatprep.subr.bf16.mxu0 %v1986
    %4214 = vmatpush1.bf16.msra.mxu0 %v1985
    %4215 = vmatprep.subr.bf16.mxu0 %v1982
    %4216 = vmatpush1.bf16.msra.mxu0 %v1981
    %4217 = vmatprep.subr.bf16.mxu0 0
    %4218 = vmatpush2.bf16.msra.mxu0 0
    %4219 = vmatprep.subr.bf16.mxu0 0
    %4220 = vmatpush2.bf16.msra.mxu0 0
    %4221 = vmatprep.subr.bf16.mxu0 0
    %4222 = vmatpush2.bf16.msra.mxu0 0
    %4223 = vmatprep.subr.bf16.mxu0 0
    %4224 = vmatpush2.bf16.msra.mxu0 0
    %4225 = vmatprep.subr.bf16.mxu0 0
    %4226 = vmatpush2.bf16.msra.mxu0 0
    %4227 = vmatprep.subr.bf16.mxu0 0
    %4228 = vmatpush2.bf16.msra.mxu0 0
    %4229 = vmatprep.subr.bf16.mxu0 0
    %4230 = vmatpush2.bf16.msra.mxu0 0
    %4231 = vmatprep.subr.bf16.mxu0 0
    %4232 = vmatpush2.bf16.msra.mxu0 0
    %4233 = vmatprep.mubr.bf16.mxu0 0
    %4234 = vmatmul.mubr.bf16.gmra.mxu0 %v4200
    %v4235 = vpop.f32.mrf.mxu0
    %v4236 = vadd.f32 0.0, %v4235
    %v4237 = vpop.f32.mrf.mxu0
    %v4238 = vadd.f32 0.0, %v4237
    %v4239 = vpop.f32.mrf.mxu0
    %v4240 = vadd.f32 0.0, %v4239
    %v4241 = vpop.f32.mrf.mxu0
    %v4242 = vadd.f32 0.0, %v4241
    %4243 = vdwg.mxu0
    %4244 = vmatprep.subr.bf16.mxu0 %v2012
    %4245 = vmatpush1.bf16.msra.mxu0 %v2011
    %4246 = vmatprep.subr.bf16.mxu0 %v2008
    %4247 = vmatpush1.bf16.msra.mxu0 %v2007
    %4248 = vmatprep.subr.bf16.mxu0 %v2004
    %4249 = vmatpush1.bf16.msra.mxu0 %v2003
    %4250 = vmatprep.subr.bf16.mxu0 %v2000
    %4251 = vmatpush1.bf16.msra.mxu0 %v1999
    %4252 = vmatprep.subr.bf16.mxu0 %v1996
    %4253 = vmatpush1.bf16.msra.mxu0 %v1995
    %4254 = vmatprep.subr.bf16.mxu0 %v1992
    %4255 = vmatpush1.bf16.msra.mxu0 %v1991
    %4256 = vmatprep.subr.bf16.mxu0 %v1988
    %4257 = vmatpush1.bf16.msra.mxu0 %v1987
    %4258 = vmatprep.subr.bf16.mxu0 %v1984
    %4259 = vmatpush1.bf16.msra.mxu0 %v1983
    %4260 = vmatprep.subr.bf16.mxu0 0
    %4261 = vmatpush2.bf16.msra.mxu0 0
    %4262 = vmatprep.subr.bf16.mxu0 0
    %4263 = vmatpush2.bf16.msra.mxu0 0
    %4264 = vmatprep.subr.bf16.mxu0 0
    %4265 = vmatpush2.bf16.msra.mxu0 0
    %4266 = vmatprep.subr.bf16.mxu0 0
    %4267 = vmatpush2.bf16.msra.mxu0 0
    %4268 = vmatprep.subr.bf16.mxu0 0
    %4269 = vmatpush2.bf16.msra.mxu0 0
    %4270 = vmatprep.subr.bf16.mxu0 0
    %4271 = vmatpush2.bf16.msra.mxu0 0
    %4272 = vmatprep.subr.bf16.mxu0 0
    %4273 = vmatpush2.bf16.msra.mxu0 0
    %4274 = vmatprep.subr.bf16.mxu0 0
    %4275 = vmatpush2.bf16.msra.mxu0 0
    %4276 = vmatprep.mubr.bf16.mxu0 0
    %4277 = vmatmul.mubr.bf16.gmra.mxu0 %v4200
    %v4278 = vpop.f32.mrf.mxu0
    %v4279 = vadd.f32 0.0, %v4278
    %v4280 = vpop.f32.mrf.mxu0
    %v4281 = vadd.f32 0.0, %v4280
    %v4282 = vpop.f32.mrf.mxu0
    %v4283 = vadd.f32 0.0, %v4282
    %v4284 = vpop.f32.mrf.mxu0
    %v4285 = vadd.f32 0.0, %v4284
    %4286 = vdwg.mxu0
    %v4287 = vadd.f32 %v4192, %v4236
    %v4288 = vadd.f32 %v4193, %v4238
    %v4289 = vadd.f32 %v4194, %v4279
    %v4290 = vadd.f32 %v4195, %v4281
    %v4291 = vadd.f32 %v4196, %v4240
    %v4292 = vadd.f32 %v4197, %v4242
    %v4293 = vadd.f32 %v4198, %v4283
    %v4294 = vadd.f32 %v4199, %v4285
    %v4295 = vxor.u32 %v4287, 2147483648
    %v4296 = vxor.u32 %v4291, 2147483648
    %v4297 = vmul.f32 %v4295, 1.442695
    %v4298 = vpow.pop %v4297
    %v4299 = vmul.f32 %v4296, 1.442695
    %v4300 = vpow.pop %v4299
    %v4301 = vadd.f32 %v4298, 1.0
    %v4302 = vadd.f32 %v4300, 1.0
    %v4303 = vrcp.pop %v4301
    %v4304 = vmul.f32 1.0, %v4303
    %v4305 = vrcp.pop %v4302
    %v4306 = vmul.f32 1.0, %v4305
    %v4307 = vxor.u32 %v4288, 2147483648
    %v4308 = vxor.u32 %v4292, 2147483648
    %v4309 = vmul.f32 %v4307, 1.442695
    %v4310 = vpow.pop %v4309
    %v4311 = vmul.f32 %v4308, 1.442695
    %v4312 = vpow.pop %v4311
    %v4313 = vadd.f32 %v4310, 1.0
    %v4314 = vadd.f32 %v4312, 1.0
    %v4315 = vrcp.pop %v4313
    %v4316 = vmul.f32 1.0, %v4315
    %v4317 = vrcp.pop %v4314
    %v4318 = vmul.f32 1.0, %v4317
    %v4319 = vtanh.pop %v4289
    %v4320 = vtanh.pop %v4293
    %v4321 = vxor.u32 %v4290, 2147483648
    %v4322 = vxor.u32 %v4294, 2147483648
    %v4323 = vmul.f32 %v4321, 1.442695
    %v4324 = vpow.pop %v4323
    %v4325 = vmul.f32 %v4322, 1.442695
    %v4326 = vpow.pop %v4325
    %v4327 = vadd.f32 %v4324, 1.0
    %v4328 = vadd.f32 %v4326, 1.0
    %v4329 = vrcp.pop %v4327
    %v4330 = vmul.f32 1.0, %v4329
    %v4331 = vrcp.pop %v4328
    %v4332 = vmul.f32 1.0, %v4331
    %v4333 = vmul.f32 %v4316, %v4009
    %v4334 = vmul.f32 %v4318, %v4010
    %v4335 = vmul.f32 %v4304, %v4319
    %v4336 = vmul.f32 %v4306, %v4320
    %v4337 = vadd.f32 %v4333, %v4335
    %v4338 = vadd.f32 %v4334, %v4336
    %v4339 = vtanh.pop %v4337
    %v4340 = vtanh.pop %v4338
    %v4341 = vmul.f32 %v4330, %v4339
    %v4342 = vmul.f32 %v4332, %v4340
    %v4343 = vsel %vm2581, %v4182, %v3999
    %v4344 = vsel %vm2582, %v4183, %v4000
    %v4345 = vsel %vm2581, %v4178, %v4001
    %v4346 = vsel %vm2582, %v4179, %v4002
    %v4347 = vmax.f32 %v4005, %v4182
    %v4348 = vmax.f32 %v4006, %v4183
    %v4349 = vsel %vm2581, %v4347, %v4005
    %v4350 = vsel %vm2582, %v4348, %v4006
    %v4351 = vsel %vm2563, %v4341, %v4007
    %v4352 = vsel %vm2564, %v4342, %v4008
    %v4353 = vsel %vm2563, %v4337, %v4009
    %v4354 = vsel %vm2564, %v4338, %v4010
    %v4355 = vmax.f32 %v4013, %v4341
    %v4356 = vmax.f32 %v4014, %v4342
    %v4357 = vsel %vm2563, %v4355, %v4013
    %v4358 = vsel %vm2564, %v4356, %v4014
    %s4359 = scalar_lea.vmem [#allocation2], 224
    %v4360 = vld [vmem:[%s4359] sm:$0xff]
    %v4361 = vld [vmem:[%s4359 + $0x8] sm:$0xff]
    %v4362 = vld [vmem:[%s4359 + $0x10] sm:$0xff]
    %v4363 = vld [vmem:[%s4359 + $0x18] sm:$0xff]
    %v4364 = vld [vmem:[#allocation3] sm:$0xff]
    %v4365 = vld [vmem:[#allocation3 + $0x8] sm:$0xff]
    %v4366 = vld [vmem:[#allocation3 + $0x10] sm:$0xff]
    %v4367 = vld [vmem:[#allocation3 + $0x18] sm:$0xff]
    %v4368 = vunpack.c.l.bf16 %v4360
    %v4369 = vunpack.c.h.bf16 %v4360
    %v4370 = vunpack.c.l.bf16 %v4361
    %v4371 = vunpack.c.h.bf16 %v4361
    %v4372 = vunpack.c.l.bf16 %v4362
    %v4373 = vunpack.c.h.bf16 %v4362
    %v4374 = vunpack.c.l.bf16 %v4363
    %v4375 = vunpack.c.h.bf16 %v4363
    %v4376 = vadd.f32 %v4368, %v1521
    %v4377 = vadd.f32 %v4369, %v1525
    %v4378 = vadd.f32 %v4370, %v1529
    %v4379 = vadd.f32 %v4371, %v1533
    %v4380 = vadd.f32 %v4372, %v1521
    %v4381 = vadd.f32 %v4373, %v1525
    %v4382 = vadd.f32 %v4374, %v1529
    %v4383 = vadd.f32 %v4375, %v1533
    %v4384 = vpack.c.bf16 %v4344, %v4343
    %4385 = vmatprep.subr.bf16.mxu0 %v1671
    %4386 = vmatpush1.bf16.msra.mxu0 %v1670
    %4387 = vmatprep.subr.bf16.mxu0 %v1667
    %4388 = vmatpush1.bf16.msra.mxu0 %v1666
    %4389 = vmatprep.subr.bf16.mxu0 %v1663
    %4390 = vmatpush1.bf16.msra.mxu0 %v1662
    %4391 = vmatprep.subr.bf16.mxu0 %v1659
    %4392 = vmatpush1.bf16.msra.mxu0 %v1658
    %4393 = vmatprep.subr.bf16.mxu0 %v1655
    %4394 = vmatpush1.bf16.msra.mxu0 %v1654
    %4395 = vmatprep.subr.bf16.mxu0 %v1651
    %4396 = vmatpush1.bf16.msra.mxu0 %v1650
    %4397 = vmatprep.subr.bf16.mxu0 %v1647
    %4398 = vmatpush1.bf16.msra.mxu0 %v1646
    %4399 = vmatprep.subr.bf16.mxu0 %v1643
    %4400 = vmatpush1.bf16.msra.mxu0 %v1642
    %4401 = vmatprep.subr.bf16.mxu0 0
    %4402 = vmatpush2.bf16.msra.mxu0 0
    %4403 = vmatprep.subr.bf16.mxu0 0
    %4404 = vmatpush2.bf16.msra.mxu0 0
    %4405 = vmatprep.subr.bf16.mxu0 0
    %4406 = vmatpush2.bf16.msra.mxu0 0
    %4407 = vmatprep.subr.bf16.mxu0 0
    %4408 = vmatpush2.bf16.msra.mxu0 0
    %4409 = vmatprep.subr.bf16.mxu0 0
    %4410 = vmatpush2.bf16.msra.mxu0 0
    %4411 = vmatprep.subr.bf16.mxu0 0
    %4412 = vmatpush2.bf16.msra.mxu0 0
    %4413 = vmatprep.subr.bf16.mxu0 0
    %4414 = vmatpush2.bf16.msra.mxu0 0
    %4415 = vmatprep.subr.bf16.mxu0 0
    %4416 = vmatpush2.bf16.msra.mxu0 0
    %4417 = vmatprep.mubr.bf16.mxu0 0
    %4418 = vmatmul.mubr.bf16.gmra.mxu0 %v4384
    %v4419 = vpop.f32.mrf.mxu0
    %v4420 = vadd.f32 0.0, %v4419
    %v4421 = vpop.f32.mrf.mxu0
    %v4422 = vadd.f32 0.0, %v4421
    %v4423 = vpop.f32.mrf.mxu0
    %v4424 = vadd.f32 0.0, %v4423
    %v4425 = vpop.f32.mrf.mxu0
    %v4426 = vadd.f32 0.0, %v4425
    %4427 = vdwg.mxu0
    %4428 = vmatprep.subr.bf16.mxu0 %v1673
    %4429 = vmatpush1.bf16.msra.mxu0 %v1672
    %4430 = vmatprep.subr.bf16.mxu0 %v1669
    %4431 = vmatpush1.bf16.msra.mxu0 %v1668
    %4432 = vmatprep.subr.bf16.mxu0 %v1665
    %4433 = vmatpush1.bf16.msra.mxu0 %v1664
    %4434 = vmatprep.subr.bf16.mxu0 %v1661
    %4435 = vmatpush1.bf16.msra.mxu0 %v1660
    %4436 = vmatprep.subr.bf16.mxu0 %v1657
    %4437 = vmatpush1.bf16.msra.mxu0 %v1656
    %4438 = vmatprep.subr.bf16.mxu0 %v1653
    %4439 = vmatpush1.bf16.msra.mxu0 %v1652
    %4440 = vmatprep.subr.bf16.mxu0 %v1649
    %4441 = vmatpush1.bf16.msra.mxu0 %v1648
    %4442 = vmatprep.subr.bf16.mxu0 %v1645
    %4443 = vmatpush1.bf16.msra.mxu0 %v1644
    %4444 = vmatprep.subr.bf16.mxu0 0
    %4445 = vmatpush2.bf16.msra.mxu0 0
    %4446 = vmatprep.subr.bf16.mxu0 0
    %4447 = vmatpush2.bf16.msra.mxu0 0
    %4448 = vmatprep.subr.bf16.mxu0 0
    %4449 = vmatpush2.bf16.msra.mxu0 0
    %4450 = vmatprep.subr.bf16.mxu0 0
    %4451 = vmatpush2.bf16.msra.mxu0 0
    %4452 = vmatprep.subr.bf16.mxu0 0
    %4453 = vmatpush2.bf16.msra.mxu0 0
    %4454 = vmatprep.subr.bf16.mxu0 0
    %4455 = vmatpush2.bf16.msra.mxu0 0
    %4456 = vmatprep.subr.bf16.mxu0 0
    %4457 = vmatpush2.bf16.msra.mxu0 0
    %4458 = vmatprep.subr.bf16.mxu0 0
    %4459 = vmatpush2.bf16.msra.mxu0 0
    %4460 = vmatprep.mubr.bf16.mxu0 0
    %4461 = vmatmul.mubr.bf16.gmra.mxu0 %v4384
    %v4462 = vpop.f32.mrf.mxu0
    %v4463 = vadd.f32 0.0, %v4462
    %v4464 = vpop.f32.mrf.mxu0
    %v4465 = vadd.f32 0.0, %v4464
    %v4466 = vpop.f32.mrf.mxu0
    %v4467 = vadd.f32 0.0, %v4466
    %v4468 = vpop.f32.mrf.mxu0
    %v4469 = vadd.f32 0.0, %v4468
    %4470 = vdwg.mxu0
    %v4471 = vadd.f32 %v4376, %v4420
    %v4472 = vadd.f32 %v4377, %v4422
    %v4473 = vadd.f32 %v4378, %v4463
    %v4474 = vadd.f32 %v4379, %v4465
    %v4475 = vadd.f32 %v4380, %v4424
    %v4476 = vadd.f32 %v4381, %v4426
    %v4477 = vadd.f32 %v4382, %v4467
    %v4478 = vadd.f32 %v4383, %v4469
    %v4479 = vxor.u32 %v4471, 2147483648
    %v4480 = vxor.u32 %v4475, 2147483648
    %v4481 = vmul.f32 %v4479, 1.442695
    %v4482 = vpow.pop %v4481
    %v4483 = vmul.f32 %v4480, 1.442695
    %v4484 = vpow.pop %v4483
    %v4485 = vadd.f32 %v4482, 1.0
    %v4486 = vadd.f32 %v4484, 1.0
    %v4487 = vrcp.pop %v4485
    %v4488 = vmul.f32 1.0, %v4487
    %v4489 = vrcp.pop %v4486
    %v4490 = vmul.f32 1.0, %v4489
    %v4491 = vxor.u32 %v4472, 2147483648
    %v4492 = vxor.u32 %v4476, 2147483648
    %v4493 = vmul.f32 %v4491, 1.442695
    %v4494 = vpow.pop %v4493
    %v4495 = vmul.f32 %v4492, 1.442695
    %v4496 = vpow.pop %v4495
    %v4497 = vadd.f32 %v4494, 1.0
    %v4498 = vadd.f32 %v4496, 1.0
    %v4499 = vrcp.pop %v4497
    %v4500 = vmul.f32 1.0, %v4499
    %v4501 = vrcp.pop %v4498
    %v4502 = vmul.f32 1.0, %v4501
    %v4503 = vtanh.pop %v4473
    %v4504 = vtanh.pop %v4477
    %v4505 = vxor.u32 %v4474, 2147483648
    %v4506 = vxor.u32 %v4478, 2147483648
    %v4507 = vmul.f32 %v4505, 1.442695
    %v4508 = vpow.pop %v4507
    %v4509 = vmul.f32 %v4506, 1.442695
    %v4510 = vpow.pop %v4509
    %v4511 = vadd.f32 %v4508, 1.0
    %v4512 = vadd.f32 %v4510, 1.0
    %v4513 = vrcp.pop %v4511
    %v4514 = vmul.f32 1.0, %v4513
    %v4515 = vrcp.pop %v4512
    %v4516 = vmul.f32 1.0, %v4515
    %v4517 = vmul.f32 %v4500, %v4345
    %v4518 = vmul.f32 %v4502, %v4346
    %v4519 = vmul.f32 %v4488, %v4503
    %v4520 = vmul.f32 %v4490, %v4504
    %v4521 = vadd.f32 %v4517, %v4519
    %v4522 = vadd.f32 %v4518, %v4520
    %v4523 = vtanh.pop %v4521
    %v4524 = vtanh.pop %v4522
    %v4525 = vmul.f32 %v4514, %v4523
    %v4526 = vmul.f32 %v4516, %v4524
    %v4527 = vunpack.c.l.bf16 %v4364
    %v4528 = vunpack.c.h.bf16 %v4364
    %v4529 = vunpack.c.l.bf16 %v4365
    %v4530 = vunpack.c.h.bf16 %v4365
    %v4531 = vunpack.c.l.bf16 %v4366
    %v4532 = vunpack.c.h.bf16 %v4366
    %v4533 = vunpack.c.l.bf16 %v4367
    %v4534 = vunpack.c.h.bf16 %v4367
    %v4535 = vadd.f32 %v4527, %v1860
    %v4536 = vadd.f32 %v4528, %v1864
    %v4537 = vadd.f32 %v4529, %v1868
    %v4538 = vadd.f32 %v4530, %v1872
    %v4539 = vadd.f32 %v4531, %v1860
    %v4540 = vadd.f32 %v4532, %v1864
    %v4541 = vadd.f32 %v4533, %v1868
    %v4542 = vadd.f32 %v4534, %v1872
    %v4543 = vpack.c.bf16 %v4352, %v4351
    %4544 = vmatprep.subr.bf16.mxu0 %v2010
    %4545 = vmatpush1.bf16.msra.mxu0 %v2009
    %4546 = vmatprep.subr.bf16.mxu0 %v2006
    %4547 = vmatpush1.bf16.msra.mxu0 %v2005
    %4548 = vmatprep.subr.bf16.mxu0 %v2002
    %4549 = vmatpush1.bf16.msra.mxu0 %v2001
    %4550 = vmatprep.subr.bf16.mxu0 %v1998
    %4551 = vmatpush1.bf16.msra.mxu0 %v1997
    %4552 = vmatprep.subr.bf16.mxu0 %v1994
    %4553 = vmatpush1.bf16.msra.mxu0 %v1993
    %4554 = vmatprep.subr.bf16.mxu0 %v1990
    %4555 = vmatpush1.bf16.msra.mxu0 %v1989
    %4556 = vmatprep.subr.bf16.mxu0 %v1986
    %4557 = vmatpush1.bf16.msra.mxu0 %v1985
    %4558 = vmatprep.subr.bf16.mxu0 %v1982
    %4559 = vmatpush1.bf16.msra.mxu0 %v1981
    %4560 = vmatprep.subr.bf16.mxu0 0
    %4561 = vmatpush2.bf16.msra.mxu0 0
    %4562 = vmatprep.subr.bf16.mxu0 0
    %4563 = vmatpush2.bf16.msra.mxu0 0
    %4564 = vmatprep.subr.bf16.mxu0 0
    %4565 = vmatpush2.bf16.msra.mxu0 0
    %4566 = vmatprep.subr.bf16.mxu0 0
    %4567 = vmatpush2.bf16.msra.mxu0 0
    %4568 = vmatprep.subr.bf16.mxu0 0
    %4569 = vmatpush2.bf16.msra.mxu0 0
    %4570 = vmatprep.subr.bf16.mxu0 0
    %4571 = vmatpush2.bf16.msra.mxu0 0
    %4572 = vmatprep.subr.bf16.mxu0 0
    %4573 = vmatpush2.bf16.msra.mxu0 0
    %4574 = vmatprep.subr.bf16.mxu0 0
    %4575 = vmatpush2.bf16.msra.mxu0 0
    %4576 = vmatprep.mubr.bf16.mxu0 0
    %4577 = vmatmul.mubr.bf16.gmra.mxu0 %v4543
    %v4578 = vpop.f32.mrf.mxu0
    %v4579 = vadd.f32 0.0, %v4578
    %v4580 = vpop.f32.mrf.mxu0
    %v4581 = vadd.f32 0.0, %v4580
    %v4582 = vpop.f32.mrf.mxu0
    %v4583 = vadd.f32 0.0, %v4582
    %v4584 = vpop.f32.mrf.mxu0
    %v4585 = vadd.f32 0.0, %v4584
    %4586 = vdwg.mxu0
    %4587 = vmatprep.subr.bf16.mxu0 %v2012
    %4588 = vmatpush1.bf16.msra.mxu0 %v2011
    %4589 = vmatprep.subr.bf16.mxu0 %v2008
    %4590 = vmatpush1.bf16.msra.mxu0 %v2007
    %4591 = vmatprep.subr.bf16.mxu0 %v2004
    %4592 = vmatpush1.bf16.msra.mxu0 %v2003
    %4593 = vmatprep.subr.bf16.mxu0 %v2000
    %4594 = vmatpush1.bf16.msra.mxu0 %v1999
    %4595 = vmatprep.subr.bf16.mxu0 %v1996
    %4596 = vmatpush1.bf16.msra.mxu0 %v1995
    %4597 = vmatprep.subr.bf16.mxu0 %v1992
    %4598 = vmatpush1.bf16.msra.mxu0 %v1991
    %4599 = vmatprep.subr.bf16.mxu0 %v1988
    %4600 = vmatpush1.bf16.msra.mxu0 %v1987
    %4601 = vmatprep.subr.bf16.mxu0 %v1984
    %4602 = vmatpush1.bf16.msra.mxu0 %v1983
    %4603 = vmatprep.subr.bf16.mxu0 0
    %4604 = vmatpush2.bf16.msra.mxu0 0
    %4605 = vmatprep.subr.bf16.mxu0 0
    %4606 = vmatpush2.bf16.msra.mxu0 0
    %4607 = vmatprep.subr.bf16.mxu0 0
    %4608 = vmatpush2.bf16.msra.mxu0 0
    %4609 = vmatprep.subr.bf16.mxu0 0
    %4610 = vmatpush2.bf16.msra.mxu0 0
    %4611 = vmatprep.subr.bf16.mxu0 0
    %4612 = vmatpush2.bf16.msra.mxu0 0
    %4613 = vmatprep.subr.bf16.mxu0 0
    %4614 = vmatpush2.bf16.msra.mxu0 0
    %4615 = vmatprep.subr.bf16.mxu0 0
    %4616 = vmatpush2.bf16.msra.mxu0 0
    %4617 = vmatprep.subr.bf16.mxu0 0
    %4618 = vmatpush2.bf16.msra.mxu0 0
    %4619 = vmatprep.mubr.bf16.mxu0 0
    %4620 = vmatmul.mubr.bf16.gmra.mxu0 %v4543
    %v4621 = vpop.f32.mrf.mxu0
    %v4622 = vadd.f32 0.0, %v4621
    %v4623 = vpop.f32.mrf.mxu0
    %v4624 = vadd.f32 0.0, %v4623
    %v4625 = vpop.f32.mrf.mxu0
    %v4626 = vadd.f32 0.0, %v4625
    %v4627 = vpop.f32.mrf.mxu0
    %v4628 = vadd.f32 0.0, %v4627
    %4629 = vdwg.mxu0
    %v4630 = vadd.f32 %v4535, %v4579
    %v4631 = vadd.f32 %v4536, %v4581
    %v4632 = vadd.f32 %v4537, %v4622
    %v4633 = vadd.f32 %v4538, %v4624
    %v4634 = vadd.f32 %v4539, %v4583
    %v4635 = vadd.f32 %v4540, %v4585
    %v4636 = vadd.f32 %v4541, %v4626
    %v4637 = vadd.f32 %v4542, %v4628
    %v4638 = vxor.u32 %v4630, 2147483648
    %v4639 = vxor.u32 %v4634, 2147483648
    %v4640 = vmul.f32 %v4638, 1.442695
    %v4641 = vpow.pop %v4640
    %v4642 = vmul.f32 %v4639, 1.442695
    %v4643 = vpow.pop %v4642
    %v4644 = vadd.f32 %v4641, 1.0
    %v4645 = vadd.f32 %v4643, 1.0
    %v4646 = vrcp.pop %v4644
    %v4647 = vmul.f32 1.0, %v4646
    %v4648 = vrcp.pop %v4645
    %v4649 = vmul.f32 1.0, %v4648
    %v4650 = vxor.u32 %v4631, 2147483648
    %v4651 = vxor.u32 %v4635, 2147483648
    %v4652 = vmul.f32 %v4650, 1.442695
    %v4653 = vpow.pop %v4652
    %v4654 = vmul.f32 %v4651, 1.442695
    %v4655 = vpow.pop %v4654
    %v4656 = vadd.f32 %v4653, 1.0
    %v4657 = vadd.f32 %v4655, 1.0
    %v4658 = vrcp.pop %v4656
    %v4659 = vmul.f32 1.0, %v4658
    %v4660 = vrcp.pop %v4657
    %v4661 = vmul.f32 1.0, %v4660
    %v4662 = vtanh.pop %v4632
    %v4663 = vtanh.pop %v4636
    %v4664 = vxor.u32 %v4633, 2147483648
    %v4665 = vxor.u32 %v4637, 2147483648
    %v4666 = vmul.f32 %v4664, 1.442695
    %v4667 = vpow.pop %v4666
    %v4668 = vmul.f32 %v4665, 1.442695
    %v4669 = vpow.pop %v4668
    %v4670 = vadd.f32 %v4667, 1.0
    %v4671 = vadd.f32 %v4669, 1.0
    %v4672 = vrcp.pop %v4670
    %v4673 = vmul.f32 1.0, %v4672
    %v4674 = vrcp.pop %v4671
    %v4675 = vmul.f32 1.0, %v4674
    %v4676 = vmul.f32 %v4659, %v4353
    %v4677 = vmul.f32 %v4661, %v4354
    %v4678 = vmul.f32 %v4647, %v4662
    %v4679 = vmul.f32 %v4649, %v4663
    %v4680 = vadd.f32 %v4676, %v4678
    %v4681 = vadd.f32 %v4677, %v4679
    %v4682 = vtanh.pop %v4680
    %v4683 = vtanh.pop %v4681
    %v4684 = vmul.f32 %v4673, %v4682
    %v4685 = vmul.f32 %v4675, %v4683
    %v4686 = vmax.f32 %v4349, %v4525
    %v4687 = vmax.f32 %v4350, %v4526
    %v4688 = vsel %vm2213, %v4686, %v4349
    %v4689 = vsel %vm2214, %v4687, %v4350
    %v4690 = vmax.f32 %v4357, %v4684
    %v4691 = vmax.f32 %v4358, %v4685
    %v4692 = vsel %vm2195, %v4690, %v4357
    %v4693 = vsel %vm2196, %v4691, %v4358
    %v4694 = vsel %vm2195, %v4688, 0.0
    %v4695 = vsel %vm2195, %v4692, 0.0
    %v4696 = vsel %vm2196, %v4689, 0.0
    %v4697 = vsel %vm2196, %v4693, 0.0
    %4698 = vst [vmem:[#allocation12] sm:$0xff] %v4694
    %4699 = vst [vmem:[#allocation12 + $0x8] sm:$0xff] %v4695
    %4700 = vst [vmem:[#allocation12 + $0x10] sm:$0xff] %v4696
    %4701 = vst [vmem:[#allocation12 + $0x18] sm:$0xff] %v4697
    // Predicated region
    $region42: #{tpu_custom_call.1} parent=1 // pred_check
      _
    $region43: #{tpu_custom_call.1} parent=1 // pred_check_branch
      %4703 = sbr.rel (0) target = $region45
    $region44: #{tpu_custom_call.1} parent=1 // pred_region
      %s4705 = ssub.s32 512, 512
      %4706 = vsyncadd [#allocation6], %s4705
      %s4707 = sshll.u32 [#allocation12], 4
      %s4708 = int_to_ptr.vmem [resolvable:$true] %s4707
      %4713 = dma.vmem_to_hbm [thread:$0]  %s4708, 512, %s6, [#allocation6], 256, 256, 16
    $region45: #{tpu_custom_call.1} parent=1 // pred_fallthru
      _
    // Predicated region
    $region46: #{tpu_custom_call.1} parent=1 // pred_check
      _
    $region47: #{tpu_custom_call.1} parent=1 // pred_check_branch
      %4715 = sbr.rel (0) target = $region49
    $region48: #{tpu_custom_call.1} parent=1 // pred_region
      %4716 = dma.done [#allocation6], 512
    $region49: #{tpu_custom_call.1} parent=1 // pred_fallthru
      _
    %4717 = vsyncpa [#allocation5], 1
    %4718 = vsyncpa [#allocation8], 1
    %4719 = vsyncpa [#allocation11], 1
    %4720 = vsyncpa [#allocation6], 1

</llo_original>
